<compile_context>
chip_gen: v6e
topology: v6e:2x2x1
jax: 0.10.0
libtpu: 0.0.40
codegen_flags: <defaults>
</compile_context>

<pallas_src>
import functools
import math

import jax
import jax.numpy as jnp
from jax.experimental import pallas as pl
from jax.experimental.pallas import tpu as pltpu


# ----------------------------------------------------------------------------
# Pallas kernel: recurrent (h-dependent) part of the DCGRU cell.
# Grid = (B//bb, T); hidden state carried across the T ("arbitrary") axis.
# ----------------------------------------------------------------------------
def dcgru_recurrent_kernel(xs_ref, p_ref, wzr_ref, wc_ref, out_ref, h_scr,
                           *, K, BH):
    # xs_ref : (1, 1, N, 3*BH)  packed x-side pre-activations (+bias);
    #                           lanes = [z | r | c], each (batch, H)
    # p_ref  : (K*N, N)         all K supports stacked along rows (resident)
    # wzr_ref: (K, BH, 2*BH)    h-side gate weights, block-diag over the bb
    #                           lane-packed batches, output lanes [z | r]
    # wc_ref : (K, BH, BH)      h-side candidate weights, block-diag over batches
    # out_ref: (1, 1, N, BH)    h_t for this (batch-block, t)
    # h_scr  : (N, BH) f32      carried hidden state for this batch block
    t = pl.program_id(1)

    @pl.when(t == 0)
    def _init():
        h_scr[...] = jnp.zeros_like(h_scr)

    N = h_scr.shape[0]
    cdt = p_ref.dtype                       # compute dtype (f32 or bf16)

    h32 = h_scr[...]                        # (N, BH) f32 carry
    h = h32.astype(cdt)
    xs = xs_ref[0, 0]                       # (N, 3*BH)

    # ---- update / reset gates ------------------------------------------------
    # All K supports applied to all bb batches with ONE MXU dot.
    ph = jnp.dot(p_ref[...], h, preferred_element_type=jnp.float32)   # (K*N, BH)
    ph = ph.astype(cdt)

    g_acc = xs[:, :2 * BH].astype(jnp.float32)        # x-side [z | r] terms
    for k in range(K):                                 # K small & static
        g_acc = g_acc + jnp.dot(ph[k * N:(k + 1) * N], wzr_ref[k],
                                preferred_element_type=jnp.float32)
    z = jax.nn.sigmoid(g_acc[:, :BH])                  # (N, BH)
    r = jax.nn.sigmoid(g_acc[:, BH:])                  # (N, BH)

    # ---- candidate -----------------------------------------------------------
    rh = (r * h32).astype(cdt)
    prh = jnp.dot(p_ref[...], rh, preferred_element_type=jnp.float32)  # (K*N, BH)
    prh = prh.astype(cdt)

    c_acc = xs[:, 2 * BH:].astype(jnp.float32)         # x-side candidate term
    for k in range(K):
        c_acc = c_acc + jnp.dot(prh[k * N:(k + 1) * N], wc_ref[k],
                                preferred_element_type=jnp.float32)
    cand = jnp.tanh(c_acc)

    # ---- GRU state update ----------------------------------------------------
    h_new = (1.0 - z) * h32 + z * cand
    h_scr[...] = h_new
    out_ref[0, 0] = h_new.astype(out_ref.dtype)


# ----------------------------------------------------------------------------
# One DCGRU layer: hoisted (non-recurrent) x-side projection + one pallas_call
# over the whole (B//bb, T) grid.
# ----------------------------------------------------------------------------
def dcgru_layer(P, x_seq_l, Wg, bg, Wc, bc, *, K, hidden_dim, compute_dtype):
    B, T, N, Cin = x_seq_l.shape
    H = hidden_dim
    F = Cin + H
    cdt = compute_dtype

    # batch-blocking factor: pack bb batches along lanes so bb*H ~ 128
    bb = math.gcd(B, max(1, 128 // H)) if H < 128 else 1
    Bb = B // bb
    BH = bb * H

    # Split GCN weights into x-side / h-side blocks per support k.
    # (row layout of W is [k, feature] with features ordered [x | h]).
    Wg3 = Wg.reshape(K, F, 2 * H)
    Wc3 = Wc.reshape(K, F, H)
    Wzx, Wrx = Wg3[:, :Cin, :H], Wg3[:, :Cin, H:]      # (K, Cin, H)
    Wzh, Wrh = Wg3[:, Cin:, :H], Wg3[:, Cin:, H:]      # (K, H, H)
    Wcx, Wch = Wc3[:, :Cin, :], Wc3[:, Cin:, :]        # (K, Cin, H), (K, H, H)
    bz, br = bg[:H], bg[H:]

    # Merged x-side weight/bias (output lanes ordered [z | r | c]).
    Wx_all = jnp.concatenate([Wzx, Wrx, Wcx], axis=-1)  # (K, Cin, 3H)
    b_all = jnp.concatenate([bz, br, bc])               # (3H,)

    # ---- hoisted x-side GCN projection for ALL (B, T), single stream ---------
    prec = jax.lax.Precision.HIGHEST if cdt == jnp.float32 else None
    Px = jnp.einsum('knm,btmc->btknc', P, x_seq_l, precision=prec)   # (B,T,K,N,Cin)
    xs = jnp.einsum('btknc,kcg->btng', Px, Wx_all, precision=prec) + b_all  # (B,T,N,3H)

    # Pack to kernel layout (B//bb, T, N, 3*bb*H), lane order (gate, batch, H).
    xs_p = xs.reshape(Bb, bb, T, N, 3, H).transpose(0, 2, 3, 4, 1, 5)
    xs_p = xs_p.reshape(Bb, T, N, 3 * BH).astype(cdt)

    # Block-diagonal (over the bb lane-packed batches) h-side weights.
    eye_bb = jnp.eye(bb, dtype=jnp.float32)

    def _bd(W):  # (K, H, Ho) -> (K, bb*H, bb*Ho)
        Ho = W.shape[-1]
        return jnp.einsum('ab,kij->kaibj', eye_bb, W).reshape(K, bb * H, bb * Ho)

    Wzr_bd = jnp.concatenate([_bd(Wzh), _bd(Wrh)], axis=-1)   # (K, BH, 2BH)
    Wc_bd = _bd(Wch)                                          # (K, BH, BH)

    kernel = functools.partial(dcgru_recurrent_kernel, K=K, BH=BH)
    h_seq_p = pl.pallas_call(
        kernel,
        out_shape=jax.ShapeDtypeStruct((Bb, T, N, BH), cdt),
        grid=(Bb, T),
        in_specs=[
            pl.BlockSpec((1, 1, N, 3 * BH), lambda b, t: (b, t, 0, 0)),  # xs (streamed)
            pl.BlockSpec((K * N, N), lambda b, t: (0, 0)),               # P  (resident)
            pl.BlockSpec((K, BH, 2 * BH), lambda b, t: (0, 0, 0)),       # Wzr (resident)
            pl.BlockSpec((K, BH, BH), lambda b, t: (0, 0, 0)),           # Wc  (resident)
        ],
        out_specs=pl.BlockSpec((1, 1, N, BH), lambda b, t: (b, t, 0, 0)),
        scratch_shapes=[pltpu.VMEM((N, BH), jnp.float32)],
        compiler_params=pltpu.CompilerParams(
            dimension_semantics=("parallel", "arbitrary")),
    )(xs_p,
      P.reshape(K * N, N).astype(cdt),
      Wzr_bd.astype(cdt),
      Wc_bd.astype(cdt))

    # Unpack (B//bb, T, N, bb*H) -> (B, T, N, H).
    h_seq = h_seq_p.reshape(Bb, T, N, bb, H).transpose(0, 3, 1, 2, 4)
    return h_seq.reshape(B, T, N, H)


# ----------------------------------------------------------------------------
# Parameter init (deterministic, xavier-normal like the PyTorch module).
# ----------------------------------------------------------------------------
def init_params(key, *, input_dim, hidden_dims, K):
    params = []
    cur_in = input_dim
    for H in hidden_dims:
        F = cur_in + H
        k1, k2, key = jax.random.split(key, 3)
        std_g = (2.0 / (K * F + 2 * H)) ** 0.5
        std_c = (2.0 / (K * F + H)) ** 0.5
        Wg = std_g * jax.random.normal(k1, (K * F, 2 * H), jnp.float32)
        bg = jnp.zeros((2 * H,), jnp.float32)
        Wc = std_c * jax.random.normal(k2, (K * F, H), jnp.float32)
        bc = jnp.zeros((H,), jnp.float32)
        params.append((Wg, bg, Wc, bc))
        cur_in = H
    return params


# ----------------------------------------------------------------------------
# Encoder forward (return_all_layers=False).
# ----------------------------------------------------------------------------
def dcgru_encoder_forward(P, x_seq, params, hidden_dims, K,
                          compute_dtype=jnp.float32):
    in_seq = x_seq
    out_last, h_last = None, None
    for l, (Wg, bg, Wc, bc) in enumerate(params):
        in_seq = dcgru_layer(P, in_seq, Wg, bg, Wc, bc,
                             K=K, hidden_dim=hidden_dims[l],
                             compute_dtype=compute_dtype)
        out_last = in_seq
        h_last = in_seq[:, -1]
    return [out_last], [h_last]


# ----------------------------------------------------------------------------
# Pure-JAX reference (mirrors the PyTorch math) for the correctness check.
# ----------------------------------------------------------------------------
def cell_ref(P, x_t, h, Wg, bg, Wc, bc, K, H):
    xh = jnp.concatenate([x_t, h], axis=-1)
    sup = jnp.concatenate([jnp.einsum('ij,bjp->bip', P[k], xh)
                           for k in range(K)], axis=-1)
    gate = jnp.einsum('bip,pq->biq', sup, Wg) + bg
    z, r = jax.nn.sigmoid(gate[..., :H]), jax.nn.sigmoid(gate[..., H:])
    cin = jnp.concatenate([x_t, r * h], axis=-1)
    supc = jnp.concatenate([jnp.einsum('ij,bjp->bip', P[k], cin)
                            for k in range(K)], axis=-1)
    cand = jnp.tanh(jnp.einsum('bip,pq->biq', supc, Wc) + bc)
    return (1.0 - z) * h + z * cand


def encoder_ref(P, x_seq, params, hidden_dims, K):
    B, T, N, _ = x_seq.shape
    in_seq = x_seq
    for l, (Wg, bg, Wc, bc) in enumerate(params):
        H = hidden_dims[l]
        h = jnp.zeros((B, N, H), jnp.float32)
        outs = []
        for t in range(T):
            h = cell_ref(P, in_seq[:, t], h, Wg, bg, Wc, bc, K, H)
            outs.append(h)
        in_seq = jnp.stack(outs, axis=1)
    return in_seq, h


if __name__ == "__main__":
    # Full-precision XLA matmuls so the f32 reference comparison is tight.
    jax.config.update("jax_default_matmul_precision", "highest")

    # Small, module-consistent shapes (B chosen so the bb=4 batch-lane block
    # gives 128-lane tiles for H=32).
    B, T, N, C = 8, 8, 16, 4        # batch, seq, num_nodes, input_dim
    K = 3                           # number of support matrices
    hidden_dims = (32, 32)          # num_layers = 2

    key = jax.random.PRNGKey(0)
    kP, kx, kp = jax.random.split(key, 3)
    P = jax.random.uniform(kP, (K, N, N), jnp.float32)
    P = P / jnp.sum(P, axis=-1, keepdims=True)        # row-normalized supports
    x_seq = jax.random.normal(kx, (B, T, N, C), jnp.float32)
    params = init_params(kp, input_dim=C, hidden_dims=hidden_dims, K=K)

    # ---- f32 path ------------------------------------------------------------
    fwd_f32 = jax.jit(functools.partial(
        dcgru_encoder_forward, hidden_dims=hidden_dims, K=K,
        compute_dtype=jnp.float32))
    out_lst, h_lst = fwd_f32(P, x_seq, params)
    out_seq = jax.block_until_ready(out_lst[-1])
    h_t = jax.block_until_ready(h_lst[-1])

    ref_out, ref_h = encoder_ref(P, x_seq, params, hidden_dims, K)
    assert out_seq.shape == (B, T, N, hidden_dims[-1])
    assert h_t.shape == (B, N, hidden_dims[-1])
    assert jnp.allclose(out_seq, ref_out, atol=1e-3, rtol=1e-3)
    assert jnp.allclose(h_t, ref_h, atol=1e-3, rtol=1e-3)

    # ---- bf16-operand path (v6e / v7x MXU-native), f32 accumulation ----------
    fwd_bf16 = jax.jit(functools.partial(
        dcgru_encoder_forward, hidden_dims=hidden_dims, K=K,
        compute_dtype=jnp.bfloat16))
    out_lst_bf, h_lst_bf = fwd_bf16(P, x_seq, params)
    out_bf = jax.block_until_ready(out_lst_bf[-1]).astype(jnp.float32)
    h_bf = jax.block_until_ready(h_lst_bf[-1]).astype(jnp.float32)
    assert jnp.allclose(out_bf, ref_out, atol=1e-1, rtol=1e-1)
    assert jnp.allclose(h_bf, ref_h, atol=1e-1, rtol=1e-1)

    print("KERNEL_OK")
</pallas_src>

<mosaic_0001>
module attributes {stable_mosaic.version = 11 : i64} {
  func.func @dcgru_recurrent_kernel(%arg0: i32, %arg1: i32, %arg2: memref<1x1x16x384xf32, #tpu.memory_space<vmem>>, %arg3: memref<48x16xf32, #tpu.memory_space<vmem>>, %arg4: memref<3x128x256xf32, #tpu.memory_space<vmem>>, %arg5: memref<3x128x128xf32, #tpu.memory_space<vmem>>, %arg6: memref<1x1x16x128xf32, #tpu.memory_space<vmem>>, %arg7: memref<16x128xf32, #tpu.memory_space<vmem>>) attributes {dimension_semantics = [#tpu.dimension_semantics<parallel>, #tpu.dimension_semantics<arbitrary>], iteration_bounds = array<i64: 2, 8>, scalar_prefetch = 0 : i64, scratch_operands = 1 : i64, tpu.core_type = #tpu.core_type<tc>, window_params = [{transform_indices = @transform_0, window_bounds = array<i64: 1, 1, 16, 384>}, {pipeline_mode = #tpu.pipeline_mode<synchronous>, transform_indices = @transform_1, window_bounds = array<i64: 48, 16>}, {pipeline_mode = #tpu.pipeline_mode<synchronous>, transform_indices = @transform_2, window_bounds = array<i64: 3, 128, 256>}, {pipeline_mode = #tpu.pipeline_mode<synchronous>, transform_indices = @transform_3, window_bounds = array<i64: 3, 128, 128>}, {transform_indices = @transform_4, window_bounds = array<i64: 1, 1, 16, 128>}]} {
    %c0_i32 = arith.constant 0 : i32
    %0 = arith.cmpi eq, %arg1, %c0_i32 : i32
    %1 = arith.extui %0 : i1 to i32
    %c0_i32_0 = arith.constant 0 : i32
    %2 = arith.cmpi ne, %1, %c0_i32_0 : i32
    scf.if %2 {
      %cst_42 = arith.constant 0.000000e+00 : f32
      %65 = vector.broadcast %cst_42 : f32 to vector<16x128xf32>
      %c0_43 = arith.constant 0 : index
      %c0_44 = arith.constant 0 : index
      %66 = vector.load %arg7[%c0_43, %c0_44] : memref<16x128xf32, #tpu.memory_space<vmem>>, vector<16x128xf32>
      tpu.vector_store %arg7[%c0_43, %c0_44], %65 {strides = array<i32>} : memref<16x128xf32, #tpu.memory_space<vmem>>, vector<16x128xf32>,
    } else {
    }
    %c0 = arith.constant 0 : index
    %c0_1 = arith.constant 0 : index
    %3 = vector.load %arg7[%c0, %c0_1] : memref<16x128xf32, #tpu.memory_space<vmem>>, vector<16x128xf32>
    %c0_2 = arith.constant 0 : index
    %c0_3 = arith.constant 0 : index
    %c0_4 = arith.constant 0 : index
    %c0_5 = arith.constant 0 : index
    %4 = vector.load %arg2[%c0_2, %c0_3, %c0_4, %c0_5] : memref<1x1x16x384xf32, #tpu.memory_space<vmem>>, vector<1x1x16x384xf32>
    %5 = vector.shape_cast %4 : vector<1x1x16x384xf32> to vector<16x384xf32>
    %c0_6 = arith.constant 0 : index
    %c0_7 = arith.constant 0 : index
    %6 = vector.load %arg3[%c0_6, %c0_7] : memref<48x16xf32, #tpu.memory_space<vmem>>, vector<48x16xf32>
    %cst = arith.constant dense<0.000000e+00> : vector<48x128xf32>
    %7 = tpu.matmul %6, %3, %cst {dimension_numbers = #tpu.dot_dimension_numbers<[1], [0], [0], [1], [0, 0, 1, 1], [], []>, precision = #tpu.contract_precision<fp32>} : vector<48x16xf32>, vector<16x128xf32>, vector<48x128xf32> -> vector<48x128xf32>
    %8 = vector.extract_strided_slice %5 {offsets = [0, 0], sizes = [16, 256], strides = [1, 1]} : vector<16x384xf32> to vector<16x256xf32>
    %9 = vector.extract_strided_slice %7 {offsets = [0, 0], sizes = [16, 128], strides = [1, 1]} : vector<48x128xf32> to vector<16x128xf32>
    %c0_8 = arith.constant 0 : index
    %c0_9 = arith.constant 0 : index
    %c0_10 = arith.constant 0 : index
    %10 = vector.load %arg4[%c0_8, %c0_9, %c0_10] : memref<3x128x256xf32, #tpu.memory_space<vmem>>, vector<1x128x256xf32>
    %11 = vector.shape_cast %10 : vector<1x128x256xf32> to vector<128x256xf32>
    %cst_11 = arith.constant dense<0.000000e+00> : vector<16x256xf32>
    %12 = tpu.matmul %9, %11, %cst_11 {dimension_numbers = #tpu.dot_dimension_numbers<[1], [0], [0], [1], [0, 0, 1, 1], [], []>, precision = #tpu.contract_precision<fp32>} : vector<16x128xf32>, vector<128x256xf32>, vector<16x256xf32> -> vector<16x256xf32>
    %13 = arith.addf %8, %12 : vector<16x256xf32>
    %14 = vector.extract_strided_slice %7 {offsets = [16, 0], sizes = [16, 128], strides = [1, 1]} : vector<48x128xf32> to vector<16x128xf32>
    %c1 = arith.constant 1 : index
    %c0_12 = arith.constant 0 : index
    %c0_13 = arith.constant 0 : index
    %15 = vector.load %arg4[%c1, %c0_12, %c0_13] : memref<3x128x256xf32, #tpu.memory_space<vmem>>, vector<1x128x256xf32>
    %16 = vector.shape_cast %15 : vector<1x128x256xf32> to vector<128x256xf32>
    %cst_14 = arith.constant dense<0.000000e+00> : vector<16x256xf32>
    %17 = tpu.matmul %14, %16, %cst_14 {dimension_numbers = #tpu.dot_dimension_numbers<[1], [0], [0], [1], [0, 0, 1, 1], [], []>, precision = #tpu.contract_precision<fp32>} : vector<16x128xf32>, vector<128x256xf32>, vector<16x256xf32> -> vector<16x256xf32>
    %18 = arith.addf %13, %17 : vector<16x256xf32>
    %19 = vector.extract_strided_slice %7 {offsets = [32, 0], sizes = [16, 128], strides = [1, 1]} : vector<48x128xf32> to vector<16x128xf32>
    %c2 = arith.constant 2 : index
    %c0_15 = arith.constant 0 : index
    %c0_16 = arith.constant 0 : index
    %20 = vector.load %arg4[%c2, %c0_15, %c0_16] : memref<3x128x256xf32, #tpu.memory_space<vmem>>, vector<1x128x256xf32>
    %21 = vector.shape_cast %20 : vector<1x128x256xf32> to vector<128x256xf32>
    %cst_17 = arith.constant dense<0.000000e+00> : vector<16x256xf32>
    %22 = tpu.matmul %19, %21, %cst_17 {dimension_numbers = #tpu.dot_dimension_numbers<[1], [0], [0], [1], [0, 0, 1, 1], [], []>, precision = #tpu.contract_precision<fp32>} : vector<16x128xf32>, vector<128x256xf32>, vector<16x256xf32> -> vector<16x256xf32>
    %23 = arith.addf %18, %22 : vector<16x256xf32>
    %24 = vector.extract_strided_slice %23 {offsets = [0, 0], sizes = [16, 128], strides = [1, 1]} : vector<16x256xf32> to vector<16x128xf32>
    %25 = arith.negf %24 : vector<16x128xf32>
    %26 = math.exp %25 : vector<16x128xf32>
    %cst_18 = arith.constant 1.000000e+00 : f32
    %27 = vector.broadcast %cst_18 : f32 to vector<16x128xf32>
    %28 = arith.addf %27, %26 : vector<16x128xf32>
    %29 = arith.divf %27, %28 : vector<16x128xf32>
    %30 = vector.extract_strided_slice %23 {offsets = [0, 128], sizes = [16, 128], strides = [1, 1]} : vector<16x256xf32> to vector<16x128xf32>
    %31 = arith.negf %30 : vector<16x128xf32>
    %32 = math.exp %31 : vector<16x128xf32>
    %cst_19 = arith.constant 1.000000e+00 : f32
    %33 = vector.broadcast %cst_19 : f32 to vector<16x128xf32>
    %34 = arith.addf %33, %32 : vector<16x128xf32>
    %35 = arith.divf %33, %34 : vector<16x128xf32>
    %36 = arith.mulf %35, %3 : vector<16x128xf32>
    %c0_20 = arith.constant 0 : index
    %c0_21 = arith.constant 0 : index
    %37 = vector.load %arg3[%c0_20, %c0_21] : memref<48x16xf32, #tpu.memory_space<vmem>>, vector<48x16xf32>
    %cst_22 = arith.constant dense<0.000000e+00> : vector<48x128xf32>
    %38 = tpu.matmul %37, %36, %cst_22 {dimension_numbers = #tpu.dot_dimension_numbers<[1], [0], [0], [1], [0, 0, 1, 1], [], []>, precision = #tpu.contract_precision<fp32>} : vector<48x16xf32>, vector<16x128xf32>, vector<48x128xf32> -> vector<48x128xf32>
    %39 = vector.extract_strided_slice %5 {offsets = [0, 256], sizes = [16, 128], strides = [1, 1]} : vector<16x384xf32> to vector<16x128xf32>
    %40 = vector.extract_strided_slice %38 {offsets = [0, 0], sizes = [16, 128], strides = [1, 1]} : vector<48x128xf32> to vector<16x128xf32>
    %c0_23 = arith.constant 0 : index
    %c0_24 = arith.constant 0 : index
    %c0_25 = arith.constant 0 : index
    %41 = vector.load %arg5[%c0_23, %c0_24, %c0_25] : memref<3x128x128xf32, #tpu.memory_space<vmem>>, vector<1x128x128xf32>
    %42 = vector.shape_cast %41 : vector<1x128x128xf32> to vector<128x128xf32>
    %cst_26 = arith.constant dense<0.000000e+00> : vector<16x128xf32>
    %43 = tpu.matmul %40, %42, %cst_26 {dimension_numbers = #tpu.dot_dimension_numbers<[1], [0], [0], [1], [0, 0, 1, 1], [], []>, precision = #tpu.contract_precision<fp32>} : vector<16x128xf32>, vector<128x128xf32>, vector<16x128xf32> -> vector<16x128xf32>
    %44 = arith.addf %39, %43 : vector<16x128xf32>
    %45 = vector.extract_strided_slice %38 {offsets = [16, 0], sizes = [16, 128], strides = [1, 1]} : vector<48x128xf32> to vector<16x128xf32>
    %c1_27 = arith.constant 1 : index
    %c0_28 = arith.constant 0 : index
    %c0_29 = arith.constant 0 : index
    %46 = vector.load %arg5[%c1_27, %c0_28, %c0_29] : memref<3x128x128xf32, #tpu.memory_space<vmem>>, vector<1x128x128xf32>
    %47 = vector.shape_cast %46 : vector<1x128x128xf32> to vector<128x128xf32>
    %cst_30 = arith.constant dense<0.000000e+00> : vector<16x128xf32>
    %48 = tpu.matmul %45, %47, %cst_30 {dimension_numbers = #tpu.dot_dimension_numbers<[1], [0], [0], [1], [0, 0, 1, 1], [], []>, precision = #tpu.contract_precision<fp32>} : vector<16x128xf32>, vector<128x128xf32>, vector<16x128xf32> -> vector<16x128xf32>
    %49 = arith.addf %44, %48 : vector<16x128xf32>
    %50 = vector.extract_strided_slice %38 {offsets = [32, 0], sizes = [16, 128], strides = [1, 1]} : vector<48x128xf32> to vector<16x128xf32>
    %c2_31 = arith.constant 2 : index
    %c0_32 = arith.constant 0 : index
    %c0_33 = arith.constant 0 : index
    %51 = vector.load %arg5[%c2_31, %c0_32, %c0_33] : memref<3x128x128xf32, #tpu.memory_space<vmem>>, vector<1x128x128xf32>
    %52 = vector.shape_cast %51 : vector<1x128x128xf32> to vector<128x128xf32>
    %cst_34 = arith.constant dense<0.000000e+00> : vector<16x128xf32>
    %53 = tpu.matmul %50, %52, %cst_34 {dimension_numbers = #tpu.dot_dimension_numbers<[1], [0], [0], [1], [0, 0, 1, 1], [], []>, precision = #tpu.contract_precision<fp32>} : vector<16x128xf32>, vector<128x128xf32>, vector<16x128xf32> -> vector<16x128xf32>
    %54 = arith.addf %49, %53 : vector<16x128xf32>
    %55 = math.tanh %54 : vector<16x128xf32>
    %cst_35 = arith.constant 1.000000e+00 : f32
    %56 = vector.broadcast %cst_35 : f32 to vector<16x128xf32>
    %57 = arith.subf %56, %29 : vector<16x128xf32>
    %58 = arith.mulf %57, %3 : vector<16x128xf32>
    %59 = arith.mulf %29, %55 : vector<16x128xf32>
    %60 = arith.addf %58, %59 : vector<16x128xf32>
    %c0_36 = arith.constant 0 : index
    %c0_37 = arith.constant 0 : index
    %61 = vector.load %arg7[%c0_36, %c0_37] : memref<16x128xf32, #tpu.memory_space<vmem>>, vector<16x128xf32>
    tpu.vector_store %arg7[%c0_36, %c0_37], %60 {strides = array<i32>} : memref<16x128xf32, #tpu.memory_space<vmem>>, vector<16x128xf32>,
    %c0_38 = arith.constant 0 : index
    %c0_39 = arith.constant 0 : index
    %c0_40 = arith.constant 0 : index
    %c0_41 = arith.constant 0 : index
    %62 = vector.load %arg6[%c0_38, %c0_39, %c0_40, %c0_41] : memref<1x1x16x128xf32, #tpu.memory_space<vmem>>, vector<1x1x16x128xf32>
    %63 = vector.shape_cast %62 : vector<1x1x16x128xf32> to vector<16x128xf32>
    %64 = vector.shape_cast %60 : vector<16x128xf32> to vector<1x1x16x128xf32>
    tpu.vector_store %arg6[%c0_38, %c0_39, %c0_40, %c0_41], %64 {strides = array<i32>} : memref<1x1x16x128xf32, #tpu.memory_space<vmem>>, vector<1x1x16x128xf32>,
    return
  }
  func.func @transform_0(%arg0: i32, %arg1: i32) -> (i32, i32, i32, i32) {
    %c0_i32 = arith.constant 0 : i32
    %c0_i32_0 = arith.constant 0 : i32
    %c0_i32_1 = arith.constant 0 : i32
    return %arg0, %arg1, %c0_i32, %c0_i32_0 : i32, i32, i32, i32
  }
  func.func @transform_1(%arg0: i32, %arg1: i32) -> (i32, i32) {
    %c0_i32 = arith.constant 0 : i32
    %c0_i32_0 = arith.constant 0 : i32
    %c0_i32_1 = arith.constant 0 : i32
    return %c0_i32, %c0_i32_0 : i32, i32
  }
  func.func @transform_2(%arg0: i32, %arg1: i32) -> (i32, i32, i32) {
    %c0_i32 = arith.constant 0 : i32
    %c0_i32_0 = arith.constant 0 : i32
    %c0_i32_1 = arith.constant 0 : i32
    %c0_i32_2 = arith.constant 0 : i32
    return %c0_i32, %c0_i32_0, %c0_i32_1 : i32, i32, i32
  }
  func.func @transform_3(%arg0: i32, %arg1: i32) -> (i32, i32, i32) {
    %c0_i32 = arith.constant 0 : i32
    %c0_i32_0 = arith.constant 0 : i32
    %c0_i32_1 = arith.constant 0 : i32
    %c0_i32_2 = arith.constant 0 : i32
    return %c0_i32, %c0_i32_0, %c0_i32_1 : i32, i32, i32
  }
  func.func @transform_4(%arg0: i32, %arg1: i32) -> (i32, i32, i32, i32) {
    %c0_i32 = arith.constant 0 : i32
    %c0_i32_0 = arith.constant 0 : i32
    %c0_i32_1 = arith.constant 0 : i32
    return %arg0, %arg1, %c0_i32, %c0_i32_0 : i32, i32, i32, i32
  }
}

</mosaic_0001>

<llo_original>
// kernel: dcgru_encoder_forward.2
$region0: #{dcgru_encoder_forward.2}
  #allocation0 [shape = 'u32[]', space=smem, size = 0x4, offset = 0x4, fixed_abs, tag = 'smem constant byte address 0x4 - core index']
  #allocation1 [shape = 'u32[144,128]{1,0:T(1,128)}', space=vmem, size = 0x12000, scoped, tag = 'internal scratch']
  #allocation2 [shape = 'f32[16,128]{1,0:T(8,128)}', space=vmem, size = 0x2000, scoped, tag = 'scratch operand']
  %s0 = inlined_call_operand.vmem [shape: f32[2,8,16,384], index: 0, kind: input, shape index: {}]
  %s1 = inlined_call_operand.vmem [shape: f32[48,16], index: 1, kind: input, shape index: {}]
  %s2 = inlined_call_operand.vmem [shape: f32[3,128,256], index: 2, kind: input, shape index: {}]
  %s3 = inlined_call_operand.vmem [shape: f32[3,128,128], index: 3, kind: input, shape index: {}]
  %s4 = inlined_call_operand.vmem [shape: f32[2,8,16,128], index: 4, kind: output, shape index: {}]
  %s5 = sld [smem:[#allocation0]]
  $region53: #{dcgru_encoder_forward.2} parent=0
    _
  %s7 = ssub.s32 1, %s5
  %s8 = scalar_select 0, %s7, %s5
  loop: start=0, step=1, limit=18
  $region2: #{dcgru_encoder_forward.2} parent=0 // loop_pre_header
    _
  $region3: #{dcgru_encoder_forward.2} parent=0 // loop_header
    %s10 = sphi 0, %s14
    %p11 = scmp.ge.s32.totalorder %s10, 18
    %s17 = sphi 0, %s29
    %s18 = sphi 0, %s25
    %s19 = sphi 0, %s17
    %s20 = sphi 0, %s18
    %s21 = sphi 0, %s19
    %s22 = sphi 0, %s20
    %s34 = sphi 0, %s36
    %s37 = sphi 0, %s34
    %s38 = sphi 0, %s37
    %s54 = sphi 0, %s38
    %s58 = sphi 0, %s58
    %s60 = sphi 0, %s58
    %s61 = sphi 0, %s60
    %s75 = sphi 0, %s61
    %s79 = sphi 0, %s79
    %s81 = sphi 0, %s79
    %s82 = sphi 0, %s81
    %s96 = sphi 0, %s82
    %s100 = sphi 0, %s100
    %s102 = sphi 0, %s100
    %s103 = sphi 0, %s102
    %s117 = sphi 0, %s103
    %s125 = sphi 0, %s127
    %s128 = sphi 0, %s125
    %s129 = sphi 0, %s128
    %s145 = sphi 0, %s129
  $region4: #{dcgru_encoder_forward.2} parent=0 // loop_header_branch
    %13 = sbr.rel (%p11) target = $region8
  $region5: #{dcgru_encoder_forward.2} parent=0 // loop_body
    %s15 = ssub.s32 %s10, 1
    %s16 = ssub.s32 %s10, 2
    %s23 = sadd.s32 1, %s18
    %p24 = scmp.ge.s32.totalorder %s23, 8
    %s25 = scalar_select %p24, 0, %s23
    %s26 = sadd.s32 1, %s17
    %s27 = scalar_select %p24, %s26, %s17
    %p28 = scmp.ge.s32.totalorder %s27, 2
    %s29 = scalar_select %p28, 0, %s27
    %s30 = ssub.s32 %s17, %s29
    %s31 = ssub.s32 %s18, %s25
    %s32 = sor.u32 %s30, %s31
    %p33 = scmp.eq.s32.totalorder %s32, 0
    %s35 = sadd.s32 %s34, 1
    %s36 = scalar_select %p33, %s34, %s35
    %p39 = pneg %p33
    %p40 = scmp.eq.s32.totalorder %s10, 15
    %p41 = por %p39, %p40
    %p42 = scmp.ne.s32.totalorder %s34, %s37
    %p43 = scmp.eq.s32.totalorder %s10, 0
    %p44 = por %p42, %p43
    %p45 = scmp.ne.s32.totalorder %s34, %s37
    %p46 = scmp.eq.s32.totalorder %s15, 15
    %p47 = por %p45, %p46
    %p48 = scmp.ne.s32.totalorder %s37, %s38
    %p49 = scmp.eq.s32.totalorder %s15, 0
    %p50 = por %p48, %p49
    %p51 = scmp.ne.s32.totalorder %s37, %s38
    %p52 = scmp.eq.s32.totalorder %s16, 15
    %p53 = por %p51, %p52
    %p55 = scmp.ne.s32.totalorder %s38, %s54
    %p56 = scmp.eq.s32.totalorder %s16, 0
    %p57 = por %p55, %p56
    %s59 = sadd.s32 %s58, 1
    %p62 = scmp.eq.s32.totalorder %s10, 15
    %p63 = scmp.ne.s32.totalorder %s58, %s60
    %p64 = scmp.eq.s32.totalorder %s10, 0
    %p65 = por %p63, %p64
    %p66 = scmp.ne.s32.totalorder %s58, %s60
    %p67 = scmp.eq.s32.totalorder %s15, 15
    %p68 = por %p66, %p67
    %p69 = scmp.ne.s32.totalorder %s60, %s61
    %p70 = scmp.eq.s32.totalorder %s15, 0
    %p71 = por %p69, %p70
    %p72 = scmp.ne.s32.totalorder %s60, %s61
    %p73 = scmp.eq.s32.totalorder %s16, 15
    %p74 = por %p72, %p73
    %p76 = scmp.ne.s32.totalorder %s61, %s75
    %p77 = scmp.eq.s32.totalorder %s16, 0
    %p78 = por %p76, %p77
    %s80 = sadd.s32 %s79, 1
    %p83 = scmp.eq.s32.totalorder %s10, 15
    %p84 = scmp.ne.s32.totalorder %s79, %s81
    %p85 = scmp.eq.s32.totalorder %s10, 0
    %p86 = por %p84, %p85
    %p87 = scmp.ne.s32.totalorder %s79, %s81
    %p88 = scmp.eq.s32.totalorder %s15, 15
    %p89 = por %p87, %p88
    %p90 = scmp.ne.s32.totalorder %s81, %s82
    %p91 = scmp.eq.s32.totalorder %s15, 0
    %p92 = por %p90, %p91
    %p93 = scmp.ne.s32.totalorder %s81, %s82
    %p94 = scmp.eq.s32.totalorder %s16, 15
    %p95 = por %p93, %p94
    %p97 = scmp.ne.s32.totalorder %s82, %s96
    %p98 = scmp.eq.s32.totalorder %s16, 0
    %p99 = por %p97, %p98
    %s101 = sadd.s32 %s100, 1
    %p104 = scmp.eq.s32.totalorder %s10, 15
    %p105 = scmp.ne.s32.totalorder %s100, %s102
    %p106 = scmp.eq.s32.totalorder %s10, 0
    %p107 = por %p105, %p106
    %p108 = scmp.ne.s32.totalorder %s100, %s102
    %p109 = scmp.eq.s32.totalorder %s15, 15
    %p110 = por %p108, %p109
    %p111 = scmp.ne.s32.totalorder %s102, %s103
    %p112 = scmp.eq.s32.totalorder %s15, 0
    %p113 = por %p111, %p112
    %p114 = scmp.ne.s32.totalorder %s102, %s103
    %p115 = scmp.eq.s32.totalorder %s16, 15
    %p116 = por %p114, %p115
    %p118 = scmp.ne.s32.totalorder %s103, %s117
    %p119 = scmp.eq.s32.totalorder %s16, 0
    %p120 = por %p118, %p119
    %s121 = ssub.s32 %s17, %s29
    %s122 = ssub.s32 %s18, %s25
    %s123 = sor.u32 %s121, %s122
    %p124 = scmp.eq.s32.totalorder %s123, 0
    %s126 = sadd.s32 %s125, 1
    %s127 = scalar_select %p124, %s125, %s126
    %p130 = pneg %p124
    %p131 = scmp.eq.s32.totalorder %s10, 15
    %p132 = por %p130, %p131
    %p133 = scmp.ne.s32.totalorder %s125, %s128
    %p134 = scmp.eq.s32.totalorder %s10, 0
    %p135 = por %p133, %p134
    %p136 = scmp.ne.s32.totalorder %s125, %s128
    %p137 = scmp.eq.s32.totalorder %s15, 15
    %p138 = por %p136, %p137
    %p139 = scmp.ne.s32.totalorder %s128, %s129
    %p140 = scmp.eq.s32.totalorder %s15, 0
    %p141 = por %p139, %p140
    %p142 = scmp.ne.s32.totalorder %s128, %s129
    %p143 = scmp.eq.s32.totalorder %s16, 15
    %p144 = por %p142, %p143
    %p146 = scmp.ne.s32.totalorder %s129, %s145
    %p147 = scmp.eq.s32.totalorder %s16, 0
    %p148 = por %p146, %p147
    %p149 = scmp.le.s32.totalorder 1, %s10
    %p150 = scmp.lt.s32.totalorder %s10, 17
    %p151 = pnand %p149, %p150
    %p152 = pneg %p151
    // Predicated region
    $region9: #{dcgru_encoder_forward.2} parent=5 // pred_check
      _
    $region10: #{dcgru_encoder_forward.2} parent=5 // pred_check_branch
      %154 = sbr.rel (%p151) target = $region12
    $region11: #{dcgru_encoder_forward.2} parent=5 // pred_region
      %s155 = ssub.s32 %s10, 1
      // Predicated region
      $region13: #{dcgru_encoder_forward.2} parent=11 // pred_check
        %p156 = pneg %p71
      $region14: #{dcgru_encoder_forward.2} parent=11 // pred_check_branch
        %158 = sbr.rel (%p156) target = $region16
      $region15: #{dcgru_encoder_forward.2} parent=11 // pred_region
        _
      $region16: #{dcgru_encoder_forward.2} parent=11 // pred_fallthru
        _
      // Predicated region
      $region17: #{dcgru_encoder_forward.2} parent=11 // pred_check
        %p159 = pneg %p92
      $region18: #{dcgru_encoder_forward.2} parent=11 // pred_check_branch
        %161 = sbr.rel (%p159) target = $region20
      $region19: #{dcgru_encoder_forward.2} parent=11 // pred_region
        _
      $region20: #{dcgru_encoder_forward.2} parent=11 // pred_fallthru
        _
      // Predicated region
      $region21: #{dcgru_encoder_forward.2} parent=11 // pred_check
        %p162 = pneg %p113
      $region22: #{dcgru_encoder_forward.2} parent=11 // pred_check_branch
        %164 = sbr.rel (%p162) target = $region24
      $region23: #{dcgru_encoder_forward.2} parent=11 // pred_region
        _
      $region24: #{dcgru_encoder_forward.2} parent=11 // pred_fallthru
        _
    $region12: #{dcgru_encoder_forward.2} parent=5 // pred_fallthru
      _
    %p165 = scmp.lt.s32.totalorder %s10, 16
    // Predicated region
    $region25: #{dcgru_encoder_forward.2} parent=5 // pred_check
      %p166 = pneg %p165
    $region26: #{dcgru_encoder_forward.2} parent=5 // pred_check_branch
      %168 = sbr.rel (%p166) target = $region28
    $region27: #{dcgru_encoder_forward.2} parent=5 // pred_region
      // Predicated region
      $region29: #{dcgru_encoder_forward.2} parent=27 // pred_check
        %p169 = pneg %p44
      $region30: #{dcgru_encoder_forward.2} parent=27 // pred_check_branch
        %171 = sbr.rel (%p169) target = $region32
      $region31: #{dcgru_encoder_forward.2} parent=27 // pred_region
        %p172 = scmp.lt.s32.totalorder %s17, 1
        %s173 = scalar_select %p172, %s17, 1
        %p174 = scmp.lt.s32.totalorder %s18, 7
        %s175 = scalar_select %p174, %s18, 7
        %s176 = smul.addr %s175, 6
        %s177 = smul.addr %s173, 48
        %s178 = sadd.s32 %s176, %s177
        %s179 = smul.addr %s178, 8
        %s180 = scalar_lea.vmem %s0, %s179
      $region32: #{dcgru_encoder_forward.2} parent=27 // pred_fallthru
        _
    $region28: #{dcgru_encoder_forward.2} parent=5 // pred_fallthru
      _
    %p181 = scmp.le.s32.totalorder 1, %s10
    %p182 = scmp.lt.s32.totalorder %s10, 17
    %p183 = pnand %p181, %p182
    %p184 = pneg %p183
    // Predicated region
    $region33: #{dcgru_encoder_forward.2} parent=5 // pred_check
      _
    $region34: #{dcgru_encoder_forward.2} parent=5 // pred_check_branch
      %186 = sbr.rel (%p183) target = $region36
    $region35: #{dcgru_encoder_forward.2} parent=5 // pred_region
      %s187 = ssub.s32 %s10, 1
      %p188 = scmp.lt.s32.totalorder %s19, 1
      %s189 = scalar_select %p188, %s19, 1
      %p190 = scmp.lt.s32.totalorder %s20, 7
      %s191 = scalar_select %p190, %s20, 7
      %s192 = smul.addr %s191, 6
      %s193 = smul.addr %s189, 48
      %s194 = sadd.s32 %s192, %s193
      %s195 = smul.addr %s194, 8
      %s196 = scalar_lea.vmem %s0, %s195
      %p197 = pneg %p50
      %p198 = pneg %p47
      %p199 = pneg %p71
      %p200 = pneg %p68
      %p201 = pneg %p92
      %p202 = pneg %p89
      %p203 = pneg %p113
      %p204 = pneg %p110
      %p205 = pneg %p141
      %p206 = pneg %p138
      %p207 = scmp.lt.s32.totalorder %s19, 1
      %s208 = scalar_select %p207, %s19, 1
      %p209 = scmp.lt.s32.totalorder %s20, 7
      %s210 = scalar_select %p209, %s20, 7
      %s211 = smul.addr %s210, 2
      %s212 = smul.addr %s208, 16
      %s213 = sadd.s32 %s211, %s212
      %s214 = smul.addr %s213, 8
      %s215 = scalar_lea.vmem %s4, %s214
      %p216 = scmp.lt.s32.totalorder %s19, 1
      %s217 = scalar_select %p216, %s19, 1
      %p218 = scmp.lt.s32.totalorder %s20, 7
      %s219 = scalar_select %p218, %s20, 7
      %s220 = smul.addr %s219, 6
      %s221 = smul.addr %s217, 48
      %s222 = sadd.s32 %s220, %s221
      %s223 = smul.addr %s222, 8
      %s224 = scalar_lea.vmem %s0, %s223
      %p225 = scmp.lt.s32.totalorder %s19, 1
      %s226 = scalar_select %p225, %s19, 1
      %p227 = scmp.lt.s32.totalorder %s20, 7
      %s228 = scalar_select %p227, %s20, 7
      %s229 = smul.addr %s228, 2
      %s230 = smul.addr %s226, 16
      %s231 = sadd.s32 %s229, %s230
      %s232 = smul.addr %s231, 8
      %s233 = scalar_lea.vmem %s4, %s232
      %p234 = scmp.eq.s32.totalorder %s20, 0
      // Predicated region
      $region37: #{dcgru_encoder_forward.2} parent=35 // pred_check
        %p235 = pneg %p234
      $region38: #{dcgru_encoder_forward.2} parent=35 // pred_check_branch
        %237 = sbr.rel (%p235) target = $region40
      $region39: #{dcgru_encoder_forward.2} parent=35 // pred_region
        %238 = vst [vmem:[#allocation2] sm:$0xff] 0.0
        %239 = vst [vmem:[#allocation2 + $0x8] sm:$0xff] 0.0
      $region40: #{dcgru_encoder_forward.2} parent=35 // pred_fallthru
        _
      %v240 = vld [vmem:[#allocation2] sm:$0xff]
      %v241 = vld [vmem:[#allocation2 + $0x8] sm:$0xff]
      %v242 = vld [vmem:[%s224] sm:$0xff]
      %v243 = vld [vmem:[%s224 + $0x8] sm:$0xff]
      %v244 = vld [vmem:[%s224 + $0x10] sm:$0xff]
      %v245 = vld [vmem:[%s224 + $0x18] sm:$0xff]
      %v246 = vld [vmem:[%s224 + $0x20] sm:$0xff]
      %v247 = vld [vmem:[%s224 + $0x28] sm:$0xff]
      %v248 = vld [vmem:[%s1] sm:$0xff]
      %v249 = vld [vmem:[%s1 + $0x8] sm:$0xff]
      %v250 = vld [vmem:[%s1 + $0x10] sm:$0xff]
      %v251 = vld [vmem:[%s1 + $0x18] sm:$0xff]
      %v252 = vld [vmem:[%s1 + $0x20] sm:$0xff]
      %v253 = vld [vmem:[%s1 + $0x28] sm:$0xff]
      %vm254 = vcmask 130048
      %v256 = vsel %vm254, %v248, 0
      %v259 = vsel %vm254, %v249, 0
      %v262 = vsel %vm254, %v250, 0
      %v265 = vsel %vm254, %v251, 0
      %v268 = vsel %vm254, %v252, 0
      %v271 = vsel %vm254, %v253, 0
      %273 = vmatprep.subr.mxu0 0.0
      %274 = vmatpush1.msra.mxu0 0.0
      %275 = vmatprep.subr.mxu0 0.0
      %276 = vmatpush1.msra.mxu0 0.0
      %277 = vmatprep.subr.mxu0 0.0
      %278 = vmatpush1.msra.mxu0 0.0
      %279 = vmatprep.subr.mxu0 0.0
      %280 = vmatpush1.msra.mxu0 0.0
      %281 = vmatprep.subr.mxu0 0.0
      %282 = vmatpush1.msra.mxu0 0.0
      %283 = vmatprep.subr.mxu0 0.0
      %284 = vmatpush1.msra.mxu0 0.0
      %285 = vmatprep.subr.mxu0 0.0
      %286 = vmatpush1.msra.mxu0 0.0
      %287 = vmatprep.subr.mxu0 0.0
      %288 = vmatpush1.msra.mxu0 0.0
      %289 = vmatprep.subr.mxu0 0.0
      %290 = vmatpush1.msra.mxu0 0.0
      %291 = vmatprep.subr.mxu0 0.0
      %292 = vmatpush1.msra.mxu0 0.0
      %293 = vmatprep.subr.mxu0 0.0
      %294 = vmatpush1.msra.mxu0 0.0
      %295 = vmatprep.subr.mxu0 0.0
      %296 = vmatpush1.msra.mxu0 0.0
      %297 = vmatprep.subr.mxu0 0.0
      %298 = vmatpush1.msra.mxu0 0.0
      %299 = vmatprep.subr.mxu0 0.0
      %300 = vmatpush1.msra.mxu0 0.0
      %301 = vmatprep.subr.mxu0 0.0
      %v302 = vand.u32 %v241, 4294901760
      %303 = vmatpush1.msra.mxu0 %v302
      %304 = vmatprep.subr.mxu0 0.0
      %v305 = vand.u32 %v240, 4294901760
      %306 = vmatpush1.msra.mxu0 %v305
      %307 = vmatprep.subr.mxu0 0.0
      %308 = vmatpush2.msra.mxu0 0.0
      %309 = vmatprep.subr.mxu0 0.0
      %310 = vmatpush2.msra.mxu0 0.0
      %311 = vmatprep.subr.mxu0 0.0
      %312 = vmatpush2.msra.mxu0 0.0
      %313 = vmatprep.subr.mxu0 0.0
      %314 = vmatpush2.msra.mxu0 0.0
      %315 = vmatprep.subr.mxu0 0.0
      %316 = vmatpush2.msra.mxu0 0.0
      %317 = vmatprep.subr.mxu0 0.0
      %318 = vmatpush2.msra.mxu0 0.0
      %319 = vmatprep.subr.mxu0 0.0
      %320 = vmatpush2.msra.mxu0 0.0
      %321 = vmatprep.subr.mxu0 0.0
      %322 = vmatpush2.msra.mxu0 0.0
      %323 = vmatprep.subr.mxu0 0.0
      %324 = vmatpush2.msra.mxu0 0.0
      %325 = vmatprep.subr.mxu0 0.0
      %326 = vmatpush2.msra.mxu0 0.0
      %327 = vmatprep.subr.mxu0 0.0
      %328 = vmatpush2.msra.mxu0 0.0
      %329 = vmatprep.subr.mxu0 0.0
      %330 = vmatpush2.msra.mxu0 0.0
      %331 = vmatprep.subr.mxu0 0.0
      %332 = vmatpush2.msra.mxu0 0.0
      %333 = vmatprep.subr.mxu0 0.0
      %334 = vmatpush2.msra.mxu0 0.0
      %335 = vmatprep.subr.mxu0 0.0
      %336 = vmatpush2.msra.mxu0 0.0
      %337 = vmatprep.subr.mxu0 0.0
      %338 = vmatpush2.msra.mxu0 0.0
      %339 = vmatprep.mubr.f32.mxu0 0.0
      %v340 = vand.u32 %v256, 4294901760
      %v341 = vsub.f32 %v256, %v340
      %v342 = vand.u32 %v341, 4294901760
      %v343 = vsub.f32 %v341, %v342
      %v344 = vand.u32 %v343, 4294901760
      %345 = vmatmul.mubr.f32.gmra.mxu0 %v344
      %v346 = vpop.f32.mrf.mxu0
      %v347 = vadd.f32 0.0, %v346
      %v348 = vpop.f32.mrf.mxu0
      %349 = vmatprep.mubr.f32.mxu0 0.0
      %v350 = vand.u32 %v259, 4294901760
      %v351 = vsub.f32 %v259, %v350
      %v352 = vand.u32 %v351, 4294901760
      %v353 = vsub.f32 %v351, %v352
      %v354 = vand.u32 %v353, 4294901760
      %355 = vmatmul.mubr.f32.gmra.mxu0 %v354
      %v356 = vpop.f32.mrf.mxu0
      %v357 = vadd.f32 0.0, %v356
      %v358 = vpop.f32.mrf.mxu0
      %359 = vmatprep.mubr.f32.mxu0 0.0
      %v360 = vand.u32 %v262, 4294901760
      %v361 = vsub.f32 %v262, %v360
      %v362 = vand.u32 %v361, 4294901760
      %v363 = vsub.f32 %v361, %v362
      %v364 = vand.u32 %v363, 4294901760
      %365 = vmatmul.mubr.f32.gmra.mxu0 %v364
      %v366 = vpop.f32.mrf.mxu0
      %v367 = vadd.f32 0.0, %v366
      %v368 = vpop.f32.mrf.mxu0
      %369 = vmatprep.mubr.f32.mxu0 0.0
      %v370 = vand.u32 %v265, 4294901760
      %v371 = vsub.f32 %v265, %v370
      %v372 = vand.u32 %v371, 4294901760
      %v373 = vsub.f32 %v371, %v372
      %v374 = vand.u32 %v373, 4294901760
      %375 = vmatmul.mubr.f32.gmra.mxu0 %v374
      %v376 = vpop.f32.mrf.mxu0
      %v377 = vadd.f32 0.0, %v376
      %v378 = vpop.f32.mrf.mxu0
      %379 = vmatprep.mubr.f32.mxu0 0.0
      %v380 = vand.u32 %v268, 4294901760
      %v381 = vsub.f32 %v268, %v380
      %v382 = vand.u32 %v381, 4294901760
      %v383 = vsub.f32 %v381, %v382
      %v384 = vand.u32 %v383, 4294901760
      %385 = vmatmul.mubr.f32.gmra.mxu0 %v384
      %v386 = vpop.f32.mrf.mxu0
      %v387 = vadd.f32 0.0, %v386
      %v388 = vpop.f32.mrf.mxu0
      %389 = vmatprep.mubr.f32.mxu0 0.0
      %v390 = vand.u32 %v271, 4294901760
      %v391 = vsub.f32 %v271, %v390
      %v392 = vand.u32 %v391, 4294901760
      %v393 = vsub.f32 %v391, %v392
      %v394 = vand.u32 %v393, 4294901760
      %395 = vmatmul.mubr.f32.gmra.mxu0 %v394
      %v396 = vpop.f32.mrf.mxu0
      %v397 = vadd.f32 0.0, %v396
      %v398 = vpop.f32.mrf.mxu0
      %399 = vdwg.mxu0
      %400 = vmatprep.subr.mxu0 0.0
      %401 = vmatpush1.msra.mxu0 0.0
      %402 = vmatprep.subr.mxu0 0.0
      %403 = vmatpush1.msra.mxu0 0.0
      %404 = vmatprep.subr.mxu0 0.0
      %405 = vmatpush1.msra.mxu0 0.0
      %406 = vmatprep.subr.mxu0 0.0
      %407 = vmatpush1.msra.mxu0 0.0
      %408 = vmatprep.subr.mxu0 0.0
      %409 = vmatpush1.msra.mxu0 0.0
      %410 = vmatprep.subr.mxu0 0.0
      %411 = vmatpush1.msra.mxu0 0.0
      %412 = vmatprep.subr.mxu0 0.0
      %413 = vmatpush1.msra.mxu0 0.0
      %414 = vmatprep.subr.mxu0 0.0
      %415 = vmatpush1.msra.mxu0 0.0
      %416 = vmatprep.subr.mxu0 0.0
      %417 = vmatpush1.msra.mxu0 0.0
      %418 = vmatprep.subr.mxu0 0.0
      %419 = vmatpush1.msra.mxu0 0.0
      %420 = vmatprep.subr.mxu0 0.0
      %421 = vmatpush1.msra.mxu0 0.0
      %422 = vmatprep.subr.mxu0 0.0
      %423 = vmatpush1.msra.mxu0 0.0
      %424 = vmatprep.subr.mxu0 0.0
      %425 = vmatpush1.msra.mxu0 0.0
      %426 = vmatprep.subr.mxu0 0.0
      %427 = vmatpush1.msra.mxu0 0.0
      %428 = vmatprep.subr.mxu0 0.0
      %v429 = vand.u32 %v241, 4294901760
      %v430 = vsub.f32 %v241, %v429
      %v431 = vand.u32 %v430, 4294901760
      %v432 = vsub.f32 %v430, %v431
      %v433 = vand.u32 %v432, 4294901760
      %434 = vmatpush1.msra.mxu0 %v433
      %435 = vmatprep.subr.mxu0 0.0
      %v436 = vand.u32 %v240, 4294901760
      %v437 = vsub.f32 %v240, %v436
      %v438 = vand.u32 %v437, 4294901760
      %v439 = vsub.f32 %v437, %v438
      %v440 = vand.u32 %v439, 4294901760
      %441 = vmatpush1.msra.mxu0 %v440
      %442 = vmatprep.subr.mxu0 0.0
      %443 = vmatpush2.msra.mxu0 0.0
      %444 = vmatprep.subr.mxu0 0.0
      %445 = vmatpush2.msra.mxu0 0.0
      %446 = vmatprep.subr.mxu0 0.0
      %447 = vmatpush2.msra.mxu0 0.0
      %448 = vmatprep.subr.mxu0 0.0
      %449 = vmatpush2.msra.mxu0 0.0
      %450 = vmatprep.subr.mxu0 0.0
      %451 = vmatpush2.msra.mxu0 0.0
      %452 = vmatprep.subr.mxu0 0.0
      %453 = vmatpush2.msra.mxu0 0.0
      %454 = vmatprep.subr.mxu0 0.0
      %455 = vmatpush2.msra.mxu0 0.0
      %456 = vmatprep.subr.mxu0 0.0
      %457 = vmatpush2.msra.mxu0 0.0
      %458 = vmatprep.subr.mxu0 0.0
      %459 = vmatpush2.msra.mxu0 0.0
      %460 = vmatprep.subr.mxu0 0.0
      %461 = vmatpush2.msra.mxu0 0.0
      %462 = vmatprep.subr.mxu0 0.0
      %463 = vmatpush2.msra.mxu0 0.0
      %464 = vmatprep.subr.mxu0 0.0
      %465 = vmatpush2.msra.mxu0 0.0
      %466 = vmatprep.subr.mxu0 0.0
      %467 = vmatpush2.msra.mxu0 0.0
      %468 = vmatprep.subr.mxu0 0.0
      %469 = vmatpush2.msra.mxu0 0.0
      %470 = vmatprep.subr.mxu0 0.0
      %471 = vmatpush2.msra.mxu0 0.0
      %472 = vmatprep.subr.mxu0 0.0
      %473 = vmatpush2.msra.mxu0 0.0
      %474 = vmatprep.mubr.f32.mxu0 0.0
      %v475 = vand.u32 %v256, 4294901760
      %476 = vmatmul.mubr.f32.gmra.mxu0 %v475
      %v477 = vpop.f32.mrf.mxu0
      %v478 = vadd.f32 %v347, %v477
      %v479 = vpop.f32.mrf.mxu0
      %480 = vmatprep.mubr.f32.mxu0 0.0
      %v481 = vand.u32 %v259, 4294901760
      %482 = vmatmul.mubr.f32.gmra.mxu0 %v481
      %v483 = vpop.f32.mrf.mxu0
      %v484 = vadd.f32 %v357, %v483
      %v485 = vpop.f32.mrf.mxu0
      %486 = vmatprep.mubr.f32.mxu0 0.0
      %v487 = vand.u32 %v262, 4294901760
      %488 = vmatmul.mubr.f32.gmra.mxu0 %v487
      %v489 = vpop.f32.mrf.mxu0
      %v490 = vadd.f32 %v367, %v489
      %v491 = vpop.f32.mrf.mxu0
      %492 = vmatprep.mubr.f32.mxu0 0.0
      %v493 = vand.u32 %v265, 4294901760
      %494 = vmatmul.mubr.f32.gmra.mxu0 %v493
      %v495 = vpop.f32.mrf.mxu0
      %v496 = vadd.f32 %v377, %v495
      %v497 = vpop.f32.mrf.mxu0
      %498 = vmatprep.mubr.f32.mxu0 0.0
      %v499 = vand.u32 %v268, 4294901760
      %500 = vmatmul.mubr.f32.gmra.mxu0 %v499
      %v501 = vpop.f32.mrf.mxu0
      %v502 = vadd.f32 %v387, %v501
      %v503 = vpop.f32.mrf.mxu0
      %504 = vmatprep.mubr.f32.mxu0 0.0
      %v505 = vand.u32 %v271, 4294901760
      %506 = vmatmul.mubr.f32.gmra.mxu0 %v505
      %v507 = vpop.f32.mrf.mxu0
      %v508 = vadd.f32 %v397, %v507
      %v509 = vpop.f32.mrf.mxu0
      %510 = vdwg.mxu0
      %511 = vmatprep.subr.mxu0 0.0
      %512 = vmatpush1.msra.mxu0 0.0
      %513 = vmatprep.subr.mxu0 0.0
      %514 = vmatpush1.msra.mxu0 0.0
      %515 = vmatprep.subr.mxu0 0.0
      %516 = vmatpush1.msra.mxu0 0.0
      %517 = vmatprep.subr.mxu0 0.0
      %518 = vmatpush1.msra.mxu0 0.0
      %519 = vmatprep.subr.mxu0 0.0
      %520 = vmatpush1.msra.mxu0 0.0
      %521 = vmatprep.subr.mxu0 0.0
      %522 = vmatpush1.msra.mxu0 0.0
      %523 = vmatprep.subr.mxu0 0.0
      %524 = vmatpush1.msra.mxu0 0.0
      %525 = vmatprep.subr.mxu0 0.0
      %526 = vmatpush1.msra.mxu0 0.0
      %527 = vmatprep.subr.mxu0 0.0
      %528 = vmatpush1.msra.mxu0 0.0
      %529 = vmatprep.subr.mxu0 0.0
      %530 = vmatpush1.msra.mxu0 0.0
      %531 = vmatprep.subr.mxu0 0.0
      %532 = vmatpush1.msra.mxu0 0.0
      %533 = vmatprep.subr.mxu0 0.0
      %534 = vmatpush1.msra.mxu0 0.0
      %535 = vmatprep.subr.mxu0 0.0
      %536 = vmatpush1.msra.mxu0 0.0
      %537 = vmatprep.subr.mxu0 0.0
      %538 = vmatpush1.msra.mxu0 0.0
      %539 = vmatprep.subr.mxu0 0.0
      %v540 = vand.u32 %v241, 4294901760
      %v541 = vsub.f32 %v241, %v540
      %542 = vmatpush1.msra.mxu0 %v541
      %543 = vmatprep.subr.mxu0 0.0
      %v544 = vand.u32 %v240, 4294901760
      %v545 = vsub.f32 %v240, %v544
      %546 = vmatpush1.msra.mxu0 %v545
      %547 = vmatprep.subr.mxu0 0.0
      %548 = vmatpush2.msra.mxu0 0.0
      %549 = vmatprep.subr.mxu0 0.0
      %550 = vmatpush2.msra.mxu0 0.0
      %551 = vmatprep.subr.mxu0 0.0
      %552 = vmatpush2.msra.mxu0 0.0
      %553 = vmatprep.subr.mxu0 0.0
      %554 = vmatpush2.msra.mxu0 0.0
      %555 = vmatprep.subr.mxu0 0.0
      %556 = vmatpush2.msra.mxu0 0.0
      %557 = vmatprep.subr.mxu0 0.0
      %558 = vmatpush2.msra.mxu0 0.0
      %559 = vmatprep.subr.mxu0 0.0
      %560 = vmatpush2.msra.mxu0 0.0
      %561 = vmatprep.subr.mxu0 0.0
      %562 = vmatpush2.msra.mxu0 0.0
      %563 = vmatprep.subr.mxu0 0.0
      %564 = vmatpush2.msra.mxu0 0.0
      %565 = vmatprep.subr.mxu0 0.0
      %566 = vmatpush2.msra.mxu0 0.0
      %567 = vmatprep.subr.mxu0 0.0
      %568 = vmatpush2.msra.mxu0 0.0
      %569 = vmatprep.subr.mxu0 0.0
      %570 = vmatpush2.msra.mxu0 0.0
      %571 = vmatprep.subr.mxu0 0.0
      %572 = vmatpush2.msra.mxu0 0.0
      %573 = vmatprep.subr.mxu0 0.0
      %574 = vmatpush2.msra.mxu0 0.0
      %575 = vmatprep.subr.mxu0 0.0
      %576 = vmatpush2.msra.mxu0 0.0
      %577 = vmatprep.subr.mxu0 0.0
      %578 = vmatpush2.msra.mxu0 0.0
      %579 = vmatprep.mubr.f32.mxu0 0.0
      %v580 = vand.u32 %v256, 4294901760
      %v581 = vsub.f32 %v256, %v580
      %582 = vmatmul.mubr.f32.gmra.mxu0 %v581
      %v583 = vpop.f32.mrf.mxu0
      %v584 = vadd.f32 %v478, %v583
      %v585 = vpop.f32.mrf.mxu0
      %586 = vmatprep.mubr.f32.mxu0 0.0
      %v587 = vand.u32 %v259, 4294901760
      %v588 = vsub.f32 %v259, %v587
      %589 = vmatmul.mubr.f32.gmra.mxu0 %v588
      %v590 = vpop.f32.mrf.mxu0
      %v591 = vadd.f32 %v484, %v590
      %v592 = vpop.f32.mrf.mxu0
      %593 = vmatprep.mubr.f32.mxu0 0.0
      %v594 = vand.u32 %v262, 4294901760
      %v595 = vsub.f32 %v262, %v594
      %596 = vmatmul.mubr.f32.gmra.mxu0 %v595
      %v597 = vpop.f32.mrf.mxu0
      %v598 = vadd.f32 %v490, %v597
      %v599 = vpop.f32.mrf.mxu0
      %600 = vmatprep.mubr.f32.mxu0 0.0
      %v601 = vand.u32 %v265, 4294901760
      %v602 = vsub.f32 %v265, %v601
      %603 = vmatmul.mubr.f32.gmra.mxu0 %v602
      %v604 = vpop.f32.mrf.mxu0
      %v605 = vadd.f32 %v496, %v604
      %v606 = vpop.f32.mrf.mxu0
      %607 = vmatprep.mubr.f32.mxu0 0.0
      %v608 = vand.u32 %v268, 4294901760
      %v609 = vsub.f32 %v268, %v608
      %610 = vmatmul.mubr.f32.gmra.mxu0 %v609
      %v611 = vpop.f32.mrf.mxu0
      %v612 = vadd.f32 %v502, %v611
      %v613 = vpop.f32.mrf.mxu0
      %614 = vmatprep.mubr.f32.mxu0 0.0
      %v615 = vand.u32 %v271, 4294901760
      %v616 = vsub.f32 %v271, %v615
      %617 = vmatmul.mubr.f32.gmra.mxu0 %v616
      %v618 = vpop.f32.mrf.mxu0
      %v619 = vadd.f32 %v508, %v618
      %v620 = vpop.f32.mrf.mxu0
      %621 = vdwg.mxu0
      %622 = vmatprep.subr.mxu0 0.0
      %623 = vmatpush1.msra.mxu0 0.0
      %624 = vmatprep.subr.mxu0 0.0
      %625 = vmatpush1.msra.mxu0 0.0
      %626 = vmatprep.subr.mxu0 0.0
      %627 = vmatpush1.msra.mxu0 0.0
      %628 = vmatprep.subr.mxu0 0.0
      %629 = vmatpush1.msra.mxu0 0.0
      %630 = vmatprep.subr.mxu0 0.0
      %631 = vmatpush1.msra.mxu0 0.0
      %632 = vmatprep.subr.mxu0 0.0
      %633 = vmatpush1.msra.mxu0 0.0
      %634 = vmatprep.subr.mxu0 0.0
      %635 = vmatpush1.msra.mxu0 0.0
      %636 = vmatprep.subr.mxu0 0.0
      %637 = vmatpush1.msra.mxu0 0.0
      %638 = vmatprep.subr.mxu0 0.0
      %639 = vmatpush1.msra.mxu0 0.0
      %640 = vmatprep.subr.mxu0 0.0
      %641 = vmatpush1.msra.mxu0 0.0
      %642 = vmatprep.subr.mxu0 0.0
      %643 = vmatpush1.msra.mxu0 0.0
      %644 = vmatprep.subr.mxu0 0.0
      %645 = vmatpush1.msra.mxu0 0.0
      %646 = vmatprep.subr.mxu0 0.0
      %647 = vmatpush1.msra.mxu0 0.0
      %648 = vmatprep.subr.mxu0 0.0
      %649 = vmatpush1.msra.mxu0 0.0
      %650 = vmatprep.subr.mxu0 0.0
      %v651 = vand.u32 %v241, 4294901760
      %652 = vmatpush1.msra.mxu0 %v651
      %653 = vmatprep.subr.mxu0 0.0
      %v654 = vand.u32 %v240, 4294901760
      %655 = vmatpush1.msra.mxu0 %v654
      %656 = vmatprep.subr.mxu0 0.0
      %657 = vmatpush2.msra.mxu0 0.0
      %658 = vmatprep.subr.mxu0 0.0
      %659 = vmatpush2.msra.mxu0 0.0
      %660 = vmatprep.subr.mxu0 0.0
      %661 = vmatpush2.msra.mxu0 0.0
      %662 = vmatprep.subr.mxu0 0.0
      %663 = vmatpush2.msra.mxu0 0.0
      %664 = vmatprep.subr.mxu0 0.0
      %665 = vmatpush2.msra.mxu0 0.0
      %666 = vmatprep.subr.mxu0 0.0
      %667 = vmatpush2.msra.mxu0 0.0
      %668 = vmatprep.subr.mxu0 0.0
      %669 = vmatpush2.msra.mxu0 0.0
      %670 = vmatprep.subr.mxu0 0.0
      %671 = vmatpush2.msra.mxu0 0.0
      %672 = vmatprep.subr.mxu0 0.0
      %673 = vmatpush2.msra.mxu0 0.0
      %674 = vmatprep.subr.mxu0 0.0
      %675 = vmatpush2.msra.mxu0 0.0
      %676 = vmatprep.subr.mxu0 0.0
      %677 = vmatpush2.msra.mxu0 0.0
      %678 = vmatprep.subr.mxu0 0.0
      %679 = vmatpush2.msra.mxu0 0.0
      %680 = vmatprep.subr.mxu0 0.0
      %681 = vmatpush2.msra.mxu0 0.0
      %682 = vmatprep.subr.mxu0 0.0
      %683 = vmatpush2.msra.mxu0 0.0
      %684 = vmatprep.subr.mxu0 0.0
      %685 = vmatpush2.msra.mxu0 0.0
      %686 = vmatprep.subr.mxu0 0.0
      %687 = vmatpush2.msra.mxu0 0.0
      %688 = vmatprep.mubr.f32.mxu0 0.0
      %v689 = vand.u32 %v256, 4294901760
      %v690 = vsub.f32 %v256, %v689
      %v691 = vand.u32 %v690, 4294901760
      %692 = vmatmul.mubr.f32.gmra.mxu0 %v691
      %v693 = vpop.f32.mrf.mxu0
      %v694 = vadd.f32 %v584, %v693
      %v695 = vpop.f32.mrf.mxu0
      %696 = vmatprep.mubr.f32.mxu0 0.0
      %v697 = vand.u32 %v259, 4294901760
      %v698 = vsub.f32 %v259, %v697
      %v699 = vand.u32 %v698, 4294901760
      %700 = vmatmul.mubr.f32.gmra.mxu0 %v699
      %v701 = vpop.f32.mrf.mxu0
      %v702 = vadd.f32 %v591, %v701
      %v703 = vpop.f32.mrf.mxu0
      %704 = vmatprep.mubr.f32.mxu0 0.0
      %v705 = vand.u32 %v262, 4294901760
      %v706 = vsub.f32 %v262, %v705
      %v707 = vand.u32 %v706, 4294901760
      %708 = vmatmul.mubr.f32.gmra.mxu0 %v707
      %v709 = vpop.f32.mrf.mxu0
      %v710 = vadd.f32 %v598, %v709
      %v711 = vpop.f32.mrf.mxu0
      %712 = vmatprep.mubr.f32.mxu0 0.0
      %v713 = vand.u32 %v265, 4294901760
      %v714 = vsub.f32 %v265, %v713
      %v715 = vand.u32 %v714, 4294901760
      %716 = vmatmul.mubr.f32.gmra.mxu0 %v715
      %v717 = vpop.f32.mrf.mxu0
      %v718 = vadd.f32 %v605, %v717
      %v719 = vpop.f32.mrf.mxu0
      %720 = vmatprep.mubr.f32.mxu0 0.0
      %v721 = vand.u32 %v268, 4294901760
      %v722 = vsub.f32 %v268, %v721
      %v723 = vand.u32 %v722, 4294901760
      %724 = vmatmul.mubr.f32.gmra.mxu0 %v723
      %v725 = vpop.f32.mrf.mxu0
      %v726 = vadd.f32 %v612, %v725
      %v727 = vpop.f32.mrf.mxu0
      %728 = vmatprep.mubr.f32.mxu0 0.0
      %v729 = vand.u32 %v271, 4294901760
      %v730 = vsub.f32 %v271, %v729
      %v731 = vand.u32 %v730, 4294901760
      %732 = vmatmul.mubr.f32.gmra.mxu0 %v731
      %v733 = vpop.f32.mrf.mxu0
      %v734 = vadd.f32 %v619, %v733
      %v735 = vpop.f32.mrf.mxu0
      %736 = vdwg.mxu0
      %737 = vmatprep.subr.mxu0 0.0
      %738 = vmatpush1.msra.mxu0 0.0
      %739 = vmatprep.subr.mxu0 0.0
      %740 = vmatpush1.msra.mxu0 0.0
      %741 = vmatprep.subr.mxu0 0.0
      %742 = vmatpush1.msra.mxu0 0.0
      %743 = vmatprep.subr.mxu0 0.0
      %744 = vmatpush1.msra.mxu0 0.0
      %745 = vmatprep.subr.mxu0 0.0
      %746 = vmatpush1.msra.mxu0 0.0
      %747 = vmatprep.subr.mxu0 0.0
      %748 = vmatpush1.msra.mxu0 0.0
      %749 = vmatprep.subr.mxu0 0.0
      %750 = vmatpush1.msra.mxu0 0.0
      %751 = vmatprep.subr.mxu0 0.0
      %752 = vmatpush1.msra.mxu0 0.0
      %753 = vmatprep.subr.mxu0 0.0
      %754 = vmatpush1.msra.mxu0 0.0
      %755 = vmatprep.subr.mxu0 0.0
      %756 = vmatpush1.msra.mxu0 0.0
      %757 = vmatprep.subr.mxu0 0.0
      %758 = vmatpush1.msra.mxu0 0.0
      %759 = vmatprep.subr.mxu0 0.0
      %760 = vmatpush1.msra.mxu0 0.0
      %761 = vmatprep.subr.mxu0 0.0
      %762 = vmatpush1.msra.mxu0 0.0
      %763 = vmatprep.subr.mxu0 0.0
      %764 = vmatpush1.msra.mxu0 0.0
      %765 = vmatprep.subr.mxu0 0.0
      %v766 = vand.u32 %v241, 4294901760
      %v767 = vsub.f32 %v241, %v766
      %v768 = vand.u32 %v767, 4294901760
      %769 = vmatpush1.msra.mxu0 %v768
      %770 = vmatprep.subr.mxu0 0.0
      %v771 = vand.u32 %v240, 4294901760
      %v772 = vsub.f32 %v240, %v771
      %v773 = vand.u32 %v772, 4294901760
      %774 = vmatpush1.msra.mxu0 %v773
      %775 = vmatprep.subr.mxu0 0.0
      %776 = vmatpush2.msra.mxu0 0.0
      %777 = vmatprep.subr.mxu0 0.0
      %778 = vmatpush2.msra.mxu0 0.0
      %779 = vmatprep.subr.mxu0 0.0
      %780 = vmatpush2.msra.mxu0 0.0
      %781 = vmatprep.subr.mxu0 0.0
      %782 = vmatpush2.msra.mxu0 0.0
      %783 = vmatprep.subr.mxu0 0.0
      %784 = vmatpush2.msra.mxu0 0.0
      %785 = vmatprep.subr.mxu0 0.0
      %786 = vmatpush2.msra.mxu0 0.0
      %787 = vmatprep.subr.mxu0 0.0
      %788 = vmatpush2.msra.mxu0 0.0
      %789 = vmatprep.subr.mxu0 0.0
      %790 = vmatpush2.msra.mxu0 0.0
      %791 = vmatprep.subr.mxu0 0.0
      %792 = vmatpush2.msra.mxu0 0.0
      %793 = vmatprep.subr.mxu0 0.0
      %794 = vmatpush2.msra.mxu0 0.0
      %795 = vmatprep.subr.mxu0 0.0
      %796 = vmatpush2.msra.mxu0 0.0
      %797 = vmatprep.subr.mxu0 0.0
      %798 = vmatpush2.msra.mxu0 0.0
      %799 = vmatprep.subr.mxu0 0.0
      %800 = vmatpush2.msra.mxu0 0.0
      %801 = vmatprep.subr.mxu0 0.0
      %802 = vmatpush2.msra.mxu0 0.0
      %803 = vmatprep.subr.mxu0 0.0
      %804 = vmatpush2.msra.mxu0 0.0
      %805 = vmatprep.subr.mxu0 0.0
      %806 = vmatpush2.msra.mxu0 0.0
      %807 = vmatprep.mubr.f32.mxu0 0.0
      %v808 = vand.u32 %v256, 4294901760
      %809 = vmatmul.mubr.f32.gmra.mxu0 %v808
      %v810 = vpop.f32.mrf.mxu0
      %v811 = vadd.f32 %v694, %v810
      %v812 = vpop.f32.mrf.mxu0
      %813 = vmatprep.mubr.f32.mxu0 0.0
      %v814 = vand.u32 %v259, 4294901760
      %815 = vmatmul.mubr.f32.gmra.mxu0 %v814
      %v816 = vpop.f32.mrf.mxu0
      %v817 = vadd.f32 %v702, %v816
      %v818 = vpop.f32.mrf.mxu0
      %819 = vmatprep.mubr.f32.mxu0 0.0
      %v820 = vand.u32 %v262, 4294901760
      %821 = vmatmul.mubr.f32.gmra.mxu0 %v820
      %v822 = vpop.f32.mrf.mxu0
      %v823 = vadd.f32 %v710, %v822
      %v824 = vpop.f32.mrf.mxu0
      %825 = vmatprep.mubr.f32.mxu0 0.0
      %v826 = vand.u32 %v265, 4294901760
      %827 = vmatmul.mubr.f32.gmra.mxu0 %v826
      %v828 = vpop.f32.mrf.mxu0
      %v829 = vadd.f32 %v718, %v828
      %v830 = vpop.f32.mrf.mxu0
      %831 = vmatprep.mubr.f32.mxu0 0.0
      %v832 = vand.u32 %v268, 4294901760
      %833 = vmatmul.mubr.f32.gmra.mxu0 %v832
      %v834 = vpop.f32.mrf.mxu0
      %v835 = vadd.f32 %v726, %v834
      %v836 = vpop.f32.mrf.mxu0
      %837 = vmatprep.mubr.f32.mxu0 0.0
      %v838 = vand.u32 %v271, 4294901760
      %839 = vmatmul.mubr.f32.gmra.mxu0 %v838
      %v840 = vpop.f32.mrf.mxu0
      %v841 = vadd.f32 %v734, %v840
      %v842 = vpop.f32.mrf.mxu0
      %843 = vdwg.mxu0
      %844 = vmatprep.subr.mxu0 0.0
      %845 = vmatpush1.msra.mxu0 0.0
      %846 = vmatprep.subr.mxu0 0.0
      %847 = vmatpush1.msra.mxu0 0.0
      %848 = vmatprep.subr.mxu0 0.0
      %849 = vmatpush1.msra.mxu0 0.0
      %850 = vmatprep.subr.mxu0 0.0
      %851 = vmatpush1.msra.mxu0 0.0
      %852 = vmatprep.subr.mxu0 0.0
      %853 = vmatpush1.msra.mxu0 0.0
      %854 = vmatprep.subr.mxu0 0.0
      %855 = vmatpush1.msra.mxu0 0.0
      %856 = vmatprep.subr.mxu0 0.0
      %857 = vmatpush1.msra.mxu0 0.0
      %858 = vmatprep.subr.mxu0 0.0
      %859 = vmatpush1.msra.mxu0 0.0
      %860 = vmatprep.subr.mxu0 0.0
      %861 = vmatpush1.msra.mxu0 0.0
      %862 = vmatprep.subr.mxu0 0.0
      %863 = vmatpush1.msra.mxu0 0.0
      %864 = vmatprep.subr.mxu0 0.0
      %865 = vmatpush1.msra.mxu0 0.0
      %866 = vmatprep.subr.mxu0 0.0
      %867 = vmatpush1.msra.mxu0 0.0
      %868 = vmatprep.subr.mxu0 0.0
      %869 = vmatpush1.msra.mxu0 0.0
      %870 = vmatprep.subr.mxu0 0.0
      %871 = vmatpush1.msra.mxu0 0.0
      %872 = vmatprep.subr.mxu0 0.0
      %v873 = vand.u32 %v241, 4294901760
      %874 = vmatpush1.msra.mxu0 %v873
      %875 = vmatprep.subr.mxu0 0.0
      %v876 = vand.u32 %v240, 4294901760
      %877 = vmatpush1.msra.mxu0 %v876
      %878 = vmatprep.subr.mxu0 0.0
      %879 = vmatpush2.msra.mxu0 0.0
      %880 = vmatprep.subr.mxu0 0.0
      %881 = vmatpush2.msra.mxu0 0.0
      %882 = vmatprep.subr.mxu0 0.0
      %883 = vmatpush2.msra.mxu0 0.0
      %884 = vmatprep.subr.mxu0 0.0
      %885 = vmatpush2.msra.mxu0 0.0
      %886 = vmatprep.subr.mxu0 0.0
      %887 = vmatpush2.msra.mxu0 0.0
      %888 = vmatprep.subr.mxu0 0.0
      %889 = vmatpush2.msra.mxu0 0.0
      %890 = vmatprep.subr.mxu0 0.0
      %891 = vmatpush2.msra.mxu0 0.0
      %892 = vmatprep.subr.mxu0 0.0
      %893 = vmatpush2.msra.mxu0 0.0
      %894 = vmatprep.subr.mxu0 0.0
      %895 = vmatpush2.msra.mxu0 0.0
      %896 = vmatprep.subr.mxu0 0.0
      %897 = vmatpush2.msra.mxu0 0.0
      %898 = vmatprep.subr.mxu0 0.0
      %899 = vmatpush2.msra.mxu0 0.0
      %900 = vmatprep.subr.mxu0 0.0
      %901 = vmatpush2.msra.mxu0 0.0
      %902 = vmatprep.subr.mxu0 0.0
      %903 = vmatpush2.msra.mxu0 0.0
      %904 = vmatprep.subr.mxu0 0.0
      %905 = vmatpush2.msra.mxu0 0.0
      %906 = vmatprep.subr.mxu0 0.0
      %907 = vmatpush2.msra.mxu0 0.0
      %908 = vmatprep.subr.mxu0 0.0
      %909 = vmatpush2.msra.mxu0 0.0
      %910 = vmatprep.mubr.f32.mxu0 0.0
      %v911 = vand.u32 %v256, 4294901760
      %912 = vmatmul.mubr.f32.gmra.mxu0 %v911
      %v913 = vpop.f32.mrf.mxu0
      %v914 = vadd.f32 %v811, %v913
      %v915 = vpop.f32.mrf.mxu0
      %916 = vmatprep.mubr.f32.mxu0 0.0
      %v917 = vand.u32 %v259, 4294901760
      %918 = vmatmul.mubr.f32.gmra.mxu0 %v917
      %v919 = vpop.f32.mrf.mxu0
      %v920 = vadd.f32 %v817, %v919
      %v921 = vpop.f32.mrf.mxu0
      %922 = vmatprep.mubr.f32.mxu0 0.0
      %v923 = vand.u32 %v262, 4294901760
      %924 = vmatmul.mubr.f32.gmra.mxu0 %v923
      %v925 = vpop.f32.mrf.mxu0
      %v926 = vadd.f32 %v823, %v925
      %v927 = vpop.f32.mrf.mxu0
      %928 = vmatprep.mubr.f32.mxu0 0.0
      %v929 = vand.u32 %v265, 4294901760
      %930 = vmatmul.mubr.f32.gmra.mxu0 %v929
      %v931 = vpop.f32.mrf.mxu0
      %v932 = vadd.f32 %v829, %v931
      %v933 = vpop.f32.mrf.mxu0
      %934 = vmatprep.mubr.f32.mxu0 0.0
      %v935 = vand.u32 %v268, 4294901760
      %936 = vmatmul.mubr.f32.gmra.mxu0 %v935
      %v937 = vpop.f32.mrf.mxu0
      %v938 = vadd.f32 %v835, %v937
      %v939 = vpop.f32.mrf.mxu0
      %940 = vmatprep.mubr.f32.mxu0 0.0
      %v941 = vand.u32 %v271, 4294901760
      %942 = vmatmul.mubr.f32.gmra.mxu0 %v941
      %v943 = vpop.f32.mrf.mxu0
      %v944 = vadd.f32 %v841, %v943
      %v945 = vpop.f32.mrf.mxu0
      %946 = vdwg.mxu0
      %v947 = vld [vmem:[%s2] sm:$0xff]
      %v948 = vld [vmem:[%s2 + $0x8] sm:$0xff]
      %v949 = vld [vmem:[%s2 + $0x10] sm:$0xff]
      %v950 = vld [vmem:[%s2 + $0x18] sm:$0xff]
      %v951 = vld [vmem:[%s2 + $0x20] sm:$0xff]
      %v952 = vld [vmem:[%s2 + $0x28] sm:$0xff]
      %v953 = vld [vmem:[%s2 + $0x30] sm:$0xff]
      %v954 = vld [vmem:[%s2 + $0x38] sm:$0xff]
      %v955 = vld [vmem:[%s2 + $0x40] sm:$0xff]
      %v956 = vld [vmem:[%s2 + $0x48] sm:$0xff]
      %v957 = vld [vmem:[%s2 + $0x50] sm:$0xff]
      %v958 = vld [vmem:[%s2 + $0x58] sm:$0xff]
      %v959 = vld [vmem:[%s2 + $0x60] sm:$0xff]
      %v960 = vld [vmem:[%s2 + $0x68] sm:$0xff]
      %v961 = vld [vmem:[%s2 + $0x70] sm:$0xff]
      %v962 = vld [vmem:[%s2 + $0x78] sm:$0xff]
      %v963 = vld [vmem:[%s2 + $0x80] sm:$0xff]
      %v964 = vld [vmem:[%s2 + $0x88] sm:$0xff]
      %v965 = vld [vmem:[%s2 + $0x90] sm:$0xff]
      %v966 = vld [vmem:[%s2 + $0x98] sm:$0xff]
      %v967 = vld [vmem:[%s2 + $0xa0] sm:$0xff]
      %v968 = vld [vmem:[%s2 + $0xa8] sm:$0xff]
      %v969 = vld [vmem:[%s2 + $0xb0] sm:$0xff]
      %v970 = vld [vmem:[%s2 + $0xb8] sm:$0xff]
      %v971 = vld [vmem:[%s2 + $0xc0] sm:$0xff]
      %v972 = vld [vmem:[%s2 + $0xc8] sm:$0xff]
      %v973 = vld [vmem:[%s2 + $0xd0] sm:$0xff]
      %v974 = vld [vmem:[%s2 + $0xd8] sm:$0xff]
      %v975 = vld [vmem:[%s2 + $0xe0] sm:$0xff]
      %v976 = vld [vmem:[%s2 + $0xe8] sm:$0xff]
      %v977 = vld [vmem:[%s2 + $0xf0] sm:$0xff]
      %v978 = vld [vmem:[%s2 + $0xf8] sm:$0xff]
      %v979 = vand.u32 %v978, 4294901760
      %980 = vmatprep.subr.mxu0 %v979
      %v981 = vand.u32 %v977, 4294901760
      %982 = vmatpush1.msra.mxu0 %v981
      %v983 = vand.u32 %v976, 4294901760
      %984 = vmatprep.subr.mxu0 %v983
      %v985 = vand.u32 %v975, 4294901760
      %986 = vmatpush1.msra.mxu0 %v985
      %v987 = vand.u32 %v974, 4294901760
      %988 = vmatprep.subr.mxu0 %v987
      %v989 = vand.u32 %v973, 4294901760
      %990 = vmatpush1.msra.mxu0 %v989
      %v991 = vand.u32 %v972, 4294901760
      %992 = vmatprep.subr.mxu0 %v991
      %v993 = vand.u32 %v971, 4294901760
      %994 = vmatpush1.msra.mxu0 %v993
      %v995 = vand.u32 %v970, 4294901760
      %996 = vmatprep.subr.mxu0 %v995
      %v997 = vand.u32 %v969, 4294901760
      %998 = vmatpush1.msra.mxu0 %v997
      %v999 = vand.u32 %v968, 4294901760
      %1000 = vmatprep.subr.mxu0 %v999
      %v1001 = vand.u32 %v967, 4294901760
      %1002 = vmatpush1.msra.mxu0 %v1001
      %v1003 = vand.u32 %v966, 4294901760
      %1004 = vmatprep.subr.mxu0 %v1003
      %v1005 = vand.u32 %v965, 4294901760
      %1006 = vmatpush1.msra.mxu0 %v1005
      %v1007 = vand.u32 %v964, 4294901760
      %1008 = vmatprep.subr.mxu0 %v1007
      %v1009 = vand.u32 %v963, 4294901760
      %1010 = vmatpush1.msra.mxu0 %v1009
      %v1011 = vand.u32 %v962, 4294901760
      %1012 = vmatprep.subr.mxu0 %v1011
      %v1013 = vand.u32 %v961, 4294901760
      %1014 = vmatpush1.msra.mxu0 %v1013
      %v1015 = vand.u32 %v960, 4294901760
      %1016 = vmatprep.subr.mxu0 %v1015
      %v1017 = vand.u32 %v959, 4294901760
      %1018 = vmatpush1.msra.mxu0 %v1017
      %v1019 = vand.u32 %v958, 4294901760
      %1020 = vmatprep.subr.mxu0 %v1019
      %v1021 = vand.u32 %v957, 4294901760
      %1022 = vmatpush1.msra.mxu0 %v1021
      %v1023 = vand.u32 %v956, 4294901760
      %1024 = vmatprep.subr.mxu0 %v1023
      %v1025 = vand.u32 %v955, 4294901760
      %1026 = vmatpush1.msra.mxu0 %v1025
      %v1027 = vand.u32 %v954, 4294901760
      %1028 = vmatprep.subr.mxu0 %v1027
      %v1029 = vand.u32 %v953, 4294901760
      %1030 = vmatpush1.msra.mxu0 %v1029
      %v1031 = vand.u32 %v952, 4294901760
      %1032 = vmatprep.subr.mxu0 %v1031
      %v1033 = vand.u32 %v951, 4294901760
      %1034 = vmatpush1.msra.mxu0 %v1033
      %v1035 = vand.u32 %v950, 4294901760
      %1036 = vmatprep.subr.mxu0 %v1035
      %v1037 = vand.u32 %v949, 4294901760
      %1038 = vmatpush1.msra.mxu0 %v1037
      %v1039 = vand.u32 %v948, 4294901760
      %1040 = vmatprep.subr.mxu0 %v1039
      %v1041 = vand.u32 %v947, 4294901760
      %1042 = vmatpush1.msra.mxu0 %v1041
      %1043 = vmatprep.subr.mxu0 0.0
      %1044 = vmatpush2.msra.mxu0 0.0
      %1045 = vmatprep.subr.mxu0 0.0
      %1046 = vmatpush2.msra.mxu0 0.0
      %1047 = vmatprep.subr.mxu0 0.0
      %1048 = vmatpush2.msra.mxu0 0.0
      %1049 = vmatprep.subr.mxu0 0.0
      %1050 = vmatpush2.msra.mxu0 0.0
      %1051 = vmatprep.subr.mxu0 0.0
      %1052 = vmatpush2.msra.mxu0 0.0
      %1053 = vmatprep.subr.mxu0 0.0
      %1054 = vmatpush2.msra.mxu0 0.0
      %1055 = vmatprep.subr.mxu0 0.0
      %1056 = vmatpush2.msra.mxu0 0.0
      %1057 = vmatprep.subr.mxu0 0.0
      %1058 = vmatpush2.msra.mxu0 0.0
      %1059 = vmatprep.subr.mxu0 0.0
      %1060 = vmatpush2.msra.mxu0 0.0
      %1061 = vmatprep.subr.mxu0 0.0
      %1062 = vmatpush2.msra.mxu0 0.0
      %1063 = vmatprep.subr.mxu0 0.0
      %1064 = vmatpush2.msra.mxu0 0.0
      %1065 = vmatprep.subr.mxu0 0.0
      %1066 = vmatpush2.msra.mxu0 0.0
      %1067 = vmatprep.subr.mxu0 0.0
      %1068 = vmatpush2.msra.mxu0 0.0
      %1069 = vmatprep.subr.mxu0 0.0
      %1070 = vmatpush2.msra.mxu0 0.0
      %1071 = vmatprep.subr.mxu0 0.0
      %1072 = vmatpush2.msra.mxu0 0.0
      %1073 = vmatprep.subr.mxu0 0.0
      %1074 = vmatpush2.msra.mxu0 0.0
      %1075 = vmatprep.mubr.f32.mxu0 0.0
      %v1076 = vand.u32 %v914, 4294901760
      %v1077 = vsub.f32 %v914, %v1076
      %v1078 = vand.u32 %v1077, 4294901760
      %v1079 = vsub.f32 %v1077, %v1078
      %v1080 = vand.u32 %v1079, 4294901760
      %1081 = vmatmul.mubr.f32.gmra.mxu0 %v1080
      %v1082 = vpop.f32.mrf.mxu0
      %v1083 = vadd.f32 0.0, %v1082
      %v1084 = vpop.f32.mrf.mxu0
      %v1085 = vadd.f32 0.0, %v1084
      %1086 = vmatprep.mubr.f32.mxu0 0.0
      %v1087 = vand.u32 %v920, 4294901760
      %v1088 = vsub.f32 %v920, %v1087
      %v1089 = vand.u32 %v1088, 4294901760
      %v1090 = vsub.f32 %v1088, %v1089
      %v1091 = vand.u32 %v1090, 4294901760
      %1092 = vmatmul.mubr.f32.gmra.mxu0 %v1091
      %v1093 = vpop.f32.mrf.mxu0
      %v1094 = vadd.f32 0.0, %v1093
      %v1095 = vpop.f32.mrf.mxu0
      %v1096 = vadd.f32 0.0, %v1095
      %1097 = vdwg.mxu0
      %v1098 = vand.u32 %v978, 4294901760
      %v1099 = vsub.f32 %v978, %v1098
      %v1100 = vand.u32 %v1099, 4294901760
      %v1101 = vsub.f32 %v1099, %v1100
      %v1102 = vand.u32 %v1101, 4294901760
      %1103 = vmatprep.subr.mxu0 %v1102
      %v1104 = vand.u32 %v977, 4294901760
      %v1105 = vsub.f32 %v977, %v1104
      %v1106 = vand.u32 %v1105, 4294901760
      %v1107 = vsub.f32 %v1105, %v1106
      %v1108 = vand.u32 %v1107, 4294901760
      %1109 = vmatpush1.msra.mxu0 %v1108
      %v1110 = vand.u32 %v976, 4294901760
      %v1111 = vsub.f32 %v976, %v1110
      %v1112 = vand.u32 %v1111, 4294901760
      %v1113 = vsub.f32 %v1111, %v1112
      %v1114 = vand.u32 %v1113, 4294901760
      %1115 = vmatprep.subr.mxu0 %v1114
      %v1116 = vand.u32 %v975, 4294901760
      %v1117 = vsub.f32 %v975, %v1116
      %v1118 = vand.u32 %v1117, 4294901760
      %v1119 = vsub.f32 %v1117, %v1118
      %v1120 = vand.u32 %v1119, 4294901760
      %1121 = vmatpush1.msra.mxu0 %v1120
      %v1122 = vand.u32 %v974, 4294901760
      %v1123 = vsub.f32 %v974, %v1122
      %v1124 = vand.u32 %v1123, 4294901760
      %v1125 = vsub.f32 %v1123, %v1124
      %v1126 = vand.u32 %v1125, 4294901760
      %1127 = vmatprep.subr.mxu0 %v1126
      %v1128 = vand.u32 %v973, 4294901760
      %v1129 = vsub.f32 %v973, %v1128
      %v1130 = vand.u32 %v1129, 4294901760
      %v1131 = vsub.f32 %v1129, %v1130
      %v1132 = vand.u32 %v1131, 4294901760
      %1133 = vmatpush1.msra.mxu0 %v1132
      %v1134 = vand.u32 %v972, 4294901760
      %v1135 = vsub.f32 %v972, %v1134
      %v1136 = vand.u32 %v1135, 4294901760
      %v1137 = vsub.f32 %v1135, %v1136
      %v1138 = vand.u32 %v1137, 4294901760
      %1139 = vmatprep.subr.mxu0 %v1138
      %v1140 = vand.u32 %v971, 4294901760
      %v1141 = vsub.f32 %v971, %v1140
      %v1142 = vand.u32 %v1141, 4294901760
      %v1143 = vsub.f32 %v1141, %v1142
      %v1144 = vand.u32 %v1143, 4294901760
      %1145 = vmatpush1.msra.mxu0 %v1144
      %v1146 = vand.u32 %v970, 4294901760
      %v1147 = vsub.f32 %v970, %v1146
      %v1148 = vand.u32 %v1147, 4294901760
      %v1149 = vsub.f32 %v1147, %v1148
      %v1150 = vand.u32 %v1149, 4294901760
      %1151 = vmatprep.subr.mxu0 %v1150
      %v1152 = vand.u32 %v969, 4294901760
      %v1153 = vsub.f32 %v969, %v1152
      %v1154 = vand.u32 %v1153, 4294901760
      %v1155 = vsub.f32 %v1153, %v1154
      %v1156 = vand.u32 %v1155, 4294901760
      %1157 = vmatpush1.msra.mxu0 %v1156
      %v1158 = vand.u32 %v968, 4294901760
      %v1159 = vsub.f32 %v968, %v1158
      %v1160 = vand.u32 %v1159, 4294901760
      %v1161 = vsub.f32 %v1159, %v1160
      %v1162 = vand.u32 %v1161, 4294901760
      %1163 = vmatprep.subr.mxu0 %v1162
      %v1164 = vand.u32 %v967, 4294901760
      %v1165 = vsub.f32 %v967, %v1164
      %v1166 = vand.u32 %v1165, 4294901760
      %v1167 = vsub.f32 %v1165, %v1166
      %v1168 = vand.u32 %v1167, 4294901760
      %1169 = vmatpush1.msra.mxu0 %v1168
      %v1170 = vand.u32 %v966, 4294901760
      %v1171 = vsub.f32 %v966, %v1170
      %v1172 = vand.u32 %v1171, 4294901760
      %v1173 = vsub.f32 %v1171, %v1172
      %v1174 = vand.u32 %v1173, 4294901760
      %1175 = vmatprep.subr.mxu0 %v1174
      %v1176 = vand.u32 %v965, 4294901760
      %v1177 = vsub.f32 %v965, %v1176
      %v1178 = vand.u32 %v1177, 4294901760
      %v1179 = vsub.f32 %v1177, %v1178
      %v1180 = vand.u32 %v1179, 4294901760
      %1181 = vmatpush1.msra.mxu0 %v1180
      %v1182 = vand.u32 %v964, 4294901760
      %v1183 = vsub.f32 %v964, %v1182
      %v1184 = vand.u32 %v1183, 4294901760
      %v1185 = vsub.f32 %v1183, %v1184
      %v1186 = vand.u32 %v1185, 4294901760
      %1187 = vmatprep.subr.mxu0 %v1186
      %v1188 = vand.u32 %v963, 4294901760
      %v1189 = vsub.f32 %v963, %v1188
      %v1190 = vand.u32 %v1189, 4294901760
      %v1191 = vsub.f32 %v1189, %v1190
      %v1192 = vand.u32 %v1191, 4294901760
      %1193 = vmatpush1.msra.mxu0 %v1192
      %v1194 = vand.u32 %v962, 4294901760
      %v1195 = vsub.f32 %v962, %v1194
      %v1196 = vand.u32 %v1195, 4294901760
      %v1197 = vsub.f32 %v1195, %v1196
      %v1198 = vand.u32 %v1197, 4294901760
      %1199 = vmatprep.subr.mxu0 %v1198
      %v1200 = vand.u32 %v961, 4294901760
      %v1201 = vsub.f32 %v961, %v1200
      %v1202 = vand.u32 %v1201, 4294901760
      %v1203 = vsub.f32 %v1201, %v1202
      %v1204 = vand.u32 %v1203, 4294901760
      %1205 = vmatpush1.msra.mxu0 %v1204
      %v1206 = vand.u32 %v960, 4294901760
      %v1207 = vsub.f32 %v960, %v1206
      %v1208 = vand.u32 %v1207, 4294901760
      %v1209 = vsub.f32 %v1207, %v1208
      %v1210 = vand.u32 %v1209, 4294901760
      %1211 = vmatprep.subr.mxu0 %v1210
      %v1212 = vand.u32 %v959, 4294901760
      %v1213 = vsub.f32 %v959, %v1212
      %v1214 = vand.u32 %v1213, 4294901760
      %v1215 = vsub.f32 %v1213, %v1214
      %v1216 = vand.u32 %v1215, 4294901760
      %1217 = vmatpush1.msra.mxu0 %v1216
      %v1218 = vand.u32 %v958, 4294901760
      %v1219 = vsub.f32 %v958, %v1218
      %v1220 = vand.u32 %v1219, 4294901760
      %v1221 = vsub.f32 %v1219, %v1220
      %v1222 = vand.u32 %v1221, 4294901760
      %1223 = vmatprep.subr.mxu0 %v1222
      %v1224 = vand.u32 %v957, 4294901760
      %v1225 = vsub.f32 %v957, %v1224
      %v1226 = vand.u32 %v1225, 4294901760
      %v1227 = vsub.f32 %v1225, %v1226
      %v1228 = vand.u32 %v1227, 4294901760
      %1229 = vmatpush1.msra.mxu0 %v1228
      %v1230 = vand.u32 %v956, 4294901760
      %v1231 = vsub.f32 %v956, %v1230
      %v1232 = vand.u32 %v1231, 4294901760
      %v1233 = vsub.f32 %v1231, %v1232
      %v1234 = vand.u32 %v1233, 4294901760
      %1235 = vmatprep.subr.mxu0 %v1234
      %v1236 = vand.u32 %v955, 4294901760
      %v1237 = vsub.f32 %v955, %v1236
      %v1238 = vand.u32 %v1237, 4294901760
      %v1239 = vsub.f32 %v1237, %v1238
      %v1240 = vand.u32 %v1239, 4294901760
      %1241 = vmatpush1.msra.mxu0 %v1240
      %v1242 = vand.u32 %v954, 4294901760
      %v1243 = vsub.f32 %v954, %v1242
      %v1244 = vand.u32 %v1243, 4294901760
      %v1245 = vsub.f32 %v1243, %v1244
      %v1246 = vand.u32 %v1245, 4294901760
      %1247 = vmatprep.subr.mxu0 %v1246
      %v1248 = vand.u32 %v953, 4294901760
      %v1249 = vsub.f32 %v953, %v1248
      %v1250 = vand.u32 %v1249, 4294901760
      %v1251 = vsub.f32 %v1249, %v1250
      %v1252 = vand.u32 %v1251, 4294901760
      %1253 = vmatpush1.msra.mxu0 %v1252
      %v1254 = vand.u32 %v952, 4294901760
      %v1255 = vsub.f32 %v952, %v1254
      %v1256 = vand.u32 %v1255, 4294901760
      %v1257 = vsub.f32 %v1255, %v1256
      %v1258 = vand.u32 %v1257, 4294901760
      %1259 = vmatprep.subr.mxu0 %v1258
      %v1260 = vand.u32 %v951, 4294901760
      %v1261 = vsub.f32 %v951, %v1260
      %v1262 = vand.u32 %v1261, 4294901760
      %v1263 = vsub.f32 %v1261, %v1262
      %v1264 = vand.u32 %v1263, 4294901760
      %1265 = vmatpush1.msra.mxu0 %v1264
      %v1266 = vand.u32 %v950, 4294901760
      %v1267 = vsub.f32 %v950, %v1266
      %v1268 = vand.u32 %v1267, 4294901760
      %v1269 = vsub.f32 %v1267, %v1268
      %v1270 = vand.u32 %v1269, 4294901760
      %1271 = vmatprep.subr.mxu0 %v1270
      %v1272 = vand.u32 %v949, 4294901760
      %v1273 = vsub.f32 %v949, %v1272
      %v1274 = vand.u32 %v1273, 4294901760
      %v1275 = vsub.f32 %v1273, %v1274
      %v1276 = vand.u32 %v1275, 4294901760
      %1277 = vmatpush1.msra.mxu0 %v1276
      %v1278 = vand.u32 %v948, 4294901760
      %v1279 = vsub.f32 %v948, %v1278
      %v1280 = vand.u32 %v1279, 4294901760
      %v1281 = vsub.f32 %v1279, %v1280
      %v1282 = vand.u32 %v1281, 4294901760
      %1283 = vmatprep.subr.mxu0 %v1282
      %v1284 = vand.u32 %v947, 4294901760
      %v1285 = vsub.f32 %v947, %v1284
      %v1286 = vand.u32 %v1285, 4294901760
      %v1287 = vsub.f32 %v1285, %v1286
      %v1288 = vand.u32 %v1287, 4294901760
      %1289 = vmatpush1.msra.mxu0 %v1288
      %1290 = vmatprep.subr.mxu0 0.0
      %1291 = vmatpush2.msra.mxu0 0.0
      %1292 = vmatprep.subr.mxu0 0.0
      %1293 = vmatpush2.msra.mxu0 0.0
      %1294 = vmatprep.subr.mxu0 0.0
      %1295 = vmatpush2.msra.mxu0 0.0
      %1296 = vmatprep.subr.mxu0 0.0
      %1297 = vmatpush2.msra.mxu0 0.0
      %1298 = vmatprep.subr.mxu0 0.0
      %1299 = vmatpush2.msra.mxu0 0.0
      %1300 = vmatprep.subr.mxu0 0.0
      %1301 = vmatpush2.msra.mxu0 0.0
      %1302 = vmatprep.subr.mxu0 0.0
      %1303 = vmatpush2.msra.mxu0 0.0
      %1304 = vmatprep.subr.mxu0 0.0
      %1305 = vmatpush2.msra.mxu0 0.0
      %1306 = vmatprep.subr.mxu0 0.0
      %1307 = vmatpush2.msra.mxu0 0.0
      %1308 = vmatprep.subr.mxu0 0.0
      %1309 = vmatpush2.msra.mxu0 0.0
      %1310 = vmatprep.subr.mxu0 0.0
      %1311 = vmatpush2.msra.mxu0 0.0
      %1312 = vmatprep.subr.mxu0 0.0
      %1313 = vmatpush2.msra.mxu0 0.0
      %1314 = vmatprep.subr.mxu0 0.0
      %1315 = vmatpush2.msra.mxu0 0.0
      %1316 = vmatprep.subr.mxu0 0.0
      %1317 = vmatpush2.msra.mxu0 0.0
      %1318 = vmatprep.subr.mxu0 0.0
      %1319 = vmatpush2.msra.mxu0 0.0
      %1320 = vmatprep.subr.mxu0 0.0
      %1321 = vmatpush2.msra.mxu0 0.0
      %1322 = vmatprep.mubr.f32.mxu0 0.0
      %v1323 = vand.u32 %v914, 4294901760
      %1324 = vmatmul.mubr.f32.gmra.mxu0 %v1323
      %v1325 = vpop.f32.mrf.mxu0
      %v1326 = vadd.f32 %v1083, %v1325
      %v1327 = vpop.f32.mrf.mxu0
      %v1328 = vadd.f32 %v1085, %v1327
      %1329 = vmatprep.mubr.f32.mxu0 0.0
      %v1330 = vand.u32 %v920, 4294901760
      %1331 = vmatmul.mubr.f32.gmra.mxu0 %v1330
      %v1332 = vpop.f32.mrf.mxu0
      %v1333 = vadd.f32 %v1094, %v1332
      %v1334 = vpop.f32.mrf.mxu0
      %v1335 = vadd.f32 %v1096, %v1334
      %1336 = vdwg.mxu0
      %v1337 = vand.u32 %v978, 4294901760
      %v1338 = vsub.f32 %v978, %v1337
      %1339 = vmatprep.subr.mxu0 %v1338
      %v1340 = vand.u32 %v977, 4294901760
      %v1341 = vsub.f32 %v977, %v1340
      %1342 = vmatpush1.msra.mxu0 %v1341
      %v1343 = vand.u32 %v976, 4294901760
      %v1344 = vsub.f32 %v976, %v1343
      %1345 = vmatprep.subr.mxu0 %v1344
      %v1346 = vand.u32 %v975, 4294901760
      %v1347 = vsub.f32 %v975, %v1346
      %1348 = vmatpush1.msra.mxu0 %v1347
      %v1349 = vand.u32 %v974, 4294901760
      %v1350 = vsub.f32 %v974, %v1349
      %1351 = vmatprep.subr.mxu0 %v1350
      %v1352 = vand.u32 %v973, 4294901760
      %v1353 = vsub.f32 %v973, %v1352
      %1354 = vmatpush1.msra.mxu0 %v1353
      %v1355 = vand.u32 %v972, 4294901760
      %v1356 = vsub.f32 %v972, %v1355
      %1357 = vmatprep.subr.mxu0 %v1356
      %v1358 = vand.u32 %v971, 4294901760
      %v1359 = vsub.f32 %v971, %v1358
      %1360 = vmatpush1.msra.mxu0 %v1359
      %v1361 = vand.u32 %v970, 4294901760
      %v1362 = vsub.f32 %v970, %v1361
      %1363 = vmatprep.subr.mxu0 %v1362
      %v1364 = vand.u32 %v969, 4294901760
      %v1365 = vsub.f32 %v969, %v1364
      %1366 = vmatpush1.msra.mxu0 %v1365
      %v1367 = vand.u32 %v968, 4294901760
      %v1368 = vsub.f32 %v968, %v1367
      %1369 = vmatprep.subr.mxu0 %v1368
      %v1370 = vand.u32 %v967, 4294901760
      %v1371 = vsub.f32 %v967, %v1370
      %1372 = vmatpush1.msra.mxu0 %v1371
      %v1373 = vand.u32 %v966, 4294901760
      %v1374 = vsub.f32 %v966, %v1373
      %1375 = vmatprep.subr.mxu0 %v1374
      %v1376 = vand.u32 %v965, 4294901760
      %v1377 = vsub.f32 %v965, %v1376
      %1378 = vmatpush1.msra.mxu0 %v1377
      %v1379 = vand.u32 %v964, 4294901760
      %v1380 = vsub.f32 %v964, %v1379
      %1381 = vmatprep.subr.mxu0 %v1380
      %v1382 = vand.u32 %v963, 4294901760
      %v1383 = vsub.f32 %v963, %v1382
      %1384 = vmatpush1.msra.mxu0 %v1383
      %v1385 = vand.u32 %v962, 4294901760
      %v1386 = vsub.f32 %v962, %v1385
      %1387 = vmatprep.subr.mxu0 %v1386
      %v1388 = vand.u32 %v961, 4294901760
      %v1389 = vsub.f32 %v961, %v1388
      %1390 = vmatpush1.msra.mxu0 %v1389
      %v1391 = vand.u32 %v960, 4294901760
      %v1392 = vsub.f32 %v960, %v1391
      %1393 = vmatprep.subr.mxu0 %v1392
      %v1394 = vand.u32 %v959, 4294901760
      %v1395 = vsub.f32 %v959, %v1394
      %1396 = vmatpush1.msra.mxu0 %v1395
      %v1397 = vand.u32 %v958, 4294901760
      %v1398 = vsub.f32 %v958, %v1397
      %1399 = vmatprep.subr.mxu0 %v1398
      %v1400 = vand.u32 %v957, 4294901760
      %v1401 = vsub.f32 %v957, %v1400
      %1402 = vmatpush1.msra.mxu0 %v1401
      %v1403 = vand.u32 %v956, 4294901760
      %v1404 = vsub.f32 %v956, %v1403
      %1405 = vmatprep.subr.mxu0 %v1404
      %v1406 = vand.u32 %v955, 4294901760
      %v1407 = vsub.f32 %v955, %v1406
      %1408 = vmatpush1.msra.mxu0 %v1407
      %v1409 = vand.u32 %v954, 4294901760
      %v1410 = vsub.f32 %v954, %v1409
      %1411 = vmatprep.subr.mxu0 %v1410
      %v1412 = vand.u32 %v953, 4294901760
      %v1413 = vsub.f32 %v953, %v1412
      %1414 = vmatpush1.msra.mxu0 %v1413
      %v1415 = vand.u32 %v952, 4294901760
      %v1416 = vsub.f32 %v952, %v1415
      %1417 = vmatprep.subr.mxu0 %v1416
      %v1418 = vand.u32 %v951, 4294901760
      %v1419 = vsub.f32 %v951, %v1418
      %1420 = vmatpush1.msra.mxu0 %v1419
      %v1421 = vand.u32 %v950, 4294901760
      %v1422 = vsub.f32 %v950, %v1421
      %1423 = vmatprep.subr.mxu0 %v1422
      %v1424 = vand.u32 %v949, 4294901760
      %v1425 = vsub.f32 %v949, %v1424
      %1426 = vmatpush1.msra.mxu0 %v1425
      %v1427 = vand.u32 %v948, 4294901760
      %v1428 = vsub.f32 %v948, %v1427
      %1429 = vmatprep.subr.mxu0 %v1428
      %v1430 = vand.u32 %v947, 4294901760
      %v1431 = vsub.f32 %v947, %v1430
      %1432 = vmatpush1.msra.mxu0 %v1431
      %1433 = vmatprep.subr.mxu0 0.0
      %1434 = vmatpush2.msra.mxu0 0.0
      %1435 = vmatprep.subr.mxu0 0.0
      %1436 = vmatpush2.msra.mxu0 0.0
      %1437 = vmatprep.subr.mxu0 0.0
      %1438 = vmatpush2.msra.mxu0 0.0
      %1439 = vmatprep.subr.mxu0 0.0
      %1440 = vmatpush2.msra.mxu0 0.0
      %1441 = vmatprep.subr.mxu0 0.0
      %1442 = vmatpush2.msra.mxu0 0.0
      %1443 = vmatprep.subr.mxu0 0.0
      %1444 = vmatpush2.msra.mxu0 0.0
      %1445 = vmatprep.subr.mxu0 0.0
      %1446 = vmatpush2.msra.mxu0 0.0
      %1447 = vmatprep.subr.mxu0 0.0
      %1448 = vmatpush2.msra.mxu0 0.0
      %1449 = vmatprep.subr.mxu0 0.0
      %1450 = vmatpush2.msra.mxu0 0.0
      %1451 = vmatprep.subr.mxu0 0.0
      %1452 = vmatpush2.msra.mxu0 0.0
      %1453 = vmatprep.subr.mxu0 0.0
      %1454 = vmatpush2.msra.mxu0 0.0
      %1455 = vmatprep.subr.mxu0 0.0
      %1456 = vmatpush2.msra.mxu0 0.0
      %1457 = vmatprep.subr.mxu0 0.0
      %1458 = vmatpush2.msra.mxu0 0.0
      %1459 = vmatprep.subr.mxu0 0.0
      %1460 = vmatpush2.msra.mxu0 0.0
      %1461 = vmatprep.subr.mxu0 0.0
      %1462 = vmatpush2.msra.mxu0 0.0
      %1463 = vmatprep.subr.mxu0 0.0
      %1464 = vmatpush2.msra.mxu0 0.0
      %1465 = vmatprep.mubr.f32.mxu0 0.0
      %v1466 = vand.u32 %v914, 4294901760
      %v1467 = vsub.f32 %v914, %v1466
      %1468 = vmatmul.mubr.f32.gmra.mxu0 %v1467
      %v1469 = vpop.f32.mrf.mxu0
      %v1470 = vadd.f32 %v1326, %v1469
      %v1471 = vpop.f32.mrf.mxu0
      %v1472 = vadd.f32 %v1328, %v1471
      %1473 = vmatprep.mubr.f32.mxu0 0.0
      %v1474 = vand.u32 %v920, 4294901760
      %v1475 = vsub.f32 %v920, %v1474
      %1476 = vmatmul.mubr.f32.gmra.mxu0 %v1475
      %v1477 = vpop.f32.mrf.mxu0
      %v1478 = vadd.f32 %v1333, %v1477
      %v1479 = vpop.f32.mrf.mxu0
      %v1480 = vadd.f32 %v1335, %v1479
      %1481 = vdwg.mxu0
      %v1482 = vand.u32 %v978, 4294901760
      %1483 = vmatprep.subr.mxu0 %v1482
      %v1484 = vand.u32 %v977, 4294901760
      %1485 = vmatpush1.msra.mxu0 %v1484
      %v1486 = vand.u32 %v976, 4294901760
      %1487 = vmatprep.subr.mxu0 %v1486
      %v1488 = vand.u32 %v975, 4294901760
      %1489 = vmatpush1.msra.mxu0 %v1488
      %v1490 = vand.u32 %v974, 4294901760
      %1491 = vmatprep.subr.mxu0 %v1490
      %v1492 = vand.u32 %v973, 4294901760
      %1493 = vmatpush1.msra.mxu0 %v1492
      %v1494 = vand.u32 %v972, 4294901760
      %1495 = vmatprep.subr.mxu0 %v1494
      %v1496 = vand.u32 %v971, 4294901760
      %1497 = vmatpush1.msra.mxu0 %v1496
      %v1498 = vand.u32 %v970, 4294901760
      %1499 = vmatprep.subr.mxu0 %v1498
      %v1500 = vand.u32 %v969, 4294901760
      %1501 = vmatpush1.msra.mxu0 %v1500
      %v1502 = vand.u32 %v968, 4294901760
      %1503 = vmatprep.subr.mxu0 %v1502
      %v1504 = vand.u32 %v967, 4294901760
      %1505 = vmatpush1.msra.mxu0 %v1504
      %v1506 = vand.u32 %v966, 4294901760
      %1507 = vmatprep.subr.mxu0 %v1506
      %v1508 = vand.u32 %v965, 4294901760
      %1509 = vmatpush1.msra.mxu0 %v1508
      %v1510 = vand.u32 %v964, 4294901760
      %1511 = vmatprep.subr.mxu0 %v1510
      %v1512 = vand.u32 %v963, 4294901760
      %1513 = vmatpush1.msra.mxu0 %v1512
      %v1514 = vand.u32 %v962, 4294901760
      %1515 = vmatprep.subr.mxu0 %v1514
      %v1516 = vand.u32 %v961, 4294901760
      %1517 = vmatpush1.msra.mxu0 %v1516
      %v1518 = vand.u32 %v960, 4294901760
      %1519 = vmatprep.subr.mxu0 %v1518
      %v1520 = vand.u32 %v959, 4294901760
      %1521 = vmatpush1.msra.mxu0 %v1520
      %v1522 = vand.u32 %v958, 4294901760
      %1523 = vmatprep.subr.mxu0 %v1522
      %v1524 = vand.u32 %v957, 4294901760
      %1525 = vmatpush1.msra.mxu0 %v1524
      %v1526 = vand.u32 %v956, 4294901760
      %1527 = vmatprep.subr.mxu0 %v1526
      %v1528 = vand.u32 %v955, 4294901760
      %1529 = vmatpush1.msra.mxu0 %v1528
      %v1530 = vand.u32 %v954, 4294901760
      %1531 = vmatprep.subr.mxu0 %v1530
      %v1532 = vand.u32 %v953, 4294901760
      %1533 = vmatpush1.msra.mxu0 %v1532
      %v1534 = vand.u32 %v952, 4294901760
      %1535 = vmatprep.subr.mxu0 %v1534
      %v1536 = vand.u32 %v951, 4294901760
      %1537 = vmatpush1.msra.mxu0 %v1536
      %v1538 = vand.u32 %v950, 4294901760
      %1539 = vmatprep.subr.mxu0 %v1538
      %v1540 = vand.u32 %v949, 4294901760
      %1541 = vmatpush1.msra.mxu0 %v1540
      %v1542 = vand.u32 %v948, 4294901760
      %1543 = vmatprep.subr.mxu0 %v1542
      %v1544 = vand.u32 %v947, 4294901760
      %1545 = vmatpush1.msra.mxu0 %v1544
      %1546 = vmatprep.subr.mxu0 0.0
      %1547 = vmatpush2.msra.mxu0 0.0
      %1548 = vmatprep.subr.mxu0 0.0
      %1549 = vmatpush2.msra.mxu0 0.0
      %1550 = vmatprep.subr.mxu0 0.0
      %1551 = vmatpush2.msra.mxu0 0.0
      %1552 = vmatprep.subr.mxu0 0.0
      %1553 = vmatpush2.msra.mxu0 0.0
      %1554 = vmatprep.subr.mxu0 0.0
      %1555 = vmatpush2.msra.mxu0 0.0
      %1556 = vmatprep.subr.mxu0 0.0
      %1557 = vmatpush2.msra.mxu0 0.0
      %1558 = vmatprep.subr.mxu0 0.0
      %1559 = vmatpush2.msra.mxu0 0.0
      %1560 = vmatprep.subr.mxu0 0.0
      %1561 = vmatpush2.msra.mxu0 0.0
      %1562 = vmatprep.subr.mxu0 0.0
      %1563 = vmatpush2.msra.mxu0 0.0
      %1564 = vmatprep.subr.mxu0 0.0
      %1565 = vmatpush2.msra.mxu0 0.0
      %1566 = vmatprep.subr.mxu0 0.0
      %1567 = vmatpush2.msra.mxu0 0.0
      %1568 = vmatprep.subr.mxu0 0.0
      %1569 = vmatpush2.msra.mxu0 0.0
      %1570 = vmatprep.subr.mxu0 0.0
      %1571 = vmatpush2.msra.mxu0 0.0
      %1572 = vmatprep.subr.mxu0 0.0
      %1573 = vmatpush2.msra.mxu0 0.0
      %1574 = vmatprep.subr.mxu0 0.0
      %1575 = vmatpush2.msra.mxu0 0.0
      %1576 = vmatprep.subr.mxu0 0.0
      %1577 = vmatpush2.msra.mxu0 0.0
      %1578 = vmatprep.mubr.f32.mxu0 0.0
      %v1579 = vand.u32 %v914, 4294901760
      %v1580 = vsub.f32 %v914, %v1579
      %v1581 = vand.u32 %v1580, 4294901760
      %1582 = vmatmul.mubr.f32.gmra.mxu0 %v1581
      %v1583 = vpop.f32.mrf.mxu0
      %v1584 = vadd.f32 %v1470, %v1583
      %v1585 = vpop.f32.mrf.mxu0
      %v1586 = vadd.f32 %v1472, %v1585
      %1587 = vmatprep.mubr.f32.mxu0 0.0
      %v1588 = vand.u32 %v920, 4294901760
      %v1589 = vsub.f32 %v920, %v1588
      %v1590 = vand.u32 %v1589, 4294901760
      %1591 = vmatmul.mubr.f32.gmra.mxu0 %v1590
      %v1592 = vpop.f32.mrf.mxu0
      %v1593 = vadd.f32 %v1478, %v1592
      %v1594 = vpop.f32.mrf.mxu0
      %v1595 = vadd.f32 %v1480, %v1594
      %1596 = vdwg.mxu0
      %v1597 = vand.u32 %v978, 4294901760
      %v1598 = vsub.f32 %v978, %v1597
      %v1599 = vand.u32 %v1598, 4294901760
      %1600 = vmatprep.subr.mxu0 %v1599
      %v1601 = vand.u32 %v977, 4294901760
      %v1602 = vsub.f32 %v977, %v1601
      %v1603 = vand.u32 %v1602, 4294901760
      %1604 = vmatpush1.msra.mxu0 %v1603
      %v1605 = vand.u32 %v976, 4294901760
      %v1606 = vsub.f32 %v976, %v1605
      %v1607 = vand.u32 %v1606, 4294901760
      %1608 = vmatprep.subr.mxu0 %v1607
      %v1609 = vand.u32 %v975, 4294901760
      %v1610 = vsub.f32 %v975, %v1609
      %v1611 = vand.u32 %v1610, 4294901760
      %1612 = vmatpush1.msra.mxu0 %v1611
      %v1613 = vand.u32 %v974, 4294901760
      %v1614 = vsub.f32 %v974, %v1613
      %v1615 = vand.u32 %v1614, 4294901760
      %1616 = vmatprep.subr.mxu0 %v1615
      %v1617 = vand.u32 %v973, 4294901760
      %v1618 = vsub.f32 %v973, %v1617
      %v1619 = vand.u32 %v1618, 4294901760
      %1620 = vmatpush1.msra.mxu0 %v1619
      %v1621 = vand.u32 %v972, 4294901760
      %v1622 = vsub.f32 %v972, %v1621
      %v1623 = vand.u32 %v1622, 4294901760
      %1624 = vmatprep.subr.mxu0 %v1623
      %v1625 = vand.u32 %v971, 4294901760
      %v1626 = vsub.f32 %v971, %v1625
      %v1627 = vand.u32 %v1626, 4294901760
      %1628 = vmatpush1.msra.mxu0 %v1627
      %v1629 = vand.u32 %v970, 4294901760
      %v1630 = vsub.f32 %v970, %v1629
      %v1631 = vand.u32 %v1630, 4294901760
      %1632 = vmatprep.subr.mxu0 %v1631
      %v1633 = vand.u32 %v969, 4294901760
      %v1634 = vsub.f32 %v969, %v1633
      %v1635 = vand.u32 %v1634, 4294901760
      %1636 = vmatpush1.msra.mxu0 %v1635
      %v1637 = vand.u32 %v968, 4294901760
      %v1638 = vsub.f32 %v968, %v1637
      %v1639 = vand.u32 %v1638, 4294901760
      %1640 = vmatprep.subr.mxu0 %v1639
      %v1641 = vand.u32 %v967, 4294901760
      %v1642 = vsub.f32 %v967, %v1641
      %v1643 = vand.u32 %v1642, 4294901760
      %1644 = vmatpush1.msra.mxu0 %v1643
      %v1645 = vand.u32 %v966, 4294901760
      %v1646 = vsub.f32 %v966, %v1645
      %v1647 = vand.u32 %v1646, 4294901760
      %1648 = vmatprep.subr.mxu0 %v1647
      %v1649 = vand.u32 %v965, 4294901760
      %v1650 = vsub.f32 %v965, %v1649
      %v1651 = vand.u32 %v1650, 4294901760
      %1652 = vmatpush1.msra.mxu0 %v1651
      %v1653 = vand.u32 %v964, 4294901760
      %v1654 = vsub.f32 %v964, %v1653
      %v1655 = vand.u32 %v1654, 4294901760
      %1656 = vmatprep.subr.mxu0 %v1655
      %v1657 = vand.u32 %v963, 4294901760
      %v1658 = vsub.f32 %v963, %v1657
      %v1659 = vand.u32 %v1658, 4294901760
      %1660 = vmatpush1.msra.mxu0 %v1659
      %v1661 = vand.u32 %v962, 4294901760
      %v1662 = vsub.f32 %v962, %v1661
      %v1663 = vand.u32 %v1662, 4294901760
      %1664 = vmatprep.subr.mxu0 %v1663
      %v1665 = vand.u32 %v961, 4294901760
      %v1666 = vsub.f32 %v961, %v1665
      %v1667 = vand.u32 %v1666, 4294901760
      %1668 = vmatpush1.msra.mxu0 %v1667
      %v1669 = vand.u32 %v960, 4294901760
      %v1670 = vsub.f32 %v960, %v1669
      %v1671 = vand.u32 %v1670, 4294901760
      %1672 = vmatprep.subr.mxu0 %v1671
      %v1673 = vand.u32 %v959, 4294901760
      %v1674 = vsub.f32 %v959, %v1673
      %v1675 = vand.u32 %v1674, 4294901760
      %1676 = vmatpush1.msra.mxu0 %v1675
      %v1677 = vand.u32 %v958, 4294901760
      %v1678 = vsub.f32 %v958, %v1677
      %v1679 = vand.u32 %v1678, 4294901760
      %1680 = vmatprep.subr.mxu0 %v1679
      %v1681 = vand.u32 %v957, 4294901760
      %v1682 = vsub.f32 %v957, %v1681
      %v1683 = vand.u32 %v1682, 4294901760
      %1684 = vmatpush1.msra.mxu0 %v1683
      %v1685 = vand.u32 %v956, 4294901760
      %v1686 = vsub.f32 %v956, %v1685
      %v1687 = vand.u32 %v1686, 4294901760
      %1688 = vmatprep.subr.mxu0 %v1687
      %v1689 = vand.u32 %v955, 4294901760
      %v1690 = vsub.f32 %v955, %v1689
      %v1691 = vand.u32 %v1690, 4294901760
      %1692 = vmatpush1.msra.mxu0 %v1691
      %v1693 = vand.u32 %v954, 4294901760
      %v1694 = vsub.f32 %v954, %v1693
      %v1695 = vand.u32 %v1694, 4294901760
      %1696 = vmatprep.subr.mxu0 %v1695
      %v1697 = vand.u32 %v953, 4294901760
      %v1698 = vsub.f32 %v953, %v1697
      %v1699 = vand.u32 %v1698, 4294901760
      %1700 = vmatpush1.msra.mxu0 %v1699
      %v1701 = vand.u32 %v952, 4294901760
      %v1702 = vsub.f32 %v952, %v1701
      %v1703 = vand.u32 %v1702, 4294901760
      %1704 = vmatprep.subr.mxu0 %v1703
      %v1705 = vand.u32 %v951, 4294901760
      %v1706 = vsub.f32 %v951, %v1705
      %v1707 = vand.u32 %v1706, 4294901760
      %1708 = vmatpush1.msra.mxu0 %v1707
      %v1709 = vand.u32 %v950, 4294901760
      %v1710 = vsub.f32 %v950, %v1709
      %v1711 = vand.u32 %v1710, 4294901760
      %1712 = vmatprep.subr.mxu0 %v1711
      %v1713 = vand.u32 %v949, 4294901760
      %v1714 = vsub.f32 %v949, %v1713
      %v1715 = vand.u32 %v1714, 4294901760
      %1716 = vmatpush1.msra.mxu0 %v1715
      %v1717 = vand.u32 %v948, 4294901760
      %v1718 = vsub.f32 %v948, %v1717
      %v1719 = vand.u32 %v1718, 4294901760
      %1720 = vmatprep.subr.mxu0 %v1719
      %v1721 = vand.u32 %v947, 4294901760
      %v1722 = vsub.f32 %v947, %v1721
      %v1723 = vand.u32 %v1722, 4294901760
      %1724 = vmatpush1.msra.mxu0 %v1723
      %1725 = vmatprep.subr.mxu0 0.0
      %1726 = vmatpush2.msra.mxu0 0.0
      %1727 = vmatprep.subr.mxu0 0.0
      %1728 = vmatpush2.msra.mxu0 0.0
      %1729 = vmatprep.subr.mxu0 0.0
      %1730 = vmatpush2.msra.mxu0 0.0
      %1731 = vmatprep.subr.mxu0 0.0
      %1732 = vmatpush2.msra.mxu0 0.0
      %1733 = vmatprep.subr.mxu0 0.0
      %1734 = vmatpush2.msra.mxu0 0.0
      %1735 = vmatprep.subr.mxu0 0.0
      %1736 = vmatpush2.msra.mxu0 0.0
      %1737 = vmatprep.subr.mxu0 0.0
      %1738 = vmatpush2.msra.mxu0 0.0
      %1739 = vmatprep.subr.mxu0 0.0
      %1740 = vmatpush2.msra.mxu0 0.0
      %1741 = vmatprep.subr.mxu0 0.0
      %1742 = vmatpush2.msra.mxu0 0.0
      %1743 = vmatprep.subr.mxu0 0.0
      %1744 = vmatpush2.msra.mxu0 0.0
      %1745 = vmatprep.subr.mxu0 0.0
      %1746 = vmatpush2.msra.mxu0 0.0
      %1747 = vmatprep.subr.mxu0 0.0
      %1748 = vmatpush2.msra.mxu0 0.0
      %1749 = vmatprep.subr.mxu0 0.0
      %1750 = vmatpush2.msra.mxu0 0.0
      %1751 = vmatprep.subr.mxu0 0.0
      %1752 = vmatpush2.msra.mxu0 0.0
      %1753 = vmatprep.subr.mxu0 0.0
      %1754 = vmatpush2.msra.mxu0 0.0
      %1755 = vmatprep.subr.mxu0 0.0
      %1756 = vmatpush2.msra.mxu0 0.0
      %1757 = vmatprep.mubr.f32.mxu0 0.0
      %v1758 = vand.u32 %v914, 4294901760
      %1759 = vmatmul.mubr.f32.gmra.mxu0 %v1758
      %v1760 = vpop.f32.mrf.mxu0
      %v1761 = vadd.f32 %v1584, %v1760
      %v1762 = vpop.f32.mrf.mxu0
      %v1763 = vadd.f32 %v1586, %v1762
      %1764 = vmatprep.mubr.f32.mxu0 0.0
      %v1765 = vand.u32 %v920, 4294901760
      %1766 = vmatmul.mubr.f32.gmra.mxu0 %v1765
      %v1767 = vpop.f32.mrf.mxu0
      %v1768 = vadd.f32 %v1593, %v1767
      %v1769 = vpop.f32.mrf.mxu0
      %v1770 = vadd.f32 %v1595, %v1769
      %1771 = vdwg.mxu0
      %v1772 = vand.u32 %v978, 4294901760
      %1773 = vmatprep.subr.mxu0 %v1772
      %v1774 = vand.u32 %v977, 4294901760
      %1775 = vmatpush1.msra.mxu0 %v1774
      %v1776 = vand.u32 %v976, 4294901760
      %1777 = vmatprep.subr.mxu0 %v1776
      %v1778 = vand.u32 %v975, 4294901760
      %1779 = vmatpush1.msra.mxu0 %v1778
      %v1780 = vand.u32 %v974, 4294901760
      %1781 = vmatprep.subr.mxu0 %v1780
      %v1782 = vand.u32 %v973, 4294901760
      %1783 = vmatpush1.msra.mxu0 %v1782
      %v1784 = vand.u32 %v972, 4294901760
      %1785 = vmatprep.subr.mxu0 %v1784
      %v1786 = vand.u32 %v971, 4294901760
      %1787 = vmatpush1.msra.mxu0 %v1786
      %v1788 = vand.u32 %v970, 4294901760
      %1789 = vmatprep.subr.mxu0 %v1788
      %v1790 = vand.u32 %v969, 4294901760
      %1791 = vmatpush1.msra.mxu0 %v1790
      %v1792 = vand.u32 %v968, 4294901760
      %1793 = vmatprep.subr.mxu0 %v1792
      %v1794 = vand.u32 %v967, 4294901760
      %1795 = vmatpush1.msra.mxu0 %v1794
      %v1796 = vand.u32 %v966, 4294901760
      %1797 = vmatprep.subr.mxu0 %v1796
      %v1798 = vand.u32 %v965, 4294901760
      %1799 = vmatpush1.msra.mxu0 %v1798
      %v1800 = vand.u32 %v964, 4294901760
      %1801 = vmatprep.subr.mxu0 %v1800
      %v1802 = vand.u32 %v963, 4294901760
      %1803 = vmatpush1.msra.mxu0 %v1802
      %v1804 = vand.u32 %v962, 4294901760
      %1805 = vmatprep.subr.mxu0 %v1804
      %v1806 = vand.u32 %v961, 4294901760
      %1807 = vmatpush1.msra.mxu0 %v1806
      %v1808 = vand.u32 %v960, 4294901760
      %1809 = vmatprep.subr.mxu0 %v1808
      %v1810 = vand.u32 %v959, 4294901760
      %1811 = vmatpush1.msra.mxu0 %v1810
      %v1812 = vand.u32 %v958, 4294901760
      %1813 = vmatprep.subr.mxu0 %v1812
      %v1814 = vand.u32 %v957, 4294901760
      %1815 = vmatpush1.msra.mxu0 %v1814
      %v1816 = vand.u32 %v956, 4294901760
      %1817 = vmatprep.subr.mxu0 %v1816
      %v1818 = vand.u32 %v955, 4294901760
      %1819 = vmatpush1.msra.mxu0 %v1818
      %v1820 = vand.u32 %v954, 4294901760
      %1821 = vmatprep.subr.mxu0 %v1820
      %v1822 = vand.u32 %v953, 4294901760
      %1823 = vmatpush1.msra.mxu0 %v1822
      %v1824 = vand.u32 %v952, 4294901760
      %1825 = vmatprep.subr.mxu0 %v1824
      %v1826 = vand.u32 %v951, 4294901760
      %1827 = vmatpush1.msra.mxu0 %v1826
      %v1828 = vand.u32 %v950, 4294901760
      %1829 = vmatprep.subr.mxu0 %v1828
      %v1830 = vand.u32 %v949, 4294901760
      %1831 = vmatpush1.msra.mxu0 %v1830
      %v1832 = vand.u32 %v948, 4294901760
      %1833 = vmatprep.subr.mxu0 %v1832
      %v1834 = vand.u32 %v947, 4294901760
      %1835 = vmatpush1.msra.mxu0 %v1834
      %1836 = vmatprep.subr.mxu0 0.0
      %1837 = vmatpush2.msra.mxu0 0.0
      %1838 = vmatprep.subr.mxu0 0.0
      %1839 = vmatpush2.msra.mxu0 0.0
      %1840 = vmatprep.subr.mxu0 0.0
      %1841 = vmatpush2.msra.mxu0 0.0
      %1842 = vmatprep.subr.mxu0 0.0
      %1843 = vmatpush2.msra.mxu0 0.0
      %1844 = vmatprep.subr.mxu0 0.0
      %1845 = vmatpush2.msra.mxu0 0.0
      %1846 = vmatprep.subr.mxu0 0.0
      %1847 = vmatpush2.msra.mxu0 0.0
      %1848 = vmatprep.subr.mxu0 0.0
      %1849 = vmatpush2.msra.mxu0 0.0
      %1850 = vmatprep.subr.mxu0 0.0
      %1851 = vmatpush2.msra.mxu0 0.0
      %1852 = vmatprep.subr.mxu0 0.0
      %1853 = vmatpush2.msra.mxu0 0.0
      %1854 = vmatprep.subr.mxu0 0.0
      %1855 = vmatpush2.msra.mxu0 0.0
      %1856 = vmatprep.subr.mxu0 0.0
      %1857 = vmatpush2.msra.mxu0 0.0
      %1858 = vmatprep.subr.mxu0 0.0
      %1859 = vmatpush2.msra.mxu0 0.0
      %1860 = vmatprep.subr.mxu0 0.0
      %1861 = vmatpush2.msra.mxu0 0.0
      %1862 = vmatprep.subr.mxu0 0.0
      %1863 = vmatpush2.msra.mxu0 0.0
      %1864 = vmatprep.subr.mxu0 0.0
      %1865 = vmatpush2.msra.mxu0 0.0
      %1866 = vmatprep.subr.mxu0 0.0
      %1867 = vmatpush2.msra.mxu0 0.0
      %1868 = vmatprep.mubr.f32.mxu0 0.0
      %v1869 = vand.u32 %v914, 4294901760
      %1870 = vmatmul.mubr.f32.gmra.mxu0 %v1869
      %v1871 = vpop.f32.mrf.mxu0
      %v1872 = vadd.f32 %v1761, %v1871
      %v1873 = vpop.f32.mrf.mxu0
      %v1874 = vadd.f32 %v1763, %v1873
      %1875 = vmatprep.mubr.f32.mxu0 0.0
      %v1876 = vand.u32 %v920, 4294901760
      %1877 = vmatmul.mubr.f32.gmra.mxu0 %v1876
      %v1878 = vpop.f32.mrf.mxu0
      %v1879 = vadd.f32 %v1768, %v1878
      %v1880 = vpop.f32.mrf.mxu0
      %v1881 = vadd.f32 %v1770, %v1880
      %1882 = vdwg.mxu0
      %v1883 = vadd.f32 %v242, %v1872
      %v1884 = vadd.f32 %v243, %v1874
      %v1885 = vadd.f32 %v245, %v1879
      %v1886 = vadd.f32 %v246, %v1881
      %s1887 = scalar_lea.vmem %s2, 256
      %v1888 = vld [vmem:[%s1887] sm:$0xff]
      %v1889 = vld [vmem:[%s1887 + $0x8] sm:$0xff]
      %v1890 = vld [vmem:[%s1887 + $0x10] sm:$0xff]
      %v1891 = vld [vmem:[%s1887 + $0x18] sm:$0xff]
      %v1892 = vld [vmem:[%s1887 + $0x20] sm:$0xff]
      %v1893 = vld [vmem:[%s1887 + $0x28] sm:$0xff]
      %v1894 = vld [vmem:[%s1887 + $0x30] sm:$0xff]
      %v1895 = vld [vmem:[%s1887 + $0x38] sm:$0xff]
      %v1896 = vld [vmem:[%s1887 + $0x40] sm:$0xff]
      %v1897 = vld [vmem:[%s1887 + $0x48] sm:$0xff]
      %v1898 = vld [vmem:[%s1887 + $0x50] sm:$0xff]
      %v1899 = vld [vmem:[%s1887 + $0x58] sm:$0xff]
      %v1900 = vld [vmem:[%s1887 + $0x60] sm:$0xff]
      %v1901 = vld [vmem:[%s1887 + $0x68] sm:$0xff]
      %v1902 = vld [vmem:[%s1887 + $0x70] sm:$0xff]
      %v1903 = vld [vmem:[%s1887 + $0x78] sm:$0xff]
      %v1904 = vld [vmem:[%s1887 + $0x80] sm:$0xff]
      %v1905 = vld [vmem:[%s1887 + $0x88] sm:$0xff]
      %v1906 = vld [vmem:[%s1887 + $0x90] sm:$0xff]
      %v1907 = vld [vmem:[%s1887 + $0x98] sm:$0xff]
      %v1908 = vld [vmem:[%s1887 + $0xa0] sm:$0xff]
      %v1909 = vld [vmem:[%s1887 + $0xa8] sm:$0xff]
      %v1910 = vld [vmem:[%s1887 + $0xb0] sm:$0xff]
      %v1911 = vld [vmem:[%s1887 + $0xb8] sm:$0xff]
      %v1912 = vld [vmem:[%s1887 + $0xc0] sm:$0xff]
      %v1913 = vld [vmem:[%s1887 + $0xc8] sm:$0xff]
      %v1914 = vld [vmem:[%s1887 + $0xd0] sm:$0xff]
      %v1915 = vld [vmem:[%s1887 + $0xd8] sm:$0xff]
      %v1916 = vld [vmem:[%s1887 + $0xe0] sm:$0xff]
      %v1917 = vld [vmem:[%s1887 + $0xe8] sm:$0xff]
      %v1918 = vld [vmem:[%s1887 + $0xf0] sm:$0xff]
      %v1919 = vld [vmem:[%s1887 + $0xf8] sm:$0xff]
      %v1920 = vand.u32 %v1919, 4294901760
      %1921 = vmatprep.subr.mxu0 %v1920
      %v1922 = vand.u32 %v1918, 4294901760
      %1923 = vmatpush1.msra.mxu0 %v1922
      %v1924 = vand.u32 %v1917, 4294901760
      %1925 = vmatprep.subr.mxu0 %v1924
      %v1926 = vand.u32 %v1916, 4294901760
      %1927 = vmatpush1.msra.mxu0 %v1926
      %v1928 = vand.u32 %v1915, 4294901760
      %1929 = vmatprep.subr.mxu0 %v1928
      %v1930 = vand.u32 %v1914, 4294901760
      %1931 = vmatpush1.msra.mxu0 %v1930
      %v1932 = vand.u32 %v1913, 4294901760
      %1933 = vmatprep.subr.mxu0 %v1932
      %v1934 = vand.u32 %v1912, 4294901760
      %1935 = vmatpush1.msra.mxu0 %v1934
      %v1936 = vand.u32 %v1911, 4294901760
      %1937 = vmatprep.subr.mxu0 %v1936
      %v1938 = vand.u32 %v1910, 4294901760
      %1939 = vmatpush1.msra.mxu0 %v1938
      %v1940 = vand.u32 %v1909, 4294901760
      %1941 = vmatprep.subr.mxu0 %v1940
      %v1942 = vand.u32 %v1908, 4294901760
      %1943 = vmatpush1.msra.mxu0 %v1942
      %v1944 = vand.u32 %v1907, 4294901760
      %1945 = vmatprep.subr.mxu0 %v1944
      %v1946 = vand.u32 %v1906, 4294901760
      %1947 = vmatpush1.msra.mxu0 %v1946
      %v1948 = vand.u32 %v1905, 4294901760
      %1949 = vmatprep.subr.mxu0 %v1948
      %v1950 = vand.u32 %v1904, 4294901760
      %1951 = vmatpush1.msra.mxu0 %v1950
      %v1952 = vand.u32 %v1903, 4294901760
      %1953 = vmatprep.subr.mxu0 %v1952
      %v1954 = vand.u32 %v1902, 4294901760
      %1955 = vmatpush1.msra.mxu0 %v1954
      %v1956 = vand.u32 %v1901, 4294901760
      %1957 = vmatprep.subr.mxu0 %v1956
      %v1958 = vand.u32 %v1900, 4294901760
      %1959 = vmatpush1.msra.mxu0 %v1958
      %v1960 = vand.u32 %v1899, 4294901760
      %1961 = vmatprep.subr.mxu0 %v1960
      %v1962 = vand.u32 %v1898, 4294901760
      %1963 = vmatpush1.msra.mxu0 %v1962
      %v1964 = vand.u32 %v1897, 4294901760
      %1965 = vmatprep.subr.mxu0 %v1964
      %v1966 = vand.u32 %v1896, 4294901760
      %1967 = vmatpush1.msra.mxu0 %v1966
      %v1968 = vand.u32 %v1895, 4294901760
      %1969 = vmatprep.subr.mxu0 %v1968
      %v1970 = vand.u32 %v1894, 4294901760
      %1971 = vmatpush1.msra.mxu0 %v1970
      %v1972 = vand.u32 %v1893, 4294901760
      %1973 = vmatprep.subr.mxu0 %v1972
      %v1974 = vand.u32 %v1892, 4294901760
      %1975 = vmatpush1.msra.mxu0 %v1974
      %v1976 = vand.u32 %v1891, 4294901760
      %1977 = vmatprep.subr.mxu0 %v1976
      %v1978 = vand.u32 %v1890, 4294901760
      %1979 = vmatpush1.msra.mxu0 %v1978
      %v1980 = vand.u32 %v1889, 4294901760
      %1981 = vmatprep.subr.mxu0 %v1980
      %v1982 = vand.u32 %v1888, 4294901760
      %1983 = vmatpush1.msra.mxu0 %v1982
      %1984 = vmatprep.subr.mxu0 0.0
      %1985 = vmatpush2.msra.mxu0 0.0
      %1986 = vmatprep.subr.mxu0 0.0
      %1987 = vmatpush2.msra.mxu0 0.0
      %1988 = vmatprep.subr.mxu0 0.0
      %1989 = vmatpush2.msra.mxu0 0.0
      %1990 = vmatprep.subr.mxu0 0.0
      %1991 = vmatpush2.msra.mxu0 0.0
      %1992 = vmatprep.subr.mxu0 0.0
      %1993 = vmatpush2.msra.mxu0 0.0
      %1994 = vmatprep.subr.mxu0 0.0
      %1995 = vmatpush2.msra.mxu0 0.0
      %1996 = vmatprep.subr.mxu0 0.0
      %1997 = vmatpush2.msra.mxu0 0.0
      %1998 = vmatprep.subr.mxu0 0.0
      %1999 = vmatpush2.msra.mxu0 0.0
      %2000 = vmatprep.subr.mxu0 0.0
      %2001 = vmatpush2.msra.mxu0 0.0
      %2002 = vmatprep.subr.mxu0 0.0
      %2003 = vmatpush2.msra.mxu0 0.0
      %2004 = vmatprep.subr.mxu0 0.0
      %2005 = vmatpush2.msra.mxu0 0.0
      %2006 = vmatprep.subr.mxu0 0.0
      %2007 = vmatpush2.msra.mxu0 0.0
      %2008 = vmatprep.subr.mxu0 0.0
      %2009 = vmatpush2.msra.mxu0 0.0
      %2010 = vmatprep.subr.mxu0 0.0
      %2011 = vmatpush2.msra.mxu0 0.0
      %2012 = vmatprep.subr.mxu0 0.0
      %2013 = vmatpush2.msra.mxu0 0.0
      %2014 = vmatprep.subr.mxu0 0.0
      %2015 = vmatpush2.msra.mxu0 0.0
      %2016 = vmatprep.mubr.f32.mxu0 0.0
      %v2017 = vand.u32 %v926, 4294901760
      %v2018 = vsub.f32 %v926, %v2017
      %v2019 = vand.u32 %v2018, 4294901760
      %v2020 = vsub.f32 %v2018, %v2019
      %v2021 = vand.u32 %v2020, 4294901760
      %2022 = vmatmul.mubr.f32.gmra.mxu0 %v2021
      %v2023 = vpop.f32.mrf.mxu0
      %v2024 = vadd.f32 0.0, %v2023
      %v2025 = vpop.f32.mrf.mxu0
      %v2026 = vadd.f32 0.0, %v2025
      %2027 = vmatprep.mubr.f32.mxu0 0.0
      %v2028 = vand.u32 %v932, 4294901760
      %v2029 = vsub.f32 %v932, %v2028
      %v2030 = vand.u32 %v2029, 4294901760
      %v2031 = vsub.f32 %v2029, %v2030
      %v2032 = vand.u32 %v2031, 4294901760
      %2033 = vmatmul.mubr.f32.gmra.mxu0 %v2032
      %v2034 = vpop.f32.mrf.mxu0
      %v2035 = vadd.f32 0.0, %v2034
      %v2036 = vpop.f32.mrf.mxu0
      %v2037 = vadd.f32 0.0, %v2036
      %2038 = vdwg.mxu0
      %v2039 = vand.u32 %v1919, 4294901760
      %v2040 = vsub.f32 %v1919, %v2039
      %v2041 = vand.u32 %v2040, 4294901760
      %v2042 = vsub.f32 %v2040, %v2041
      %v2043 = vand.u32 %v2042, 4294901760
      %2044 = vmatprep.subr.mxu0 %v2043
      %v2045 = vand.u32 %v1918, 4294901760
      %v2046 = vsub.f32 %v1918, %v2045
      %v2047 = vand.u32 %v2046, 4294901760
      %v2048 = vsub.f32 %v2046, %v2047
      %v2049 = vand.u32 %v2048, 4294901760
      %2050 = vmatpush1.msra.mxu0 %v2049
      %v2051 = vand.u32 %v1917, 4294901760
      %v2052 = vsub.f32 %v1917, %v2051
      %v2053 = vand.u32 %v2052, 4294901760
      %v2054 = vsub.f32 %v2052, %v2053
      %v2055 = vand.u32 %v2054, 4294901760
      %2056 = vmatprep.subr.mxu0 %v2055
      %v2057 = vand.u32 %v1916, 4294901760
      %v2058 = vsub.f32 %v1916, %v2057
      %v2059 = vand.u32 %v2058, 4294901760
      %v2060 = vsub.f32 %v2058, %v2059
      %v2061 = vand.u32 %v2060, 4294901760
      %2062 = vmatpush1.msra.mxu0 %v2061
      %v2063 = vand.u32 %v1915, 4294901760
      %v2064 = vsub.f32 %v1915, %v2063
      %v2065 = vand.u32 %v2064, 4294901760
      %v2066 = vsub.f32 %v2064, %v2065
      %v2067 = vand.u32 %v2066, 4294901760
      %2068 = vmatprep.subr.mxu0 %v2067
      %v2069 = vand.u32 %v1914, 4294901760
      %v2070 = vsub.f32 %v1914, %v2069
      %v2071 = vand.u32 %v2070, 4294901760
      %v2072 = vsub.f32 %v2070, %v2071
      %v2073 = vand.u32 %v2072, 4294901760
      %2074 = vmatpush1.msra.mxu0 %v2073
      %v2075 = vand.u32 %v1913, 4294901760
      %v2076 = vsub.f32 %v1913, %v2075
      %v2077 = vand.u32 %v2076, 4294901760
      %v2078 = vsub.f32 %v2076, %v2077
      %v2079 = vand.u32 %v2078, 4294901760
      %2080 = vmatprep.subr.mxu0 %v2079
      %v2081 = vand.u32 %v1912, 4294901760
      %v2082 = vsub.f32 %v1912, %v2081
      %v2083 = vand.u32 %v2082, 4294901760
      %v2084 = vsub.f32 %v2082, %v2083
      %v2085 = vand.u32 %v2084, 4294901760
      %2086 = vmatpush1.msra.mxu0 %v2085
      %v2087 = vand.u32 %v1911, 4294901760
      %v2088 = vsub.f32 %v1911, %v2087
      %v2089 = vand.u32 %v2088, 4294901760
      %v2090 = vsub.f32 %v2088, %v2089
      %v2091 = vand.u32 %v2090, 4294901760
      %2092 = vmatprep.subr.mxu0 %v2091
      %v2093 = vand.u32 %v1910, 4294901760
      %v2094 = vsub.f32 %v1910, %v2093
      %v2095 = vand.u32 %v2094, 4294901760
      %v2096 = vsub.f32 %v2094, %v2095
      %v2097 = vand.u32 %v2096, 4294901760
      %2098 = vmatpush1.msra.mxu0 %v2097
      %v2099 = vand.u32 %v1909, 4294901760
      %v2100 = vsub.f32 %v1909, %v2099
      %v2101 = vand.u32 %v2100, 4294901760
      %v2102 = vsub.f32 %v2100, %v2101
      %v2103 = vand.u32 %v2102, 4294901760
      %2104 = vmatprep.subr.mxu0 %v2103
      %v2105 = vand.u32 %v1908, 4294901760
      %v2106 = vsub.f32 %v1908, %v2105
      %v2107 = vand.u32 %v2106, 4294901760
      %v2108 = vsub.f32 %v2106, %v2107
      %v2109 = vand.u32 %v2108, 4294901760
      %2110 = vmatpush1.msra.mxu0 %v2109
      %v2111 = vand.u32 %v1907, 4294901760
      %v2112 = vsub.f32 %v1907, %v2111
      %v2113 = vand.u32 %v2112, 4294901760
      %v2114 = vsub.f32 %v2112, %v2113
      %v2115 = vand.u32 %v2114, 4294901760
      %2116 = vmatprep.subr.mxu0 %v2115
      %v2117 = vand.u32 %v1906, 4294901760
      %v2118 = vsub.f32 %v1906, %v2117
      %v2119 = vand.u32 %v2118, 4294901760
      %v2120 = vsub.f32 %v2118, %v2119
      %v2121 = vand.u32 %v2120, 4294901760
      %2122 = vmatpush1.msra.mxu0 %v2121
      %v2123 = vand.u32 %v1905, 4294901760
      %v2124 = vsub.f32 %v1905, %v2123
      %v2125 = vand.u32 %v2124, 4294901760
      %v2126 = vsub.f32 %v2124, %v2125
      %v2127 = vand.u32 %v2126, 4294901760
      %2128 = vmatprep.subr.mxu0 %v2127
      %v2129 = vand.u32 %v1904, 4294901760
      %v2130 = vsub.f32 %v1904, %v2129
      %v2131 = vand.u32 %v2130, 4294901760
      %v2132 = vsub.f32 %v2130, %v2131
      %v2133 = vand.u32 %v2132, 4294901760
      %2134 = vmatpush1.msra.mxu0 %v2133
      %v2135 = vand.u32 %v1903, 4294901760
      %v2136 = vsub.f32 %v1903, %v2135
      %v2137 = vand.u32 %v2136, 4294901760
      %v2138 = vsub.f32 %v2136, %v2137
      %v2139 = vand.u32 %v2138, 4294901760
      %2140 = vmatprep.subr.mxu0 %v2139
      %v2141 = vand.u32 %v1902, 4294901760
      %v2142 = vsub.f32 %v1902, %v2141
      %v2143 = vand.u32 %v2142, 4294901760
      %v2144 = vsub.f32 %v2142, %v2143
      %v2145 = vand.u32 %v2144, 4294901760
      %2146 = vmatpush1.msra.mxu0 %v2145
      %v2147 = vand.u32 %v1901, 4294901760
      %v2148 = vsub.f32 %v1901, %v2147
      %v2149 = vand.u32 %v2148, 4294901760
      %v2150 = vsub.f32 %v2148, %v2149
      %v2151 = vand.u32 %v2150, 4294901760
      %2152 = vmatprep.subr.mxu0 %v2151
      %v2153 = vand.u32 %v1900, 4294901760
      %v2154 = vsub.f32 %v1900, %v2153
      %v2155 = vand.u32 %v2154, 4294901760
      %v2156 = vsub.f32 %v2154, %v2155
      %v2157 = vand.u32 %v2156, 4294901760
      %2158 = vmatpush1.msra.mxu0 %v2157
      %v2159 = vand.u32 %v1899, 4294901760
      %v2160 = vsub.f32 %v1899, %v2159
      %v2161 = vand.u32 %v2160, 4294901760
      %v2162 = vsub.f32 %v2160, %v2161
      %v2163 = vand.u32 %v2162, 4294901760
      %2164 = vmatprep.subr.mxu0 %v2163
      %v2165 = vand.u32 %v1898, 4294901760
      %v2166 = vsub.f32 %v1898, %v2165
      %v2167 = vand.u32 %v2166, 4294901760
      %v2168 = vsub.f32 %v2166, %v2167
      %v2169 = vand.u32 %v2168, 4294901760
      %2170 = vmatpush1.msra.mxu0 %v2169
      %v2171 = vand.u32 %v1897, 4294901760
      %v2172 = vsub.f32 %v1897, %v2171
      %v2173 = vand.u32 %v2172, 4294901760
      %v2174 = vsub.f32 %v2172, %v2173
      %v2175 = vand.u32 %v2174, 4294901760
      %2176 = vmatprep.subr.mxu0 %v2175
      %v2177 = vand.u32 %v1896, 4294901760
      %v2178 = vsub.f32 %v1896, %v2177
      %v2179 = vand.u32 %v2178, 4294901760
      %v2180 = vsub.f32 %v2178, %v2179
      %v2181 = vand.u32 %v2180, 4294901760
      %2182 = vmatpush1.msra.mxu0 %v2181
      %v2183 = vand.u32 %v1895, 4294901760
      %v2184 = vsub.f32 %v1895, %v2183
      %v2185 = vand.u32 %v2184, 4294901760
      %v2186 = vsub.f32 %v2184, %v2185
      %v2187 = vand.u32 %v2186, 4294901760
      %2188 = vmatprep.subr.mxu0 %v2187
      %v2189 = vand.u32 %v1894, 4294901760
      %v2190 = vsub.f32 %v1894, %v2189
      %v2191 = vand.u32 %v2190, 4294901760
      %v2192 = vsub.f32 %v2190, %v2191
      %v2193 = vand.u32 %v2192, 4294901760
      %2194 = vmatpush1.msra.mxu0 %v2193
      %v2195 = vand.u32 %v1893, 4294901760
      %v2196 = vsub.f32 %v1893, %v2195
      %v2197 = vand.u32 %v2196, 4294901760
      %v2198 = vsub.f32 %v2196, %v2197
      %v2199 = vand.u32 %v2198, 4294901760
      %2200 = vmatprep.subr.mxu0 %v2199
      %v2201 = vand.u32 %v1892, 4294901760
      %v2202 = vsub.f32 %v1892, %v2201
      %v2203 = vand.u32 %v2202, 4294901760
      %v2204 = vsub.f32 %v2202, %v2203
      %v2205 = vand.u32 %v2204, 4294901760
      %2206 = vmatpush1.msra.mxu0 %v2205
      %v2207 = vand.u32 %v1891, 4294901760
      %v2208 = vsub.f32 %v1891, %v2207
      %v2209 = vand.u32 %v2208, 4294901760
      %v2210 = vsub.f32 %v2208, %v2209
      %v2211 = vand.u32 %v2210, 4294901760
      %2212 = vmatprep.subr.mxu0 %v2211
      %v2213 = vand.u32 %v1890, 4294901760
      %v2214 = vsub.f32 %v1890, %v2213
      %v2215 = vand.u32 %v2214, 4294901760
      %v2216 = vsub.f32 %v2214, %v2215
      %v2217 = vand.u32 %v2216, 4294901760
      %2218 = vmatpush1.msra.mxu0 %v2217
      %v2219 = vand.u32 %v1889, 4294901760
      %v2220 = vsub.f32 %v1889, %v2219
      %v2221 = vand.u32 %v2220, 4294901760
      %v2222 = vsub.f32 %v2220, %v2221
      %v2223 = vand.u32 %v2222, 4294901760
      %2224 = vmatprep.subr.mxu0 %v2223
      %v2225 = vand.u32 %v1888, 4294901760
      %v2226 = vsub.f32 %v1888, %v2225
      %v2227 = vand.u32 %v2226, 4294901760
      %v2228 = vsub.f32 %v2226, %v2227
      %v2229 = vand.u32 %v2228, 4294901760
      %2230 = vmatpush1.msra.mxu0 %v2229
      %2231 = vmatprep.subr.mxu0 0.0
      %2232 = vmatpush2.msra.mxu0 0.0
      %2233 = vmatprep.subr.mxu0 0.0
      %2234 = vmatpush2.msra.mxu0 0.0
      %2235 = vmatprep.subr.mxu0 0.0
      %2236 = vmatpush2.msra.mxu0 0.0
      %2237 = vmatprep.subr.mxu0 0.0
      %2238 = vmatpush2.msra.mxu0 0.0
      %2239 = vmatprep.subr.mxu0 0.0
      %2240 = vmatpush2.msra.mxu0 0.0
      %2241 = vmatprep.subr.mxu0 0.0
      %2242 = vmatpush2.msra.mxu0 0.0
      %2243 = vmatprep.subr.mxu0 0.0
      %2244 = vmatpush2.msra.mxu0 0.0
      %2245 = vmatprep.subr.mxu0 0.0
      %2246 = vmatpush2.msra.mxu0 0.0
      %2247 = vmatprep.subr.mxu0 0.0
      %2248 = vmatpush2.msra.mxu0 0.0
      %2249 = vmatprep.subr.mxu0 0.0
      %2250 = vmatpush2.msra.mxu0 0.0
      %2251 = vmatprep.subr.mxu0 0.0
      %2252 = vmatpush2.msra.mxu0 0.0
      %2253 = vmatprep.subr.mxu0 0.0
      %2254 = vmatpush2.msra.mxu0 0.0
      %2255 = vmatprep.subr.mxu0 0.0
      %2256 = vmatpush2.msra.mxu0 0.0
      %2257 = vmatprep.subr.mxu0 0.0
      %2258 = vmatpush2.msra.mxu0 0.0
      %2259 = vmatprep.subr.mxu0 0.0
      %2260 = vmatpush2.msra.mxu0 0.0
      %2261 = vmatprep.subr.mxu0 0.0
      %2262 = vmatpush2.msra.mxu0 0.0
      %2263 = vmatprep.mubr.f32.mxu0 0.0
      %v2264 = vand.u32 %v926, 4294901760
      %2265 = vmatmul.mubr.f32.gmra.mxu0 %v2264
      %v2266 = vpop.f32.mrf.mxu0
      %v2267 = vadd.f32 %v2024, %v2266
      %v2268 = vpop.f32.mrf.mxu0
      %v2269 = vadd.f32 %v2026, %v2268
      %2270 = vmatprep.mubr.f32.mxu0 0.0
      %v2271 = vand.u32 %v932, 4294901760
      %2272 = vmatmul.mubr.f32.gmra.mxu0 %v2271
      %v2273 = vpop.f32.mrf.mxu0
      %v2274 = vadd.f32 %v2035, %v2273
      %v2275 = vpop.f32.mrf.mxu0
      %v2276 = vadd.f32 %v2037, %v2275
      %2277 = vdwg.mxu0
      %v2278 = vand.u32 %v1919, 4294901760
      %v2279 = vsub.f32 %v1919, %v2278
      %2280 = vmatprep.subr.mxu0 %v2279
      %v2281 = vand.u32 %v1918, 4294901760
      %v2282 = vsub.f32 %v1918, %v2281
      %2283 = vmatpush1.msra.mxu0 %v2282
      %v2284 = vand.u32 %v1917, 4294901760
      %v2285 = vsub.f32 %v1917, %v2284
      %2286 = vmatprep.subr.mxu0 %v2285
      %v2287 = vand.u32 %v1916, 4294901760
      %v2288 = vsub.f32 %v1916, %v2287
      %2289 = vmatpush1.msra.mxu0 %v2288
      %v2290 = vand.u32 %v1915, 4294901760
      %v2291 = vsub.f32 %v1915, %v2290
      %2292 = vmatprep.subr.mxu0 %v2291
      %v2293 = vand.u32 %v1914, 4294901760
      %v2294 = vsub.f32 %v1914, %v2293
      %2295 = vmatpush1.msra.mxu0 %v2294
      %v2296 = vand.u32 %v1913, 4294901760
      %v2297 = vsub.f32 %v1913, %v2296
      %2298 = vmatprep.subr.mxu0 %v2297
      %v2299 = vand.u32 %v1912, 4294901760
      %v2300 = vsub.f32 %v1912, %v2299
      %2301 = vmatpush1.msra.mxu0 %v2300
      %v2302 = vand.u32 %v1911, 4294901760
      %v2303 = vsub.f32 %v1911, %v2302
      %2304 = vmatprep.subr.mxu0 %v2303
      %v2305 = vand.u32 %v1910, 4294901760
      %v2306 = vsub.f32 %v1910, %v2305
      %2307 = vmatpush1.msra.mxu0 %v2306
      %v2308 = vand.u32 %v1909, 4294901760
      %v2309 = vsub.f32 %v1909, %v2308
      %2310 = vmatprep.subr.mxu0 %v2309
      %v2311 = vand.u32 %v1908, 4294901760
      %v2312 = vsub.f32 %v1908, %v2311
      %2313 = vmatpush1.msra.mxu0 %v2312
      %v2314 = vand.u32 %v1907, 4294901760
      %v2315 = vsub.f32 %v1907, %v2314
      %2316 = vmatprep.subr.mxu0 %v2315
      %v2317 = vand.u32 %v1906, 4294901760
      %v2318 = vsub.f32 %v1906, %v2317
      %2319 = vmatpush1.msra.mxu0 %v2318
      %v2320 = vand.u32 %v1905, 4294901760
      %v2321 = vsub.f32 %v1905, %v2320
      %2322 = vmatprep.subr.mxu0 %v2321
      %v2323 = vand.u32 %v1904, 4294901760
      %v2324 = vsub.f32 %v1904, %v2323
      %2325 = vmatpush1.msra.mxu0 %v2324
      %v2326 = vand.u32 %v1903, 4294901760
      %v2327 = vsub.f32 %v1903, %v2326
      %2328 = vmatprep.subr.mxu0 %v2327
      %v2329 = vand.u32 %v1902, 4294901760
      %v2330 = vsub.f32 %v1902, %v2329
      %2331 = vmatpush1.msra.mxu0 %v2330
      %v2332 = vand.u32 %v1901, 4294901760
      %v2333 = vsub.f32 %v1901, %v2332
      %2334 = vmatprep.subr.mxu0 %v2333
      %v2335 = vand.u32 %v1900, 4294901760
      %v2336 = vsub.f32 %v1900, %v2335
      %2337 = vmatpush1.msra.mxu0 %v2336
      %v2338 = vand.u32 %v1899, 4294901760
      %v2339 = vsub.f32 %v1899, %v2338
      %2340 = vmatprep.subr.mxu0 %v2339
      %v2341 = vand.u32 %v1898, 4294901760
      %v2342 = vsub.f32 %v1898, %v2341
      %2343 = vmatpush1.msra.mxu0 %v2342
      %v2344 = vand.u32 %v1897, 4294901760
      %v2345 = vsub.f32 %v1897, %v2344
      %2346 = vmatprep.subr.mxu0 %v2345
      %v2347 = vand.u32 %v1896, 4294901760
      %v2348 = vsub.f32 %v1896, %v2347
      %2349 = vmatpush1.msra.mxu0 %v2348
      %v2350 = vand.u32 %v1895, 4294901760
      %v2351 = vsub.f32 %v1895, %v2350
      %2352 = vmatprep.subr.mxu0 %v2351
      %v2353 = vand.u32 %v1894, 4294901760
      %v2354 = vsub.f32 %v1894, %v2353
      %2355 = vmatpush1.msra.mxu0 %v2354
      %v2356 = vand.u32 %v1893, 4294901760
      %v2357 = vsub.f32 %v1893, %v2356
      %2358 = vmatprep.subr.mxu0 %v2357
      %v2359 = vand.u32 %v1892, 4294901760
      %v2360 = vsub.f32 %v1892, %v2359
      %2361 = vmatpush1.msra.mxu0 %v2360
      %v2362 = vand.u32 %v1891, 4294901760
      %v2363 = vsub.f32 %v1891, %v2362
      %2364 = vmatprep.subr.mxu0 %v2363
      %v2365 = vand.u32 %v1890, 4294901760
      %v2366 = vsub.f32 %v1890, %v2365
      %2367 = vmatpush1.msra.mxu0 %v2366
      %v2368 = vand.u32 %v1889, 4294901760
      %v2369 = vsub.f32 %v1889, %v2368
      %2370 = vmatprep.subr.mxu0 %v2369
      %v2371 = vand.u32 %v1888, 4294901760
      %v2372 = vsub.f32 %v1888, %v2371
      %2373 = vmatpush1.msra.mxu0 %v2372
      %2374 = vmatprep.subr.mxu0 0.0
      %2375 = vmatpush2.msra.mxu0 0.0
      %2376 = vmatprep.subr.mxu0 0.0
      %2377 = vmatpush2.msra.mxu0 0.0
      %2378 = vmatprep.subr.mxu0 0.0
      %2379 = vmatpush2.msra.mxu0 0.0
      %2380 = vmatprep.subr.mxu0 0.0
      %2381 = vmatpush2.msra.mxu0 0.0
      %2382 = vmatprep.subr.mxu0 0.0
      %2383 = vmatpush2.msra.mxu0 0.0
      %2384 = vmatprep.subr.mxu0 0.0
      %2385 = vmatpush2.msra.mxu0 0.0
      %2386 = vmatprep.subr.mxu0 0.0
      %2387 = vmatpush2.msra.mxu0 0.0
      %2388 = vmatprep.subr.mxu0 0.0
      %2389 = vmatpush2.msra.mxu0 0.0
      %2390 = vmatprep.subr.mxu0 0.0
      %2391 = vmatpush2.msra.mxu0 0.0
      %2392 = vmatprep.subr.mxu0 0.0
      %2393 = vmatpush2.msra.mxu0 0.0
      %2394 = vmatprep.subr.mxu0 0.0
      %2395 = vmatpush2.msra.mxu0 0.0
      %2396 = vmatprep.subr.mxu0 0.0
      %2397 = vmatpush2.msra.mxu0 0.0
      %2398 = vmatprep.subr.mxu0 0.0
      %2399 = vmatpush2.msra.mxu0 0.0
      %2400 = vmatprep.subr.mxu0 0.0
      %2401 = vmatpush2.msra.mxu0 0.0
      %2402 = vmatprep.subr.mxu0 0.0
      %2403 = vmatpush2.msra.mxu0 0.0
      %2404 = vmatprep.subr.mxu0 0.0
      %2405 = vmatpush2.msra.mxu0 0.0
      %2406 = vmatprep.mubr.f32.mxu0 0.0
      %v2407 = vand.u32 %v926, 4294901760
      %v2408 = vsub.f32 %v926, %v2407
      %2409 = vmatmul.mubr.f32.gmra.mxu0 %v2408
      %v2410 = vpop.f32.mrf.mxu0
      %v2411 = vadd.f32 %v2267, %v2410
      %v2412 = vpop.f32.mrf.mxu0
      %v2413 = vadd.f32 %v2269, %v2412
      %2414 = vmatprep.mubr.f32.mxu0 0.0
      %v2415 = vand.u32 %v932, 4294901760
      %v2416 = vsub.f32 %v932, %v2415
      %2417 = vmatmul.mubr.f32.gmra.mxu0 %v2416
      %v2418 = vpop.f32.mrf.mxu0
      %v2419 = vadd.f32 %v2274, %v2418
      %v2420 = vpop.f32.mrf.mxu0
      %v2421 = vadd.f32 %v2276, %v2420
      %2422 = vdwg.mxu0
      %v2423 = vand.u32 %v1919, 4294901760
      %2424 = vmatprep.subr.mxu0 %v2423
      %v2425 = vand.u32 %v1918, 4294901760
      %2426 = vmatpush1.msra.mxu0 %v2425
      %v2427 = vand.u32 %v1917, 4294901760
      %2428 = vmatprep.subr.mxu0 %v2427
      %v2429 = vand.u32 %v1916, 4294901760
      %2430 = vmatpush1.msra.mxu0 %v2429
      %v2431 = vand.u32 %v1915, 4294901760
      %2432 = vmatprep.subr.mxu0 %v2431
      %v2433 = vand.u32 %v1914, 4294901760
      %2434 = vmatpush1.msra.mxu0 %v2433
      %v2435 = vand.u32 %v1913, 4294901760
      %2436 = vmatprep.subr.mxu0 %v2435
      %v2437 = vand.u32 %v1912, 4294901760
      %2438 = vmatpush1.msra.mxu0 %v2437
      %v2439 = vand.u32 %v1911, 4294901760
      %2440 = vmatprep.subr.mxu0 %v2439
      %v2441 = vand.u32 %v1910, 4294901760
      %2442 = vmatpush1.msra.mxu0 %v2441
      %v2443 = vand.u32 %v1909, 4294901760
      %2444 = vmatprep.subr.mxu0 %v2443
      %v2445 = vand.u32 %v1908, 4294901760
      %2446 = vmatpush1.msra.mxu0 %v2445
      %v2447 = vand.u32 %v1907, 4294901760
      %2448 = vmatprep.subr.mxu0 %v2447
      %v2449 = vand.u32 %v1906, 4294901760
      %2450 = vmatpush1.msra.mxu0 %v2449
      %v2451 = vand.u32 %v1905, 4294901760
      %2452 = vmatprep.subr.mxu0 %v2451
      %v2453 = vand.u32 %v1904, 4294901760
      %2454 = vmatpush1.msra.mxu0 %v2453
      %v2455 = vand.u32 %v1903, 4294901760
      %2456 = vmatprep.subr.mxu0 %v2455
      %v2457 = vand.u32 %v1902, 4294901760
      %2458 = vmatpush1.msra.mxu0 %v2457
      %v2459 = vand.u32 %v1901, 4294901760
      %2460 = vmatprep.subr.mxu0 %v2459
      %v2461 = vand.u32 %v1900, 4294901760
      %2462 = vmatpush1.msra.mxu0 %v2461
      %v2463 = vand.u32 %v1899, 4294901760
      %2464 = vmatprep.subr.mxu0 %v2463
      %v2465 = vand.u32 %v1898, 4294901760
      %2466 = vmatpush1.msra.mxu0 %v2465
      %v2467 = vand.u32 %v1897, 4294901760
      %2468 = vmatprep.subr.mxu0 %v2467
      %v2469 = vand.u32 %v1896, 4294901760
      %2470 = vmatpush1.msra.mxu0 %v2469
      %v2471 = vand.u32 %v1895, 4294901760
      %2472 = vmatprep.subr.mxu0 %v2471
      %v2473 = vand.u32 %v1894, 4294901760
      %2474 = vmatpush1.msra.mxu0 %v2473
      %v2475 = vand.u32 %v1893, 4294901760
      %2476 = vmatprep.subr.mxu0 %v2475
      %v2477 = vand.u32 %v1892, 4294901760
      %2478 = vmatpush1.msra.mxu0 %v2477
      %v2479 = vand.u32 %v1891, 4294901760
      %2480 = vmatprep.subr.mxu0 %v2479
      %v2481 = vand.u32 %v1890, 4294901760
      %2482 = vmatpush1.msra.mxu0 %v2481
      %v2483 = vand.u32 %v1889, 4294901760
      %2484 = vmatprep.subr.mxu0 %v2483
      %v2485 = vand.u32 %v1888, 4294901760
      %2486 = vmatpush1.msra.mxu0 %v2485
      %2487 = vmatprep.subr.mxu0 0.0
      %2488 = vmatpush2.msra.mxu0 0.0
      %2489 = vmatprep.subr.mxu0 0.0
      %2490 = vmatpush2.msra.mxu0 0.0
      %2491 = vmatprep.subr.mxu0 0.0
      %2492 = vmatpush2.msra.mxu0 0.0
      %2493 = vmatprep.subr.mxu0 0.0
      %2494 = vmatpush2.msra.mxu0 0.0
      %2495 = vmatprep.subr.mxu0 0.0
      %2496 = vmatpush2.msra.mxu0 0.0
      %2497 = vmatprep.subr.mxu0 0.0
      %2498 = vmatpush2.msra.mxu0 0.0
      %2499 = vmatprep.subr.mxu0 0.0
      %2500 = vmatpush2.msra.mxu0 0.0
      %2501 = vmatprep.subr.mxu0 0.0
      %2502 = vmatpush2.msra.mxu0 0.0
      %2503 = vmatprep.subr.mxu0 0.0
      %2504 = vmatpush2.msra.mxu0 0.0
      %2505 = vmatprep.subr.mxu0 0.0
      %2506 = vmatpush2.msra.mxu0 0.0
      %2507 = vmatprep.subr.mxu0 0.0
      %2508 = vmatpush2.msra.mxu0 0.0
      %2509 = vmatprep.subr.mxu0 0.0
      %2510 = vmatpush2.msra.mxu0 0.0
      %2511 = vmatprep.subr.mxu0 0.0
      %2512 = vmatpush2.msra.mxu0 0.0
      %2513 = vmatprep.subr.mxu0 0.0
      %2514 = vmatpush2.msra.mxu0 0.0
      %2515 = vmatprep.subr.mxu0 0.0
      %2516 = vmatpush2.msra.mxu0 0.0
      %2517 = vmatprep.subr.mxu0 0.0
      %2518 = vmatpush2.msra.mxu0 0.0
      %2519 = vmatprep.mubr.f32.mxu0 0.0
      %v2520 = vand.u32 %v926, 4294901760
      %v2521 = vsub.f32 %v926, %v2520
      %v2522 = vand.u32 %v2521, 4294901760
      %2523 = vmatmul.mubr.f32.gmra.mxu0 %v2522
      %v2524 = vpop.f32.mrf.mxu0
      %v2525 = vadd.f32 %v2411, %v2524
      %v2526 = vpop.f32.mrf.mxu0
      %v2527 = vadd.f32 %v2413, %v2526
      %2528 = vmatprep.mubr.f32.mxu0 0.0
      %v2529 = vand.u32 %v932, 4294901760
      %v2530 = vsub.f32 %v932, %v2529
      %v2531 = vand.u32 %v2530, 4294901760
      %2532 = vmatmul.mubr.f32.gmra.mxu0 %v2531
      %v2533 = vpop.f32.mrf.mxu0
      %v2534 = vadd.f32 %v2419, %v2533
      %v2535 = vpop.f32.mrf.mxu0
      %v2536 = vadd.f32 %v2421, %v2535
      %2537 = vdwg.mxu0
      %v2538 = vand.u32 %v1919, 4294901760
      %v2539 = vsub.f32 %v1919, %v2538
      %v2540 = vand.u32 %v2539, 4294901760
      %2541 = vmatprep.subr.mxu0 %v2540
      %v2542 = vand.u32 %v1918, 4294901760
      %v2543 = vsub.f32 %v1918, %v2542
      %v2544 = vand.u32 %v2543, 4294901760
      %2545 = vmatpush1.msra.mxu0 %v2544
      %v2546 = vand.u32 %v1917, 4294901760
      %v2547 = vsub.f32 %v1917, %v2546
      %v2548 = vand.u32 %v2547, 4294901760
      %2549 = vmatprep.subr.mxu0 %v2548
      %v2550 = vand.u32 %v1916, 4294901760
      %v2551 = vsub.f32 %v1916, %v2550
      %v2552 = vand.u32 %v2551, 4294901760
      %2553 = vmatpush1.msra.mxu0 %v2552
      %v2554 = vand.u32 %v1915, 4294901760
      %v2555 = vsub.f32 %v1915, %v2554
      %v2556 = vand.u32 %v2555, 4294901760
      %2557 = vmatprep.subr.mxu0 %v2556
      %v2558 = vand.u32 %v1914, 4294901760
      %v2559 = vsub.f32 %v1914, %v2558
      %v2560 = vand.u32 %v2559, 4294901760
      %2561 = vmatpush1.msra.mxu0 %v2560
      %v2562 = vand.u32 %v1913, 4294901760
      %v2563 = vsub.f32 %v1913, %v2562
      %v2564 = vand.u32 %v2563, 4294901760
      %2565 = vmatprep.subr.mxu0 %v2564
      %v2566 = vand.u32 %v1912, 4294901760
      %v2567 = vsub.f32 %v1912, %v2566
      %v2568 = vand.u32 %v2567, 4294901760
      %2569 = vmatpush1.msra.mxu0 %v2568
      %v2570 = vand.u32 %v1911, 4294901760
      %v2571 = vsub.f32 %v1911, %v2570
      %v2572 = vand.u32 %v2571, 4294901760
      %2573 = vmatprep.subr.mxu0 %v2572
      %v2574 = vand.u32 %v1910, 4294901760
      %v2575 = vsub.f32 %v1910, %v2574
      %v2576 = vand.u32 %v2575, 4294901760
      %2577 = vmatpush1.msra.mxu0 %v2576
      %v2578 = vand.u32 %v1909, 4294901760
      %v2579 = vsub.f32 %v1909, %v2578
      %v2580 = vand.u32 %v2579, 4294901760
      %2581 = vmatprep.subr.mxu0 %v2580
      %v2582 = vand.u32 %v1908, 4294901760
      %v2583 = vsub.f32 %v1908, %v2582
      %v2584 = vand.u32 %v2583, 4294901760
      %2585 = vmatpush1.msra.mxu0 %v2584
      %v2586 = vand.u32 %v1907, 4294901760
      %v2587 = vsub.f32 %v1907, %v2586
      %v2588 = vand.u32 %v2587, 4294901760
      %2589 = vmatprep.subr.mxu0 %v2588
      %v2590 = vand.u32 %v1906, 4294901760
      %v2591 = vsub.f32 %v1906, %v2590
      %v2592 = vand.u32 %v2591, 4294901760
      %2593 = vmatpush1.msra.mxu0 %v2592
      %v2594 = vand.u32 %v1905, 4294901760
      %v2595 = vsub.f32 %v1905, %v2594
      %v2596 = vand.u32 %v2595, 4294901760
      %2597 = vmatprep.subr.mxu0 %v2596
      %v2598 = vand.u32 %v1904, 4294901760
      %v2599 = vsub.f32 %v1904, %v2598
      %v2600 = vand.u32 %v2599, 4294901760
      %2601 = vmatpush1.msra.mxu0 %v2600
      %v2602 = vand.u32 %v1903, 4294901760
      %v2603 = vsub.f32 %v1903, %v2602
      %v2604 = vand.u32 %v2603, 4294901760
      %2605 = vmatprep.subr.mxu0 %v2604
      %v2606 = vand.u32 %v1902, 4294901760
      %v2607 = vsub.f32 %v1902, %v2606
      %v2608 = vand.u32 %v2607, 4294901760
      %2609 = vmatpush1.msra.mxu0 %v2608
      %v2610 = vand.u32 %v1901, 4294901760
      %v2611 = vsub.f32 %v1901, %v2610
      %v2612 = vand.u32 %v2611, 4294901760
      %2613 = vmatprep.subr.mxu0 %v2612
      %v2614 = vand.u32 %v1900, 4294901760
      %v2615 = vsub.f32 %v1900, %v2614
      %v2616 = vand.u32 %v2615, 4294901760
      %2617 = vmatpush1.msra.mxu0 %v2616
      %v2618 = vand.u32 %v1899, 4294901760
      %v2619 = vsub.f32 %v1899, %v2618
      %v2620 = vand.u32 %v2619, 4294901760
      %2621 = vmatprep.subr.mxu0 %v2620
      %v2622 = vand.u32 %v1898, 4294901760
      %v2623 = vsub.f32 %v1898, %v2622
      %v2624 = vand.u32 %v2623, 4294901760
      %2625 = vmatpush1.msra.mxu0 %v2624
      %v2626 = vand.u32 %v1897, 4294901760
      %v2627 = vsub.f32 %v1897, %v2626
      %v2628 = vand.u32 %v2627, 4294901760
      %2629 = vmatprep.subr.mxu0 %v2628
      %v2630 = vand.u32 %v1896, 4294901760
      %v2631 = vsub.f32 %v1896, %v2630
      %v2632 = vand.u32 %v2631, 4294901760
      %2633 = vmatpush1.msra.mxu0 %v2632
      %v2634 = vand.u32 %v1895, 4294901760
      %v2635 = vsub.f32 %v1895, %v2634
      %v2636 = vand.u32 %v2635, 4294901760
      %2637 = vmatprep.subr.mxu0 %v2636
      %v2638 = vand.u32 %v1894, 4294901760
      %v2639 = vsub.f32 %v1894, %v2638
      %v2640 = vand.u32 %v2639, 4294901760
      %2641 = vmatpush1.msra.mxu0 %v2640
      %v2642 = vand.u32 %v1893, 4294901760
      %v2643 = vsub.f32 %v1893, %v2642
      %v2644 = vand.u32 %v2643, 4294901760
      %2645 = vmatprep.subr.mxu0 %v2644
      %v2646 = vand.u32 %v1892, 4294901760
      %v2647 = vsub.f32 %v1892, %v2646
      %v2648 = vand.u32 %v2647, 4294901760
      %2649 = vmatpush1.msra.mxu0 %v2648
      %v2650 = vand.u32 %v1891, 4294901760
      %v2651 = vsub.f32 %v1891, %v2650
      %v2652 = vand.u32 %v2651, 4294901760
      %2653 = vmatprep.subr.mxu0 %v2652
      %v2654 = vand.u32 %v1890, 4294901760
      %v2655 = vsub.f32 %v1890, %v2654
      %v2656 = vand.u32 %v2655, 4294901760
      %2657 = vmatpush1.msra.mxu0 %v2656
      %v2658 = vand.u32 %v1889, 4294901760
      %v2659 = vsub.f32 %v1889, %v2658
      %v2660 = vand.u32 %v2659, 4294901760
      %2661 = vmatprep.subr.mxu0 %v2660
      %v2662 = vand.u32 %v1888, 4294901760
      %v2663 = vsub.f32 %v1888, %v2662
      %v2664 = vand.u32 %v2663, 4294901760
      %2665 = vmatpush1.msra.mxu0 %v2664
      %2666 = vmatprep.subr.mxu0 0.0
      %2667 = vmatpush2.msra.mxu0 0.0
      %2668 = vmatprep.subr.mxu0 0.0
      %2669 = vmatpush2.msra.mxu0 0.0
      %2670 = vmatprep.subr.mxu0 0.0
      %2671 = vmatpush2.msra.mxu0 0.0
      %2672 = vmatprep.subr.mxu0 0.0
      %2673 = vmatpush2.msra.mxu0 0.0
      %2674 = vmatprep.subr.mxu0 0.0
      %2675 = vmatpush2.msra.mxu0 0.0
      %2676 = vmatprep.subr.mxu0 0.0
      %2677 = vmatpush2.msra.mxu0 0.0
      %2678 = vmatprep.subr.mxu0 0.0
      %2679 = vmatpush2.msra.mxu0 0.0
      %2680 = vmatprep.subr.mxu0 0.0
      %2681 = vmatpush2.msra.mxu0 0.0
      %2682 = vmatprep.subr.mxu0 0.0
      %2683 = vmatpush2.msra.mxu0 0.0
      %2684 = vmatprep.subr.mxu0 0.0
      %2685 = vmatpush2.msra.mxu0 0.0
      %2686 = vmatprep.subr.mxu0 0.0
      %2687 = vmatpush2.msra.mxu0 0.0
      %2688 = vmatprep.subr.mxu0 0.0
      %2689 = vmatpush2.msra.mxu0 0.0
      %2690 = vmatprep.subr.mxu0 0.0
      %2691 = vmatpush2.msra.mxu0 0.0
      %2692 = vmatprep.subr.mxu0 0.0
      %2693 = vmatpush2.msra.mxu0 0.0
      %2694 = vmatprep.subr.mxu0 0.0
      %2695 = vmatpush2.msra.mxu0 0.0
      %2696 = vmatprep.subr.mxu0 0.0
      %2697 = vmatpush2.msra.mxu0 0.0
      %2698 = vmatprep.mubr.f32.mxu0 0.0
      %v2699 = vand.u32 %v926, 4294901760
      %2700 = vmatmul.mubr.f32.gmra.mxu0 %v2699
      %v2701 = vpop.f32.mrf.mxu0
      %v2702 = vadd.f32 %v2525, %v2701
      %v2703 = vpop.f32.mrf.mxu0
      %v2704 = vadd.f32 %v2527, %v2703
      %2705 = vmatprep.mubr.f32.mxu0 0.0
      %v2706 = vand.u32 %v932, 4294901760
      %2707 = vmatmul.mubr.f32.gmra.mxu0 %v2706
      %v2708 = vpop.f32.mrf.mxu0
      %v2709 = vadd.f32 %v2534, %v2708
      %v2710 = vpop.f32.mrf.mxu0
      %v2711 = vadd.f32 %v2536, %v2710
      %2712 = vdwg.mxu0
      %v2713 = vand.u32 %v1919, 4294901760
      %2714 = vmatprep.subr.mxu0 %v2713
      %v2715 = vand.u32 %v1918, 4294901760
      %2716 = vmatpush1.msra.mxu0 %v2715
      %v2717 = vand.u32 %v1917, 4294901760
      %2718 = vmatprep.subr.mxu0 %v2717
      %v2719 = vand.u32 %v1916, 4294901760
      %2720 = vmatpush1.msra.mxu0 %v2719
      %v2721 = vand.u32 %v1915, 4294901760
      %2722 = vmatprep.subr.mxu0 %v2721
      %v2723 = vand.u32 %v1914, 4294901760
      %2724 = vmatpush1.msra.mxu0 %v2723
      %v2725 = vand.u32 %v1913, 4294901760
      %2726 = vmatprep.subr.mxu0 %v2725
      %v2727 = vand.u32 %v1912, 4294901760
      %2728 = vmatpush1.msra.mxu0 %v2727
      %v2729 = vand.u32 %v1911, 4294901760
      %2730 = vmatprep.subr.mxu0 %v2729
      %v2731 = vand.u32 %v1910, 4294901760
      %2732 = vmatpush1.msra.mxu0 %v2731
      %v2733 = vand.u32 %v1909, 4294901760
      %2734 = vmatprep.subr.mxu0 %v2733
      %v2735 = vand.u32 %v1908, 4294901760
      %2736 = vmatpush1.msra.mxu0 %v2735
      %v2737 = vand.u32 %v1907, 4294901760
      %2738 = vmatprep.subr.mxu0 %v2737
      %v2739 = vand.u32 %v1906, 4294901760
      %2740 = vmatpush1.msra.mxu0 %v2739
      %v2741 = vand.u32 %v1905, 4294901760
      %2742 = vmatprep.subr.mxu0 %v2741
      %v2743 = vand.u32 %v1904, 4294901760
      %2744 = vmatpush1.msra.mxu0 %v2743
      %v2745 = vand.u32 %v1903, 4294901760
      %2746 = vmatprep.subr.mxu0 %v2745
      %v2747 = vand.u32 %v1902, 4294901760
      %2748 = vmatpush1.msra.mxu0 %v2747
      %v2749 = vand.u32 %v1901, 4294901760
      %2750 = vmatprep.subr.mxu0 %v2749
      %v2751 = vand.u32 %v1900, 4294901760
      %2752 = vmatpush1.msra.mxu0 %v2751
      %v2753 = vand.u32 %v1899, 4294901760
      %2754 = vmatprep.subr.mxu0 %v2753
      %v2755 = vand.u32 %v1898, 4294901760
      %2756 = vmatpush1.msra.mxu0 %v2755
      %v2757 = vand.u32 %v1897, 4294901760
      %2758 = vmatprep.subr.mxu0 %v2757
      %v2759 = vand.u32 %v1896, 4294901760
      %2760 = vmatpush1.msra.mxu0 %v2759
      %v2761 = vand.u32 %v1895, 4294901760
      %2762 = vmatprep.subr.mxu0 %v2761
      %v2763 = vand.u32 %v1894, 4294901760
      %2764 = vmatpush1.msra.mxu0 %v2763
      %v2765 = vand.u32 %v1893, 4294901760
      %2766 = vmatprep.subr.mxu0 %v2765
      %v2767 = vand.u32 %v1892, 4294901760
      %2768 = vmatpush1.msra.mxu0 %v2767
      %v2769 = vand.u32 %v1891, 4294901760
      %2770 = vmatprep.subr.mxu0 %v2769
      %v2771 = vand.u32 %v1890, 4294901760
      %2772 = vmatpush1.msra.mxu0 %v2771
      %v2773 = vand.u32 %v1889, 4294901760
      %2774 = vmatprep.subr.mxu0 %v2773
      %v2775 = vand.u32 %v1888, 4294901760
      %2776 = vmatpush1.msra.mxu0 %v2775
      %2777 = vmatprep.subr.mxu0 0.0
      %2778 = vmatpush2.msra.mxu0 0.0
      %2779 = vmatprep.subr.mxu0 0.0
      %2780 = vmatpush2.msra.mxu0 0.0
      %2781 = vmatprep.subr.mxu0 0.0
      %2782 = vmatpush2.msra.mxu0 0.0
      %2783 = vmatprep.subr.mxu0 0.0
      %2784 = vmatpush2.msra.mxu0 0.0
      %2785 = vmatprep.subr.mxu0 0.0
      %2786 = vmatpush2.msra.mxu0 0.0
      %2787 = vmatprep.subr.mxu0 0.0
      %2788 = vmatpush2.msra.mxu0 0.0
      %2789 = vmatprep.subr.mxu0 0.0
      %2790 = vmatpush2.msra.mxu0 0.0
      %2791 = vmatprep.subr.mxu0 0.0
      %2792 = vmatpush2.msra.mxu0 0.0
      %2793 = vmatprep.subr.mxu0 0.0
      %2794 = vmatpush2.msra.mxu0 0.0
      %2795 = vmatprep.subr.mxu0 0.0
      %2796 = vmatpush2.msra.mxu0 0.0
      %2797 = vmatprep.subr.mxu0 0.0
      %2798 = vmatpush2.msra.mxu0 0.0
      %2799 = vmatprep.subr.mxu0 0.0
      %2800 = vmatpush2.msra.mxu0 0.0
      %2801 = vmatprep.subr.mxu0 0.0
      %2802 = vmatpush2.msra.mxu0 0.0
      %2803 = vmatprep.subr.mxu0 0.0
      %2804 = vmatpush2.msra.mxu0 0.0
      %2805 = vmatprep.subr.mxu0 0.0
      %2806 = vmatpush2.msra.mxu0 0.0
      %2807 = vmatprep.subr.mxu0 0.0
      %2808 = vmatpush2.msra.mxu0 0.0
      %2809 = vmatprep.mubr.f32.mxu0 0.0
      %v2810 = vand.u32 %v926, 4294901760
      %2811 = vmatmul.mubr.f32.gmra.mxu0 %v2810
      %v2812 = vpop.f32.mrf.mxu0
      %v2813 = vadd.f32 %v2702, %v2812
      %v2814 = vpop.f32.mrf.mxu0
      %v2815 = vadd.f32 %v2704, %v2814
      %2816 = vmatprep.mubr.f32.mxu0 0.0
      %v2817 = vand.u32 %v932, 4294901760
      %2818 = vmatmul.mubr.f32.gmra.mxu0 %v2817
      %v2819 = vpop.f32.mrf.mxu0
      %v2820 = vadd.f32 %v2709, %v2819
      %v2821 = vpop.f32.mrf.mxu0
      %v2822 = vadd.f32 %v2711, %v2821
      %2823 = vdwg.mxu0
      %v2824 = vadd.f32 %v1883, %v2813
      %v2825 = vadd.f32 %v1884, %v2815
      %v2826 = vadd.f32 %v1885, %v2820
      %v2827 = vadd.f32 %v1886, %v2822
      %s2828 = scalar_lea.vmem %s2, 512
      %v2829 = vld [vmem:[%s2828] sm:$0xff]
      %v2830 = vld [vmem:[%s2828 + $0x8] sm:$0xff]
      %v2831 = vld [vmem:[%s2828 + $0x10] sm:$0xff]
      %v2832 = vld [vmem:[%s2828 + $0x18] sm:$0xff]
      %v2833 = vld [vmem:[%s2828 + $0x20] sm:$0xff]
      %v2834 = vld [vmem:[%s2828 + $0x28] sm:$0xff]
      %v2835 = vld [vmem:[%s2828 + $0x30] sm:$0xff]
      %v2836 = vld [vmem:[%s2828 + $0x38] sm:$0xff]
      %v2837 = vld [vmem:[%s2828 + $0x40] sm:$0xff]
      %v2838 = vld [vmem:[%s2828 + $0x48] sm:$0xff]
      %v2839 = vld [vmem:[%s2828 + $0x50] sm:$0xff]
      %v2840 = vld [vmem:[%s2828 + $0x58] sm:$0xff]
      %v2841 = vld [vmem:[%s2828 + $0x60] sm:$0xff]
      %v2842 = vld [vmem:[%s2828 + $0x68] sm:$0xff]
      %v2843 = vld [vmem:[%s2828 + $0x70] sm:$0xff]
      %v2844 = vld [vmem:[%s2828 + $0x78] sm:$0xff]
      %v2845 = vld [vmem:[%s2828 + $0x80] sm:$0xff]
      %v2846 = vld [vmem:[%s2828 + $0x88] sm:$0xff]
      %v2847 = vld [vmem:[%s2828 + $0x90] sm:$0xff]
      %v2848 = vld [vmem:[%s2828 + $0x98] sm:$0xff]
      %v2849 = vld [vmem:[%s2828 + $0xa0] sm:$0xff]
      %v2850 = vld [vmem:[%s2828 + $0xa8] sm:$0xff]
      %v2851 = vld [vmem:[%s2828 + $0xb0] sm:$0xff]
      %v2852 = vld [vmem:[%s2828 + $0xb8] sm:$0xff]
      %v2853 = vld [vmem:[%s2828 + $0xc0] sm:$0xff]
      %v2854 = vld [vmem:[%s2828 + $0xc8] sm:$0xff]
      %v2855 = vld [vmem:[%s2828 + $0xd0] sm:$0xff]
      %v2856 = vld [vmem:[%s2828 + $0xd8] sm:$0xff]
      %v2857 = vld [vmem:[%s2828 + $0xe0] sm:$0xff]
      %v2858 = vld [vmem:[%s2828 + $0xe8] sm:$0xff]
      %v2859 = vld [vmem:[%s2828 + $0xf0] sm:$0xff]
      %v2860 = vld [vmem:[%s2828 + $0xf8] sm:$0xff]
      %v2861 = vand.u32 %v2860, 4294901760
      %2862 = vmatprep.subr.mxu0 %v2861
      %v2863 = vand.u32 %v2859, 4294901760
      %2864 = vmatpush1.msra.mxu0 %v2863
      %v2865 = vand.u32 %v2858, 4294901760
      %2866 = vmatprep.subr.mxu0 %v2865
      %v2867 = vand.u32 %v2857, 4294901760
      %2868 = vmatpush1.msra.mxu0 %v2867
      %v2869 = vand.u32 %v2856, 4294901760
      %2870 = vmatprep.subr.mxu0 %v2869
      %v2871 = vand.u32 %v2855, 4294901760
      %2872 = vmatpush1.msra.mxu0 %v2871
      %v2873 = vand.u32 %v2854, 4294901760
      %2874 = vmatprep.subr.mxu0 %v2873
      %v2875 = vand.u32 %v2853, 4294901760
      %2876 = vmatpush1.msra.mxu0 %v2875
      %v2877 = vand.u32 %v2852, 4294901760
      %2878 = vmatprep.subr.mxu0 %v2877
      %v2879 = vand.u32 %v2851, 4294901760
      %2880 = vmatpush1.msra.mxu0 %v2879
      %v2881 = vand.u32 %v2850, 4294901760
      %2882 = vmatprep.subr.mxu0 %v2881
      %v2883 = vand.u32 %v2849, 4294901760
      %2884 = vmatpush1.msra.mxu0 %v2883
      %v2885 = vand.u32 %v2848, 4294901760
      %2886 = vmatprep.subr.mxu0 %v2885
      %v2887 = vand.u32 %v2847, 4294901760
      %2888 = vmatpush1.msra.mxu0 %v2887
      %v2889 = vand.u32 %v2846, 4294901760
      %2890 = vmatprep.subr.mxu0 %v2889
      %v2891 = vand.u32 %v2845, 4294901760
      %2892 = vmatpush1.msra.mxu0 %v2891
      %v2893 = vand.u32 %v2844, 4294901760
      %2894 = vmatprep.subr.mxu0 %v2893
      %v2895 = vand.u32 %v2843, 4294901760
      %2896 = vmatpush1.msra.mxu0 %v2895
      %v2897 = vand.u32 %v2842, 4294901760
      %2898 = vmatprep.subr.mxu0 %v2897
      %v2899 = vand.u32 %v2841, 4294901760
      %2900 = vmatpush1.msra.mxu0 %v2899
      %v2901 = vand.u32 %v2840, 4294901760
      %2902 = vmatprep.subr.mxu0 %v2901
      %v2903 = vand.u32 %v2839, 4294901760
      %2904 = vmatpush1.msra.mxu0 %v2903
      %v2905 = vand.u32 %v2838, 4294901760
      %2906 = vmatprep.subr.mxu0 %v2905
      %v2907 = vand.u32 %v2837, 4294901760
      %2908 = vmatpush1.msra.mxu0 %v2907
      %v2909 = vand.u32 %v2836, 4294901760
      %2910 = vmatprep.subr.mxu0 %v2909
      %v2911 = vand.u32 %v2835, 4294901760
      %2912 = vmatpush1.msra.mxu0 %v2911
      %v2913 = vand.u32 %v2834, 4294901760
      %2914 = vmatprep.subr.mxu0 %v2913
      %v2915 = vand.u32 %v2833, 4294901760
      %2916 = vmatpush1.msra.mxu0 %v2915
      %v2917 = vand.u32 %v2832, 4294901760
      %2918 = vmatprep.subr.mxu0 %v2917
      %v2919 = vand.u32 %v2831, 4294901760
      %2920 = vmatpush1.msra.mxu0 %v2919
      %v2921 = vand.u32 %v2830, 4294901760
      %2922 = vmatprep.subr.mxu0 %v2921
      %v2923 = vand.u32 %v2829, 4294901760
      %2924 = vmatpush1.msra.mxu0 %v2923
      %2925 = vmatprep.subr.mxu0 0.0
      %2926 = vmatpush2.msra.mxu0 0.0
      %2927 = vmatprep.subr.mxu0 0.0
      %2928 = vmatpush2.msra.mxu0 0.0
      %2929 = vmatprep.subr.mxu0 0.0
      %2930 = vmatpush2.msra.mxu0 0.0
      %2931 = vmatprep.subr.mxu0 0.0
      %2932 = vmatpush2.msra.mxu0 0.0
      %2933 = vmatprep.subr.mxu0 0.0
      %2934 = vmatpush2.msra.mxu0 0.0
      %2935 = vmatprep.subr.mxu0 0.0
      %2936 = vmatpush2.msra.mxu0 0.0
      %2937 = vmatprep.subr.mxu0 0.0
      %2938 = vmatpush2.msra.mxu0 0.0
      %2939 = vmatprep.subr.mxu0 0.0
      %2940 = vmatpush2.msra.mxu0 0.0
      %2941 = vmatprep.subr.mxu0 0.0
      %2942 = vmatpush2.msra.mxu0 0.0
      %2943 = vmatprep.subr.mxu0 0.0
      %2944 = vmatpush2.msra.mxu0 0.0
      %2945 = vmatprep.subr.mxu0 0.0
      %2946 = vmatpush2.msra.mxu0 0.0
      %2947 = vmatprep.subr.mxu0 0.0
      %2948 = vmatpush2.msra.mxu0 0.0
      %2949 = vmatprep.subr.mxu0 0.0
      %2950 = vmatpush2.msra.mxu0 0.0
      %2951 = vmatprep.subr.mxu0 0.0
      %2952 = vmatpush2.msra.mxu0 0.0
      %2953 = vmatprep.subr.mxu0 0.0
      %2954 = vmatpush2.msra.mxu0 0.0
      %2955 = vmatprep.subr.mxu0 0.0
      %2956 = vmatpush2.msra.mxu0 0.0
      %2957 = vmatprep.mubr.f32.mxu0 0.0
      %v2958 = vand.u32 %v938, 4294901760
      %v2959 = vsub.f32 %v938, %v2958
      %v2960 = vand.u32 %v2959, 4294901760
      %v2961 = vsub.f32 %v2959, %v2960
      %v2962 = vand.u32 %v2961, 4294901760
      %2963 = vmatmul.mubr.f32.gmra.mxu0 %v2962
      %v2964 = vpop.f32.mrf.mxu0
      %v2965 = vadd.f32 0.0, %v2964
      %v2966 = vpop.f32.mrf.mxu0
      %v2967 = vadd.f32 0.0, %v2966
      %2968 = vmatprep.mubr.f32.mxu0 0.0
      %v2969 = vand.u32 %v944, 4294901760
      %v2970 = vsub.f32 %v944, %v2969
      %v2971 = vand.u32 %v2970, 4294901760
      %v2972 = vsub.f32 %v2970, %v2971
      %v2973 = vand.u32 %v2972, 4294901760
      %2974 = vmatmul.mubr.f32.gmra.mxu0 %v2973
      %v2975 = vpop.f32.mrf.mxu0
      %v2976 = vadd.f32 0.0, %v2975
      %v2977 = vpop.f32.mrf.mxu0
      %v2978 = vadd.f32 0.0, %v2977
      %2979 = vdwg.mxu0
      %v2980 = vand.u32 %v2860, 4294901760
      %v2981 = vsub.f32 %v2860, %v2980
      %v2982 = vand.u32 %v2981, 4294901760
      %v2983 = vsub.f32 %v2981, %v2982
      %v2984 = vand.u32 %v2983, 4294901760
      %2985 = vmatprep.subr.mxu0 %v2984
      %v2986 = vand.u32 %v2859, 4294901760
      %v2987 = vsub.f32 %v2859, %v2986
      %v2988 = vand.u32 %v2987, 4294901760
      %v2989 = vsub.f32 %v2987, %v2988
      %v2990 = vand.u32 %v2989, 4294901760
      %2991 = vmatpush1.msra.mxu0 %v2990
      %v2992 = vand.u32 %v2858, 4294901760
      %v2993 = vsub.f32 %v2858, %v2992
      %v2994 = vand.u32 %v2993, 4294901760
      %v2995 = vsub.f32 %v2993, %v2994
      %v2996 = vand.u32 %v2995, 4294901760
      %2997 = vmatprep.subr.mxu0 %v2996
      %v2998 = vand.u32 %v2857, 4294901760
      %v2999 = vsub.f32 %v2857, %v2998
      %v3000 = vand.u32 %v2999, 4294901760
      %v3001 = vsub.f32 %v2999, %v3000
      %v3002 = vand.u32 %v3001, 4294901760
      %3003 = vmatpush1.msra.mxu0 %v3002
      %v3004 = vand.u32 %v2856, 4294901760
      %v3005 = vsub.f32 %v2856, %v3004
      %v3006 = vand.u32 %v3005, 4294901760
      %v3007 = vsub.f32 %v3005, %v3006
      %v3008 = vand.u32 %v3007, 4294901760
      %3009 = vmatprep.subr.mxu0 %v3008
      %v3010 = vand.u32 %v2855, 4294901760
      %v3011 = vsub.f32 %v2855, %v3010
      %v3012 = vand.u32 %v3011, 4294901760
      %v3013 = vsub.f32 %v3011, %v3012
      %v3014 = vand.u32 %v3013, 4294901760
      %3015 = vmatpush1.msra.mxu0 %v3014
      %v3016 = vand.u32 %v2854, 4294901760
      %v3017 = vsub.f32 %v2854, %v3016
      %v3018 = vand.u32 %v3017, 4294901760
      %v3019 = vsub.f32 %v3017, %v3018
      %v3020 = vand.u32 %v3019, 4294901760
      %3021 = vmatprep.subr.mxu0 %v3020
      %v3022 = vand.u32 %v2853, 4294901760
      %v3023 = vsub.f32 %v2853, %v3022
      %v3024 = vand.u32 %v3023, 4294901760
      %v3025 = vsub.f32 %v3023, %v3024
      %v3026 = vand.u32 %v3025, 4294901760
      %3027 = vmatpush1.msra.mxu0 %v3026
      %v3028 = vand.u32 %v2852, 4294901760
      %v3029 = vsub.f32 %v2852, %v3028
      %v3030 = vand.u32 %v3029, 4294901760
      %v3031 = vsub.f32 %v3029, %v3030
      %v3032 = vand.u32 %v3031, 4294901760
      %3033 = vmatprep.subr.mxu0 %v3032
      %v3034 = vand.u32 %v2851, 4294901760
      %v3035 = vsub.f32 %v2851, %v3034
      %v3036 = vand.u32 %v3035, 4294901760
      %v3037 = vsub.f32 %v3035, %v3036
      %v3038 = vand.u32 %v3037, 4294901760
      %3039 = vmatpush1.msra.mxu0 %v3038
      %v3040 = vand.u32 %v2850, 4294901760
      %v3041 = vsub.f32 %v2850, %v3040
      %v3042 = vand.u32 %v3041, 4294901760
      %v3043 = vsub.f32 %v3041, %v3042
      %v3044 = vand.u32 %v3043, 4294901760
      %3045 = vmatprep.subr.mxu0 %v3044
      %v3046 = vand.u32 %v2849, 4294901760
      %v3047 = vsub.f32 %v2849, %v3046
      %v3048 = vand.u32 %v3047, 4294901760
      %v3049 = vsub.f32 %v3047, %v3048
      %v3050 = vand.u32 %v3049, 4294901760
      %3051 = vmatpush1.msra.mxu0 %v3050
      %v3052 = vand.u32 %v2848, 4294901760
      %v3053 = vsub.f32 %v2848, %v3052
      %v3054 = vand.u32 %v3053, 4294901760
      %v3055 = vsub.f32 %v3053, %v3054
      %v3056 = vand.u32 %v3055, 4294901760
      %3057 = vmatprep.subr.mxu0 %v3056
      %v3058 = vand.u32 %v2847, 4294901760
      %v3059 = vsub.f32 %v2847, %v3058
      %v3060 = vand.u32 %v3059, 4294901760
      %v3061 = vsub.f32 %v3059, %v3060
      %v3062 = vand.u32 %v3061, 4294901760
      %3063 = vmatpush1.msra.mxu0 %v3062
      %v3064 = vand.u32 %v2846, 4294901760
      %v3065 = vsub.f32 %v2846, %v3064
      %v3066 = vand.u32 %v3065, 4294901760
      %v3067 = vsub.f32 %v3065, %v3066
      %v3068 = vand.u32 %v3067, 4294901760
      %3069 = vmatprep.subr.mxu0 %v3068
      %v3070 = vand.u32 %v2845, 4294901760
      %v3071 = vsub.f32 %v2845, %v3070
      %v3072 = vand.u32 %v3071, 4294901760
      %v3073 = vsub.f32 %v3071, %v3072
      %v3074 = vand.u32 %v3073, 4294901760
      %3075 = vmatpush1.msra.mxu0 %v3074
      %v3076 = vand.u32 %v2844, 4294901760
      %v3077 = vsub.f32 %v2844, %v3076
      %v3078 = vand.u32 %v3077, 4294901760
      %v3079 = vsub.f32 %v3077, %v3078
      %v3080 = vand.u32 %v3079, 4294901760
      %3081 = vmatprep.subr.mxu0 %v3080
      %v3082 = vand.u32 %v2843, 4294901760
      %v3083 = vsub.f32 %v2843, %v3082
      %v3084 = vand.u32 %v3083, 4294901760
      %v3085 = vsub.f32 %v3083, %v3084
      %v3086 = vand.u32 %v3085, 4294901760
      %3087 = vmatpush1.msra.mxu0 %v3086
      %v3088 = vand.u32 %v2842, 4294901760
      %v3089 = vsub.f32 %v2842, %v3088
      %v3090 = vand.u32 %v3089, 4294901760
      %v3091 = vsub.f32 %v3089, %v3090
      %v3092 = vand.u32 %v3091, 4294901760
      %3093 = vmatprep.subr.mxu0 %v3092
      %v3094 = vand.u32 %v2841, 4294901760
      %v3095 = vsub.f32 %v2841, %v3094
      %v3096 = vand.u32 %v3095, 4294901760
      %v3097 = vsub.f32 %v3095, %v3096
      %v3098 = vand.u32 %v3097, 4294901760
      %3099 = vmatpush1.msra.mxu0 %v3098
      %v3100 = vand.u32 %v2840, 4294901760
      %v3101 = vsub.f32 %v2840, %v3100
      %v3102 = vand.u32 %v3101, 4294901760
      %v3103 = vsub.f32 %v3101, %v3102
      %v3104 = vand.u32 %v3103, 4294901760
      %3105 = vmatprep.subr.mxu0 %v3104
      %v3106 = vand.u32 %v2839, 4294901760
      %v3107 = vsub.f32 %v2839, %v3106
      %v3108 = vand.u32 %v3107, 4294901760
      %v3109 = vsub.f32 %v3107, %v3108
      %v3110 = vand.u32 %v3109, 4294901760
      %3111 = vmatpush1.msra.mxu0 %v3110
      %v3112 = vand.u32 %v2838, 4294901760
      %v3113 = vsub.f32 %v2838, %v3112
      %v3114 = vand.u32 %v3113, 4294901760
      %v3115 = vsub.f32 %v3113, %v3114
      %v3116 = vand.u32 %v3115, 4294901760
      %3117 = vmatprep.subr.mxu0 %v3116
      %v3118 = vand.u32 %v2837, 4294901760
      %v3119 = vsub.f32 %v2837, %v3118
      %v3120 = vand.u32 %v3119, 4294901760
      %v3121 = vsub.f32 %v3119, %v3120
      %v3122 = vand.u32 %v3121, 4294901760
      %3123 = vmatpush1.msra.mxu0 %v3122
      %v3124 = vand.u32 %v2836, 4294901760
      %v3125 = vsub.f32 %v2836, %v3124
      %v3126 = vand.u32 %v3125, 4294901760
      %v3127 = vsub.f32 %v3125, %v3126
      %v3128 = vand.u32 %v3127, 4294901760
      %3129 = vmatprep.subr.mxu0 %v3128
      %v3130 = vand.u32 %v2835, 4294901760
      %v3131 = vsub.f32 %v2835, %v3130
      %v3132 = vand.u32 %v3131, 4294901760
      %v3133 = vsub.f32 %v3131, %v3132
      %v3134 = vand.u32 %v3133, 4294901760
      %3135 = vmatpush1.msra.mxu0 %v3134
      %v3136 = vand.u32 %v2834, 4294901760
      %v3137 = vsub.f32 %v2834, %v3136
      %v3138 = vand.u32 %v3137, 4294901760
      %v3139 = vsub.f32 %v3137, %v3138
      %v3140 = vand.u32 %v3139, 4294901760
      %3141 = vmatprep.subr.mxu0 %v3140
      %v3142 = vand.u32 %v2833, 4294901760
      %v3143 = vsub.f32 %v2833, %v3142
      %v3144 = vand.u32 %v3143, 4294901760
      %v3145 = vsub.f32 %v3143, %v3144
      %v3146 = vand.u32 %v3145, 4294901760
      %3147 = vmatpush1.msra.mxu0 %v3146
      %v3148 = vand.u32 %v2832, 4294901760
      %v3149 = vsub.f32 %v2832, %v3148
      %v3150 = vand.u32 %v3149, 4294901760
      %v3151 = vsub.f32 %v3149, %v3150
      %v3152 = vand.u32 %v3151, 4294901760
      %3153 = vmatprep.subr.mxu0 %v3152
      %v3154 = vand.u32 %v2831, 4294901760
      %v3155 = vsub.f32 %v2831, %v3154
      %v3156 = vand.u32 %v3155, 4294901760
      %v3157 = vsub.f32 %v3155, %v3156
      %v3158 = vand.u32 %v3157, 4294901760
      %3159 = vmatpush1.msra.mxu0 %v3158
      %v3160 = vand.u32 %v2830, 4294901760
      %v3161 = vsub.f32 %v2830, %v3160
      %v3162 = vand.u32 %v3161, 4294901760
      %v3163 = vsub.f32 %v3161, %v3162
      %v3164 = vand.u32 %v3163, 4294901760
      %3165 = vmatprep.subr.mxu0 %v3164
      %v3166 = vand.u32 %v2829, 4294901760
      %v3167 = vsub.f32 %v2829, %v3166
      %v3168 = vand.u32 %v3167, 4294901760
      %v3169 = vsub.f32 %v3167, %v3168
      %v3170 = vand.u32 %v3169, 4294901760
      %3171 = vmatpush1.msra.mxu0 %v3170
      %3172 = vmatprep.subr.mxu0 0.0
      %3173 = vmatpush2.msra.mxu0 0.0
      %3174 = vmatprep.subr.mxu0 0.0
      %3175 = vmatpush2.msra.mxu0 0.0
      %3176 = vmatprep.subr.mxu0 0.0
      %3177 = vmatpush2.msra.mxu0 0.0
      %3178 = vmatprep.subr.mxu0 0.0
      %3179 = vmatpush2.msra.mxu0 0.0
      %3180 = vmatprep.subr.mxu0 0.0
      %3181 = vmatpush2.msra.mxu0 0.0
      %3182 = vmatprep.subr.mxu0 0.0
      %3183 = vmatpush2.msra.mxu0 0.0
      %3184 = vmatprep.subr.mxu0 0.0
      %3185 = vmatpush2.msra.mxu0 0.0
      %3186 = vmatprep.subr.mxu0 0.0
      %3187 = vmatpush2.msra.mxu0 0.0
      %3188 = vmatprep.subr.mxu0 0.0
      %3189 = vmatpush2.msra.mxu0 0.0
      %3190 = vmatprep.subr.mxu0 0.0
      %3191 = vmatpush2.msra.mxu0 0.0
      %3192 = vmatprep.subr.mxu0 0.0
      %3193 = vmatpush2.msra.mxu0 0.0
      %3194 = vmatprep.subr.mxu0 0.0
      %3195 = vmatpush2.msra.mxu0 0.0
      %3196 = vmatprep.subr.mxu0 0.0
      %3197 = vmatpush2.msra.mxu0 0.0
      %3198 = vmatprep.subr.mxu0 0.0
      %3199 = vmatpush2.msra.mxu0 0.0
      %3200 = vmatprep.subr.mxu0 0.0
      %3201 = vmatpush2.msra.mxu0 0.0
      %3202 = vmatprep.subr.mxu0 0.0
      %3203 = vmatpush2.msra.mxu0 0.0
      %3204 = vmatprep.mubr.f32.mxu0 0.0
      %v3205 = vand.u32 %v938, 4294901760
      %3206 = vmatmul.mubr.f32.gmra.mxu0 %v3205
      %v3207 = vpop.f32.mrf.mxu0
      %v3208 = vadd.f32 %v2965, %v3207
      %v3209 = vpop.f32.mrf.mxu0
      %v3210 = vadd.f32 %v2967, %v3209
      %3211 = vmatprep.mubr.f32.mxu0 0.0
      %v3212 = vand.u32 %v944, 4294901760
      %3213 = vmatmul.mubr.f32.gmra.mxu0 %v3212
      %v3214 = vpop.f32.mrf.mxu0
      %v3215 = vadd.f32 %v2976, %v3214
      %v3216 = vpop.f32.mrf.mxu0
      %v3217 = vadd.f32 %v2978, %v3216
      %3218 = vdwg.mxu0
      %v3219 = vand.u32 %v2860, 4294901760
      %v3220 = vsub.f32 %v2860, %v3219
      %3221 = vmatprep.subr.mxu0 %v3220
      %v3222 = vand.u32 %v2859, 4294901760
      %v3223 = vsub.f32 %v2859, %v3222
      %3224 = vmatpush1.msra.mxu0 %v3223
      %v3225 = vand.u32 %v2858, 4294901760
      %v3226 = vsub.f32 %v2858, %v3225
      %3227 = vmatprep.subr.mxu0 %v3226
      %v3228 = vand.u32 %v2857, 4294901760
      %v3229 = vsub.f32 %v2857, %v3228
      %3230 = vmatpush1.msra.mxu0 %v3229
      %v3231 = vand.u32 %v2856, 4294901760
      %v3232 = vsub.f32 %v2856, %v3231
      %3233 = vmatprep.subr.mxu0 %v3232
      %v3234 = vand.u32 %v2855, 4294901760
      %v3235 = vsub.f32 %v2855, %v3234
      %3236 = vmatpush1.msra.mxu0 %v3235
      %v3237 = vand.u32 %v2854, 4294901760
      %v3238 = vsub.f32 %v2854, %v3237
      %3239 = vmatprep.subr.mxu0 %v3238
      %v3240 = vand.u32 %v2853, 4294901760
      %v3241 = vsub.f32 %v2853, %v3240
      %3242 = vmatpush1.msra.mxu0 %v3241
      %v3243 = vand.u32 %v2852, 4294901760
      %v3244 = vsub.f32 %v2852, %v3243
      %3245 = vmatprep.subr.mxu0 %v3244
      %v3246 = vand.u32 %v2851, 4294901760
      %v3247 = vsub.f32 %v2851, %v3246
      %3248 = vmatpush1.msra.mxu0 %v3247
      %v3249 = vand.u32 %v2850, 4294901760
      %v3250 = vsub.f32 %v2850, %v3249
      %3251 = vmatprep.subr.mxu0 %v3250
      %v3252 = vand.u32 %v2849, 4294901760
      %v3253 = vsub.f32 %v2849, %v3252
      %3254 = vmatpush1.msra.mxu0 %v3253
      %v3255 = vand.u32 %v2848, 4294901760
      %v3256 = vsub.f32 %v2848, %v3255
      %3257 = vmatprep.subr.mxu0 %v3256
      %v3258 = vand.u32 %v2847, 4294901760
      %v3259 = vsub.f32 %v2847, %v3258
      %3260 = vmatpush1.msra.mxu0 %v3259
      %v3261 = vand.u32 %v2846, 4294901760
      %v3262 = vsub.f32 %v2846, %v3261
      %3263 = vmatprep.subr.mxu0 %v3262
      %v3264 = vand.u32 %v2845, 4294901760
      %v3265 = vsub.f32 %v2845, %v3264
      %3266 = vmatpush1.msra.mxu0 %v3265
      %v3267 = vand.u32 %v2844, 4294901760
      %v3268 = vsub.f32 %v2844, %v3267
      %3269 = vmatprep.subr.mxu0 %v3268
      %v3270 = vand.u32 %v2843, 4294901760
      %v3271 = vsub.f32 %v2843, %v3270
      %3272 = vmatpush1.msra.mxu0 %v3271
      %v3273 = vand.u32 %v2842, 4294901760
      %v3274 = vsub.f32 %v2842, %v3273
      %3275 = vmatprep.subr.mxu0 %v3274
      %v3276 = vand.u32 %v2841, 4294901760
      %v3277 = vsub.f32 %v2841, %v3276
      %3278 = vmatpush1.msra.mxu0 %v3277
      %v3279 = vand.u32 %v2840, 4294901760
      %v3280 = vsub.f32 %v2840, %v3279
      %3281 = vmatprep.subr.mxu0 %v3280
      %v3282 = vand.u32 %v2839, 4294901760
      %v3283 = vsub.f32 %v2839, %v3282
      %3284 = vmatpush1.msra.mxu0 %v3283
      %v3285 = vand.u32 %v2838, 4294901760
      %v3286 = vsub.f32 %v2838, %v3285
      %3287 = vmatprep.subr.mxu0 %v3286
      %v3288 = vand.u32 %v2837, 4294901760
      %v3289 = vsub.f32 %v2837, %v3288
      %3290 = vmatpush1.msra.mxu0 %v3289
      %v3291 = vand.u32 %v2836, 4294901760
      %v3292 = vsub.f32 %v2836, %v3291
      %3293 = vmatprep.subr.mxu0 %v3292
      %v3294 = vand.u32 %v2835, 4294901760
      %v3295 = vsub.f32 %v2835, %v3294
      %3296 = vmatpush1.msra.mxu0 %v3295
      %v3297 = vand.u32 %v2834, 4294901760
      %v3298 = vsub.f32 %v2834, %v3297
      %3299 = vmatprep.subr.mxu0 %v3298
      %v3300 = vand.u32 %v2833, 4294901760
      %v3301 = vsub.f32 %v2833, %v3300
      %3302 = vmatpush1.msra.mxu0 %v3301
      %v3303 = vand.u32 %v2832, 4294901760
      %v3304 = vsub.f32 %v2832, %v3303
      %3305 = vmatprep.subr.mxu0 %v3304
      %v3306 = vand.u32 %v2831, 4294901760
      %v3307 = vsub.f32 %v2831, %v3306
      %3308 = vmatpush1.msra.mxu0 %v3307
      %v3309 = vand.u32 %v2830, 4294901760
      %v3310 = vsub.f32 %v2830, %v3309
      %3311 = vmatprep.subr.mxu0 %v3310
      %v3312 = vand.u32 %v2829, 4294901760
      %v3313 = vsub.f32 %v2829, %v3312
      %3314 = vmatpush1.msra.mxu0 %v3313
      %3315 = vmatprep.subr.mxu0 0.0
      %3316 = vmatpush2.msra.mxu0 0.0
      %3317 = vmatprep.subr.mxu0 0.0
      %3318 = vmatpush2.msra.mxu0 0.0
      %3319 = vmatprep.subr.mxu0 0.0
      %3320 = vmatpush2.msra.mxu0 0.0
      %3321 = vmatprep.subr.mxu0 0.0
      %3322 = vmatpush2.msra.mxu0 0.0
      %3323 = vmatprep.subr.mxu0 0.0
      %3324 = vmatpush2.msra.mxu0 0.0
      %3325 = vmatprep.subr.mxu0 0.0
      %3326 = vmatpush2.msra.mxu0 0.0
      %3327 = vmatprep.subr.mxu0 0.0
      %3328 = vmatpush2.msra.mxu0 0.0
      %3329 = vmatprep.subr.mxu0 0.0
      %3330 = vmatpush2.msra.mxu0 0.0
      %3331 = vmatprep.subr.mxu0 0.0
      %3332 = vmatpush2.msra.mxu0 0.0
      %3333 = vmatprep.subr.mxu0 0.0
      %3334 = vmatpush2.msra.mxu0 0.0
      %3335 = vmatprep.subr.mxu0 0.0
      %3336 = vmatpush2.msra.mxu0 0.0
      %3337 = vmatprep.subr.mxu0 0.0
      %3338 = vmatpush2.msra.mxu0 0.0
      %3339 = vmatprep.subr.mxu0 0.0
      %3340 = vmatpush2.msra.mxu0 0.0
      %3341 = vmatprep.subr.mxu0 0.0
      %3342 = vmatpush2.msra.mxu0 0.0
      %3343 = vmatprep.subr.mxu0 0.0
      %3344 = vmatpush2.msra.mxu0 0.0
      %3345 = vmatprep.subr.mxu0 0.0
      %3346 = vmatpush2.msra.mxu0 0.0
      %3347 = vmatprep.mubr.f32.mxu0 0.0
      %v3348 = vand.u32 %v938, 4294901760
      %v3349 = vsub.f32 %v938, %v3348
      %3350 = vmatmul.mubr.f32.gmra.mxu0 %v3349
      %v3351 = vpop.f32.mrf.mxu0
      %v3352 = vadd.f32 %v3208, %v3351
      %v3353 = vpop.f32.mrf.mxu0
      %v3354 = vadd.f32 %v3210, %v3353
      %3355 = vmatprep.mubr.f32.mxu0 0.0
      %v3356 = vand.u32 %v944, 4294901760
      %v3357 = vsub.f32 %v944, %v3356
      %3358 = vmatmul.mubr.f32.gmra.mxu0 %v3357
      %v3359 = vpop.f32.mrf.mxu0
      %v3360 = vadd.f32 %v3215, %v3359
      %v3361 = vpop.f32.mrf.mxu0
      %v3362 = vadd.f32 %v3217, %v3361
      %3363 = vdwg.mxu0
      %v3364 = vand.u32 %v2860, 4294901760
      %3365 = vmatprep.subr.mxu0 %v3364
      %v3366 = vand.u32 %v2859, 4294901760
      %3367 = vmatpush1.msra.mxu0 %v3366
      %v3368 = vand.u32 %v2858, 4294901760
      %3369 = vmatprep.subr.mxu0 %v3368
      %v3370 = vand.u32 %v2857, 4294901760
      %3371 = vmatpush1.msra.mxu0 %v3370
      %v3372 = vand.u32 %v2856, 4294901760
      %3373 = vmatprep.subr.mxu0 %v3372
      %v3374 = vand.u32 %v2855, 4294901760
      %3375 = vmatpush1.msra.mxu0 %v3374
      %v3376 = vand.u32 %v2854, 4294901760
      %3377 = vmatprep.subr.mxu0 %v3376
      %v3378 = vand.u32 %v2853, 4294901760
      %3379 = vmatpush1.msra.mxu0 %v3378
      %v3380 = vand.u32 %v2852, 4294901760
      %3381 = vmatprep.subr.mxu0 %v3380
      %v3382 = vand.u32 %v2851, 4294901760
      %3383 = vmatpush1.msra.mxu0 %v3382
      %v3384 = vand.u32 %v2850, 4294901760
      %3385 = vmatprep.subr.mxu0 %v3384
      %v3386 = vand.u32 %v2849, 4294901760
      %3387 = vmatpush1.msra.mxu0 %v3386
      %v3388 = vand.u32 %v2848, 4294901760
      %3389 = vmatprep.subr.mxu0 %v3388
      %v3390 = vand.u32 %v2847, 4294901760
      %3391 = vmatpush1.msra.mxu0 %v3390
      %v3392 = vand.u32 %v2846, 4294901760
      %3393 = vmatprep.subr.mxu0 %v3392
      %v3394 = vand.u32 %v2845, 4294901760
      %3395 = vmatpush1.msra.mxu0 %v3394
      %v3396 = vand.u32 %v2844, 4294901760
      %3397 = vmatprep.subr.mxu0 %v3396
      %v3398 = vand.u32 %v2843, 4294901760
      %3399 = vmatpush1.msra.mxu0 %v3398
      %v3400 = vand.u32 %v2842, 4294901760
      %3401 = vmatprep.subr.mxu0 %v3400
      %v3402 = vand.u32 %v2841, 4294901760
      %3403 = vmatpush1.msra.mxu0 %v3402
      %v3404 = vand.u32 %v2840, 4294901760
      %3405 = vmatprep.subr.mxu0 %v3404
      %v3406 = vand.u32 %v2839, 4294901760
      %3407 = vmatpush1.msra.mxu0 %v3406
      %v3408 = vand.u32 %v2838, 4294901760
      %3409 = vmatprep.subr.mxu0 %v3408
      %v3410 = vand.u32 %v2837, 4294901760
      %3411 = vmatpush1.msra.mxu0 %v3410
      %v3412 = vand.u32 %v2836, 4294901760
      %3413 = vmatprep.subr.mxu0 %v3412
      %v3414 = vand.u32 %v2835, 4294901760
      %3415 = vmatpush1.msra.mxu0 %v3414
      %v3416 = vand.u32 %v2834, 4294901760
      %3417 = vmatprep.subr.mxu0 %v3416
      %v3418 = vand.u32 %v2833, 4294901760
      %3419 = vmatpush1.msra.mxu0 %v3418
      %v3420 = vand.u32 %v2832, 4294901760
      %3421 = vmatprep.subr.mxu0 %v3420
      %v3422 = vand.u32 %v2831, 4294901760
      %3423 = vmatpush1.msra.mxu0 %v3422
      %v3424 = vand.u32 %v2830, 4294901760
      %3425 = vmatprep.subr.mxu0 %v3424
      %v3426 = vand.u32 %v2829, 4294901760
      %3427 = vmatpush1.msra.mxu0 %v3426
      %3428 = vmatprep.subr.mxu0 0.0
      %3429 = vmatpush2.msra.mxu0 0.0
      %3430 = vmatprep.subr.mxu0 0.0
      %3431 = vmatpush2.msra.mxu0 0.0
      %3432 = vmatprep.subr.mxu0 0.0
      %3433 = vmatpush2.msra.mxu0 0.0
      %3434 = vmatprep.subr.mxu0 0.0
      %3435 = vmatpush2.msra.mxu0 0.0
      %3436 = vmatprep.subr.mxu0 0.0
      %3437 = vmatpush2.msra.mxu0 0.0
      %3438 = vmatprep.subr.mxu0 0.0
      %3439 = vmatpush2.msra.mxu0 0.0
      %3440 = vmatprep.subr.mxu0 0.0
      %3441 = vmatpush2.msra.mxu0 0.0
      %3442 = vmatprep.subr.mxu0 0.0
      %3443 = vmatpush2.msra.mxu0 0.0
      %3444 = vmatprep.subr.mxu0 0.0
      %3445 = vmatpush2.msra.mxu0 0.0
      %3446 = vmatprep.subr.mxu0 0.0
      %3447 = vmatpush2.msra.mxu0 0.0
      %3448 = vmatprep.subr.mxu0 0.0
      %3449 = vmatpush2.msra.mxu0 0.0
      %3450 = vmatprep.subr.mxu0 0.0
      %3451 = vmatpush2.msra.mxu0 0.0
      %3452 = vmatprep.subr.mxu0 0.0
      %3453 = vmatpush2.msra.mxu0 0.0
      %3454 = vmatprep.subr.mxu0 0.0
      %3455 = vmatpush2.msra.mxu0 0.0
      %3456 = vmatprep.subr.mxu0 0.0
      %3457 = vmatpush2.msra.mxu0 0.0
      %3458 = vmatprep.subr.mxu0 0.0
      %3459 = vmatpush2.msra.mxu0 0.0
      %3460 = vmatprep.mubr.f32.mxu0 0.0
      %v3461 = vand.u32 %v938, 4294901760
      %v3462 = vsub.f32 %v938, %v3461
      %v3463 = vand.u32 %v3462, 4294901760
      %3464 = vmatmul.mubr.f32.gmra.mxu0 %v3463
      %v3465 = vpop.f32.mrf.mxu0
      %v3466 = vadd.f32 %v3352, %v3465
      %v3467 = vpop.f32.mrf.mxu0
      %v3468 = vadd.f32 %v3354, %v3467
      %3469 = vmatprep.mubr.f32.mxu0 0.0
      %v3470 = vand.u32 %v944, 4294901760
      %v3471 = vsub.f32 %v944, %v3470
      %v3472 = vand.u32 %v3471, 4294901760
      %3473 = vmatmul.mubr.f32.gmra.mxu0 %v3472
      %v3474 = vpop.f32.mrf.mxu0
      %v3475 = vadd.f32 %v3360, %v3474
      %v3476 = vpop.f32.mrf.mxu0
      %v3477 = vadd.f32 %v3362, %v3476
      %3478 = vdwg.mxu0
      %v3479 = vand.u32 %v2860, 4294901760
      %v3480 = vsub.f32 %v2860, %v3479
      %v3481 = vand.u32 %v3480, 4294901760
      %3482 = vmatprep.subr.mxu0 %v3481
      %v3483 = vand.u32 %v2859, 4294901760
      %v3484 = vsub.f32 %v2859, %v3483
      %v3485 = vand.u32 %v3484, 4294901760
      %3486 = vmatpush1.msra.mxu0 %v3485
      %v3487 = vand.u32 %v2858, 4294901760
      %v3488 = vsub.f32 %v2858, %v3487
      %v3489 = vand.u32 %v3488, 4294901760
      %3490 = vmatprep.subr.mxu0 %v3489
      %v3491 = vand.u32 %v2857, 4294901760
      %v3492 = vsub.f32 %v2857, %v3491
      %v3493 = vand.u32 %v3492, 4294901760
      %3494 = vmatpush1.msra.mxu0 %v3493
      %v3495 = vand.u32 %v2856, 4294901760
      %v3496 = vsub.f32 %v2856, %v3495
      %v3497 = vand.u32 %v3496, 4294901760
      %3498 = vmatprep.subr.mxu0 %v3497
      %v3499 = vand.u32 %v2855, 4294901760
      %v3500 = vsub.f32 %v2855, %v3499
      %v3501 = vand.u32 %v3500, 4294901760
      %3502 = vmatpush1.msra.mxu0 %v3501
      %v3503 = vand.u32 %v2854, 4294901760
      %v3504 = vsub.f32 %v2854, %v3503
      %v3505 = vand.u32 %v3504, 4294901760
      %3506 = vmatprep.subr.mxu0 %v3505
      %v3507 = vand.u32 %v2853, 4294901760
      %v3508 = vsub.f32 %v2853, %v3507
      %v3509 = vand.u32 %v3508, 4294901760
      %3510 = vmatpush1.msra.mxu0 %v3509
      %v3511 = vand.u32 %v2852, 4294901760
      %v3512 = vsub.f32 %v2852, %v3511
      %v3513 = vand.u32 %v3512, 4294901760
      %3514 = vmatprep.subr.mxu0 %v3513
      %v3515 = vand.u32 %v2851, 4294901760
      %v3516 = vsub.f32 %v2851, %v3515
      %v3517 = vand.u32 %v3516, 4294901760
      %3518 = vmatpush1.msra.mxu0 %v3517
      %v3519 = vand.u32 %v2850, 4294901760
      %v3520 = vsub.f32 %v2850, %v3519
      %v3521 = vand.u32 %v3520, 4294901760
      %3522 = vmatprep.subr.mxu0 %v3521
      %v3523 = vand.u32 %v2849, 4294901760
      %v3524 = vsub.f32 %v2849, %v3523
      %v3525 = vand.u32 %v3524, 4294901760
      %3526 = vmatpush1.msra.mxu0 %v3525
      %v3527 = vand.u32 %v2848, 4294901760
      %v3528 = vsub.f32 %v2848, %v3527
      %v3529 = vand.u32 %v3528, 4294901760
      %3530 = vmatprep.subr.mxu0 %v3529
      %v3531 = vand.u32 %v2847, 4294901760
      %v3532 = vsub.f32 %v2847, %v3531
      %v3533 = vand.u32 %v3532, 4294901760
      %3534 = vmatpush1.msra.mxu0 %v3533
      %v3535 = vand.u32 %v2846, 4294901760
      %v3536 = vsub.f32 %v2846, %v3535
      %v3537 = vand.u32 %v3536, 4294901760
      %3538 = vmatprep.subr.mxu0 %v3537
      %v3539 = vand.u32 %v2845, 4294901760
      %v3540 = vsub.f32 %v2845, %v3539
      %v3541 = vand.u32 %v3540, 4294901760
      %3542 = vmatpush1.msra.mxu0 %v3541
      %v3543 = vand.u32 %v2844, 4294901760
      %v3544 = vsub.f32 %v2844, %v3543
      %v3545 = vand.u32 %v3544, 4294901760
      %3546 = vmatprep.subr.mxu0 %v3545
      %v3547 = vand.u32 %v2843, 4294901760
      %v3548 = vsub.f32 %v2843, %v3547
      %v3549 = vand.u32 %v3548, 4294901760
      %3550 = vmatpush1.msra.mxu0 %v3549
      %v3551 = vand.u32 %v2842, 4294901760
      %v3552 = vsub.f32 %v2842, %v3551
      %v3553 = vand.u32 %v3552, 4294901760
      %3554 = vmatprep.subr.mxu0 %v3553
      %v3555 = vand.u32 %v2841, 4294901760
      %v3556 = vsub.f32 %v2841, %v3555
      %v3557 = vand.u32 %v3556, 4294901760
      %3558 = vmatpush1.msra.mxu0 %v3557
      %v3559 = vand.u32 %v2840, 4294901760
      %v3560 = vsub.f32 %v2840, %v3559
      %v3561 = vand.u32 %v3560, 4294901760
      %3562 = vmatprep.subr.mxu0 %v3561
      %v3563 = vand.u32 %v2839, 4294901760
      %v3564 = vsub.f32 %v2839, %v3563
      %v3565 = vand.u32 %v3564, 4294901760
      %3566 = vmatpush1.msra.mxu0 %v3565
      %v3567 = vand.u32 %v2838, 4294901760
      %v3568 = vsub.f32 %v2838, %v3567
      %v3569 = vand.u32 %v3568, 4294901760
      %3570 = vmatprep.subr.mxu0 %v3569
      %v3571 = vand.u32 %v2837, 4294901760
      %v3572 = vsub.f32 %v2837, %v3571
      %v3573 = vand.u32 %v3572, 4294901760
      %3574 = vmatpush1.msra.mxu0 %v3573
      %v3575 = vand.u32 %v2836, 4294901760
      %v3576 = vsub.f32 %v2836, %v3575
      %v3577 = vand.u32 %v3576, 4294901760
      %3578 = vmatprep.subr.mxu0 %v3577
      %v3579 = vand.u32 %v2835, 4294901760
      %v3580 = vsub.f32 %v2835, %v3579
      %v3581 = vand.u32 %v3580, 4294901760
      %3582 = vmatpush1.msra.mxu0 %v3581
      %v3583 = vand.u32 %v2834, 4294901760
      %v3584 = vsub.f32 %v2834, %v3583
      %v3585 = vand.u32 %v3584, 4294901760
      %3586 = vmatprep.subr.mxu0 %v3585
      %v3587 = vand.u32 %v2833, 4294901760
      %v3588 = vsub.f32 %v2833, %v3587
      %v3589 = vand.u32 %v3588, 4294901760
      %3590 = vmatpush1.msra.mxu0 %v3589
      %v3591 = vand.u32 %v2832, 4294901760
      %v3592 = vsub.f32 %v2832, %v3591
      %v3593 = vand.u32 %v3592, 4294901760
      %3594 = vmatprep.subr.mxu0 %v3593
      %v3595 = vand.u32 %v2831, 4294901760
      %v3596 = vsub.f32 %v2831, %v3595
      %v3597 = vand.u32 %v3596, 4294901760
      %3598 = vmatpush1.msra.mxu0 %v3597
      %v3599 = vand.u32 %v2830, 4294901760
      %v3600 = vsub.f32 %v2830, %v3599
      %v3601 = vand.u32 %v3600, 4294901760
      %3602 = vmatprep.subr.mxu0 %v3601
      %v3603 = vand.u32 %v2829, 4294901760
      %v3604 = vsub.f32 %v2829, %v3603
      %v3605 = vand.u32 %v3604, 4294901760
      %3606 = vmatpush1.msra.mxu0 %v3605
      %3607 = vmatprep.subr.mxu0 0.0
      %3608 = vmatpush2.msra.mxu0 0.0
      %3609 = vmatprep.subr.mxu0 0.0
      %3610 = vmatpush2.msra.mxu0 0.0
      %3611 = vmatprep.subr.mxu0 0.0
      %3612 = vmatpush2.msra.mxu0 0.0
      %3613 = vmatprep.subr.mxu0 0.0
      %3614 = vmatpush2.msra.mxu0 0.0
      %3615 = vmatprep.subr.mxu0 0.0
      %3616 = vmatpush2.msra.mxu0 0.0
      %3617 = vmatprep.subr.mxu0 0.0
      %3618 = vmatpush2.msra.mxu0 0.0
      %3619 = vmatprep.subr.mxu0 0.0
      %3620 = vmatpush2.msra.mxu0 0.0
      %3621 = vmatprep.subr.mxu0 0.0
      %3622 = vmatpush2.msra.mxu0 0.0
      %3623 = vmatprep.subr.mxu0 0.0
      %3624 = vmatpush2.msra.mxu0 0.0
      %3625 = vmatprep.subr.mxu0 0.0
      %3626 = vmatpush2.msra.mxu0 0.0
      %3627 = vmatprep.subr.mxu0 0.0
      %3628 = vmatpush2.msra.mxu0 0.0
      %3629 = vmatprep.subr.mxu0 0.0
      %3630 = vmatpush2.msra.mxu0 0.0
      %3631 = vmatprep.subr.mxu0 0.0
      %3632 = vmatpush2.msra.mxu0 0.0
      %3633 = vmatprep.subr.mxu0 0.0
      %3634 = vmatpush2.msra.mxu0 0.0
      %3635 = vmatprep.subr.mxu0 0.0
      %3636 = vmatpush2.msra.mxu0 0.0
      %3637 = vmatprep.subr.mxu0 0.0
      %3638 = vmatpush2.msra.mxu0 0.0
      %3639 = vmatprep.mubr.f32.mxu0 0.0
      %v3640 = vand.u32 %v938, 4294901760
      %3641 = vmatmul.mubr.f32.gmra.mxu0 %v3640
      %v3642 = vpop.f32.mrf.mxu0
      %v3643 = vadd.f32 %v3466, %v3642
      %v3644 = vpop.f32.mrf.mxu0
      %v3645 = vadd.f32 %v3468, %v3644
      %3646 = vmatprep.mubr.f32.mxu0 0.0
      %v3647 = vand.u32 %v944, 4294901760
      %3648 = vmatmul.mubr.f32.gmra.mxu0 %v3647
      %v3649 = vpop.f32.mrf.mxu0
      %v3650 = vadd.f32 %v3475, %v3649
      %v3651 = vpop.f32.mrf.mxu0
      %v3652 = vadd.f32 %v3477, %v3651
      %3653 = vdwg.mxu0
      %v3654 = vand.u32 %v2860, 4294901760
      %3655 = vmatprep.subr.mxu0 %v3654
      %v3656 = vand.u32 %v2859, 4294901760
      %3657 = vmatpush1.msra.mxu0 %v3656
      %v3658 = vand.u32 %v2858, 4294901760
      %3659 = vmatprep.subr.mxu0 %v3658
      %v3660 = vand.u32 %v2857, 4294901760
      %3661 = vmatpush1.msra.mxu0 %v3660
      %v3662 = vand.u32 %v2856, 4294901760
      %3663 = vmatprep.subr.mxu0 %v3662
      %v3664 = vand.u32 %v2855, 4294901760
      %3665 = vmatpush1.msra.mxu0 %v3664
      %v3666 = vand.u32 %v2854, 4294901760
      %3667 = vmatprep.subr.mxu0 %v3666
      %v3668 = vand.u32 %v2853, 4294901760
      %3669 = vmatpush1.msra.mxu0 %v3668
      %v3670 = vand.u32 %v2852, 4294901760
      %3671 = vmatprep.subr.mxu0 %v3670
      %v3672 = vand.u32 %v2851, 4294901760
      %3673 = vmatpush1.msra.mxu0 %v3672
      %v3674 = vand.u32 %v2850, 4294901760
      %3675 = vmatprep.subr.mxu0 %v3674
      %v3676 = vand.u32 %v2849, 4294901760
      %3677 = vmatpush1.msra.mxu0 %v3676
      %v3678 = vand.u32 %v2848, 4294901760
      %3679 = vmatprep.subr.mxu0 %v3678
      %v3680 = vand.u32 %v2847, 4294901760
      %3681 = vmatpush1.msra.mxu0 %v3680
      %v3682 = vand.u32 %v2846, 4294901760
      %3683 = vmatprep.subr.mxu0 %v3682
      %v3684 = vand.u32 %v2845, 4294901760
      %3685 = vmatpush1.msra.mxu0 %v3684
      %v3686 = vand.u32 %v2844, 4294901760
      %3687 = vmatprep.subr.mxu0 %v3686
      %v3688 = vand.u32 %v2843, 4294901760
      %3689 = vmatpush1.msra.mxu0 %v3688
      %v3690 = vand.u32 %v2842, 4294901760
      %3691 = vmatprep.subr.mxu0 %v3690
      %v3692 = vand.u32 %v2841, 4294901760
      %3693 = vmatpush1.msra.mxu0 %v3692
      %v3694 = vand.u32 %v2840, 4294901760
      %3695 = vmatprep.subr.mxu0 %v3694
      %v3696 = vand.u32 %v2839, 4294901760
      %3697 = vmatpush1.msra.mxu0 %v3696
      %v3698 = vand.u32 %v2838, 4294901760
      %3699 = vmatprep.subr.mxu0 %v3698
      %v3700 = vand.u32 %v2837, 4294901760
      %3701 = vmatpush1.msra.mxu0 %v3700
      %v3702 = vand.u32 %v2836, 4294901760
      %3703 = vmatprep.subr.mxu0 %v3702
      %v3704 = vand.u32 %v2835, 4294901760
      %3705 = vmatpush1.msra.mxu0 %v3704
      %v3706 = vand.u32 %v2834, 4294901760
      %3707 = vmatprep.subr.mxu0 %v3706
      %v3708 = vand.u32 %v2833, 4294901760
      %3709 = vmatpush1.msra.mxu0 %v3708
      %v3710 = vand.u32 %v2832, 4294901760
      %3711 = vmatprep.subr.mxu0 %v3710
      %v3712 = vand.u32 %v2831, 4294901760
      %3713 = vmatpush1.msra.mxu0 %v3712
      %v3714 = vand.u32 %v2830, 4294901760
      %3715 = vmatprep.subr.mxu0 %v3714
      %v3716 = vand.u32 %v2829, 4294901760
      %3717 = vmatpush1.msra.mxu0 %v3716
      %3718 = vmatprep.subr.mxu0 0.0
      %3719 = vmatpush2.msra.mxu0 0.0
      %3720 = vmatprep.subr.mxu0 0.0
      %3721 = vmatpush2.msra.mxu0 0.0
      %3722 = vmatprep.subr.mxu0 0.0
      %3723 = vmatpush2.msra.mxu0 0.0
      %3724 = vmatprep.subr.mxu0 0.0
      %3725 = vmatpush2.msra.mxu0 0.0
      %3726 = vmatprep.subr.mxu0 0.0
      %3727 = vmatpush2.msra.mxu0 0.0
      %3728 = vmatprep.subr.mxu0 0.0
      %3729 = vmatpush2.msra.mxu0 0.0
      %3730 = vmatprep.subr.mxu0 0.0
      %3731 = vmatpush2.msra.mxu0 0.0
      %3732 = vmatprep.subr.mxu0 0.0
      %3733 = vmatpush2.msra.mxu0 0.0
      %3734 = vmatprep.subr.mxu0 0.0
      %3735 = vmatpush2.msra.mxu0 0.0
      %3736 = vmatprep.subr.mxu0 0.0
      %3737 = vmatpush2.msra.mxu0 0.0
      %3738 = vmatprep.subr.mxu0 0.0
      %3739 = vmatpush2.msra.mxu0 0.0
      %3740 = vmatprep.subr.mxu0 0.0
      %3741 = vmatpush2.msra.mxu0 0.0
      %3742 = vmatprep.subr.mxu0 0.0
      %3743 = vmatpush2.msra.mxu0 0.0
      %3744 = vmatprep.subr.mxu0 0.0
      %3745 = vmatpush2.msra.mxu0 0.0
      %3746 = vmatprep.subr.mxu0 0.0
      %3747 = vmatpush2.msra.mxu0 0.0
      %3748 = vmatprep.subr.mxu0 0.0
      %3749 = vmatpush2.msra.mxu0 0.0
      %3750 = vmatprep.mubr.f32.mxu0 0.0
      %v3751 = vand.u32 %v938, 4294901760
      %3752 = vmatmul.mubr.f32.gmra.mxu0 %v3751
      %v3753 = vpop.f32.mrf.mxu0
      %v3754 = vadd.f32 %v3643, %v3753
      %v3755 = vpop.f32.mrf.mxu0
      %v3756 = vadd.f32 %v3645, %v3755
      %3757 = vmatprep.mubr.f32.mxu0 0.0
      %v3758 = vand.u32 %v944, 4294901760
      %3759 = vmatmul.mubr.f32.gmra.mxu0 %v3758
      %v3760 = vpop.f32.mrf.mxu0
      %v3761 = vadd.f32 %v3650, %v3760
      %v3762 = vpop.f32.mrf.mxu0
      %v3763 = vadd.f32 %v3652, %v3762
      %3764 = vdwg.mxu0
      %v3765 = vadd.f32 %v2824, %v3754
      %v3766 = vadd.f32 %v2825, %v3756
      %v3767 = vadd.f32 %v2826, %v3761
      %v3768 = vadd.f32 %v2827, %v3763
      %v3769 = vxor.u32 %v3765, 2147483648
      %v3770 = vxor.u32 %v3767, 2147483648
      %v3771 = vmul.f32 %v3769, 1.442695
      %v3772 = vpow.pop %v3771
      %v3773 = vmul.f32 %v3770, 1.442695
      %v3774 = vpow.pop %v3773
      %v3775 = vadd.f32 %v3772, 1.0
      %v3776 = vadd.f32 %v3774, 1.0
      %v3777 = vrcp.pop %v3775
      %v3778 = vmul.f32 1.0, %v3777
      %v3779 = vrcp.pop %v3776
      %v3780 = vmul.f32 1.0, %v3779
      %v3781 = vxor.u32 %v3766, 2147483648
      %v3782 = vxor.u32 %v3768, 2147483648
      %v3783 = vmul.f32 %v3781, 1.442695
      %v3784 = vpow.pop %v3783
      %v3785 = vmul.f32 %v3782, 1.442695
      %v3786 = vpow.pop %v3785
      %v3787 = vadd.f32 %v3784, 1.0
      %v3788 = vadd.f32 %v3786, 1.0
      %v3789 = vrcp.pop %v3787
      %v3790 = vmul.f32 1.0, %v3789
      %v3791 = vrcp.pop %v3788
      %v3792 = vmul.f32 1.0, %v3791
      %v3793 = vmul.f32 %v3790, %v240
      %v3794 = vmul.f32 %v3792, %v241
      %3795 = vmatprep.subr.mxu0 0.0
      %3796 = vmatpush1.msra.mxu0 0.0
      %3797 = vmatprep.subr.mxu0 0.0
      %3798 = vmatpush1.msra.mxu0 0.0
      %3799 = vmatprep.subr.mxu0 0.0
      %3800 = vmatpush1.msra.mxu0 0.0
      %3801 = vmatprep.subr.mxu0 0.0
      %3802 = vmatpush1.msra.mxu0 0.0
      %3803 = vmatprep.subr.mxu0 0.0
      %3804 = vmatpush1.msra.mxu0 0.0
      %3805 = vmatprep.subr.mxu0 0.0
      %3806 = vmatpush1.msra.mxu0 0.0
      %3807 = vmatprep.subr.mxu0 0.0
      %3808 = vmatpush1.msra.mxu0 0.0
      %3809 = vmatprep.subr.mxu0 0.0
      %3810 = vmatpush1.msra.mxu0 0.0
      %3811 = vmatprep.subr.mxu0 0.0
      %3812 = vmatpush1.msra.mxu0 0.0
      %3813 = vmatprep.subr.mxu0 0.0
      %3814 = vmatpush1.msra.mxu0 0.0
      %3815 = vmatprep.subr.mxu0 0.0
      %3816 = vmatpush1.msra.mxu0 0.0
      %3817 = vmatprep.subr.mxu0 0.0
      %3818 = vmatpush1.msra.mxu0 0.0
      %3819 = vmatprep.subr.mxu0 0.0
      %3820 = vmatpush1.msra.mxu0 0.0
      %3821 = vmatprep.subr.mxu0 0.0
      %3822 = vmatpush1.msra.mxu0 0.0
      %3823 = vmatprep.subr.mxu0 0.0
      %v3824 = vand.u32 %v3794, 4294901760
      %3825 = vmatpush1.msra.mxu0 %v3824
      %3826 = vmatprep.subr.mxu0 0.0
      %v3827 = vand.u32 %v3793, 4294901760
      %3828 = vmatpush1.msra.mxu0 %v3827
      %3829 = vmatprep.subr.mxu0 0.0
      %3830 = vmatpush2.msra.mxu0 0.0
      %3831 = vmatprep.subr.mxu0 0.0
      %3832 = vmatpush2.msra.mxu0 0.0
      %3833 = vmatprep.subr.mxu0 0.0
      %3834 = vmatpush2.msra.mxu0 0.0
      %3835 = vmatprep.subr.mxu0 0.0
      %3836 = vmatpush2.msra.mxu0 0.0
      %3837 = vmatprep.subr.mxu0 0.0
      %3838 = vmatpush2.msra.mxu0 0.0
      %3839 = vmatprep.subr.mxu0 0.0
      %3840 = vmatpush2.msra.mxu0 0.0
      %3841 = vmatprep.subr.mxu0 0.0
      %3842 = vmatpush2.msra.mxu0 0.0
      %3843 = vmatprep.subr.mxu0 0.0
      %3844 = vmatpush2.msra.mxu0 0.0
      %3845 = vmatprep.subr.mxu0 0.0
      %3846 = vmatpush2.msra.mxu0 0.0
      %3847 = vmatprep.subr.mxu0 0.0
      %3848 = vmatpush2.msra.mxu0 0.0
      %3849 = vmatprep.subr.mxu0 0.0
      %3850 = vmatpush2.msra.mxu0 0.0
      %3851 = vmatprep.subr.mxu0 0.0
      %3852 = vmatpush2.msra.mxu0 0.0
      %3853 = vmatprep.subr.mxu0 0.0
      %3854 = vmatpush2.msra.mxu0 0.0
      %3855 = vmatprep.subr.mxu0 0.0
      %3856 = vmatpush2.msra.mxu0 0.0
      %3857 = vmatprep.subr.mxu0 0.0
      %3858 = vmatpush2.msra.mxu0 0.0
      %3859 = vmatprep.subr.mxu0 0.0
      %3860 = vmatpush2.msra.mxu0 0.0
      %3861 = vmatprep.mubr.f32.mxu0 0.0
      %v3862 = vand.u32 %v256, 4294901760
      %v3863 = vsub.f32 %v256, %v3862
      %v3864 = vand.u32 %v3863, 4294901760
      %v3865 = vsub.f32 %v3863, %v3864
      %v3866 = vand.u32 %v3865, 4294901760
      %3867 = vmatmul.mubr.f32.gmra.mxu0 %v3866
      %v3868 = vpop.f32.mrf.mxu0
      %v3869 = vadd.f32 0.0, %v3868
      %v3870 = vpop.f32.mrf.mxu0
      %3871 = vmatprep.mubr.f32.mxu0 0.0
      %v3872 = vand.u32 %v259, 4294901760
      %v3873 = vsub.f32 %v259, %v3872
      %v3874 = vand.u32 %v3873, 4294901760
      %v3875 = vsub.f32 %v3873, %v3874
      %v3876 = vand.u32 %v3875, 4294901760
      %3877 = vmatmul.mubr.f32.gmra.mxu0 %v3876
      %v3878 = vpop.f32.mrf.mxu0
      %v3879 = vadd.f32 0.0, %v3878
      %v3880 = vpop.f32.mrf.mxu0
      %3881 = vmatprep.mubr.f32.mxu0 0.0
      %v3882 = vand.u32 %v262, 4294901760
      %v3883 = vsub.f32 %v262, %v3882
      %v3884 = vand.u32 %v3883, 4294901760
      %v3885 = vsub.f32 %v3883, %v3884
      %v3886 = vand.u32 %v3885, 4294901760
      %3887 = vmatmul.mubr.f32.gmra.mxu0 %v3886
      %v3888 = vpop.f32.mrf.mxu0
      %v3889 = vadd.f32 0.0, %v3888
      %v3890 = vpop.f32.mrf.mxu0
      %3891 = vmatprep.mubr.f32.mxu0 0.0
      %v3892 = vand.u32 %v265, 4294901760
      %v3893 = vsub.f32 %v265, %v3892
      %v3894 = vand.u32 %v3893, 4294901760
      %v3895 = vsub.f32 %v3893, %v3894
      %v3896 = vand.u32 %v3895, 4294901760
      %3897 = vmatmul.mubr.f32.gmra.mxu0 %v3896
      %v3898 = vpop.f32.mrf.mxu0
      %v3899 = vadd.f32 0.0, %v3898
      %v3900 = vpop.f32.mrf.mxu0
      %3901 = vmatprep.mubr.f32.mxu0 0.0
      %v3902 = vand.u32 %v268, 4294901760
      %v3903 = vsub.f32 %v268, %v3902
      %v3904 = vand.u32 %v3903, 4294901760
      %v3905 = vsub.f32 %v3903, %v3904
      %v3906 = vand.u32 %v3905, 4294901760
      %3907 = vmatmul.mubr.f32.gmra.mxu0 %v3906
      %v3908 = vpop.f32.mrf.mxu0
      %v3909 = vadd.f32 0.0, %v3908
      %v3910 = vpop.f32.mrf.mxu0
      %3911 = vmatprep.mubr.f32.mxu0 0.0
      %v3912 = vand.u32 %v271, 4294901760
      %v3913 = vsub.f32 %v271, %v3912
      %v3914 = vand.u32 %v3913, 4294901760
      %v3915 = vsub.f32 %v3913, %v3914
      %v3916 = vand.u32 %v3915, 4294901760
      %3917 = vmatmul.mubr.f32.gmra.mxu0 %v3916
      %v3918 = vpop.f32.mrf.mxu0
      %v3919 = vadd.f32 0.0, %v3918
      %v3920 = vpop.f32.mrf.mxu0
      %3921 = vdwg.mxu0
      %3922 = vmatprep.subr.mxu0 0.0
      %3923 = vmatpush1.msra.mxu0 0.0
      %3924 = vmatprep.subr.mxu0 0.0
      %3925 = vmatpush1.msra.mxu0 0.0
      %3926 = vmatprep.subr.mxu0 0.0
      %3927 = vmatpush1.msra.mxu0 0.0
      %3928 = vmatprep.subr.mxu0 0.0
      %3929 = vmatpush1.msra.mxu0 0.0
      %3930 = vmatprep.subr.mxu0 0.0
      %3931 = vmatpush1.msra.mxu0 0.0
      %3932 = vmatprep.subr.mxu0 0.0
      %3933 = vmatpush1.msra.mxu0 0.0
      %3934 = vmatprep.subr.mxu0 0.0
      %3935 = vmatpush1.msra.mxu0 0.0
      %3936 = vmatprep.subr.mxu0 0.0
      %3937 = vmatpush1.msra.mxu0 0.0
      %3938 = vmatprep.subr.mxu0 0.0
      %3939 = vmatpush1.msra.mxu0 0.0
      %3940 = vmatprep.subr.mxu0 0.0
      %3941 = vmatpush1.msra.mxu0 0.0
      %3942 = vmatprep.subr.mxu0 0.0
      %3943 = vmatpush1.msra.mxu0 0.0
      %3944 = vmatprep.subr.mxu0 0.0
      %3945 = vmatpush1.msra.mxu0 0.0
      %3946 = vmatprep.subr.mxu0 0.0
      %3947 = vmatpush1.msra.mxu0 0.0
      %3948 = vmatprep.subr.mxu0 0.0
      %3949 = vmatpush1.msra.mxu0 0.0
      %3950 = vmatprep.subr.mxu0 0.0
      %v3951 = vand.u32 %v3794, 4294901760
      %v3952 = vsub.f32 %v3794, %v3951
      %v3953 = vand.u32 %v3952, 4294901760
      %v3954 = vsub.f32 %v3952, %v3953
      %v3955 = vand.u32 %v3954, 4294901760
      %3956 = vmatpush1.msra.mxu0 %v3955
      %3957 = vmatprep.subr.mxu0 0.0
      %v3958 = vand.u32 %v3793, 4294901760
      %v3959 = vsub.f32 %v3793, %v3958
      %v3960 = vand.u32 %v3959, 4294901760
      %v3961 = vsub.f32 %v3959, %v3960
      %v3962 = vand.u32 %v3961, 4294901760
      %3963 = vmatpush1.msra.mxu0 %v3962
      %3964 = vmatprep.subr.mxu0 0.0
      %3965 = vmatpush2.msra.mxu0 0.0
      %3966 = vmatprep.subr.mxu0 0.0
      %3967 = vmatpush2.msra.mxu0 0.0
      %3968 = vmatprep.subr.mxu0 0.0
      %3969 = vmatpush2.msra.mxu0 0.0
      %3970 = vmatprep.subr.mxu0 0.0
      %3971 = vmatpush2.msra.mxu0 0.0
      %3972 = vmatprep.subr.mxu0 0.0
      %3973 = vmatpush2.msra.mxu0 0.0
      %3974 = vmatprep.subr.mxu0 0.0
      %3975 = vmatpush2.msra.mxu0 0.0
      %3976 = vmatprep.subr.mxu0 0.0
      %3977 = vmatpush2.msra.mxu0 0.0
      %3978 = vmatprep.subr.mxu0 0.0
      %3979 = vmatpush2.msra.mxu0 0.0
      %3980 = vmatprep.subr.mxu0 0.0
      %3981 = vmatpush2.msra.mxu0 0.0
      %3982 = vmatprep.subr.mxu0 0.0
      %3983 = vmatpush2.msra.mxu0 0.0
      %3984 = vmatprep.subr.mxu0 0.0
      %3985 = vmatpush2.msra.mxu0 0.0
      %3986 = vmatprep.subr.mxu0 0.0
      %3987 = vmatpush2.msra.mxu0 0.0
      %3988 = vmatprep.subr.mxu0 0.0
      %3989 = vmatpush2.msra.mxu0 0.0
      %3990 = vmatprep.subr.mxu0 0.0
      %3991 = vmatpush2.msra.mxu0 0.0
      %3992 = vmatprep.subr.mxu0 0.0
      %3993 = vmatpush2.msra.mxu0 0.0
      %3994 = vmatprep.subr.mxu0 0.0
      %3995 = vmatpush2.msra.mxu0 0.0
      %3996 = vmatprep.mubr.f32.mxu0 0.0
      %v3997 = vand.u32 %v256, 4294901760
      %3998 = vmatmul.mubr.f32.gmra.mxu0 %v3997
      %v3999 = vpop.f32.mrf.mxu0
      %v4000 = vadd.f32 %v3869, %v3999
      %v4001 = vpop.f32.mrf.mxu0
      %4002 = vmatprep.mubr.f32.mxu0 0.0
      %v4003 = vand.u32 %v259, 4294901760
      %4004 = vmatmul.mubr.f32.gmra.mxu0 %v4003
      %v4005 = vpop.f32.mrf.mxu0
      %v4006 = vadd.f32 %v3879, %v4005
      %v4007 = vpop.f32.mrf.mxu0
      %4008 = vmatprep.mubr.f32.mxu0 0.0
      %v4009 = vand.u32 %v262, 4294901760
      %4010 = vmatmul.mubr.f32.gmra.mxu0 %v4009
      %v4011 = vpop.f32.mrf.mxu0
      %v4012 = vadd.f32 %v3889, %v4011
      %v4013 = vpop.f32.mrf.mxu0
      %4014 = vmatprep.mubr.f32.mxu0 0.0
      %v4015 = vand.u32 %v265, 4294901760
      %4016 = vmatmul.mubr.f32.gmra.mxu0 %v4015
      %v4017 = vpop.f32.mrf.mxu0
      %v4018 = vadd.f32 %v3899, %v4017
      %v4019 = vpop.f32.mrf.mxu0
      %4020 = vmatprep.mubr.f32.mxu0 0.0
      %v4021 = vand.u32 %v268, 4294901760
      %4022 = vmatmul.mubr.f32.gmra.mxu0 %v4021
      %v4023 = vpop.f32.mrf.mxu0
      %v4024 = vadd.f32 %v3909, %v4023
      %v4025 = vpop.f32.mrf.mxu0
      %4026 = vmatprep.mubr.f32.mxu0 0.0
      %v4027 = vand.u32 %v271, 4294901760
      %4028 = vmatmul.mubr.f32.gmra.mxu0 %v4027
      %v4029 = vpop.f32.mrf.mxu0
      %v4030 = vadd.f32 %v3919, %v4029
      %v4031 = vpop.f32.mrf.mxu0
      %4032 = vdwg.mxu0
      %4033 = vmatprep.subr.mxu0 0.0
      %4034 = vmatpush1.msra.mxu0 0.0
      %4035 = vmatprep.subr.mxu0 0.0
      %4036 = vmatpush1.msra.mxu0 0.0
      %4037 = vmatprep.subr.mxu0 0.0
      %4038 = vmatpush1.msra.mxu0 0.0
      %4039 = vmatprep.subr.mxu0 0.0
      %4040 = vmatpush1.msra.mxu0 0.0
      %4041 = vmatprep.subr.mxu0 0.0
      %4042 = vmatpush1.msra.mxu0 0.0
      %4043 = vmatprep.subr.mxu0 0.0
      %4044 = vmatpush1.msra.mxu0 0.0
      %4045 = vmatprep.subr.mxu0 0.0
      %4046 = vmatpush1.msra.mxu0 0.0
      %4047 = vmatprep.subr.mxu0 0.0
      %4048 = vmatpush1.msra.mxu0 0.0
      %4049 = vmatprep.subr.mxu0 0.0
      %4050 = vmatpush1.msra.mxu0 0.0
      %4051 = vmatprep.subr.mxu0 0.0
      %4052 = vmatpush1.msra.mxu0 0.0
      %4053 = vmatprep.subr.mxu0 0.0
      %4054 = vmatpush1.msra.mxu0 0.0
      %4055 = vmatprep.subr.mxu0 0.0
      %4056 = vmatpush1.msra.mxu0 0.0
      %4057 = vmatprep.subr.mxu0 0.0
      %4058 = vmatpush1.msra.mxu0 0.0
      %4059 = vmatprep.subr.mxu0 0.0
      %4060 = vmatpush1.msra.mxu0 0.0
      %4061 = vmatprep.subr.mxu0 0.0
      %v4062 = vand.u32 %v3794, 4294901760
      %v4063 = vsub.f32 %v3794, %v4062
      %4064 = vmatpush1.msra.mxu0 %v4063
      %4065 = vmatprep.subr.mxu0 0.0
      %v4066 = vand.u32 %v3793, 4294901760
      %v4067 = vsub.f32 %v3793, %v4066
      %4068 = vmatpush1.msra.mxu0 %v4067
      %4069 = vmatprep.subr.mxu0 0.0
      %4070 = vmatpush2.msra.mxu0 0.0
      %4071 = vmatprep.subr.mxu0 0.0
      %4072 = vmatpush2.msra.mxu0 0.0
      %4073 = vmatprep.subr.mxu0 0.0
      %4074 = vmatpush2.msra.mxu0 0.0
      %4075 = vmatprep.subr.mxu0 0.0
      %4076 = vmatpush2.msra.mxu0 0.0
      %4077 = vmatprep.subr.mxu0 0.0
      %4078 = vmatpush2.msra.mxu0 0.0
      %4079 = vmatprep.subr.mxu0 0.0
      %4080 = vmatpush2.msra.mxu0 0.0
      %4081 = vmatprep.subr.mxu0 0.0
      %4082 = vmatpush2.msra.mxu0 0.0
      %4083 = vmatprep.subr.mxu0 0.0
      %4084 = vmatpush2.msra.mxu0 0.0
      %4085 = vmatprep.subr.mxu0 0.0
      %4086 = vmatpush2.msra.mxu0 0.0
      %4087 = vmatprep.subr.mxu0 0.0
      %4088 = vmatpush2.msra.mxu0 0.0
      %4089 = vmatprep.subr.mxu0 0.0
      %4090 = vmatpush2.msra.mxu0 0.0
      %4091 = vmatprep.subr.mxu0 0.0
      %4092 = vmatpush2.msra.mxu0 0.0
      %4093 = vmatprep.subr.mxu0 0.0
      %4094 = vmatpush2.msra.mxu0 0.0
      %4095 = vmatprep.subr.mxu0 0.0
      %4096 = vmatpush2.msra.mxu0 0.0
      %4097 = vmatprep.subr.mxu0 0.0
      %4098 = vmatpush2.msra.mxu0 0.0
      %4099 = vmatprep.subr.mxu0 0.0
      %4100 = vmatpush2.msra.mxu0 0.0
      %4101 = vmatprep.mubr.f32.mxu0 0.0
      %v4102 = vand.u32 %v256, 4294901760
      %v4103 = vsub.f32 %v256, %v4102
      %4104 = vmatmul.mubr.f32.gmra.mxu0 %v4103
      %v4105 = vpop.f32.mrf.mxu0
      %v4106 = vadd.f32 %v4000, %v4105
      %v4107 = vpop.f32.mrf.mxu0
      %4108 = vmatprep.mubr.f32.mxu0 0.0
      %v4109 = vand.u32 %v259, 4294901760
      %v4110 = vsub.f32 %v259, %v4109
      %4111 = vmatmul.mubr.f32.gmra.mxu0 %v4110
      %v4112 = vpop.f32.mrf.mxu0
      %v4113 = vadd.f32 %v4006, %v4112
      %v4114 = vpop.f32.mrf.mxu0
      %4115 = vmatprep.mubr.f32.mxu0 0.0
      %v4116 = vand.u32 %v262, 4294901760
      %v4117 = vsub.f32 %v262, %v4116
      %4118 = vmatmul.mubr.f32.gmra.mxu0 %v4117
      %v4119 = vpop.f32.mrf.mxu0
      %v4120 = vadd.f32 %v4012, %v4119
      %v4121 = vpop.f32.mrf.mxu0
      %4122 = vmatprep.mubr.f32.mxu0 0.0
      %v4123 = vand.u32 %v265, 4294901760
      %v4124 = vsub.f32 %v265, %v4123
      %4125 = vmatmul.mubr.f32.gmra.mxu0 %v4124
      %v4126 = vpop.f32.mrf.mxu0
      %v4127 = vadd.f32 %v4018, %v4126
      %v4128 = vpop.f32.mrf.mxu0
      %4129 = vmatprep.mubr.f32.mxu0 0.0
      %v4130 = vand.u32 %v268, 4294901760
      %v4131 = vsub.f32 %v268, %v4130
      %4132 = vmatmul.mubr.f32.gmra.mxu0 %v4131
      %v4133 = vpop.f32.mrf.mxu0
      %v4134 = vadd.f32 %v4024, %v4133
      %v4135 = vpop.f32.mrf.mxu0
      %4136 = vmatprep.mubr.f32.mxu0 0.0
      %v4137 = vand.u32 %v271, 4294901760
      %v4138 = vsub.f32 %v271, %v4137
      %4139 = vmatmul.mubr.f32.gmra.mxu0 %v4138
      %v4140 = vpop.f32.mrf.mxu0
      %v4141 = vadd.f32 %v4030, %v4140
      %v4142 = vpop.f32.mrf.mxu0
      %4143 = vdwg.mxu0
      %4144 = vmatprep.subr.mxu0 0.0
      %4145 = vmatpush1.msra.mxu0 0.0
      %4146 = vmatprep.subr.mxu0 0.0
      %4147 = vmatpush1.msra.mxu0 0.0
      %4148 = vmatprep.subr.mxu0 0.0
      %4149 = vmatpush1.msra.mxu0 0.0
      %4150 = vmatprep.subr.mxu0 0.0
      %4151 = vmatpush1.msra.mxu0 0.0
      %4152 = vmatprep.subr.mxu0 0.0
      %4153 = vmatpush1.msra.mxu0 0.0
      %4154 = vmatprep.subr.mxu0 0.0
      %4155 = vmatpush1.msra.mxu0 0.0
      %4156 = vmatprep.subr.mxu0 0.0
      %4157 = vmatpush1.msra.mxu0 0.0
      %4158 = vmatprep.subr.mxu0 0.0
      %4159 = vmatpush1.msra.mxu0 0.0
      %4160 = vmatprep.subr.mxu0 0.0
      %4161 = vmatpush1.msra.mxu0 0.0
      %4162 = vmatprep.subr.mxu0 0.0
      %4163 = vmatpush1.msra.mxu0 0.0
      %4164 = vmatprep.subr.mxu0 0.0
      %4165 = vmatpush1.msra.mxu0 0.0
      %4166 = vmatprep.subr.mxu0 0.0
      %4167 = vmatpush1.msra.mxu0 0.0
      %4168 = vmatprep.subr.mxu0 0.0
      %4169 = vmatpush1.msra.mxu0 0.0
      %4170 = vmatprep.subr.mxu0 0.0
      %4171 = vmatpush1.msra.mxu0 0.0
      %4172 = vmatprep.subr.mxu0 0.0
      %v4173 = vand.u32 %v3794, 4294901760
      %4174 = vmatpush1.msra.mxu0 %v4173
      %4175 = vmatprep.subr.mxu0 0.0
      %v4176 = vand.u32 %v3793, 4294901760
      %4177 = vmatpush1.msra.mxu0 %v4176
      %4178 = vmatprep.subr.mxu0 0.0
      %4179 = vmatpush2.msra.mxu0 0.0
      %4180 = vmatprep.subr.mxu0 0.0
      %4181 = vmatpush2.msra.mxu0 0.0
      %4182 = vmatprep.subr.mxu0 0.0
      %4183 = vmatpush2.msra.mxu0 0.0
      %4184 = vmatprep.subr.mxu0 0.0
      %4185 = vmatpush2.msra.mxu0 0.0
      %4186 = vmatprep.subr.mxu0 0.0
      %4187 = vmatpush2.msra.mxu0 0.0
      %4188 = vmatprep.subr.mxu0 0.0
      %4189 = vmatpush2.msra.mxu0 0.0
      %4190 = vmatprep.subr.mxu0 0.0
      %4191 = vmatpush2.msra.mxu0 0.0
      %4192 = vmatprep.subr.mxu0 0.0
      %4193 = vmatpush2.msra.mxu0 0.0
      %4194 = vmatprep.subr.mxu0 0.0
      %4195 = vmatpush2.msra.mxu0 0.0
      %4196 = vmatprep.subr.mxu0 0.0
      %4197 = vmatpush2.msra.mxu0 0.0
      %4198 = vmatprep.subr.mxu0 0.0
      %4199 = vmatpush2.msra.mxu0 0.0
      %4200 = vmatprep.subr.mxu0 0.0
      %4201 = vmatpush2.msra.mxu0 0.0
      %4202 = vmatprep.subr.mxu0 0.0
      %4203 = vmatpush2.msra.mxu0 0.0
      %4204 = vmatprep.subr.mxu0 0.0
      %4205 = vmatpush2.msra.mxu0 0.0
      %4206 = vmatprep.subr.mxu0 0.0
      %4207 = vmatpush2.msra.mxu0 0.0
      %4208 = vmatprep.subr.mxu0 0.0
      %4209 = vmatpush2.msra.mxu0 0.0
      %4210 = vmatprep.mubr.f32.mxu0 0.0
      %v4211 = vand.u32 %v256, 4294901760
      %v4212 = vsub.f32 %v256, %v4211
      %v4213 = vand.u32 %v4212, 4294901760
      %4214 = vmatmul.mubr.f32.gmra.mxu0 %v4213
      %v4215 = vpop.f32.mrf.mxu0
      %v4216 = vadd.f32 %v4106, %v4215
      %v4217 = vpop.f32.mrf.mxu0
      %4218 = vmatprep.mubr.f32.mxu0 0.0
      %v4219 = vand.u32 %v259, 4294901760
      %v4220 = vsub.f32 %v259, %v4219
      %v4221 = vand.u32 %v4220, 4294901760
      %4222 = vmatmul.mubr.f32.gmra.mxu0 %v4221
      %v4223 = vpop.f32.mrf.mxu0
      %v4224 = vadd.f32 %v4113, %v4223
      %v4225 = vpop.f32.mrf.mxu0
      %4226 = vmatprep.mubr.f32.mxu0 0.0
      %v4227 = vand.u32 %v262, 4294901760
      %v4228 = vsub.f32 %v262, %v4227
      %v4229 = vand.u32 %v4228, 4294901760
      %4230 = vmatmul.mubr.f32.gmra.mxu0 %v4229
      %v4231 = vpop.f32.mrf.mxu0
      %v4232 = vadd.f32 %v4120, %v4231
      %v4233 = vpop.f32.mrf.mxu0
      %4234 = vmatprep.mubr.f32.mxu0 0.0
      %v4235 = vand.u32 %v265, 4294901760
      %v4236 = vsub.f32 %v265, %v4235
      %v4237 = vand.u32 %v4236, 4294901760
      %4238 = vmatmul.mubr.f32.gmra.mxu0 %v4237
      %v4239 = vpop.f32.mrf.mxu0
      %v4240 = vadd.f32 %v4127, %v4239
      %v4241 = vpop.f32.mrf.mxu0
      %4242 = vmatprep.mubr.f32.mxu0 0.0
      %v4243 = vand.u32 %v268, 4294901760
      %v4244 = vsub.f32 %v268, %v4243
      %v4245 = vand.u32 %v4244, 4294901760
      %4246 = vmatmul.mubr.f32.gmra.mxu0 %v4245
      %v4247 = vpop.f32.mrf.mxu0
      %v4248 = vadd.f32 %v4134, %v4247
      %v4249 = vpop.f32.mrf.mxu0
      %4250 = vmatprep.mubr.f32.mxu0 0.0
      %v4251 = vand.u32 %v271, 4294901760
      %v4252 = vsub.f32 %v271, %v4251
      %v4253 = vand.u32 %v4252, 4294901760
      %4254 = vmatmul.mubr.f32.gmra.mxu0 %v4253
      %v4255 = vpop.f32.mrf.mxu0
      %v4256 = vadd.f32 %v4141, %v4255
      %v4257 = vpop.f32.mrf.mxu0
      %4258 = vdwg.mxu0
      %4259 = vmatprep.subr.mxu0 0.0
      %4260 = vmatpush1.msra.mxu0 0.0
      %4261 = vmatprep.subr.mxu0 0.0
      %4262 = vmatpush1.msra.mxu0 0.0
      %4263 = vmatprep.subr.mxu0 0.0
      %4264 = vmatpush1.msra.mxu0 0.0
      %4265 = vmatprep.subr.mxu0 0.0
      %4266 = vmatpush1.msra.mxu0 0.0
      %4267 = vmatprep.subr.mxu0 0.0
      %4268 = vmatpush1.msra.mxu0 0.0
      %4269 = vmatprep.subr.mxu0 0.0
      %4270 = vmatpush1.msra.mxu0 0.0
      %4271 = vmatprep.subr.mxu0 0.0
      %4272 = vmatpush1.msra.mxu0 0.0
      %4273 = vmatprep.subr.mxu0 0.0
      %4274 = vmatpush1.msra.mxu0 0.0
      %4275 = vmatprep.subr.mxu0 0.0
      %4276 = vmatpush1.msra.mxu0 0.0
      %4277 = vmatprep.subr.mxu0 0.0
      %4278 = vmatpush1.msra.mxu0 0.0
      %4279 = vmatprep.subr.mxu0 0.0
      %4280 = vmatpush1.msra.mxu0 0.0
      %4281 = vmatprep.subr.mxu0 0.0
      %4282 = vmatpush1.msra.mxu0 0.0
      %4283 = vmatprep.subr.mxu0 0.0
      %4284 = vmatpush1.msra.mxu0 0.0
      %4285 = vmatprep.subr.mxu0 0.0
      %4286 = vmatpush1.msra.mxu0 0.0
      %4287 = vmatprep.subr.mxu0 0.0
      %v4288 = vand.u32 %v3794, 4294901760
      %v4289 = vsub.f32 %v3794, %v4288
      %v4290 = vand.u32 %v4289, 4294901760
      %4291 = vmatpush1.msra.mxu0 %v4290
      %4292 = vmatprep.subr.mxu0 0.0
      %v4293 = vand.u32 %v3793, 4294901760
      %v4294 = vsub.f32 %v3793, %v4293
      %v4295 = vand.u32 %v4294, 4294901760
      %4296 = vmatpush1.msra.mxu0 %v4295
      %4297 = vmatprep.subr.mxu0 0.0
      %4298 = vmatpush2.msra.mxu0 0.0
      %4299 = vmatprep.subr.mxu0 0.0
      %4300 = vmatpush2.msra.mxu0 0.0
      %4301 = vmatprep.subr.mxu0 0.0
      %4302 = vmatpush2.msra.mxu0 0.0
      %4303 = vmatprep.subr.mxu0 0.0
      %4304 = vmatpush2.msra.mxu0 0.0
      %4305 = vmatprep.subr.mxu0 0.0
      %4306 = vmatpush2.msra.mxu0 0.0
      %4307 = vmatprep.subr.mxu0 0.0
      %4308 = vmatpush2.msra.mxu0 0.0
      %4309 = vmatprep.subr.mxu0 0.0
      %4310 = vmatpush2.msra.mxu0 0.0
      %4311 = vmatprep.subr.mxu0 0.0
      %4312 = vmatpush2.msra.mxu0 0.0
      %4313 = vmatprep.subr.mxu0 0.0
      %4314 = vmatpush2.msra.mxu0 0.0
      %4315 = vmatprep.subr.mxu0 0.0
      %4316 = vmatpush2.msra.mxu0 0.0
      %4317 = vmatprep.subr.mxu0 0.0
      %4318 = vmatpush2.msra.mxu0 0.0
      %4319 = vmatprep.subr.mxu0 0.0
      %4320 = vmatpush2.msra.mxu0 0.0
      %4321 = vmatprep.subr.mxu0 0.0
      %4322 = vmatpush2.msra.mxu0 0.0
      %4323 = vmatprep.subr.mxu0 0.0
      %4324 = vmatpush2.msra.mxu0 0.0
      %4325 = vmatprep.subr.mxu0 0.0
      %4326 = vmatpush2.msra.mxu0 0.0
      %4327 = vmatprep.subr.mxu0 0.0
      %4328 = vmatpush2.msra.mxu0 0.0
      %4329 = vmatprep.mubr.f32.mxu0 0.0
      %v4330 = vand.u32 %v256, 4294901760
      %4331 = vmatmul.mubr.f32.gmra.mxu0 %v4330
      %v4332 = vpop.f32.mrf.mxu0
      %v4333 = vadd.f32 %v4216, %v4332
      %v4334 = vpop.f32.mrf.mxu0
      %4335 = vmatprep.mubr.f32.mxu0 0.0
      %v4336 = vand.u32 %v259, 4294901760
      %4337 = vmatmul.mubr.f32.gmra.mxu0 %v4336
      %v4338 = vpop.f32.mrf.mxu0
      %v4339 = vadd.f32 %v4224, %v4338
      %v4340 = vpop.f32.mrf.mxu0
      %4341 = vmatprep.mubr.f32.mxu0 0.0
      %v4342 = vand.u32 %v262, 4294901760
      %4343 = vmatmul.mubr.f32.gmra.mxu0 %v4342
      %v4344 = vpop.f32.mrf.mxu0
      %v4345 = vadd.f32 %v4232, %v4344
      %v4346 = vpop.f32.mrf.mxu0
      %4347 = vmatprep.mubr.f32.mxu0 0.0
      %v4348 = vand.u32 %v265, 4294901760
      %4349 = vmatmul.mubr.f32.gmra.mxu0 %v4348
      %v4350 = vpop.f32.mrf.mxu0
      %v4351 = vadd.f32 %v4240, %v4350
      %v4352 = vpop.f32.mrf.mxu0
      %4353 = vmatprep.mubr.f32.mxu0 0.0
      %v4354 = vand.u32 %v268, 4294901760
      %4355 = vmatmul.mubr.f32.gmra.mxu0 %v4354
      %v4356 = vpop.f32.mrf.mxu0
      %v4357 = vadd.f32 %v4248, %v4356
      %v4358 = vpop.f32.mrf.mxu0
      %4359 = vmatprep.mubr.f32.mxu0 0.0
      %v4360 = vand.u32 %v271, 4294901760
      %4361 = vmatmul.mubr.f32.gmra.mxu0 %v4360
      %v4362 = vpop.f32.mrf.mxu0
      %v4363 = vadd.f32 %v4256, %v4362
      %v4364 = vpop.f32.mrf.mxu0
      %4365 = vdwg.mxu0
      %4366 = vmatprep.subr.mxu0 0.0
      %4367 = vmatpush1.msra.mxu0 0.0
      %4368 = vmatprep.subr.mxu0 0.0
      %4369 = vmatpush1.msra.mxu0 0.0
      %4370 = vmatprep.subr.mxu0 0.0
      %4371 = vmatpush1.msra.mxu0 0.0
      %4372 = vmatprep.subr.mxu0 0.0
      %4373 = vmatpush1.msra.mxu0 0.0
      %4374 = vmatprep.subr.mxu0 0.0
      %4375 = vmatpush1.msra.mxu0 0.0
      %4376 = vmatprep.subr.mxu0 0.0
      %4377 = vmatpush1.msra.mxu0 0.0
      %4378 = vmatprep.subr.mxu0 0.0
      %4379 = vmatpush1.msra.mxu0 0.0
      %4380 = vmatprep.subr.mxu0 0.0
      %4381 = vmatpush1.msra.mxu0 0.0
      %4382 = vmatprep.subr.mxu0 0.0
      %4383 = vmatpush1.msra.mxu0 0.0
      %4384 = vmatprep.subr.mxu0 0.0
      %4385 = vmatpush1.msra.mxu0 0.0
      %4386 = vmatprep.subr.mxu0 0.0
      %4387 = vmatpush1.msra.mxu0 0.0
      %4388 = vmatprep.subr.mxu0 0.0
      %4389 = vmatpush1.msra.mxu0 0.0
      %4390 = vmatprep.subr.mxu0 0.0
      %4391 = vmatpush1.msra.mxu0 0.0
      %4392 = vmatprep.subr.mxu0 0.0
      %4393 = vmatpush1.msra.mxu0 0.0
      %4394 = vmatprep.subr.mxu0 0.0
      %v4395 = vand.u32 %v3794, 4294901760
      %4396 = vmatpush1.msra.mxu0 %v4395
      %4397 = vmatprep.subr.mxu0 0.0
      %v4398 = vand.u32 %v3793, 4294901760
      %4399 = vmatpush1.msra.mxu0 %v4398
      %4400 = vmatprep.subr.mxu0 0.0
      %4401 = vmatpush2.msra.mxu0 0.0
      %4402 = vmatprep.subr.mxu0 0.0
      %4403 = vmatpush2.msra.mxu0 0.0
      %4404 = vmatprep.subr.mxu0 0.0
      %4405 = vmatpush2.msra.mxu0 0.0
      %4406 = vmatprep.subr.mxu0 0.0
      %4407 = vmatpush2.msra.mxu0 0.0
      %4408 = vmatprep.subr.mxu0 0.0
      %4409 = vmatpush2.msra.mxu0 0.0
      %4410 = vmatprep.subr.mxu0 0.0
      %4411 = vmatpush2.msra.mxu0 0.0
      %4412 = vmatprep.subr.mxu0 0.0
      %4413 = vmatpush2.msra.mxu0 0.0
      %4414 = vmatprep.subr.mxu0 0.0
      %4415 = vmatpush2.msra.mxu0 0.0
      %4416 = vmatprep.subr.mxu0 0.0
      %4417 = vmatpush2.msra.mxu0 0.0
      %4418 = vmatprep.subr.mxu0 0.0
      %4419 = vmatpush2.msra.mxu0 0.0
      %4420 = vmatprep.subr.mxu0 0.0
      %4421 = vmatpush2.msra.mxu0 0.0
      %4422 = vmatprep.subr.mxu0 0.0
      %4423 = vmatpush2.msra.mxu0 0.0
      %4424 = vmatprep.subr.mxu0 0.0
      %4425 = vmatpush2.msra.mxu0 0.0
      %4426 = vmatprep.subr.mxu0 0.0
      %4427 = vmatpush2.msra.mxu0 0.0
      %4428 = vmatprep.subr.mxu0 0.0
      %4429 = vmatpush2.msra.mxu0 0.0
      %4430 = vmatprep.subr.mxu0 0.0
      %4431 = vmatpush2.msra.mxu0 0.0
      %4432 = vmatprep.mubr.f32.mxu0 0.0
      %v4433 = vand.u32 %v256, 4294901760
      %4434 = vmatmul.mubr.f32.gmra.mxu0 %v4433
      %v4435 = vpop.f32.mrf.mxu0
      %v4436 = vadd.f32 %v4333, %v4435
      %v4437 = vpop.f32.mrf.mxu0
      %4438 = vmatprep.mubr.f32.mxu0 0.0
      %v4439 = vand.u32 %v259, 4294901760
      %4440 = vmatmul.mubr.f32.gmra.mxu0 %v4439
      %v4441 = vpop.f32.mrf.mxu0
      %v4442 = vadd.f32 %v4339, %v4441
      %v4443 = vpop.f32.mrf.mxu0
      %4444 = vmatprep.mubr.f32.mxu0 0.0
      %v4445 = vand.u32 %v262, 4294901760
      %4446 = vmatmul.mubr.f32.gmra.mxu0 %v4445
      %v4447 = vpop.f32.mrf.mxu0
      %v4448 = vadd.f32 %v4345, %v4447
      %v4449 = vpop.f32.mrf.mxu0
      %4450 = vmatprep.mubr.f32.mxu0 0.0
      %v4451 = vand.u32 %v265, 4294901760
      %4452 = vmatmul.mubr.f32.gmra.mxu0 %v4451
      %v4453 = vpop.f32.mrf.mxu0
      %v4454 = vadd.f32 %v4351, %v4453
      %v4455 = vpop.f32.mrf.mxu0
      %4456 = vmatprep.mubr.f32.mxu0 0.0
      %v4457 = vand.u32 %v268, 4294901760
      %4458 = vmatmul.mubr.f32.gmra.mxu0 %v4457
      %v4459 = vpop.f32.mrf.mxu0
      %v4460 = vadd.f32 %v4357, %v4459
      %v4461 = vpop.f32.mrf.mxu0
      %4462 = vmatprep.mubr.f32.mxu0 0.0
      %v4463 = vand.u32 %v271, 4294901760
      %4464 = vmatmul.mubr.f32.gmra.mxu0 %v4463
      %v4465 = vpop.f32.mrf.mxu0
      %v4466 = vadd.f32 %v4363, %v4465
      %v4467 = vpop.f32.mrf.mxu0
      %4468 = vdwg.mxu0
      %v4469 = vld [vmem:[%s3] sm:$0xff]
      %v4470 = vld [vmem:[%s3 + $0x8] sm:$0xff]
      %v4471 = vld [vmem:[%s3 + $0x10] sm:$0xff]
      %v4472 = vld [vmem:[%s3 + $0x18] sm:$0xff]
      %v4473 = vld [vmem:[%s3 + $0x20] sm:$0xff]
      %v4474 = vld [vmem:[%s3 + $0x28] sm:$0xff]
      %v4475 = vld [vmem:[%s3 + $0x30] sm:$0xff]
      %v4476 = vld [vmem:[%s3 + $0x38] sm:$0xff]
      %v4477 = vld [vmem:[%s3 + $0x40] sm:$0xff]
      %v4478 = vld [vmem:[%s3 + $0x48] sm:$0xff]
      %v4479 = vld [vmem:[%s3 + $0x50] sm:$0xff]
      %v4480 = vld [vmem:[%s3 + $0x58] sm:$0xff]
      %v4481 = vld [vmem:[%s3 + $0x60] sm:$0xff]
      %v4482 = vld [vmem:[%s3 + $0x68] sm:$0xff]
      %v4483 = vld [vmem:[%s3 + $0x70] sm:$0xff]
      %v4484 = vld [vmem:[%s3 + $0x78] sm:$0xff]
      %4485 = vmatprep.subr.mxu0 0.0
      %v4486 = vand.u32 %v4484, 4294901760
      %4487 = vmatpush1.msra.mxu0 %v4486
      %4488 = vmatprep.subr.mxu0 0.0
      %v4489 = vand.u32 %v4483, 4294901760
      %4490 = vmatpush1.msra.mxu0 %v4489
      %4491 = vmatprep.subr.mxu0 0.0
      %v4492 = vand.u32 %v4482, 4294901760
      %4493 = vmatpush1.msra.mxu0 %v4492
      %4494 = vmatprep.subr.mxu0 0.0
      %v4495 = vand.u32 %v4481, 4294901760
      %4496 = vmatpush1.msra.mxu0 %v4495
      %4497 = vmatprep.subr.mxu0 0.0
      %v4498 = vand.u32 %v4480, 4294901760
      %4499 = vmatpush1.msra.mxu0 %v4498
      %4500 = vmatprep.subr.mxu0 0.0
      %v4501 = vand.u32 %v4479, 4294901760
      %4502 = vmatpush1.msra.mxu0 %v4501
      %4503 = vmatprep.subr.mxu0 0.0
      %v4504 = vand.u32 %v4478, 4294901760
      %4505 = vmatpush1.msra.mxu0 %v4504
      %4506 = vmatprep.subr.mxu0 0.0
      %v4507 = vand.u32 %v4477, 4294901760
      %4508 = vmatpush1.msra.mxu0 %v4507
      %4509 = vmatprep.subr.mxu0 0.0
      %v4510 = vand.u32 %v4476, 4294901760
      %4511 = vmatpush1.msra.mxu0 %v4510
      %4512 = vmatprep.subr.mxu0 0.0
      %v4513 = vand.u32 %v4475, 4294901760
      %4514 = vmatpush1.msra.mxu0 %v4513
      %4515 = vmatprep.subr.mxu0 0.0
      %v4516 = vand.u32 %v4474, 4294901760
      %4517 = vmatpush1.msra.mxu0 %v4516
      %4518 = vmatprep.subr.mxu0 0.0
      %v4519 = vand.u32 %v4473, 4294901760
      %4520 = vmatpush1.msra.mxu0 %v4519
      %4521 = vmatprep.subr.mxu0 0.0
      %v4522 = vand.u32 %v4472, 4294901760
      %4523 = vmatpush1.msra.mxu0 %v4522
      %4524 = vmatprep.subr.mxu0 0.0
      %v4525 = vand.u32 %v4471, 4294901760
      %4526 = vmatpush1.msra.mxu0 %v4525
      %4527 = vmatprep.subr.mxu0 0.0
      %v4528 = vand.u32 %v4470, 4294901760
      %4529 = vmatpush1.msra.mxu0 %v4528
      %4530 = vmatprep.subr.mxu0 0.0
      %v4531 = vand.u32 %v4469, 4294901760
      %4532 = vmatpush1.msra.mxu0 %v4531
      %4533 = vmatprep.subr.mxu0 0.0
      %4534 = vmatpush2.msra.mxu0 0.0
      %4535 = vmatprep.subr.mxu0 0.0
      %4536 = vmatpush2.msra.mxu0 0.0
      %4537 = vmatprep.subr.mxu0 0.0
      %4538 = vmatpush2.msra.mxu0 0.0
      %4539 = vmatprep.subr.mxu0 0.0
      %4540 = vmatpush2.msra.mxu0 0.0
      %4541 = vmatprep.subr.mxu0 0.0
      %4542 = vmatpush2.msra.mxu0 0.0
      %4543 = vmatprep.subr.mxu0 0.0
      %4544 = vmatpush2.msra.mxu0 0.0
      %4545 = vmatprep.subr.mxu0 0.0
      %4546 = vmatpush2.msra.mxu0 0.0
      %4547 = vmatprep.subr.mxu0 0.0
      %4548 = vmatpush2.msra.mxu0 0.0
      %4549 = vmatprep.subr.mxu0 0.0
      %4550 = vmatpush2.msra.mxu0 0.0
      %4551 = vmatprep.subr.mxu0 0.0
      %4552 = vmatpush2.msra.mxu0 0.0
      %4553 = vmatprep.subr.mxu0 0.0
      %4554 = vmatpush2.msra.mxu0 0.0
      %4555 = vmatprep.subr.mxu0 0.0
      %4556 = vmatpush2.msra.mxu0 0.0
      %4557 = vmatprep.subr.mxu0 0.0
      %4558 = vmatpush2.msra.mxu0 0.0
      %4559 = vmatprep.subr.mxu0 0.0
      %4560 = vmatpush2.msra.mxu0 0.0
      %4561 = vmatprep.subr.mxu0 0.0
      %4562 = vmatpush2.msra.mxu0 0.0
      %4563 = vmatprep.subr.mxu0 0.0
      %4564 = vmatpush2.msra.mxu0 0.0
      %4565 = vmatprep.mubr.f32.mxu0 0.0
      %v4566 = vand.u32 %v4436, 4294901760
      %v4567 = vsub.f32 %v4436, %v4566
      %v4568 = vand.u32 %v4567, 4294901760
      %v4569 = vsub.f32 %v4567, %v4568
      %v4570 = vand.u32 %v4569, 4294901760
      %4571 = vmatmul.mubr.f32.gmra.mxu0 %v4570
      %v4572 = vpop.f32.mrf.mxu0
      %v4573 = vadd.f32 0.0, %v4572
      %v4574 = vpop.f32.mrf.mxu0
      %4575 = vmatprep.mubr.f32.mxu0 0.0
      %v4576 = vand.u32 %v4442, 4294901760
      %v4577 = vsub.f32 %v4442, %v4576
      %v4578 = vand.u32 %v4577, 4294901760
      %v4579 = vsub.f32 %v4577, %v4578
      %v4580 = vand.u32 %v4579, 4294901760
      %4581 = vmatmul.mubr.f32.gmra.mxu0 %v4580
      %v4582 = vpop.f32.mrf.mxu0
      %v4583 = vadd.f32 0.0, %v4582
      %v4584 = vpop.f32.mrf.mxu0
      %4585 = vdwg.mxu0
      %4586 = vmatprep.subr.mxu0 0.0
      %v4587 = vand.u32 %v4484, 4294901760
      %v4588 = vsub.f32 %v4484, %v4587
      %v4589 = vand.u32 %v4588, 4294901760
      %v4590 = vsub.f32 %v4588, %v4589
      %v4591 = vand.u32 %v4590, 4294901760
      %4592 = vmatpush1.msra.mxu0 %v4591
      %4593 = vmatprep.subr.mxu0 0.0
      %v4594 = vand.u32 %v4483, 4294901760
      %v4595 = vsub.f32 %v4483, %v4594
      %v4596 = vand.u32 %v4595, 4294901760
      %v4597 = vsub.f32 %v4595, %v4596
      %v4598 = vand.u32 %v4597, 4294901760
      %4599 = vmatpush1.msra.mxu0 %v4598
      %4600 = vmatprep.subr.mxu0 0.0
      %v4601 = vand.u32 %v4482, 4294901760
      %v4602 = vsub.f32 %v4482, %v4601
      %v4603 = vand.u32 %v4602, 4294901760
      %v4604 = vsub.f32 %v4602, %v4603
      %v4605 = vand.u32 %v4604, 4294901760
      %4606 = vmatpush1.msra.mxu0 %v4605
      %4607 = vmatprep.subr.mxu0 0.0
      %v4608 = vand.u32 %v4481, 4294901760
      %v4609 = vsub.f32 %v4481, %v4608
      %v4610 = vand.u32 %v4609, 4294901760
      %v4611 = vsub.f32 %v4609, %v4610
      %v4612 = vand.u32 %v4611, 4294901760
      %4613 = vmatpush1.msra.mxu0 %v4612
      %4614 = vmatprep.subr.mxu0 0.0
      %v4615 = vand.u32 %v4480, 4294901760
      %v4616 = vsub.f32 %v4480, %v4615
      %v4617 = vand.u32 %v4616, 4294901760
      %v4618 = vsub.f32 %v4616, %v4617
      %v4619 = vand.u32 %v4618, 4294901760
      %4620 = vmatpush1.msra.mxu0 %v4619
      %4621 = vmatprep.subr.mxu0 0.0
      %v4622 = vand.u32 %v4479, 4294901760
      %v4623 = vsub.f32 %v4479, %v4622
      %v4624 = vand.u32 %v4623, 4294901760
      %v4625 = vsub.f32 %v4623, %v4624
      %v4626 = vand.u32 %v4625, 4294901760
      %4627 = vmatpush1.msra.mxu0 %v4626
      %4628 = vmatprep.subr.mxu0 0.0
      %v4629 = vand.u32 %v4478, 4294901760
      %v4630 = vsub.f32 %v4478, %v4629
      %v4631 = vand.u32 %v4630, 4294901760
      %v4632 = vsub.f32 %v4630, %v4631
      %v4633 = vand.u32 %v4632, 4294901760
      %4634 = vmatpush1.msra.mxu0 %v4633
      %4635 = vmatprep.subr.mxu0 0.0
      %v4636 = vand.u32 %v4477, 4294901760
      %v4637 = vsub.f32 %v4477, %v4636
      %v4638 = vand.u32 %v4637, 4294901760
      %v4639 = vsub.f32 %v4637, %v4638
      %v4640 = vand.u32 %v4639, 4294901760
      %4641 = vmatpush1.msra.mxu0 %v4640
      %4642 = vmatprep.subr.mxu0 0.0
      %v4643 = vand.u32 %v4476, 4294901760
      %v4644 = vsub.f32 %v4476, %v4643
      %v4645 = vand.u32 %v4644, 4294901760
      %v4646 = vsub.f32 %v4644, %v4645
      %v4647 = vand.u32 %v4646, 4294901760
      %4648 = vmatpush1.msra.mxu0 %v4647
      %4649 = vmatprep.subr.mxu0 0.0
      %v4650 = vand.u32 %v4475, 4294901760
      %v4651 = vsub.f32 %v4475, %v4650
      %v4652 = vand.u32 %v4651, 4294901760
      %v4653 = vsub.f32 %v4651, %v4652
      %v4654 = vand.u32 %v4653, 4294901760
      %4655 = vmatpush1.msra.mxu0 %v4654
      %4656 = vmatprep.subr.mxu0 0.0
      %v4657 = vand.u32 %v4474, 4294901760
      %v4658 = vsub.f32 %v4474, %v4657
      %v4659 = vand.u32 %v4658, 4294901760
      %v4660 = vsub.f32 %v4658, %v4659
      %v4661 = vand.u32 %v4660, 4294901760
      %4662 = vmatpush1.msra.mxu0 %v4661
      %4663 = vmatprep.subr.mxu0 0.0
      %v4664 = vand.u32 %v4473, 4294901760
      %v4665 = vsub.f32 %v4473, %v4664
      %v4666 = vand.u32 %v4665, 4294901760
      %v4667 = vsub.f32 %v4665, %v4666
      %v4668 = vand.u32 %v4667, 4294901760
      %4669 = vmatpush1.msra.mxu0 %v4668
      %4670 = vmatprep.subr.mxu0 0.0
      %v4671 = vand.u32 %v4472, 4294901760
      %v4672 = vsub.f32 %v4472, %v4671
      %v4673 = vand.u32 %v4672, 4294901760
      %v4674 = vsub.f32 %v4672, %v4673
      %v4675 = vand.u32 %v4674, 4294901760
      %4676 = vmatpush1.msra.mxu0 %v4675
      %4677 = vmatprep.subr.mxu0 0.0
      %v4678 = vand.u32 %v4471, 4294901760
      %v4679 = vsub.f32 %v4471, %v4678
      %v4680 = vand.u32 %v4679, 4294901760
      %v4681 = vsub.f32 %v4679, %v4680
      %v4682 = vand.u32 %v4681, 4294901760
      %4683 = vmatpush1.msra.mxu0 %v4682
      %4684 = vmatprep.subr.mxu0 0.0
      %v4685 = vand.u32 %v4470, 4294901760
      %v4686 = vsub.f32 %v4470, %v4685
      %v4687 = vand.u32 %v4686, 4294901760
      %v4688 = vsub.f32 %v4686, %v4687
      %v4689 = vand.u32 %v4688, 4294901760
      %4690 = vmatpush1.msra.mxu0 %v4689
      %4691 = vmatprep.subr.mxu0 0.0
      %v4692 = vand.u32 %v4469, 4294901760
      %v4693 = vsub.f32 %v4469, %v4692
      %v4694 = vand.u32 %v4693, 4294901760
      %v4695 = vsub.f32 %v4693, %v4694
      %v4696 = vand.u32 %v4695, 4294901760
      %4697 = vmatpush1.msra.mxu0 %v4696
      %4698 = vmatprep.subr.mxu0 0.0
      %4699 = vmatpush2.msra.mxu0 0.0
      %4700 = vmatprep.subr.mxu0 0.0
      %4701 = vmatpush2.msra.mxu0 0.0
      %4702 = vmatprep.subr.mxu0 0.0
      %4703 = vmatpush2.msra.mxu0 0.0
      %4704 = vmatprep.subr.mxu0 0.0
      %4705 = vmatpush2.msra.mxu0 0.0
      %4706 = vmatprep.subr.mxu0 0.0
      %4707 = vmatpush2.msra.mxu0 0.0
      %4708 = vmatprep.subr.mxu0 0.0
      %4709 = vmatpush2.msra.mxu0 0.0
      %4710 = vmatprep.subr.mxu0 0.0
      %4711 = vmatpush2.msra.mxu0 0.0
      %4712 = vmatprep.subr.mxu0 0.0
      %4713 = vmatpush2.msra.mxu0 0.0
      %4714 = vmatprep.subr.mxu0 0.0
      %4715 = vmatpush2.msra.mxu0 0.0
      %4716 = vmatprep.subr.mxu0 0.0
      %4717 = vmatpush2.msra.mxu0 0.0
      %4718 = vmatprep.subr.mxu0 0.0
      %4719 = vmatpush2.msra.mxu0 0.0
      %4720 = vmatprep.subr.mxu0 0.0
      %4721 = vmatpush2.msra.mxu0 0.0
      %4722 = vmatprep.subr.mxu0 0.0
      %4723 = vmatpush2.msra.mxu0 0.0
      %4724 = vmatprep.subr.mxu0 0.0
      %4725 = vmatpush2.msra.mxu0 0.0
      %4726 = vmatprep.subr.mxu0 0.0
      %4727 = vmatpush2.msra.mxu0 0.0
      %4728 = vmatprep.subr.mxu0 0.0
      %4729 = vmatpush2.msra.mxu0 0.0
      %4730 = vmatprep.mubr.f32.mxu0 0.0
      %v4731 = vand.u32 %v4436, 4294901760
      %4732 = vmatmul.mubr.f32.gmra.mxu0 %v4731
      %v4733 = vpop.f32.mrf.mxu0
      %v4734 = vadd.f32 %v4573, %v4733
      %v4735 = vpop.f32.mrf.mxu0
      %4736 = vmatprep.mubr.f32.mxu0 0.0
      %v4737 = vand.u32 %v4442, 4294901760
      %4738 = vmatmul.mubr.f32.gmra.mxu0 %v4737
      %v4739 = vpop.f32.mrf.mxu0
      %v4740 = vadd.f32 %v4583, %v4739
      %v4741 = vpop.f32.mrf.mxu0
      %4742 = vdwg.mxu0
      %4743 = vmatprep.subr.mxu0 0.0
      %v4744 = vand.u32 %v4484, 4294901760
      %v4745 = vsub.f32 %v4484, %v4744
      %4746 = vmatpush1.msra.mxu0 %v4745
      %4747 = vmatprep.subr.mxu0 0.0
      %v4748 = vand.u32 %v4483, 4294901760
      %v4749 = vsub.f32 %v4483, %v4748
      %4750 = vmatpush1.msra.mxu0 %v4749
      %4751 = vmatprep.subr.mxu0 0.0
      %v4752 = vand.u32 %v4482, 4294901760
      %v4753 = vsub.f32 %v4482, %v4752
      %4754 = vmatpush1.msra.mxu0 %v4753
      %4755 = vmatprep.subr.mxu0 0.0
      %v4756 = vand.u32 %v4481, 4294901760
      %v4757 = vsub.f32 %v4481, %v4756
      %4758 = vmatpush1.msra.mxu0 %v4757
      %4759 = vmatprep.subr.mxu0 0.0
      %v4760 = vand.u32 %v4480, 4294901760
      %v4761 = vsub.f32 %v4480, %v4760
      %4762 = vmatpush1.msra.mxu0 %v4761
      %4763 = vmatprep.subr.mxu0 0.0
      %v4764 = vand.u32 %v4479, 4294901760
      %v4765 = vsub.f32 %v4479, %v4764
      %4766 = vmatpush1.msra.mxu0 %v4765
      %4767 = vmatprep.subr.mxu0 0.0
      %v4768 = vand.u32 %v4478, 4294901760
      %v4769 = vsub.f32 %v4478, %v4768
      %4770 = vmatpush1.msra.mxu0 %v4769
      %4771 = vmatprep.subr.mxu0 0.0
      %v4772 = vand.u32 %v4477, 4294901760
      %v4773 = vsub.f32 %v4477, %v4772
      %4774 = vmatpush1.msra.mxu0 %v4773
      %4775 = vmatprep.subr.mxu0 0.0
      %v4776 = vand.u32 %v4476, 4294901760
      %v4777 = vsub.f32 %v4476, %v4776
      %4778 = vmatpush1.msra.mxu0 %v4777
      %4779 = vmatprep.subr.mxu0 0.0
      %v4780 = vand.u32 %v4475, 4294901760
      %v4781 = vsub.f32 %v4475, %v4780
      %4782 = vmatpush1.msra.mxu0 %v4781
      %4783 = vmatprep.subr.mxu0 0.0
      %v4784 = vand.u32 %v4474, 4294901760
      %v4785 = vsub.f32 %v4474, %v4784
      %4786 = vmatpush1.msra.mxu0 %v4785
      %4787 = vmatprep.subr.mxu0 0.0
      %v4788 = vand.u32 %v4473, 4294901760
      %v4789 = vsub.f32 %v4473, %v4788
      %4790 = vmatpush1.msra.mxu0 %v4789
      %4791 = vmatprep.subr.mxu0 0.0
      %v4792 = vand.u32 %v4472, 4294901760
      %v4793 = vsub.f32 %v4472, %v4792
      %4794 = vmatpush1.msra.mxu0 %v4793
      %4795 = vmatprep.subr.mxu0 0.0
      %v4796 = vand.u32 %v4471, 4294901760
      %v4797 = vsub.f32 %v4471, %v4796
      %4798 = vmatpush1.msra.mxu0 %v4797
      %4799 = vmatprep.subr.mxu0 0.0
      %v4800 = vand.u32 %v4470, 4294901760
      %v4801 = vsub.f32 %v4470, %v4800
      %4802 = vmatpush1.msra.mxu0 %v4801
      %4803 = vmatprep.subr.mxu0 0.0
      %v4804 = vand.u32 %v4469, 4294901760
      %v4805 = vsub.f32 %v4469, %v4804
      %4806 = vmatpush1.msra.mxu0 %v4805
      %4807 = vmatprep.subr.mxu0 0.0
      %4808 = vmatpush2.msra.mxu0 0.0
      %4809 = vmatprep.subr.mxu0 0.0
      %4810 = vmatpush2.msra.mxu0 0.0
      %4811 = vmatprep.subr.mxu0 0.0
      %4812 = vmatpush2.msra.mxu0 0.0
      %4813 = vmatprep.subr.mxu0 0.0
      %4814 = vmatpush2.msra.mxu0 0.0
      %4815 = vmatprep.subr.mxu0 0.0
      %4816 = vmatpush2.msra.mxu0 0.0
      %4817 = vmatprep.subr.mxu0 0.0
      %4818 = vmatpush2.msra.mxu0 0.0
      %4819 = vmatprep.subr.mxu0 0.0
      %4820 = vmatpush2.msra.mxu0 0.0
      %4821 = vmatprep.subr.mxu0 0.0
      %4822 = vmatpush2.msra.mxu0 0.0
      %4823 = vmatprep.subr.mxu0 0.0
      %4824 = vmatpush2.msra.mxu0 0.0
      %4825 = vmatprep.subr.mxu0 0.0
      %4826 = vmatpush2.msra.mxu0 0.0
      %4827 = vmatprep.subr.mxu0 0.0
      %4828 = vmatpush2.msra.mxu0 0.0
      %4829 = vmatprep.subr.mxu0 0.0
      %4830 = vmatpush2.msra.mxu0 0.0
      %4831 = vmatprep.subr.mxu0 0.0
      %4832 = vmatpush2.msra.mxu0 0.0
      %4833 = vmatprep.subr.mxu0 0.0
      %4834 = vmatpush2.msra.mxu0 0.0
      %4835 = vmatprep.subr.mxu0 0.0
      %4836 = vmatpush2.msra.mxu0 0.0
      %4837 = vmatprep.subr.mxu0 0.0
      %4838 = vmatpush2.msra.mxu0 0.0
      %4839 = vmatprep.mubr.f32.mxu0 0.0
      %v4840 = vand.u32 %v4436, 4294901760
      %v4841 = vsub.f32 %v4436, %v4840
      %4842 = vmatmul.mubr.f32.gmra.mxu0 %v4841
      %v4843 = vpop.f32.mrf.mxu0
      %v4844 = vadd.f32 %v4734, %v4843
      %v4845 = vpop.f32.mrf.mxu0
      %4846 = vmatprep.mubr.f32.mxu0 0.0
      %v4847 = vand.u32 %v4442, 4294901760
      %v4848 = vsub.f32 %v4442, %v4847
      %4849 = vmatmul.mubr.f32.gmra.mxu0 %v4848
      %v4850 = vpop.f32.mrf.mxu0
      %v4851 = vadd.f32 %v4740, %v4850
      %v4852 = vpop.f32.mrf.mxu0
      %4853 = vdwg.mxu0
      %4854 = vmatprep.subr.mxu0 0.0
      %v4855 = vand.u32 %v4484, 4294901760
      %4856 = vmatpush1.msra.mxu0 %v4855
      %4857 = vmatprep.subr.mxu0 0.0
      %v4858 = vand.u32 %v4483, 4294901760
      %4859 = vmatpush1.msra.mxu0 %v4858
      %4860 = vmatprep.subr.mxu0 0.0
      %v4861 = vand.u32 %v4482, 4294901760
      %4862 = vmatpush1.msra.mxu0 %v4861
      %4863 = vmatprep.subr.mxu0 0.0
      %v4864 = vand.u32 %v4481, 4294901760
      %4865 = vmatpush1.msra.mxu0 %v4864
      %4866 = vmatprep.subr.mxu0 0.0
      %v4867 = vand.u32 %v4480, 4294901760
      %4868 = vmatpush1.msra.mxu0 %v4867
      %4869 = vmatprep.subr.mxu0 0.0
      %v4870 = vand.u32 %v4479, 4294901760
      %4871 = vmatpush1.msra.mxu0 %v4870
      %4872 = vmatprep.subr.mxu0 0.0
      %v4873 = vand.u32 %v4478, 4294901760
      %4874 = vmatpush1.msra.mxu0 %v4873
      %4875 = vmatprep.subr.mxu0 0.0
      %v4876 = vand.u32 %v4477, 4294901760
      %4877 = vmatpush1.msra.mxu0 %v4876
      %4878 = vmatprep.subr.mxu0 0.0
      %v4879 = vand.u32 %v4476, 4294901760
      %4880 = vmatpush1.msra.mxu0 %v4879
      %4881 = vmatprep.subr.mxu0 0.0
      %v4882 = vand.u32 %v4475, 4294901760
      %4883 = vmatpush1.msra.mxu0 %v4882
      %4884 = vmatprep.subr.mxu0 0.0
      %v4885 = vand.u32 %v4474, 4294901760
      %4886 = vmatpush1.msra.mxu0 %v4885
      %4887 = vmatprep.subr.mxu0 0.0
      %v4888 = vand.u32 %v4473, 4294901760
      %4889 = vmatpush1.msra.mxu0 %v4888
      %4890 = vmatprep.subr.mxu0 0.0
      %v4891 = vand.u32 %v4472, 4294901760
      %4892 = vmatpush1.msra.mxu0 %v4891
      %4893 = vmatprep.subr.mxu0 0.0
      %v4894 = vand.u32 %v4471, 4294901760
      %4895 = vmatpush1.msra.mxu0 %v4894
      %4896 = vmatprep.subr.mxu0 0.0
      %v4897 = vand.u32 %v4470, 4294901760
      %4898 = vmatpush1.msra.mxu0 %v4897
      %4899 = vmatprep.subr.mxu0 0.0
      %v4900 = vand.u32 %v4469, 4294901760
      %4901 = vmatpush1.msra.mxu0 %v4900
      %4902 = vmatprep.subr.mxu0 0.0
      %4903 = vmatpush2.msra.mxu0 0.0
      %4904 = vmatprep.subr.mxu0 0.0
      %4905 = vmatpush2.msra.mxu0 0.0
      %4906 = vmatprep.subr.mxu0 0.0
      %4907 = vmatpush2.msra.mxu0 0.0
      %4908 = vmatprep.subr.mxu0 0.0
      %4909 = vmatpush2.msra.mxu0 0.0
      %4910 = vmatprep.subr.mxu0 0.0
      %4911 = vmatpush2.msra.mxu0 0.0
      %4912 = vmatprep.subr.mxu0 0.0
      %4913 = vmatpush2.msra.mxu0 0.0
      %4914 = vmatprep.subr.mxu0 0.0
      %4915 = vmatpush2.msra.mxu0 0.0
      %4916 = vmatprep.subr.mxu0 0.0
      %4917 = vmatpush2.msra.mxu0 0.0
      %4918 = vmatprep.subr.mxu0 0.0
      %4919 = vmatpush2.msra.mxu0 0.0
      %4920 = vmatprep.subr.mxu0 0.0
      %4921 = vmatpush2.msra.mxu0 0.0
      %4922 = vmatprep.subr.mxu0 0.0
      %4923 = vmatpush2.msra.mxu0 0.0
      %4924 = vmatprep.subr.mxu0 0.0
      %4925 = vmatpush2.msra.mxu0 0.0
      %4926 = vmatprep.subr.mxu0 0.0
      %4927 = vmatpush2.msra.mxu0 0.0
      %4928 = vmatprep.subr.mxu0 0.0
      %4929 = vmatpush2.msra.mxu0 0.0
      %4930 = vmatprep.subr.mxu0 0.0
      %4931 = vmatpush2.msra.mxu0 0.0
      %4932 = vmatprep.subr.mxu0 0.0
      %4933 = vmatpush2.msra.mxu0 0.0
      %4934 = vmatprep.mubr.f32.mxu0 0.0
      %v4935 = vand.u32 %v4436, 4294901760
      %v4936 = vsub.f32 %v4436, %v4935
      %v4937 = vand.u32 %v4936, 4294901760
      %4938 = vmatmul.mubr.f32.gmra.mxu0 %v4937
      %v4939 = vpop.f32.mrf.mxu0
      %v4940 = vadd.f32 %v4844, %v4939
      %v4941 = vpop.f32.mrf.mxu0
      %4942 = vmatprep.mubr.f32.mxu0 0.0
      %v4943 = vand.u32 %v4442, 4294901760
      %v4944 = vsub.f32 %v4442, %v4943
      %v4945 = vand.u32 %v4944, 4294901760
      %4946 = vmatmul.mubr.f32.gmra.mxu0 %v4945
      %v4947 = vpop.f32.mrf.mxu0
      %v4948 = vadd.f32 %v4851, %v4947
      %v4949 = vpop.f32.mrf.mxu0
      %4950 = vdwg.mxu0
      %4951 = vmatprep.subr.mxu0 0.0
      %v4952 = vand.u32 %v4484, 4294901760
      %v4953 = vsub.f32 %v4484, %v4952
      %v4954 = vand.u32 %v4953, 4294901760
      %4955 = vmatpush1.msra.mxu0 %v4954
      %4956 = vmatprep.subr.mxu0 0.0
      %v4957 = vand.u32 %v4483, 4294901760
      %v4958 = vsub.f32 %v4483, %v4957
      %v4959 = vand.u32 %v4958, 4294901760
      %4960 = vmatpush1.msra.mxu0 %v4959
      %4961 = vmatprep.subr.mxu0 0.0
      %v4962 = vand.u32 %v4482, 4294901760
      %v4963 = vsub.f32 %v4482, %v4962
      %v4964 = vand.u32 %v4963, 4294901760
      %4965 = vmatpush1.msra.mxu0 %v4964
      %4966 = vmatprep.subr.mxu0 0.0
      %v4967 = vand.u32 %v4481, 4294901760
      %v4968 = vsub.f32 %v4481, %v4967
      %v4969 = vand.u32 %v4968, 4294901760
      %4970 = vmatpush1.msra.mxu0 %v4969
      %4971 = vmatprep.subr.mxu0 0.0
      %v4972 = vand.u32 %v4480, 4294901760
      %v4973 = vsub.f32 %v4480, %v4972
      %v4974 = vand.u32 %v4973, 4294901760
      %4975 = vmatpush1.msra.mxu0 %v4974
      %4976 = vmatprep.subr.mxu0 0.0
      %v4977 = vand.u32 %v4479, 4294901760
      %v4978 = vsub.f32 %v4479, %v4977
      %v4979 = vand.u32 %v4978, 4294901760
      %4980 = vmatpush1.msra.mxu0 %v4979
      %4981 = vmatprep.subr.mxu0 0.0
      %v4982 = vand.u32 %v4478, 4294901760
      %v4983 = vsub.f32 %v4478, %v4982
      %v4984 = vand.u32 %v4983, 4294901760
      %4985 = vmatpush1.msra.mxu0 %v4984
      %4986 = vmatprep.subr.mxu0 0.0
      %v4987 = vand.u32 %v4477, 4294901760
      %v4988 = vsub.f32 %v4477, %v4987
      %v4989 = vand.u32 %v4988, 4294901760
      %4990 = vmatpush1.msra.mxu0 %v4989
      %4991 = vmatprep.subr.mxu0 0.0
      %v4992 = vand.u32 %v4476, 4294901760
      %v4993 = vsub.f32 %v4476, %v4992
      %v4994 = vand.u32 %v4993, 4294901760
      %4995 = vmatpush1.msra.mxu0 %v4994
      %4996 = vmatprep.subr.mxu0 0.0
      %v4997 = vand.u32 %v4475, 4294901760
      %v4998 = vsub.f32 %v4475, %v4997
      %v4999 = vand.u32 %v4998, 4294901760
      %5000 = vmatpush1.msra.mxu0 %v4999
      %5001 = vmatprep.subr.mxu0 0.0
      %v5002 = vand.u32 %v4474, 4294901760
      %v5003 = vsub.f32 %v4474, %v5002
      %v5004 = vand.u32 %v5003, 4294901760
      %5005 = vmatpush1.msra.mxu0 %v5004
      %5006 = vmatprep.subr.mxu0 0.0
      %v5007 = vand.u32 %v4473, 4294901760
      %v5008 = vsub.f32 %v4473, %v5007
      %v5009 = vand.u32 %v5008, 4294901760
      %5010 = vmatpush1.msra.mxu0 %v5009
      %5011 = vmatprep.subr.mxu0 0.0
      %v5012 = vand.u32 %v4472, 4294901760
      %v5013 = vsub.f32 %v4472, %v5012
      %v5014 = vand.u32 %v5013, 4294901760
      %5015 = vmatpush1.msra.mxu0 %v5014
      %5016 = vmatprep.subr.mxu0 0.0
      %v5017 = vand.u32 %v4471, 4294901760
      %v5018 = vsub.f32 %v4471, %v5017
      %v5019 = vand.u32 %v5018, 4294901760
      %5020 = vmatpush1.msra.mxu0 %v5019
      %5021 = vmatprep.subr.mxu0 0.0
      %v5022 = vand.u32 %v4470, 4294901760
      %v5023 = vsub.f32 %v4470, %v5022
      %v5024 = vand.u32 %v5023, 4294901760
      %5025 = vmatpush1.msra.mxu0 %v5024
      %5026 = vmatprep.subr.mxu0 0.0
      %v5027 = vand.u32 %v4469, 4294901760
      %v5028 = vsub.f32 %v4469, %v5027
      %v5029 = vand.u32 %v5028, 4294901760
      %5030 = vmatpush1.msra.mxu0 %v5029
      %5031 = vmatprep.subr.mxu0 0.0
      %5032 = vmatpush2.msra.mxu0 0.0
      %5033 = vmatprep.subr.mxu0 0.0
      %5034 = vmatpush2.msra.mxu0 0.0
      %5035 = vmatprep.subr.mxu0 0.0
      %5036 = vmatpush2.msra.mxu0 0.0
      %5037 = vmatprep.subr.mxu0 0.0
      %5038 = vmatpush2.msra.mxu0 0.0
      %5039 = vmatprep.subr.mxu0 0.0
      %5040 = vmatpush2.msra.mxu0 0.0
      %5041 = vmatprep.subr.mxu0 0.0
      %5042 = vmatpush2.msra.mxu0 0.0
      %5043 = vmatprep.subr.mxu0 0.0
      %5044 = vmatpush2.msra.mxu0 0.0
      %5045 = vmatprep.subr.mxu0 0.0
      %5046 = vmatpush2.msra.mxu0 0.0
      %5047 = vmatprep.subr.mxu0 0.0
      %5048 = vmatpush2.msra.mxu0 0.0
      %5049 = vmatprep.subr.mxu0 0.0
      %5050 = vmatpush2.msra.mxu0 0.0
      %5051 = vmatprep.subr.mxu0 0.0
      %5052 = vmatpush2.msra.mxu0 0.0
      %5053 = vmatprep.subr.mxu0 0.0
      %5054 = vmatpush2.msra.mxu0 0.0
      %5055 = vmatprep.subr.mxu0 0.0
      %5056 = vmatpush2.msra.mxu0 0.0
      %5057 = vmatprep.subr.mxu0 0.0
      %5058 = vmatpush2.msra.mxu0 0.0
      %5059 = vmatprep.subr.mxu0 0.0
      %5060 = vmatpush2.msra.mxu0 0.0
      %5061 = vmatprep.subr.mxu0 0.0
      %5062 = vmatpush2.msra.mxu0 0.0
      %5063 = vmatprep.mubr.f32.mxu0 0.0
      %v5064 = vand.u32 %v4436, 4294901760
      %5065 = vmatmul.mubr.f32.gmra.mxu0 %v5064
      %v5066 = vpop.f32.mrf.mxu0
      %v5067 = vadd.f32 %v4940, %v5066
      %v5068 = vpop.f32.mrf.mxu0
      %5069 = vmatprep.mubr.f32.mxu0 0.0
      %v5070 = vand.u32 %v4442, 4294901760
      %5071 = vmatmul.mubr.f32.gmra.mxu0 %v5070
      %v5072 = vpop.f32.mrf.mxu0
      %v5073 = vadd.f32 %v4948, %v5072
      %v5074 = vpop.f32.mrf.mxu0
      %5075 = vdwg.mxu0
      %5076 = vmatprep.subr.mxu0 0.0
      %v5077 = vand.u32 %v4484, 4294901760
      %5078 = vmatpush1.msra.mxu0 %v5077
      %5079 = vmatprep.subr.mxu0 0.0
      %v5080 = vand.u32 %v4483, 4294901760
      %5081 = vmatpush1.msra.mxu0 %v5080
      %5082 = vmatprep.subr.mxu0 0.0
      %v5083 = vand.u32 %v4482, 4294901760
      %5084 = vmatpush1.msra.mxu0 %v5083
      %5085 = vmatprep.subr.mxu0 0.0
      %v5086 = vand.u32 %v4481, 4294901760
      %5087 = vmatpush1.msra.mxu0 %v5086
      %5088 = vmatprep.subr.mxu0 0.0
      %v5089 = vand.u32 %v4480, 4294901760
      %5090 = vmatpush1.msra.mxu0 %v5089
      %5091 = vmatprep.subr.mxu0 0.0
      %v5092 = vand.u32 %v4479, 4294901760
      %5093 = vmatpush1.msra.mxu0 %v5092
      %5094 = vmatprep.subr.mxu0 0.0
      %v5095 = vand.u32 %v4478, 4294901760
      %5096 = vmatpush1.msra.mxu0 %v5095
      %5097 = vmatprep.subr.mxu0 0.0
      %v5098 = vand.u32 %v4477, 4294901760
      %5099 = vmatpush1.msra.mxu0 %v5098
      %5100 = vmatprep.subr.mxu0 0.0
      %v5101 = vand.u32 %v4476, 4294901760
      %5102 = vmatpush1.msra.mxu0 %v5101
      %5103 = vmatprep.subr.mxu0 0.0
      %v5104 = vand.u32 %v4475, 4294901760
      %5105 = vmatpush1.msra.mxu0 %v5104
      %5106 = vmatprep.subr.mxu0 0.0
      %v5107 = vand.u32 %v4474, 4294901760
      %5108 = vmatpush1.msra.mxu0 %v5107
      %5109 = vmatprep.subr.mxu0 0.0
      %v5110 = vand.u32 %v4473, 4294901760
      %5111 = vmatpush1.msra.mxu0 %v5110
      %5112 = vmatprep.subr.mxu0 0.0
      %v5113 = vand.u32 %v4472, 4294901760
      %5114 = vmatpush1.msra.mxu0 %v5113
      %5115 = vmatprep.subr.mxu0 0.0
      %v5116 = vand.u32 %v4471, 4294901760
      %5117 = vmatpush1.msra.mxu0 %v5116
      %5118 = vmatprep.subr.mxu0 0.0
      %v5119 = vand.u32 %v4470, 4294901760
      %5120 = vmatpush1.msra.mxu0 %v5119
      %5121 = vmatprep.subr.mxu0 0.0
      %v5122 = vand.u32 %v4469, 4294901760
      %5123 = vmatpush1.msra.mxu0 %v5122
      %5124 = vmatprep.subr.mxu0 0.0
      %5125 = vmatpush2.msra.mxu0 0.0
      %5126 = vmatprep.subr.mxu0 0.0
      %5127 = vmatpush2.msra.mxu0 0.0
      %5128 = vmatprep.subr.mxu0 0.0
      %5129 = vmatpush2.msra.mxu0 0.0
      %5130 = vmatprep.subr.mxu0 0.0
      %5131 = vmatpush2.msra.mxu0 0.0
      %5132 = vmatprep.subr.mxu0 0.0
      %5133 = vmatpush2.msra.mxu0 0.0
      %5134 = vmatprep.subr.mxu0 0.0
      %5135 = vmatpush2.msra.mxu0 0.0
      %5136 = vmatprep.subr.mxu0 0.0
      %5137 = vmatpush2.msra.mxu0 0.0
      %5138 = vmatprep.subr.mxu0 0.0
      %5139 = vmatpush2.msra.mxu0 0.0
      %5140 = vmatprep.subr.mxu0 0.0
      %5141 = vmatpush2.msra.mxu0 0.0
      %5142 = vmatprep.subr.mxu0 0.0
      %5143 = vmatpush2.msra.mxu0 0.0
      %5144 = vmatprep.subr.mxu0 0.0
      %5145 = vmatpush2.msra.mxu0 0.0
      %5146 = vmatprep.subr.mxu0 0.0
      %5147 = vmatpush2.msra.mxu0 0.0
      %5148 = vmatprep.subr.mxu0 0.0
      %5149 = vmatpush2.msra.mxu0 0.0
      %5150 = vmatprep.subr.mxu0 0.0
      %5151 = vmatpush2.msra.mxu0 0.0
      %5152 = vmatprep.subr.mxu0 0.0
      %5153 = vmatpush2.msra.mxu0 0.0
      %5154 = vmatprep.subr.mxu0 0.0
      %5155 = vmatpush2.msra.mxu0 0.0
      %5156 = vmatprep.mubr.f32.mxu0 0.0
      %v5157 = vand.u32 %v4436, 4294901760
      %5158 = vmatmul.mubr.f32.gmra.mxu0 %v5157
      %v5159 = vpop.f32.mrf.mxu0
      %v5160 = vadd.f32 %v5067, %v5159
      %v5161 = vpop.f32.mrf.mxu0
      %5162 = vmatprep.mubr.f32.mxu0 0.0
      %v5163 = vand.u32 %v4442, 4294901760
      %5164 = vmatmul.mubr.f32.gmra.mxu0 %v5163
      %v5165 = vpop.f32.mrf.mxu0
      %v5166 = vadd.f32 %v5073, %v5165
      %v5167 = vpop.f32.mrf.mxu0
      %5168 = vdwg.mxu0
      %v5169 = vadd.f32 %v244, %v5160
      %v5170 = vadd.f32 %v247, %v5166
      %s5171 = scalar_lea.vmem %s3, 128
      %v5172 = vld [vmem:[%s5171] sm:$0xff]
      %v5173 = vld [vmem:[%s5171 + $0x8] sm:$0xff]
      %v5174 = vld [vmem:[%s5171 + $0x10] sm:$0xff]
      %v5175 = vld [vmem:[%s5171 + $0x18] sm:$0xff]
      %v5176 = vld [vmem:[%s5171 + $0x20] sm:$0xff]
      %v5177 = vld [vmem:[%s5171 + $0x28] sm:$0xff]
      %v5178 = vld [vmem:[%s5171 + $0x30] sm:$0xff]
      %v5179 = vld [vmem:[%s5171 + $0x38] sm:$0xff]
      %v5180 = vld [vmem:[%s5171 + $0x40] sm:$0xff]
      %v5181 = vld [vmem:[%s5171 + $0x48] sm:$0xff]
      %v5182 = vld [vmem:[%s5171 + $0x50] sm:$0xff]
      %v5183 = vld [vmem:[%s5171 + $0x58] sm:$0xff]
      %v5184 = vld [vmem:[%s5171 + $0x60] sm:$0xff]
      %v5185 = vld [vmem:[%s5171 + $0x68] sm:$0xff]
      %v5186 = vld [vmem:[%s5171 + $0x70] sm:$0xff]
      %v5187 = vld [vmem:[%s5171 + $0x78] sm:$0xff]
      %5188 = vmatprep.subr.mxu0 0.0
      %v5189 = vand.u32 %v5187, 4294901760
      %5190 = vmatpush1.msra.mxu0 %v5189
      %5191 = vmatprep.subr.mxu0 0.0
      %v5192 = vand.u32 %v5186, 4294901760
      %5193 = vmatpush1.msra.mxu0 %v5192
      %5194 = vmatprep.subr.mxu0 0.0
      %v5195 = vand.u32 %v5185, 4294901760
      %5196 = vmatpush1.msra.mxu0 %v5195
      %5197 = vmatprep.subr.mxu0 0.0
      %v5198 = vand.u32 %v5184, 4294901760
      %5199 = vmatpush1.msra.mxu0 %v5198
      %5200 = vmatprep.subr.mxu0 0.0
      %v5201 = vand.u32 %v5183, 4294901760
      %5202 = vmatpush1.msra.mxu0 %v5201
      %5203 = vmatprep.subr.mxu0 0.0
      %v5204 = vand.u32 %v5182, 4294901760
      %5205 = vmatpush1.msra.mxu0 %v5204
      %5206 = vmatprep.subr.mxu0 0.0
      %v5207 = vand.u32 %v5181, 4294901760
      %5208 = vmatpush1.msra.mxu0 %v5207
      %5209 = vmatprep.subr.mxu0 0.0
      %v5210 = vand.u32 %v5180, 4294901760
      %5211 = vmatpush1.msra.mxu0 %v5210
      %5212 = vmatprep.subr.mxu0 0.0
      %v5213 = vand.u32 %v5179, 4294901760
      %5214 = vmatpush1.msra.mxu0 %v5213
      %5215 = vmatprep.subr.mxu0 0.0
      %v5216 = vand.u32 %v5178, 4294901760
      %5217 = vmatpush1.msra.mxu0 %v5216
      %5218 = vmatprep.subr.mxu0 0.0
      %v5219 = vand.u32 %v5177, 4294901760
      %5220 = vmatpush1.msra.mxu0 %v5219
      %5221 = vmatprep.subr.mxu0 0.0
      %v5222 = vand.u32 %v5176, 4294901760
      %5223 = vmatpush1.msra.mxu0 %v5222
      %5224 = vmatprep.subr.mxu0 0.0
      %v5225 = vand.u32 %v5175, 4294901760
      %5226 = vmatpush1.msra.mxu0 %v5225
      %5227 = vmatprep.subr.mxu0 0.0
      %v5228 = vand.u32 %v5174, 4294901760
      %5229 = vmatpush1.msra.mxu0 %v5228
      %5230 = vmatprep.subr.mxu0 0.0
      %v5231 = vand.u32 %v5173, 4294901760
      %5232 = vmatpush1.msra.mxu0 %v5231
      %5233 = vmatprep.subr.mxu0 0.0
      %v5234 = vand.u32 %v5172, 4294901760
      %5235 = vmatpush1.msra.mxu0 %v5234
      %5236 = vmatprep.subr.mxu0 0.0
      %5237 = vmatpush2.msra.mxu0 0.0
      %5238 = vmatprep.subr.mxu0 0.0
      %5239 = vmatpush2.msra.mxu0 0.0
      %5240 = vmatprep.subr.mxu0 0.0
      %5241 = vmatpush2.msra.mxu0 0.0
      %5242 = vmatprep.subr.mxu0 0.0
      %5243 = vmatpush2.msra.mxu0 0.0
      %5244 = vmatprep.subr.mxu0 0.0
      %5245 = vmatpush2.msra.mxu0 0.0
      %5246 = vmatprep.subr.mxu0 0.0
      %5247 = vmatpush2.msra.mxu0 0.0
      %5248 = vmatprep.subr.mxu0 0.0
      %5249 = vmatpush2.msra.mxu0 0.0
      %5250 = vmatprep.subr.mxu0 0.0
      %5251 = vmatpush2.msra.mxu0 0.0
      %5252 = vmatprep.subr.mxu0 0.0
      %5253 = vmatpush2.msra.mxu0 0.0
      %5254 = vmatprep.subr.mxu0 0.0
      %5255 = vmatpush2.msra.mxu0 0.0
      %5256 = vmatprep.subr.mxu0 0.0
      %5257 = vmatpush2.msra.mxu0 0.0
      %5258 = vmatprep.subr.mxu0 0.0
      %5259 = vmatpush2.msra.mxu0 0.0
      %5260 = vmatprep.subr.mxu0 0.0
      %5261 = vmatpush2.msra.mxu0 0.0
      %5262 = vmatprep.subr.mxu0 0.0
      %5263 = vmatpush2.msra.mxu0 0.0
      %5264 = vmatprep.subr.mxu0 0.0
      %5265 = vmatpush2.msra.mxu0 0.0
      %5266 = vmatprep.subr.mxu0 0.0
      %5267 = vmatpush2.msra.mxu0 0.0
      %5268 = vmatprep.mubr.f32.mxu0 0.0
      %v5269 = vand.u32 %v4448, 4294901760
      %v5270 = vsub.f32 %v4448, %v5269
      %v5271 = vand.u32 %v5270, 4294901760
      %v5272 = vsub.f32 %v5270, %v5271
      %v5273 = vand.u32 %v5272, 4294901760
      %5274 = vmatmul.mubr.f32.gmra.mxu0 %v5273
      %v5275 = vpop.f32.mrf.mxu0
      %v5276 = vadd.f32 0.0, %v5275
      %v5277 = vpop.f32.mrf.mxu0
      %5278 = vmatprep.mubr.f32.mxu0 0.0
      %v5279 = vand.u32 %v4454, 4294901760
      %v5280 = vsub.f32 %v4454, %v5279
      %v5281 = vand.u32 %v5280, 4294901760
      %v5282 = vsub.f32 %v5280, %v5281
      %v5283 = vand.u32 %v5282, 4294901760
      %5284 = vmatmul.mubr.f32.gmra.mxu0 %v5283
      %v5285 = vpop.f32.mrf.mxu0
      %v5286 = vadd.f32 0.0, %v5285
      %v5287 = vpop.f32.mrf.mxu0
      %5288 = vdwg.mxu0
      %5289 = vmatprep.subr.mxu0 0.0
      %v5290 = vand.u32 %v5187, 4294901760
      %v5291 = vsub.f32 %v5187, %v5290
      %v5292 = vand.u32 %v5291, 4294901760
      %v5293 = vsub.f32 %v5291, %v5292
      %v5294 = vand.u32 %v5293, 4294901760
      %5295 = vmatpush1.msra.mxu0 %v5294
      %5296 = vmatprep.subr.mxu0 0.0
      %v5297 = vand.u32 %v5186, 4294901760
      %v5298 = vsub.f32 %v5186, %v5297
      %v5299 = vand.u32 %v5298, 4294901760
      %v5300 = vsub.f32 %v5298, %v5299
      %v5301 = vand.u32 %v5300, 4294901760
      %5302 = vmatpush1.msra.mxu0 %v5301
      %5303 = vmatprep.subr.mxu0 0.0
      %v5304 = vand.u32 %v5185, 4294901760
      %v5305 = vsub.f32 %v5185, %v5304
      %v5306 = vand.u32 %v5305, 4294901760
      %v5307 = vsub.f32 %v5305, %v5306
      %v5308 = vand.u32 %v5307, 4294901760
      %5309 = vmatpush1.msra.mxu0 %v5308
      %5310 = vmatprep.subr.mxu0 0.0
      %v5311 = vand.u32 %v5184, 4294901760
      %v5312 = vsub.f32 %v5184, %v5311
      %v5313 = vand.u32 %v5312, 4294901760
      %v5314 = vsub.f32 %v5312, %v5313
      %v5315 = vand.u32 %v5314, 4294901760
      %5316 = vmatpush1.msra.mxu0 %v5315
      %5317 = vmatprep.subr.mxu0 0.0
      %v5318 = vand.u32 %v5183, 4294901760
      %v5319 = vsub.f32 %v5183, %v5318
      %v5320 = vand.u32 %v5319, 4294901760
      %v5321 = vsub.f32 %v5319, %v5320
      %v5322 = vand.u32 %v5321, 4294901760
      %5323 = vmatpush1.msra.mxu0 %v5322
      %5324 = vmatprep.subr.mxu0 0.0
      %v5325 = vand.u32 %v5182, 4294901760
      %v5326 = vsub.f32 %v5182, %v5325
      %v5327 = vand.u32 %v5326, 4294901760
      %v5328 = vsub.f32 %v5326, %v5327
      %v5329 = vand.u32 %v5328, 4294901760
      %5330 = vmatpush1.msra.mxu0 %v5329
      %5331 = vmatprep.subr.mxu0 0.0
      %v5332 = vand.u32 %v5181, 4294901760
      %v5333 = vsub.f32 %v5181, %v5332
      %v5334 = vand.u32 %v5333, 4294901760
      %v5335 = vsub.f32 %v5333, %v5334
      %v5336 = vand.u32 %v5335, 4294901760
      %5337 = vmatpush1.msra.mxu0 %v5336
      %5338 = vmatprep.subr.mxu0 0.0
      %v5339 = vand.u32 %v5180, 4294901760
      %v5340 = vsub.f32 %v5180, %v5339
      %v5341 = vand.u32 %v5340, 4294901760
      %v5342 = vsub.f32 %v5340, %v5341
      %v5343 = vand.u32 %v5342, 4294901760
      %5344 = vmatpush1.msra.mxu0 %v5343
      %5345 = vmatprep.subr.mxu0 0.0
      %v5346 = vand.u32 %v5179, 4294901760
      %v5347 = vsub.f32 %v5179, %v5346
      %v5348 = vand.u32 %v5347, 4294901760
      %v5349 = vsub.f32 %v5347, %v5348
      %v5350 = vand.u32 %v5349, 4294901760
      %5351 = vmatpush1.msra.mxu0 %v5350
      %5352 = vmatprep.subr.mxu0 0.0
      %v5353 = vand.u32 %v5178, 4294901760
      %v5354 = vsub.f32 %v5178, %v5353
      %v5355 = vand.u32 %v5354, 4294901760
      %v5356 = vsub.f32 %v5354, %v5355
      %v5357 = vand.u32 %v5356, 4294901760
      %5358 = vmatpush1.msra.mxu0 %v5357
      %5359 = vmatprep.subr.mxu0 0.0
      %v5360 = vand.u32 %v5177, 4294901760
      %v5361 = vsub.f32 %v5177, %v5360
      %v5362 = vand.u32 %v5361, 4294901760
      %v5363 = vsub.f32 %v5361, %v5362
      %v5364 = vand.u32 %v5363, 4294901760
      %5365 = vmatpush1.msra.mxu0 %v5364
      %5366 = vmatprep.subr.mxu0 0.0
      %v5367 = vand.u32 %v5176, 4294901760
      %v5368 = vsub.f32 %v5176, %v5367
      %v5369 = vand.u32 %v5368, 4294901760
      %v5370 = vsub.f32 %v5368, %v5369
      %v5371 = vand.u32 %v5370, 4294901760
      %5372 = vmatpush1.msra.mxu0 %v5371
      %5373 = vmatprep.subr.mxu0 0.0
      %v5374 = vand.u32 %v5175, 4294901760
      %v5375 = vsub.f32 %v5175, %v5374
      %v5376 = vand.u32 %v5375, 4294901760
      %v5377 = vsub.f32 %v5375, %v5376
      %v5378 = vand.u32 %v5377, 4294901760
      %5379 = vmatpush1.msra.mxu0 %v5378
      %5380 = vmatprep.subr.mxu0 0.0
      %v5381 = vand.u32 %v5174, 4294901760
      %v5382 = vsub.f32 %v5174, %v5381
      %v5383 = vand.u32 %v5382, 4294901760
      %v5384 = vsub.f32 %v5382, %v5383
      %v5385 = vand.u32 %v5384, 4294901760
      %5386 = vmatpush1.msra.mxu0 %v5385
      %5387 = vmatprep.subr.mxu0 0.0
      %v5388 = vand.u32 %v5173, 4294901760
      %v5389 = vsub.f32 %v5173, %v5388
      %v5390 = vand.u32 %v5389, 4294901760
      %v5391 = vsub.f32 %v5389, %v5390
      %v5392 = vand.u32 %v5391, 4294901760
      %5393 = vmatpush1.msra.mxu0 %v5392
      %5394 = vmatprep.subr.mxu0 0.0
      %v5395 = vand.u32 %v5172, 4294901760
      %v5396 = vsub.f32 %v5172, %v5395
      %v5397 = vand.u32 %v5396, 4294901760
      %v5398 = vsub.f32 %v5396, %v5397
      %v5399 = vand.u32 %v5398, 4294901760
      %5400 = vmatpush1.msra.mxu0 %v5399
      %5401 = vmatprep.subr.mxu0 0.0
      %5402 = vmatpush2.msra.mxu0 0.0
      %5403 = vmatprep.subr.mxu0 0.0
      %5404 = vmatpush2.msra.mxu0 0.0
      %5405 = vmatprep.subr.mxu0 0.0
      %5406 = vmatpush2.msra.mxu0 0.0
      %5407 = vmatprep.subr.mxu0 0.0
      %5408 = vmatpush2.msra.mxu0 0.0
      %5409 = vmatprep.subr.mxu0 0.0
      %5410 = vmatpush2.msra.mxu0 0.0
      %5411 = vmatprep.subr.mxu0 0.0
      %5412 = vmatpush2.msra.mxu0 0.0
      %5413 = vmatprep.subr.mxu0 0.0
      %5414 = vmatpush2.msra.mxu0 0.0
      %5415 = vmatprep.subr.mxu0 0.0
      %5416 = vmatpush2.msra.mxu0 0.0
      %5417 = vmatprep.subr.mxu0 0.0
      %5418 = vmatpush2.msra.mxu0 0.0
      %5419 = vmatprep.subr.mxu0 0.0
      %5420 = vmatpush2.msra.mxu0 0.0
      %5421 = vmatprep.subr.mxu0 0.0
      %5422 = vmatpush2.msra.mxu0 0.0
      %5423 = vmatprep.subr.mxu0 0.0
      %5424 = vmatpush2.msra.mxu0 0.0
      %5425 = vmatprep.subr.mxu0 0.0
      %5426 = vmatpush2.msra.mxu0 0.0
      %5427 = vmatprep.subr.mxu0 0.0
      %5428 = vmatpush2.msra.mxu0 0.0
      %5429 = vmatprep.subr.mxu0 0.0
      %5430 = vmatpush2.msra.mxu0 0.0
      %5431 = vmatprep.subr.mxu0 0.0
      %5432 = vmatpush2.msra.mxu0 0.0
      %5433 = vmatprep.mubr.f32.mxu0 0.0
      %v5434 = vand.u32 %v4448, 4294901760
      %5435 = vmatmul.mubr.f32.gmra.mxu0 %v5434
      %v5436 = vpop.f32.mrf.mxu0
      %v5437 = vadd.f32 %v5276, %v5436
      %v5438 = vpop.f32.mrf.mxu0
      %5439 = vmatprep.mubr.f32.mxu0 0.0
      %v5440 = vand.u32 %v4454, 4294901760
      %5441 = vmatmul.mubr.f32.gmra.mxu0 %v5440
      %v5442 = vpop.f32.mrf.mxu0
      %v5443 = vadd.f32 %v5286, %v5442
      %v5444 = vpop.f32.mrf.mxu0
      %5445 = vdwg.mxu0
      %5446 = vmatprep.subr.mxu0 0.0
      %v5447 = vand.u32 %v5187, 4294901760
      %v5448 = vsub.f32 %v5187, %v5447
      %5449 = vmatpush1.msra.mxu0 %v5448
      %5450 = vmatprep.subr.mxu0 0.0
      %v5451 = vand.u32 %v5186, 4294901760
      %v5452 = vsub.f32 %v5186, %v5451
      %5453 = vmatpush1.msra.mxu0 %v5452
      %5454 = vmatprep.subr.mxu0 0.0
      %v5455 = vand.u32 %v5185, 4294901760
      %v5456 = vsub.f32 %v5185, %v5455
      %5457 = vmatpush1.msra.mxu0 %v5456
      %5458 = vmatprep.subr.mxu0 0.0
      %v5459 = vand.u32 %v5184, 4294901760
      %v5460 = vsub.f32 %v5184, %v5459
      %5461 = vmatpush1.msra.mxu0 %v5460
      %5462 = vmatprep.subr.mxu0 0.0
      %v5463 = vand.u32 %v5183, 4294901760
      %v5464 = vsub.f32 %v5183, %v5463
      %5465 = vmatpush1.msra.mxu0 %v5464
      %5466 = vmatprep.subr.mxu0 0.0
      %v5467 = vand.u32 %v5182, 4294901760
      %v5468 = vsub.f32 %v5182, %v5467
      %5469 = vmatpush1.msra.mxu0 %v5468
      %5470 = vmatprep.subr.mxu0 0.0
      %v5471 = vand.u32 %v5181, 4294901760
      %v5472 = vsub.f32 %v5181, %v5471
      %5473 = vmatpush1.msra.mxu0 %v5472
      %5474 = vmatprep.subr.mxu0 0.0
      %v5475 = vand.u32 %v5180, 4294901760
      %v5476 = vsub.f32 %v5180, %v5475
      %5477 = vmatpush1.msra.mxu0 %v5476
      %5478 = vmatprep.subr.mxu0 0.0
      %v5479 = vand.u32 %v5179, 4294901760
      %v5480 = vsub.f32 %v5179, %v5479
      %5481 = vmatpush1.msra.mxu0 %v5480
      %5482 = vmatprep.subr.mxu0 0.0
      %v5483 = vand.u32 %v5178, 4294901760
      %v5484 = vsub.f32 %v5178, %v5483
      %5485 = vmatpush1.msra.mxu0 %v5484
      %5486 = vmatprep.subr.mxu0 0.0
      %v5487 = vand.u32 %v5177, 4294901760
      %v5488 = vsub.f32 %v5177, %v5487
      %5489 = vmatpush1.msra.mxu0 %v5488
      %5490 = vmatprep.subr.mxu0 0.0
      %v5491 = vand.u32 %v5176, 4294901760
      %v5492 = vsub.f32 %v5176, %v5491
      %5493 = vmatpush1.msra.mxu0 %v5492
      %5494 = vmatprep.subr.mxu0 0.0
      %v5495 = vand.u32 %v5175, 4294901760
      %v5496 = vsub.f32 %v5175, %v5495
      %5497 = vmatpush1.msra.mxu0 %v5496
      %5498 = vmatprep.subr.mxu0 0.0
      %v5499 = vand.u32 %v5174, 4294901760
      %v5500 = vsub.f32 %v5174, %v5499
      %5501 = vmatpush1.msra.mxu0 %v5500
      %5502 = vmatprep.subr.mxu0 0.0
      %v5503 = vand.u32 %v5173, 4294901760
      %v5504 = vsub.f32 %v5173, %v5503
      %5505 = vmatpush1.msra.mxu0 %v5504
      %5506 = vmatprep.subr.mxu0 0.0
      %v5507 = vand.u32 %v5172, 4294901760
      %v5508 = vsub.f32 %v5172, %v5507
      %5509 = vmatpush1.msra.mxu0 %v5508
      %5510 = vmatprep.subr.mxu0 0.0
      %5511 = vmatpush2.msra.mxu0 0.0
      %5512 = vmatprep.subr.mxu0 0.0
      %5513 = vmatpush2.msra.mxu0 0.0
      %5514 = vmatprep.subr.mxu0 0.0
      %5515 = vmatpush2.msra.mxu0 0.0
      %5516 = vmatprep.subr.mxu0 0.0
      %5517 = vmatpush2.msra.mxu0 0.0
      %5518 = vmatprep.subr.mxu0 0.0
      %5519 = vmatpush2.msra.mxu0 0.0
      %5520 = vmatprep.subr.mxu0 0.0
      %5521 = vmatpush2.msra.mxu0 0.0
      %5522 = vmatprep.subr.mxu0 0.0
      %5523 = vmatpush2.msra.mxu0 0.0
      %5524 = vmatprep.subr.mxu0 0.0
      %5525 = vmatpush2.msra.mxu0 0.0
      %5526 = vmatprep.subr.mxu0 0.0
      %5527 = vmatpush2.msra.mxu0 0.0
      %5528 = vmatprep.subr.mxu0 0.0
      %5529 = vmatpush2.msra.mxu0 0.0
      %5530 = vmatprep.subr.mxu0 0.0
      %5531 = vmatpush2.msra.mxu0 0.0
      %5532 = vmatprep.subr.mxu0 0.0
      %5533 = vmatpush2.msra.mxu0 0.0
      %5534 = vmatprep.subr.mxu0 0.0
      %5535 = vmatpush2.msra.mxu0 0.0
      %5536 = vmatprep.subr.mxu0 0.0
      %5537 = vmatpush2.msra.mxu0 0.0
      %5538 = vmatprep.subr.mxu0 0.0
      %5539 = vmatpush2.msra.mxu0 0.0
      %5540 = vmatprep.subr.mxu0 0.0
      %5541 = vmatpush2.msra.mxu0 0.0
      %5542 = vmatprep.mubr.f32.mxu0 0.0
      %v5543 = vand.u32 %v4448, 4294901760
      %v5544 = vsub.f32 %v4448, %v5543
      %5545 = vmatmul.mubr.f32.gmra.mxu0 %v5544
      %v5546 = vpop.f32.mrf.mxu0
      %v5547 = vadd.f32 %v5437, %v5546
      %v5548 = vpop.f32.mrf.mxu0
      %5549 = vmatprep.mubr.f32.mxu0 0.0
      %v5550 = vand.u32 %v4454, 4294901760
      %v5551 = vsub.f32 %v4454, %v5550
      %5552 = vmatmul.mubr.f32.gmra.mxu0 %v5551
      %v5553 = vpop.f32.mrf.mxu0
      %v5554 = vadd.f32 %v5443, %v5553
      %v5555 = vpop.f32.mrf.mxu0
      %5556 = vdwg.mxu0
      %5557 = vmatprep.subr.mxu0 0.0
      %v5558 = vand.u32 %v5187, 4294901760
      %5559 = vmatpush1.msra.mxu0 %v5558
      %5560 = vmatprep.subr.mxu0 0.0
      %v5561 = vand.u32 %v5186, 4294901760
      %5562 = vmatpush1.msra.mxu0 %v5561
      %5563 = vmatprep.subr.mxu0 0.0
      %v5564 = vand.u32 %v5185, 4294901760
      %5565 = vmatpush1.msra.mxu0 %v5564
      %5566 = vmatprep.subr.mxu0 0.0
      %v5567 = vand.u32 %v5184, 4294901760
      %5568 = vmatpush1.msra.mxu0 %v5567
      %5569 = vmatprep.subr.mxu0 0.0
      %v5570 = vand.u32 %v5183, 4294901760
      %5571 = vmatpush1.msra.mxu0 %v5570
      %5572 = vmatprep.subr.mxu0 0.0
      %v5573 = vand.u32 %v5182, 4294901760
      %5574 = vmatpush1.msra.mxu0 %v5573
      %5575 = vmatprep.subr.mxu0 0.0
      %v5576 = vand.u32 %v5181, 4294901760
      %5577 = vmatpush1.msra.mxu0 %v5576
      %5578 = vmatprep.subr.mxu0 0.0
      %v5579 = vand.u32 %v5180, 4294901760
      %5580 = vmatpush1.msra.mxu0 %v5579
      %5581 = vmatprep.subr.mxu0 0.0
      %v5582 = vand.u32 %v5179, 4294901760
      %5583 = vmatpush1.msra.mxu0 %v5582
      %5584 = vmatprep.subr.mxu0 0.0
      %v5585 = vand.u32 %v5178, 4294901760
      %5586 = vmatpush1.msra.mxu0 %v5585
      %5587 = vmatprep.subr.mxu0 0.0
      %v5588 = vand.u32 %v5177, 4294901760
      %5589 = vmatpush1.msra.mxu0 %v5588
      %5590 = vmatprep.subr.mxu0 0.0
      %v5591 = vand.u32 %v5176, 4294901760
      %5592 = vmatpush1.msra.mxu0 %v5591
      %5593 = vmatprep.subr.mxu0 0.0
      %v5594 = vand.u32 %v5175, 4294901760
      %5595 = vmatpush1.msra.mxu0 %v5594
      %5596 = vmatprep.subr.mxu0 0.0
      %v5597 = vand.u32 %v5174, 4294901760
      %5598 = vmatpush1.msra.mxu0 %v5597
      %5599 = vmatprep.subr.mxu0 0.0
      %v5600 = vand.u32 %v5173, 4294901760
      %5601 = vmatpush1.msra.mxu0 %v5600
      %5602 = vmatprep.subr.mxu0 0.0
      %v5603 = vand.u32 %v5172, 4294901760
      %5604 = vmatpush1.msra.mxu0 %v5603
      %5605 = vmatprep.subr.mxu0 0.0
      %5606 = vmatpush2.msra.mxu0 0.0
      %5607 = vmatprep.subr.mxu0 0.0
      %5608 = vmatpush2.msra.mxu0 0.0
      %5609 = vmatprep.subr.mxu0 0.0
      %5610 = vmatpush2.msra.mxu0 0.0
      %5611 = vmatprep.subr.mxu0 0.0
      %5612 = vmatpush2.msra.mxu0 0.0
      %5613 = vmatprep.subr.mxu0 0.0
      %5614 = vmatpush2.msra.mxu0 0.0
      %5615 = vmatprep.subr.mxu0 0.0
      %5616 = vmatpush2.msra.mxu0 0.0
      %5617 = vmatprep.subr.mxu0 0.0
      %5618 = vmatpush2.msra.mxu0 0.0
      %5619 = vmatprep.subr.mxu0 0.0
      %5620 = vmatpush2.msra.mxu0 0.0
      %5621 = vmatprep.subr.mxu0 0.0
      %5622 = vmatpush2.msra.mxu0 0.0
      %5623 = vmatprep.subr.mxu0 0.0
      %5624 = vmatpush2.msra.mxu0 0.0
      %5625 = vmatprep.subr.mxu0 0.0
      %5626 = vmatpush2.msra.mxu0 0.0
      %5627 = vmatprep.subr.mxu0 0.0
      %5628 = vmatpush2.msra.mxu0 0.0
      %5629 = vmatprep.subr.mxu0 0.0
      %5630 = vmatpush2.msra.mxu0 0.0
      %5631 = vmatprep.subr.mxu0 0.0
      %5632 = vmatpush2.msra.mxu0 0.0
      %5633 = vmatprep.subr.mxu0 0.0
      %5634 = vmatpush2.msra.mxu0 0.0
      %5635 = vmatprep.subr.mxu0 0.0
      %5636 = vmatpush2.msra.mxu0 0.0
      %5637 = vmatprep.mubr.f32.mxu0 0.0
      %v5638 = vand.u32 %v4448, 4294901760
      %v5639 = vsub.f32 %v4448, %v5638
      %v5640 = vand.u32 %v5639, 4294901760
      %5641 = vmatmul.mubr.f32.gmra.mxu0 %v5640
      %v5642 = vpop.f32.mrf.mxu0
      %v5643 = vadd.f32 %v5547, %v5642
      %v5644 = vpop.f32.mrf.mxu0
      %5645 = vmatprep.mubr.f32.mxu0 0.0
      %v5646 = vand.u32 %v4454, 4294901760
      %v5647 = vsub.f32 %v4454, %v5646
      %v5648 = vand.u32 %v5647, 4294901760
      %5649 = vmatmul.mubr.f32.gmra.mxu0 %v5648
      %v5650 = vpop.f32.mrf.mxu0
      %v5651 = vadd.f32 %v5554, %v5650
      %v5652 = vpop.f32.mrf.mxu0
      %5653 = vdwg.mxu0
      %5654 = vmatprep.subr.mxu0 0.0
      %v5655 = vand.u32 %v5187, 4294901760
      %v5656 = vsub.f32 %v5187, %v5655
      %v5657 = vand.u32 %v5656, 4294901760
      %5658 = vmatpush1.msra.mxu0 %v5657
      %5659 = vmatprep.subr.mxu0 0.0
      %v5660 = vand.u32 %v5186, 4294901760
      %v5661 = vsub.f32 %v5186, %v5660
      %v5662 = vand.u32 %v5661, 4294901760
      %5663 = vmatpush1.msra.mxu0 %v5662
      %5664 = vmatprep.subr.mxu0 0.0
      %v5665 = vand.u32 %v5185, 4294901760
      %v5666 = vsub.f32 %v5185, %v5665
      %v5667 = vand.u32 %v5666, 4294901760
      %5668 = vmatpush1.msra.mxu0 %v5667
      %5669 = vmatprep.subr.mxu0 0.0
      %v5670 = vand.u32 %v5184, 4294901760
      %v5671 = vsub.f32 %v5184, %v5670
      %v5672 = vand.u32 %v5671, 4294901760
      %5673 = vmatpush1.msra.mxu0 %v5672
      %5674 = vmatprep.subr.mxu0 0.0
      %v5675 = vand.u32 %v5183, 4294901760
      %v5676 = vsub.f32 %v5183, %v5675
      %v5677 = vand.u32 %v5676, 4294901760
      %5678 = vmatpush1.msra.mxu0 %v5677
      %5679 = vmatprep.subr.mxu0 0.0
      %v5680 = vand.u32 %v5182, 4294901760
      %v5681 = vsub.f32 %v5182, %v5680
      %v5682 = vand.u32 %v5681, 4294901760
      %5683 = vmatpush1.msra.mxu0 %v5682
      %5684 = vmatprep.subr.mxu0 0.0
      %v5685 = vand.u32 %v5181, 4294901760
      %v5686 = vsub.f32 %v5181, %v5685
      %v5687 = vand.u32 %v5686, 4294901760
      %5688 = vmatpush1.msra.mxu0 %v5687
      %5689 = vmatprep.subr.mxu0 0.0
      %v5690 = vand.u32 %v5180, 4294901760
      %v5691 = vsub.f32 %v5180, %v5690
      %v5692 = vand.u32 %v5691, 4294901760
      %5693 = vmatpush1.msra.mxu0 %v5692
      %5694 = vmatprep.subr.mxu0 0.0
      %v5695 = vand.u32 %v5179, 4294901760
      %v5696 = vsub.f32 %v5179, %v5695
      %v5697 = vand.u32 %v5696, 4294901760
      %5698 = vmatpush1.msra.mxu0 %v5697
      %5699 = vmatprep.subr.mxu0 0.0
      %v5700 = vand.u32 %v5178, 4294901760
      %v5701 = vsub.f32 %v5178, %v5700
      %v5702 = vand.u32 %v5701, 4294901760
      %5703 = vmatpush1.msra.mxu0 %v5702
      %5704 = vmatprep.subr.mxu0 0.0
      %v5705 = vand.u32 %v5177, 4294901760
      %v5706 = vsub.f32 %v5177, %v5705
      %v5707 = vand.u32 %v5706, 4294901760
      %5708 = vmatpush1.msra.mxu0 %v5707
      %5709 = vmatprep.subr.mxu0 0.0
      %v5710 = vand.u32 %v5176, 4294901760
      %v5711 = vsub.f32 %v5176, %v5710
      %v5712 = vand.u32 %v5711, 4294901760
      %5713 = vmatpush1.msra.mxu0 %v5712
      %5714 = vmatprep.subr.mxu0 0.0
      %v5715 = vand.u32 %v5175, 4294901760
      %v5716 = vsub.f32 %v5175, %v5715
      %v5717 = vand.u32 %v5716, 4294901760
      %5718 = vmatpush1.msra.mxu0 %v5717
      %5719 = vmatprep.subr.mxu0 0.0
      %v5720 = vand.u32 %v5174, 4294901760
      %v5721 = vsub.f32 %v5174, %v5720
      %v5722 = vand.u32 %v5721, 4294901760
      %5723 = vmatpush1.msra.mxu0 %v5722
      %5724 = vmatprep.subr.mxu0 0.0
      %v5725 = vand.u32 %v5173, 4294901760
      %v5726 = vsub.f32 %v5173, %v5725
      %v5727 = vand.u32 %v5726, 4294901760
      %5728 = vmatpush1.msra.mxu0 %v5727
      %5729 = vmatprep.subr.mxu0 0.0
      %v5730 = vand.u32 %v5172, 4294901760
      %v5731 = vsub.f32 %v5172, %v5730
      %v5732 = vand.u32 %v5731, 4294901760
      %5733 = vmatpush1.msra.mxu0 %v5732
      %5734 = vmatprep.subr.mxu0 0.0
      %5735 = vmatpush2.msra.mxu0 0.0
      %5736 = vmatprep.subr.mxu0 0.0
      %5737 = vmatpush2.msra.mxu0 0.0
      %5738 = vmatprep.subr.mxu0 0.0
      %5739 = vmatpush2.msra.mxu0 0.0
      %5740 = vmatprep.subr.mxu0 0.0
      %5741 = vmatpush2.msra.mxu0 0.0
      %5742 = vmatprep.subr.mxu0 0.0
      %5743 = vmatpush2.msra.mxu0 0.0
      %5744 = vmatprep.subr.mxu0 0.0
      %5745 = vmatpush2.msra.mxu0 0.0
      %5746 = vmatprep.subr.mxu0 0.0
      %5747 = vmatpush2.msra.mxu0 0.0
      %5748 = vmatprep.subr.mxu0 0.0
      %5749 = vmatpush2.msra.mxu0 0.0
      %5750 = vmatprep.subr.mxu0 0.0
      %5751 = vmatpush2.msra.mxu0 0.0
      %5752 = vmatprep.subr.mxu0 0.0
      %5753 = vmatpush2.msra.mxu0 0.0
      %5754 = vmatprep.subr.mxu0 0.0
      %5755 = vmatpush2.msra.mxu0 0.0
      %5756 = vmatprep.subr.mxu0 0.0
      %5757 = vmatpush2.msra.mxu0 0.0
      %5758 = vmatprep.subr.mxu0 0.0
      %5759 = vmatpush2.msra.mxu0 0.0
      %5760 = vmatprep.subr.mxu0 0.0
      %5761 = vmatpush2.msra.mxu0 0.0
      %5762 = vmatprep.subr.mxu0 0.0
      %5763 = vmatpush2.msra.mxu0 0.0
      %5764 = vmatprep.subr.mxu0 0.0
      %5765 = vmatpush2.msra.mxu0 0.0
      %5766 = vmatprep.mubr.f32.mxu0 0.0
      %v5767 = vand.u32 %v4448, 4294901760
      %5768 = vmatmul.mubr.f32.gmra.mxu0 %v5767
      %v5769 = vpop.f32.mrf.mxu0
      %v5770 = vadd.f32 %v5643, %v5769
      %v5771 = vpop.f32.mrf.mxu0
      %5772 = vmatprep.mubr.f32.mxu0 0.0
      %v5773 = vand.u32 %v4454, 4294901760
      %5774 = vmatmul.mubr.f32.gmra.mxu0 %v5773
      %v5775 = vpop.f32.mrf.mxu0
      %v5776 = vadd.f32 %v5651, %v5775
      %v5777 = vpop.f32.mrf.mxu0
      %5778 = vdwg.mxu0
      %5779 = vmatprep.subr.mxu0 0.0
      %v5780 = vand.u32 %v5187, 4294901760
      %5781 = vmatpush1.msra.mxu0 %v5780
      %5782 = vmatprep.subr.mxu0 0.0
      %v5783 = vand.u32 %v5186, 4294901760
      %5784 = vmatpush1.msra.mxu0 %v5783
      %5785 = vmatprep.subr.mxu0 0.0
      %v5786 = vand.u32 %v5185, 4294901760
      %5787 = vmatpush1.msra.mxu0 %v5786
      %5788 = vmatprep.subr.mxu0 0.0
      %v5789 = vand.u32 %v5184, 4294901760
      %5790 = vmatpush1.msra.mxu0 %v5789
      %5791 = vmatprep.subr.mxu0 0.0
      %v5792 = vand.u32 %v5183, 4294901760
      %5793 = vmatpush1.msra.mxu0 %v5792
      %5794 = vmatprep.subr.mxu0 0.0
      %v5795 = vand.u32 %v5182, 4294901760
      %5796 = vmatpush1.msra.mxu0 %v5795
      %5797 = vmatprep.subr.mxu0 0.0
      %v5798 = vand.u32 %v5181, 4294901760
      %5799 = vmatpush1.msra.mxu0 %v5798
      %5800 = vmatprep.subr.mxu0 0.0
      %v5801 = vand.u32 %v5180, 4294901760
      %5802 = vmatpush1.msra.mxu0 %v5801
      %5803 = vmatprep.subr.mxu0 0.0
      %v5804 = vand.u32 %v5179, 4294901760
      %5805 = vmatpush1.msra.mxu0 %v5804
      %5806 = vmatprep.subr.mxu0 0.0
      %v5807 = vand.u32 %v5178, 4294901760
      %5808 = vmatpush1.msra.mxu0 %v5807
      %5809 = vmatprep.subr.mxu0 0.0
      %v5810 = vand.u32 %v5177, 4294901760
      %5811 = vmatpush1.msra.mxu0 %v5810
      %5812 = vmatprep.subr.mxu0 0.0
      %v5813 = vand.u32 %v5176, 4294901760
      %5814 = vmatpush1.msra.mxu0 %v5813
      %5815 = vmatprep.subr.mxu0 0.0
      %v5816 = vand.u32 %v5175, 4294901760
      %5817 = vmatpush1.msra.mxu0 %v5816
      %5818 = vmatprep.subr.mxu0 0.0
      %v5819 = vand.u32 %v5174, 4294901760
      %5820 = vmatpush1.msra.mxu0 %v5819
      %5821 = vmatprep.subr.mxu0 0.0
      %v5822 = vand.u32 %v5173, 4294901760
      %5823 = vmatpush1.msra.mxu0 %v5822
      %5824 = vmatprep.subr.mxu0 0.0
      %v5825 = vand.u32 %v5172, 4294901760
      %5826 = vmatpush1.msra.mxu0 %v5825
      %5827 = vmatprep.subr.mxu0 0.0
      %5828 = vmatpush2.msra.mxu0 0.0
      %5829 = vmatprep.subr.mxu0 0.0
      %5830 = vmatpush2.msra.mxu0 0.0
      %5831 = vmatprep.subr.mxu0 0.0
      %5832 = vmatpush2.msra.mxu0 0.0
      %5833 = vmatprep.subr.mxu0 0.0
      %5834 = vmatpush2.msra.mxu0 0.0
      %5835 = vmatprep.subr.mxu0 0.0
      %5836 = vmatpush2.msra.mxu0 0.0
      %5837 = vmatprep.subr.mxu0 0.0
      %5838 = vmatpush2.msra.mxu0 0.0
      %5839 = vmatprep.subr.mxu0 0.0
      %5840 = vmatpush2.msra.mxu0 0.0
      %5841 = vmatprep.subr.mxu0 0.0
      %5842 = vmatpush2.msra.mxu0 0.0
      %5843 = vmatprep.subr.mxu0 0.0
      %5844 = vmatpush2.msra.mxu0 0.0
      %5845 = vmatprep.subr.mxu0 0.0
      %5846 = vmatpush2.msra.mxu0 0.0
      %5847 = vmatprep.subr.mxu0 0.0
      %5848 = vmatpush2.msra.mxu0 0.0
      %5849 = vmatprep.subr.mxu0 0.0
      %5850 = vmatpush2.msra.mxu0 0.0
      %5851 = vmatprep.subr.mxu0 0.0
      %5852 = vmatpush2.msra.mxu0 0.0
      %5853 = vmatprep.subr.mxu0 0.0
      %5854 = vmatpush2.msra.mxu0 0.0
      %5855 = vmatprep.subr.mxu0 0.0
      %5856 = vmatpush2.msra.mxu0 0.0
      %5857 = vmatprep.subr.mxu0 0.0
      %5858 = vmatpush2.msra.mxu0 0.0
      %5859 = vmatprep.mubr.f32.mxu0 0.0
      %v5860 = vand.u32 %v4448, 4294901760
      %5861 = vmatmul.mubr.f32.gmra.mxu0 %v5860
      %v5862 = vpop.f32.mrf.mxu0
      %v5863 = vadd.f32 %v5770, %v5862
      %v5864 = vpop.f32.mrf.mxu0
      %5865 = vmatprep.mubr.f32.mxu0 0.0
      %v5866 = vand.u32 %v4454, 4294901760
      %5867 = vmatmul.mubr.f32.gmra.mxu0 %v5866
      %v5868 = vpop.f32.mrf.mxu0
      %v5869 = vadd.f32 %v5776, %v5868
      %v5870 = vpop.f32.mrf.mxu0
      %5871 = vdwg.mxu0
      %v5872 = vadd.f32 %v5169, %v5863
      %v5873 = vadd.f32 %v5170, %v5869
      %s5874 = scalar_lea.vmem %s3, 256
      %v5875 = vld [vmem:[%s5874] sm:$0xff]
      %v5876 = vld [vmem:[%s5874 + $0x8] sm:$0xff]
      %v5877 = vld [vmem:[%s5874 + $0x10] sm:$0xff]
      %v5878 = vld [vmem:[%s5874 + $0x18] sm:$0xff]
      %v5879 = vld [vmem:[%s5874 + $0x20] sm:$0xff]
      %v5880 = vld [vmem:[%s5874 + $0x28] sm:$0xff]
      %v5881 = vld [vmem:[%s5874 + $0x30] sm:$0xff]
      %v5882 = vld [vmem:[%s5874 + $0x38] sm:$0xff]
      %v5883 = vld [vmem:[%s5874 + $0x40] sm:$0xff]
      %v5884 = vld [vmem:[%s5874 + $0x48] sm:$0xff]
      %v5885 = vld [vmem:[%s5874 + $0x50] sm:$0xff]
      %v5886 = vld [vmem:[%s5874 + $0x58] sm:$0xff]
      %v5887 = vld [vmem:[%s5874 + $0x60] sm:$0xff]
      %v5888 = vld [vmem:[%s5874 + $0x68] sm:$0xff]
      %v5889 = vld [vmem:[%s5874 + $0x70] sm:$0xff]
      %v5890 = vld [vmem:[%s5874 + $0x78] sm:$0xff]
      %5891 = vmatprep.subr.mxu0 0.0
      %v5892 = vand.u32 %v5890, 4294901760
      %5893 = vmatpush1.msra.mxu0 %v5892
      %5894 = vmatprep.subr.mxu0 0.0
      %v5895 = vand.u32 %v5889, 4294901760
      %5896 = vmatpush1.msra.mxu0 %v5895
      %5897 = vmatprep.subr.mxu0 0.0
      %v5898 = vand.u32 %v5888, 4294901760
      %5899 = vmatpush1.msra.mxu0 %v5898
      %5900 = vmatprep.subr.mxu0 0.0
      %v5901 = vand.u32 %v5887, 4294901760
      %5902 = vmatpush1.msra.mxu0 %v5901
      %5903 = vmatprep.subr.mxu0 0.0
      %v5904 = vand.u32 %v5886, 4294901760
      %5905 = vmatpush1.msra.mxu0 %v5904
      %5906 = vmatprep.subr.mxu0 0.0
      %v5907 = vand.u32 %v5885, 4294901760
      %5908 = vmatpush1.msra.mxu0 %v5907
      %5909 = vmatprep.subr.mxu0 0.0
      %v5910 = vand.u32 %v5884, 4294901760
      %5911 = vmatpush1.msra.mxu0 %v5910
      %5912 = vmatprep.subr.mxu0 0.0
      %v5913 = vand.u32 %v5883, 4294901760
      %5914 = vmatpush1.msra.mxu0 %v5913
      %5915 = vmatprep.subr.mxu0 0.0
      %v5916 = vand.u32 %v5882, 4294901760
      %5917 = vmatpush1.msra.mxu0 %v5916
      %5918 = vmatprep.subr.mxu0 0.0
      %v5919 = vand.u32 %v5881, 4294901760
      %5920 = vmatpush1.msra.mxu0 %v5919
      %5921 = vmatprep.subr.mxu0 0.0
      %v5922 = vand.u32 %v5880, 4294901760
      %5923 = vmatpush1.msra.mxu0 %v5922
      %5924 = vmatprep.subr.mxu0 0.0
      %v5925 = vand.u32 %v5879, 4294901760
      %5926 = vmatpush1.msra.mxu0 %v5925
      %5927 = vmatprep.subr.mxu0 0.0
      %v5928 = vand.u32 %v5878, 4294901760
      %5929 = vmatpush1.msra.mxu0 %v5928
      %5930 = vmatprep.subr.mxu0 0.0
      %v5931 = vand.u32 %v5877, 4294901760
      %5932 = vmatpush1.msra.mxu0 %v5931
      %5933 = vmatprep.subr.mxu0 0.0
      %v5934 = vand.u32 %v5876, 4294901760
      %5935 = vmatpush1.msra.mxu0 %v5934
      %5936 = vmatprep.subr.mxu0 0.0
      %v5937 = vand.u32 %v5875, 4294901760
      %5938 = vmatpush1.msra.mxu0 %v5937
      %5939 = vmatprep.subr.mxu0 0.0
      %5940 = vmatpush2.msra.mxu0 0.0
      %5941 = vmatprep.subr.mxu0 0.0
      %5942 = vmatpush2.msra.mxu0 0.0
      %5943 = vmatprep.subr.mxu0 0.0
      %5944 = vmatpush2.msra.mxu0 0.0
      %5945 = vmatprep.subr.mxu0 0.0
      %5946 = vmatpush2.msra.mxu0 0.0
      %5947 = vmatprep.subr.mxu0 0.0
      %5948 = vmatpush2.msra.mxu0 0.0
      %5949 = vmatprep.subr.mxu0 0.0
      %5950 = vmatpush2.msra.mxu0 0.0
      %5951 = vmatprep.subr.mxu0 0.0
      %5952 = vmatpush2.msra.mxu0 0.0
      %5953 = vmatprep.subr.mxu0 0.0
      %5954 = vmatpush2.msra.mxu0 0.0
      %5955 = vmatprep.subr.mxu0 0.0
      %5956 = vmatpush2.msra.mxu0 0.0
      %5957 = vmatprep.subr.mxu0 0.0
      %5958 = vmatpush2.msra.mxu0 0.0
      %5959 = vmatprep.subr.mxu0 0.0
      %5960 = vmatpush2.msra.mxu0 0.0
      %5961 = vmatprep.subr.mxu0 0.0
      %5962 = vmatpush2.msra.mxu0 0.0
      %5963 = vmatprep.subr.mxu0 0.0
      %5964 = vmatpush2.msra.mxu0 0.0
      %5965 = vmatprep.subr.mxu0 0.0
      %5966 = vmatpush2.msra.mxu0 0.0
      %5967 = vmatprep.subr.mxu0 0.0
      %5968 = vmatpush2.msra.mxu0 0.0
      %5969 = vmatprep.subr.mxu0 0.0
      %5970 = vmatpush2.msra.mxu0 0.0
      %5971 = vmatprep.mubr.f32.mxu0 0.0
      %v5972 = vand.u32 %v4460, 4294901760
      %v5973 = vsub.f32 %v4460, %v5972
      %v5974 = vand.u32 %v5973, 4294901760
      %v5975 = vsub.f32 %v5973, %v5974
      %v5976 = vand.u32 %v5975, 4294901760
      %5977 = vmatmul.mubr.f32.gmra.mxu0 %v5976
      %v5978 = vpop.f32.mrf.mxu0
      %v5979 = vadd.f32 0.0, %v5978
      %v5980 = vpop.f32.mrf.mxu0
      %5981 = vmatprep.mubr.f32.mxu0 0.0
      %v5982 = vand.u32 %v4466, 4294901760
      %v5983 = vsub.f32 %v4466, %v5982
      %v5984 = vand.u32 %v5983, 4294901760
      %v5985 = vsub.f32 %v5983, %v5984
      %v5986 = vand.u32 %v5985, 4294901760
      %5987 = vmatmul.mubr.f32.gmra.mxu0 %v5986
      %v5988 = vpop.f32.mrf.mxu0
      %v5989 = vadd.f32 0.0, %v5988
      %v5990 = vpop.f32.mrf.mxu0
      %5991 = vdwg.mxu0
      %5992 = vmatprep.subr.mxu0 0.0
      %v5993 = vand.u32 %v5890, 4294901760
      %v5994 = vsub.f32 %v5890, %v5993
      %v5995 = vand.u32 %v5994, 4294901760
      %v5996 = vsub.f32 %v5994, %v5995
      %v5997 = vand.u32 %v5996, 4294901760
      %5998 = vmatpush1.msra.mxu0 %v5997
      %5999 = vmatprep.subr.mxu0 0.0
      %v6000 = vand.u32 %v5889, 4294901760
      %v6001 = vsub.f32 %v5889, %v6000
      %v6002 = vand.u32 %v6001, 4294901760
      %v6003 = vsub.f32 %v6001, %v6002
      %v6004 = vand.u32 %v6003, 4294901760
      %6005 = vmatpush1.msra.mxu0 %v6004
      %6006 = vmatprep.subr.mxu0 0.0
      %v6007 = vand.u32 %v5888, 4294901760
      %v6008 = vsub.f32 %v5888, %v6007
      %v6009 = vand.u32 %v6008, 4294901760
      %v6010 = vsub.f32 %v6008, %v6009
      %v6011 = vand.u32 %v6010, 4294901760
      %6012 = vmatpush1.msra.mxu0 %v6011
      %6013 = vmatprep.subr.mxu0 0.0
      %v6014 = vand.u32 %v5887, 4294901760
      %v6015 = vsub.f32 %v5887, %v6014
      %v6016 = vand.u32 %v6015, 4294901760
      %v6017 = vsub.f32 %v6015, %v6016
      %v6018 = vand.u32 %v6017, 4294901760
      %6019 = vmatpush1.msra.mxu0 %v6018
      %6020 = vmatprep.subr.mxu0 0.0
      %v6021 = vand.u32 %v5886, 4294901760
      %v6022 = vsub.f32 %v5886, %v6021
      %v6023 = vand.u32 %v6022, 4294901760
      %v6024 = vsub.f32 %v6022, %v6023
      %v6025 = vand.u32 %v6024, 4294901760
      %6026 = vmatpush1.msra.mxu0 %v6025
      %6027 = vmatprep.subr.mxu0 0.0
      %v6028 = vand.u32 %v5885, 4294901760
      %v6029 = vsub.f32 %v5885, %v6028
      %v6030 = vand.u32 %v6029, 4294901760
      %v6031 = vsub.f32 %v6029, %v6030
      %v6032 = vand.u32 %v6031, 4294901760
      %6033 = vmatpush1.msra.mxu0 %v6032
      %6034 = vmatprep.subr.mxu0 0.0
      %v6035 = vand.u32 %v5884, 4294901760
      %v6036 = vsub.f32 %v5884, %v6035
      %v6037 = vand.u32 %v6036, 4294901760
      %v6038 = vsub.f32 %v6036, %v6037
      %v6039 = vand.u32 %v6038, 4294901760
      %6040 = vmatpush1.msra.mxu0 %v6039
      %6041 = vmatprep.subr.mxu0 0.0
      %v6042 = vand.u32 %v5883, 4294901760
      %v6043 = vsub.f32 %v5883, %v6042
      %v6044 = vand.u32 %v6043, 4294901760
      %v6045 = vsub.f32 %v6043, %v6044
      %v6046 = vand.u32 %v6045, 4294901760
      %6047 = vmatpush1.msra.mxu0 %v6046
      %6048 = vmatprep.subr.mxu0 0.0
      %v6049 = vand.u32 %v5882, 4294901760
      %v6050 = vsub.f32 %v5882, %v6049
      %v6051 = vand.u32 %v6050, 4294901760
      %v6052 = vsub.f32 %v6050, %v6051
      %v6053 = vand.u32 %v6052, 4294901760
      %6054 = vmatpush1.msra.mxu0 %v6053
      %6055 = vmatprep.subr.mxu0 0.0
      %v6056 = vand.u32 %v5881, 4294901760
      %v6057 = vsub.f32 %v5881, %v6056
      %v6058 = vand.u32 %v6057, 4294901760
      %v6059 = vsub.f32 %v6057, %v6058
      %v6060 = vand.u32 %v6059, 4294901760
      %6061 = vmatpush1.msra.mxu0 %v6060
      %6062 = vmatprep.subr.mxu0 0.0
      %v6063 = vand.u32 %v5880, 4294901760
      %v6064 = vsub.f32 %v5880, %v6063
      %v6065 = vand.u32 %v6064, 4294901760
      %v6066 = vsub.f32 %v6064, %v6065
      %v6067 = vand.u32 %v6066, 4294901760
      %6068 = vmatpush1.msra.mxu0 %v6067
      %6069 = vmatprep.subr.mxu0 0.0
      %v6070 = vand.u32 %v5879, 4294901760
      %v6071 = vsub.f32 %v5879, %v6070
      %v6072 = vand.u32 %v6071, 4294901760
      %v6073 = vsub.f32 %v6071, %v6072
      %v6074 = vand.u32 %v6073, 4294901760
      %6075 = vmatpush1.msra.mxu0 %v6074
      %6076 = vmatprep.subr.mxu0 0.0
      %v6077 = vand.u32 %v5878, 4294901760
      %v6078 = vsub.f32 %v5878, %v6077
      %v6079 = vand.u32 %v6078, 4294901760
      %v6080 = vsub.f32 %v6078, %v6079
      %v6081 = vand.u32 %v6080, 4294901760
      %6082 = vmatpush1.msra.mxu0 %v6081
      %6083 = vmatprep.subr.mxu0 0.0
      %v6084 = vand.u32 %v5877, 4294901760
      %v6085 = vsub.f32 %v5877, %v6084
      %v6086 = vand.u32 %v6085, 4294901760
      %v6087 = vsub.f32 %v6085, %v6086
      %v6088 = vand.u32 %v6087, 4294901760
      %6089 = vmatpush1.msra.mxu0 %v6088
      %6090 = vmatprep.subr.mxu0 0.0
      %v6091 = vand.u32 %v5876, 4294901760
      %v6092 = vsub.f32 %v5876, %v6091
      %v6093 = vand.u32 %v6092, 4294901760
      %v6094 = vsub.f32 %v6092, %v6093
      %v6095 = vand.u32 %v6094, 4294901760
      %6096 = vmatpush1.msra.mxu0 %v6095
      %6097 = vmatprep.subr.mxu0 0.0
      %v6098 = vand.u32 %v5875, 4294901760
      %v6099 = vsub.f32 %v5875, %v6098
      %v6100 = vand.u32 %v6099, 4294901760
      %v6101 = vsub.f32 %v6099, %v6100
      %v6102 = vand.u32 %v6101, 4294901760
      %6103 = vmatpush1.msra.mxu0 %v6102
      %6104 = vmatprep.subr.mxu0 0.0
      %6105 = vmatpush2.msra.mxu0 0.0
      %6106 = vmatprep.subr.mxu0 0.0
      %6107 = vmatpush2.msra.mxu0 0.0
      %6108 = vmatprep.subr.mxu0 0.0
      %6109 = vmatpush2.msra.mxu0 0.0
      %6110 = vmatprep.subr.mxu0 0.0
      %6111 = vmatpush2.msra.mxu0 0.0
      %6112 = vmatprep.subr.mxu0 0.0
      %6113 = vmatpush2.msra.mxu0 0.0
      %6114 = vmatprep.subr.mxu0 0.0
      %6115 = vmatpush2.msra.mxu0 0.0
      %6116 = vmatprep.subr.mxu0 0.0
      %6117 = vmatpush2.msra.mxu0 0.0
      %6118 = vmatprep.subr.mxu0 0.0
      %6119 = vmatpush2.msra.mxu0 0.0
      %6120 = vmatprep.subr.mxu0 0.0
      %6121 = vmatpush2.msra.mxu0 0.0
      %6122 = vmatprep.subr.mxu0 0.0
      %6123 = vmatpush2.msra.mxu0 0.0
      %6124 = vmatprep.subr.mxu0 0.0
      %6125 = vmatpush2.msra.mxu0 0.0
      %6126 = vmatprep.subr.mxu0 0.0
      %6127 = vmatpush2.msra.mxu0 0.0
      %6128 = vmatprep.subr.mxu0 0.0
      %6129 = vmatpush2.msra.mxu0 0.0
      %6130 = vmatprep.subr.mxu0 0.0
      %6131 = vmatpush2.msra.mxu0 0.0
      %6132 = vmatprep.subr.mxu0 0.0
      %6133 = vmatpush2.msra.mxu0 0.0
      %6134 = vmatprep.subr.mxu0 0.0
      %6135 = vmatpush2.msra.mxu0 0.0
      %6136 = vmatprep.mubr.f32.mxu0 0.0
      %v6137 = vand.u32 %v4460, 4294901760
      %6138 = vmatmul.mubr.f32.gmra.mxu0 %v6137
      %v6139 = vpop.f32.mrf.mxu0
      %v6140 = vadd.f32 %v5979, %v6139
      %v6141 = vpop.f32.mrf.mxu0
      %6142 = vmatprep.mubr.f32.mxu0 0.0
      %v6143 = vand.u32 %v4466, 4294901760
      %6144 = vmatmul.mubr.f32.gmra.mxu0 %v6143
      %v6145 = vpop.f32.mrf.mxu0
      %v6146 = vadd.f32 %v5989, %v6145
      %v6147 = vpop.f32.mrf.mxu0
      %6148 = vdwg.mxu0
      %6149 = vmatprep.subr.mxu0 0.0
      %v6150 = vand.u32 %v5890, 4294901760
      %v6151 = vsub.f32 %v5890, %v6150
      %6152 = vmatpush1.msra.mxu0 %v6151
      %6153 = vmatprep.subr.mxu0 0.0
      %v6154 = vand.u32 %v5889, 4294901760
      %v6155 = vsub.f32 %v5889, %v6154
      %6156 = vmatpush1.msra.mxu0 %v6155
      %6157 = vmatprep.subr.mxu0 0.0
      %v6158 = vand.u32 %v5888, 4294901760
      %v6159 = vsub.f32 %v5888, %v6158
      %6160 = vmatpush1.msra.mxu0 %v6159
      %6161 = vmatprep.subr.mxu0 0.0
      %v6162 = vand.u32 %v5887, 4294901760
      %v6163 = vsub.f32 %v5887, %v6162
      %6164 = vmatpush1.msra.mxu0 %v6163
      %6165 = vmatprep.subr.mxu0 0.0
      %v6166 = vand.u32 %v5886, 4294901760
      %v6167 = vsub.f32 %v5886, %v6166
      %6168 = vmatpush1.msra.mxu0 %v6167
      %6169 = vmatprep.subr.mxu0 0.0
      %v6170 = vand.u32 %v5885, 4294901760
      %v6171 = vsub.f32 %v5885, %v6170
      %6172 = vmatpush1.msra.mxu0 %v6171
      %6173 = vmatprep.subr.mxu0 0.0
      %v6174 = vand.u32 %v5884, 4294901760
      %v6175 = vsub.f32 %v5884, %v6174
      %6176 = vmatpush1.msra.mxu0 %v6175
      %6177 = vmatprep.subr.mxu0 0.0
      %v6178 = vand.u32 %v5883, 4294901760
      %v6179 = vsub.f32 %v5883, %v6178
      %6180 = vmatpush1.msra.mxu0 %v6179
      %6181 = vmatprep.subr.mxu0 0.0
      %v6182 = vand.u32 %v5882, 4294901760
      %v6183 = vsub.f32 %v5882, %v6182
      %6184 = vmatpush1.msra.mxu0 %v6183
      %6185 = vmatprep.subr.mxu0 0.0
      %v6186 = vand.u32 %v5881, 4294901760
      %v6187 = vsub.f32 %v5881, %v6186
      %6188 = vmatpush1.msra.mxu0 %v6187
      %6189 = vmatprep.subr.mxu0 0.0
      %v6190 = vand.u32 %v5880, 4294901760
      %v6191 = vsub.f32 %v5880, %v6190
      %6192 = vmatpush1.msra.mxu0 %v6191
      %6193 = vmatprep.subr.mxu0 0.0
      %v6194 = vand.u32 %v5879, 4294901760
      %v6195 = vsub.f32 %v5879, %v6194
      %6196 = vmatpush1.msra.mxu0 %v6195
      %6197 = vmatprep.subr.mxu0 0.0
      %v6198 = vand.u32 %v5878, 4294901760
      %v6199 = vsub.f32 %v5878, %v6198
      %6200 = vmatpush1.msra.mxu0 %v6199
      %6201 = vmatprep.subr.mxu0 0.0
      %v6202 = vand.u32 %v5877, 4294901760
      %v6203 = vsub.f32 %v5877, %v6202
      %6204 = vmatpush1.msra.mxu0 %v6203
      %6205 = vmatprep.subr.mxu0 0.0
      %v6206 = vand.u32 %v5876, 4294901760
      %v6207 = vsub.f32 %v5876, %v6206
      %6208 = vmatpush1.msra.mxu0 %v6207
      %6209 = vmatprep.subr.mxu0 0.0
      %v6210 = vand.u32 %v5875, 4294901760
      %v6211 = vsub.f32 %v5875, %v6210
      %6212 = vmatpush1.msra.mxu0 %v6211
      %6213 = vmatprep.subr.mxu0 0.0
      %6214 = vmatpush2.msra.mxu0 0.0
      %6215 = vmatprep.subr.mxu0 0.0
      %6216 = vmatpush2.msra.mxu0 0.0
      %6217 = vmatprep.subr.mxu0 0.0
      %6218 = vmatpush2.msra.mxu0 0.0
      %6219 = vmatprep.subr.mxu0 0.0
      %6220 = vmatpush2.msra.mxu0 0.0
      %6221 = vmatprep.subr.mxu0 0.0
      %6222 = vmatpush2.msra.mxu0 0.0
      %6223 = vmatprep.subr.mxu0 0.0
      %6224 = vmatpush2.msra.mxu0 0.0
      %6225 = vmatprep.subr.mxu0 0.0
      %6226 = vmatpush2.msra.mxu0 0.0
      %6227 = vmatprep.subr.mxu0 0.0
      %6228 = vmatpush2.msra.mxu0 0.0
      %6229 = vmatprep.subr.mxu0 0.0
      %6230 = vmatpush2.msra.mxu0 0.0
      %6231 = vmatprep.subr.mxu0 0.0
      %6232 = vmatpush2.msra.mxu0 0.0
      %6233 = vmatprep.subr.mxu0 0.0
      %6234 = vmatpush2.msra.mxu0 0.0
      %6235 = vmatprep.subr.mxu0 0.0
      %6236 = vmatpush2.msra.mxu0 0.0
      %6237 = vmatprep.subr.mxu0 0.0
      %6238 = vmatpush2.msra.mxu0 0.0
      %6239 = vmatprep.subr.mxu0 0.0
      %6240 = vmatpush2.msra.mxu0 0.0
      %6241 = vmatprep.subr.mxu0 0.0
      %6242 = vmatpush2.msra.mxu0 0.0
      %6243 = vmatprep.subr.mxu0 0.0
      %6244 = vmatpush2.msra.mxu0 0.0
      %6245 = vmatprep.mubr.f32.mxu0 0.0
      %v6246 = vand.u32 %v4460, 4294901760
      %v6247 = vsub.f32 %v4460, %v6246
      %6248 = vmatmul.mubr.f32.gmra.mxu0 %v6247
      %v6249 = vpop.f32.mrf.mxu0
      %v6250 = vadd.f32 %v6140, %v6249
      %v6251 = vpop.f32.mrf.mxu0
      %6252 = vmatprep.mubr.f32.mxu0 0.0
      %v6253 = vand.u32 %v4466, 4294901760
      %v6254 = vsub.f32 %v4466, %v6253
      %6255 = vmatmul.mubr.f32.gmra.mxu0 %v6254
      %v6256 = vpop.f32.mrf.mxu0
      %v6257 = vadd.f32 %v6146, %v6256
      %v6258 = vpop.f32.mrf.mxu0
      %6259 = vdwg.mxu0
      %6260 = vmatprep.subr.mxu0 0.0
      %v6261 = vand.u32 %v5890, 4294901760
      %6262 = vmatpush1.msra.mxu0 %v6261
      %6263 = vmatprep.subr.mxu0 0.0
      %v6264 = vand.u32 %v5889, 4294901760
      %6265 = vmatpush1.msra.mxu0 %v6264
      %6266 = vmatprep.subr.mxu0 0.0
      %v6267 = vand.u32 %v5888, 4294901760
      %6268 = vmatpush1.msra.mxu0 %v6267
      %6269 = vmatprep.subr.mxu0 0.0
      %v6270 = vand.u32 %v5887, 4294901760
      %6271 = vmatpush1.msra.mxu0 %v6270
      %6272 = vmatprep.subr.mxu0 0.0
      %v6273 = vand.u32 %v5886, 4294901760
      %6274 = vmatpush1.msra.mxu0 %v6273
      %6275 = vmatprep.subr.mxu0 0.0
      %v6276 = vand.u32 %v5885, 4294901760
      %6277 = vmatpush1.msra.mxu0 %v6276
      %6278 = vmatprep.subr.mxu0 0.0
      %v6279 = vand.u32 %v5884, 4294901760
      %6280 = vmatpush1.msra.mxu0 %v6279
      %6281 = vmatprep.subr.mxu0 0.0
      %v6282 = vand.u32 %v5883, 4294901760
      %6283 = vmatpush1.msra.mxu0 %v6282
      %6284 = vmatprep.subr.mxu0 0.0
      %v6285 = vand.u32 %v5882, 4294901760
      %6286 = vmatpush1.msra.mxu0 %v6285
      %6287 = vmatprep.subr.mxu0 0.0
      %v6288 = vand.u32 %v5881, 4294901760
      %6289 = vmatpush1.msra.mxu0 %v6288
      %6290 = vmatprep.subr.mxu0 0.0
      %v6291 = vand.u32 %v5880, 4294901760
      %6292 = vmatpush1.msra.mxu0 %v6291
      %6293 = vmatprep.subr.mxu0 0.0
      %v6294 = vand.u32 %v5879, 4294901760
      %6295 = vmatpush1.msra.mxu0 %v6294
      %6296 = vmatprep.subr.mxu0 0.0
      %v6297 = vand.u32 %v5878, 4294901760
      %6298 = vmatpush1.msra.mxu0 %v6297
      %6299 = vmatprep.subr.mxu0 0.0
      %v6300 = vand.u32 %v5877, 4294901760
      %6301 = vmatpush1.msra.mxu0 %v6300
      %6302 = vmatprep.subr.mxu0 0.0
      %v6303 = vand.u32 %v5876, 4294901760
      %6304 = vmatpush1.msra.mxu0 %v6303
      %6305 = vmatprep.subr.mxu0 0.0
      %v6306 = vand.u32 %v5875, 4294901760
      %6307 = vmatpush1.msra.mxu0 %v6306
      %6308 = vmatprep.subr.mxu0 0.0
      %6309 = vmatpush2.msra.mxu0 0.0
      %6310 = vmatprep.subr.mxu0 0.0
      %6311 = vmatpush2.msra.mxu0 0.0
      %6312 = vmatprep.subr.mxu0 0.0
      %6313 = vmatpush2.msra.mxu0 0.0
      %6314 = vmatprep.subr.mxu0 0.0
      %6315 = vmatpush2.msra.mxu0 0.0
      %6316 = vmatprep.subr.mxu0 0.0
      %6317 = vmatpush2.msra.mxu0 0.0
      %6318 = vmatprep.subr.mxu0 0.0
      %6319 = vmatpush2.msra.mxu0 0.0
      %6320 = vmatprep.subr.mxu0 0.0
      %6321 = vmatpush2.msra.mxu0 0.0
      %6322 = vmatprep.subr.mxu0 0.0
      %6323 = vmatpush2.msra.mxu0 0.0
      %6324 = vmatprep.subr.mxu0 0.0
      %6325 = vmatpush2.msra.mxu0 0.0
      %6326 = vmatprep.subr.mxu0 0.0
      %6327 = vmatpush2.msra.mxu0 0.0
      %6328 = vmatprep.subr.mxu0 0.0
      %6329 = vmatpush2.msra.mxu0 0.0
      %6330 = vmatprep.subr.mxu0 0.0
      %6331 = vmatpush2.msra.mxu0 0.0
      %6332 = vmatprep.subr.mxu0 0.0
      %6333 = vmatpush2.msra.mxu0 0.0
      %6334 = vmatprep.subr.mxu0 0.0
      %6335 = vmatpush2.msra.mxu0 0.0
      %6336 = vmatprep.subr.mxu0 0.0
      %6337 = vmatpush2.msra.mxu0 0.0
      %6338 = vmatprep.subr.mxu0 0.0
      %6339 = vmatpush2.msra.mxu0 0.0
      %6340 = vmatprep.mubr.f32.mxu0 0.0
      %v6341 = vand.u32 %v4460, 4294901760
      %v6342 = vsub.f32 %v4460, %v6341
      %v6343 = vand.u32 %v6342, 4294901760
      %6344 = vmatmul.mubr.f32.gmra.mxu0 %v6343
      %v6345 = vpop.f32.mrf.mxu0
      %v6346 = vadd.f32 %v6250, %v6345
      %v6347 = vpop.f32.mrf.mxu0
      %6348 = vmatprep.mubr.f32.mxu0 0.0
      %v6349 = vand.u32 %v4466, 4294901760
      %v6350 = vsub.f32 %v4466, %v6349
      %v6351 = vand.u32 %v6350, 4294901760
      %6352 = vmatmul.mubr.f32.gmra.mxu0 %v6351
      %v6353 = vpop.f32.mrf.mxu0
      %v6354 = vadd.f32 %v6257, %v6353
      %v6355 = vpop.f32.mrf.mxu0
      %6356 = vdwg.mxu0
      %6357 = vmatprep.subr.mxu0 0.0
      %v6358 = vand.u32 %v5890, 4294901760
      %v6359 = vsub.f32 %v5890, %v6358
      %v6360 = vand.u32 %v6359, 4294901760
      %6361 = vmatpush1.msra.mxu0 %v6360
      %6362 = vmatprep.subr.mxu0 0.0
      %v6363 = vand.u32 %v5889, 4294901760
      %v6364 = vsub.f32 %v5889, %v6363
      %v6365 = vand.u32 %v6364, 4294901760
      %6366 = vmatpush1.msra.mxu0 %v6365
      %6367 = vmatprep.subr.mxu0 0.0
      %v6368 = vand.u32 %v5888, 4294901760
      %v6369 = vsub.f32 %v5888, %v6368
      %v6370 = vand.u32 %v6369, 4294901760
      %6371 = vmatpush1.msra.mxu0 %v6370
      %6372 = vmatprep.subr.mxu0 0.0
      %v6373 = vand.u32 %v5887, 4294901760
      %v6374 = vsub.f32 %v5887, %v6373
      %v6375 = vand.u32 %v6374, 4294901760
      %6376 = vmatpush1.msra.mxu0 %v6375
      %6377 = vmatprep.subr.mxu0 0.0
      %v6378 = vand.u32 %v5886, 4294901760
      %v6379 = vsub.f32 %v5886, %v6378
      %v6380 = vand.u32 %v6379, 4294901760
      %6381 = vmatpush1.msra.mxu0 %v6380
      %6382 = vmatprep.subr.mxu0 0.0
      %v6383 = vand.u32 %v5885, 4294901760
      %v6384 = vsub.f32 %v5885, %v6383
      %v6385 = vand.u32 %v6384, 4294901760
      %6386 = vmatpush1.msra.mxu0 %v6385
      %6387 = vmatprep.subr.mxu0 0.0
      %v6388 = vand.u32 %v5884, 4294901760
      %v6389 = vsub.f32 %v5884, %v6388
      %v6390 = vand.u32 %v6389, 4294901760
      %6391 = vmatpush1.msra.mxu0 %v6390
      %6392 = vmatprep.subr.mxu0 0.0
      %v6393 = vand.u32 %v5883, 4294901760
      %v6394 = vsub.f32 %v5883, %v6393
      %v6395 = vand.u32 %v6394, 4294901760
      %6396 = vmatpush1.msra.mxu0 %v6395
      %6397 = vmatprep.subr.mxu0 0.0
      %v6398 = vand.u32 %v5882, 4294901760
      %v6399 = vsub.f32 %v5882, %v6398
      %v6400 = vand.u32 %v6399, 4294901760
      %6401 = vmatpush1.msra.mxu0 %v6400
      %6402 = vmatprep.subr.mxu0 0.0
      %v6403 = vand.u32 %v5881, 4294901760
      %v6404 = vsub.f32 %v5881, %v6403
      %v6405 = vand.u32 %v6404, 4294901760
      %6406 = vmatpush1.msra.mxu0 %v6405
      %6407 = vmatprep.subr.mxu0 0.0
      %v6408 = vand.u32 %v5880, 4294901760
      %v6409 = vsub.f32 %v5880, %v6408
      %v6410 = vand.u32 %v6409, 4294901760
      %6411 = vmatpush1.msra.mxu0 %v6410
      %6412 = vmatprep.subr.mxu0 0.0
      %v6413 = vand.u32 %v5879, 4294901760
      %v6414 = vsub.f32 %v5879, %v6413
      %v6415 = vand.u32 %v6414, 4294901760
      %6416 = vmatpush1.msra.mxu0 %v6415
      %6417 = vmatprep.subr.mxu0 0.0
      %v6418 = vand.u32 %v5878, 4294901760
      %v6419 = vsub.f32 %v5878, %v6418
      %v6420 = vand.u32 %v6419, 4294901760
      %6421 = vmatpush1.msra.mxu0 %v6420
      %6422 = vmatprep.subr.mxu0 0.0
      %v6423 = vand.u32 %v5877, 4294901760
      %v6424 = vsub.f32 %v5877, %v6423
      %v6425 = vand.u32 %v6424, 4294901760
      %6426 = vmatpush1.msra.mxu0 %v6425
      %6427 = vmatprep.subr.mxu0 0.0
      %v6428 = vand.u32 %v5876, 4294901760
      %v6429 = vsub.f32 %v5876, %v6428
      %v6430 = vand.u32 %v6429, 4294901760
      %6431 = vmatpush1.msra.mxu0 %v6430
      %6432 = vmatprep.subr.mxu0 0.0
      %v6433 = vand.u32 %v5875, 4294901760
      %v6434 = vsub.f32 %v5875, %v6433
      %v6435 = vand.u32 %v6434, 4294901760
      %6436 = vmatpush1.msra.mxu0 %v6435
      %6437 = vmatprep.subr.mxu0 0.0
      %6438 = vmatpush2.msra.mxu0 0.0
      %6439 = vmatprep.subr.mxu0 0.0
      %6440 = vmatpush2.msra.mxu0 0.0
      %6441 = vmatprep.subr.mxu0 0.0
      %6442 = vmatpush2.msra.mxu0 0.0
      %6443 = vmatprep.subr.mxu0 0.0
      %6444 = vmatpush2.msra.mxu0 0.0
      %6445 = vmatprep.subr.mxu0 0.0
      %6446 = vmatpush2.msra.mxu0 0.0
      %6447 = vmatprep.subr.mxu0 0.0
      %6448 = vmatpush2.msra.mxu0 0.0
      %6449 = vmatprep.subr.mxu0 0.0
      %6450 = vmatpush2.msra.mxu0 0.0
      %6451 = vmatprep.subr.mxu0 0.0
      %6452 = vmatpush2.msra.mxu0 0.0
      %6453 = vmatprep.subr.mxu0 0.0
      %6454 = vmatpush2.msra.mxu0 0.0
      %6455 = vmatprep.subr.mxu0 0.0
      %6456 = vmatpush2.msra.mxu0 0.0
      %6457 = vmatprep.subr.mxu0 0.0
      %6458 = vmatpush2.msra.mxu0 0.0
      %6459 = vmatprep.subr.mxu0 0.0
      %6460 = vmatpush2.msra.mxu0 0.0
      %6461 = vmatprep.subr.mxu0 0.0
      %6462 = vmatpush2.msra.mxu0 0.0
      %6463 = vmatprep.subr.mxu0 0.0
      %6464 = vmatpush2.msra.mxu0 0.0
      %6465 = vmatprep.subr.mxu0 0.0
      %6466 = vmatpush2.msra.mxu0 0.0
      %6467 = vmatprep.subr.mxu0 0.0
      %6468 = vmatpush2.msra.mxu0 0.0
      %6469 = vmatprep.mubr.f32.mxu0 0.0
      %v6470 = vand.u32 %v4460, 4294901760
      %6471 = vmatmul.mubr.f32.gmra.mxu0 %v6470
      %v6472 = vpop.f32.mrf.mxu0
      %v6473 = vadd.f32 %v6346, %v6472
      %v6474 = vpop.f32.mrf.mxu0
      %6475 = vmatprep.mubr.f32.mxu0 0.0
      %v6476 = vand.u32 %v4466, 4294901760
      %6477 = vmatmul.mubr.f32.gmra.mxu0 %v6476
      %v6478 = vpop.f32.mrf.mxu0
      %v6479 = vadd.f32 %v6354, %v6478
      %v6480 = vpop.f32.mrf.mxu0
      %6481 = vdwg.mxu0
      %6482 = vmatprep.subr.mxu0 0.0
      %v6483 = vand.u32 %v5890, 4294901760
      %6484 = vmatpush1.msra.mxu0 %v6483
      %6485 = vmatprep.subr.mxu0 0.0
      %v6486 = vand.u32 %v5889, 4294901760
      %6487 = vmatpush1.msra.mxu0 %v6486
      %6488 = vmatprep.subr.mxu0 0.0
      %v6489 = vand.u32 %v5888, 4294901760
      %6490 = vmatpush1.msra.mxu0 %v6489
      %6491 = vmatprep.subr.mxu0 0.0
      %v6492 = vand.u32 %v5887, 4294901760
      %6493 = vmatpush1.msra.mxu0 %v6492
      %6494 = vmatprep.subr.mxu0 0.0
      %v6495 = vand.u32 %v5886, 4294901760
      %6496 = vmatpush1.msra.mxu0 %v6495
      %6497 = vmatprep.subr.mxu0 0.0
      %v6498 = vand.u32 %v5885, 4294901760
      %6499 = vmatpush1.msra.mxu0 %v6498
      %6500 = vmatprep.subr.mxu0 0.0
      %v6501 = vand.u32 %v5884, 4294901760
      %6502 = vmatpush1.msra.mxu0 %v6501
      %6503 = vmatprep.subr.mxu0 0.0
      %v6504 = vand.u32 %v5883, 4294901760
      %6505 = vmatpush1.msra.mxu0 %v6504
      %6506 = vmatprep.subr.mxu0 0.0
      %v6507 = vand.u32 %v5882, 4294901760
      %6508 = vmatpush1.msra.mxu0 %v6507
      %6509 = vmatprep.subr.mxu0 0.0
      %v6510 = vand.u32 %v5881, 4294901760
      %6511 = vmatpush1.msra.mxu0 %v6510
      %6512 = vmatprep.subr.mxu0 0.0
      %v6513 = vand.u32 %v5880, 4294901760
      %6514 = vmatpush1.msra.mxu0 %v6513
      %6515 = vmatprep.subr.mxu0 0.0
      %v6516 = vand.u32 %v5879, 4294901760
      %6517 = vmatpush1.msra.mxu0 %v6516
      %6518 = vmatprep.subr.mxu0 0.0
      %v6519 = vand.u32 %v5878, 4294901760
      %6520 = vmatpush1.msra.mxu0 %v6519
      %6521 = vmatprep.subr.mxu0 0.0
      %v6522 = vand.u32 %v5877, 4294901760
      %6523 = vmatpush1.msra.mxu0 %v6522
      %6524 = vmatprep.subr.mxu0 0.0
      %v6525 = vand.u32 %v5876, 4294901760
      %6526 = vmatpush1.msra.mxu0 %v6525
      %6527 = vmatprep.subr.mxu0 0.0
      %v6528 = vand.u32 %v5875, 4294901760
      %6529 = vmatpush1.msra.mxu0 %v6528
      %6530 = vmatprep.subr.mxu0 0.0
      %6531 = vmatpush2.msra.mxu0 0.0
      %6532 = vmatprep.subr.mxu0 0.0
      %6533 = vmatpush2.msra.mxu0 0.0
      %6534 = vmatprep.subr.mxu0 0.0
      %6535 = vmatpush2.msra.mxu0 0.0
      %6536 = vmatprep.subr.mxu0 0.0
      %6537 = vmatpush2.msra.mxu0 0.0
      %6538 = vmatprep.subr.mxu0 0.0
      %6539 = vmatpush2.msra.mxu0 0.0
      %6540 = vmatprep.subr.mxu0 0.0
      %6541 = vmatpush2.msra.mxu0 0.0
      %6542 = vmatprep.subr.mxu0 0.0
      %6543 = vmatpush2.msra.mxu0 0.0
      %6544 = vmatprep.subr.mxu0 0.0
      %6545 = vmatpush2.msra.mxu0 0.0
      %6546 = vmatprep.subr.mxu0 0.0
      %6547 = vmatpush2.msra.mxu0 0.0
      %6548 = vmatprep.subr.mxu0 0.0
      %6549 = vmatpush2.msra.mxu0 0.0
      %6550 = vmatprep.subr.mxu0 0.0
      %6551 = vmatpush2.msra.mxu0 0.0
      %6552 = vmatprep.subr.mxu0 0.0
      %6553 = vmatpush2.msra.mxu0 0.0
      %6554 = vmatprep.subr.mxu0 0.0
      %6555 = vmatpush2.msra.mxu0 0.0
      %6556 = vmatprep.subr.mxu0 0.0
      %6557 = vmatpush2.msra.mxu0 0.0
      %6558 = vmatprep.subr.mxu0 0.0
      %6559 = vmatpush2.msra.mxu0 0.0
      %6560 = vmatprep.subr.mxu0 0.0
      %6561 = vmatpush2.msra.mxu0 0.0
      %6562 = vmatprep.mubr.f32.mxu0 0.0
      %v6563 = vand.u32 %v4460, 4294901760
      %6564 = vmatmul.mubr.f32.gmra.mxu0 %v6563
      %v6565 = vpop.f32.mrf.mxu0
      %v6566 = vadd.f32 %v6473, %v6565
      %v6567 = vpop.f32.mrf.mxu0
      %6568 = vmatprep.mubr.f32.mxu0 0.0
      %v6569 = vand.u32 %v4466, 4294901760
      %6570 = vmatmul.mubr.f32.gmra.mxu0 %v6569
      %v6571 = vpop.f32.mrf.mxu0
      %v6572 = vadd.f32 %v6479, %v6571
      %v6573 = vpop.f32.mrf.mxu0
      %6574 = vdwg.mxu0
      %v6575 = vadd.f32 %v5872, %v6566
      %v6576 = vadd.f32 %v5873, %v6572
      %v6577 = vtanh.pop %v6575
      %v6578 = vtanh.pop %v6576
      %v6579 = vsub.f32 1.0, %v3778
      %v6580 = vsub.f32 1.0, %v3780
      %v6581 = vmul.f32 %v6579, %v240
      %v6582 = vmul.f32 %v6580, %v241
      %v6583 = vmul.f32 %v3778, %v6577
      %v6584 = vmul.f32 %v3780, %v6578
      %v6585 = vadd.f32 %v6581, %v6583
      %v6586 = vadd.f32 %v6582, %v6584
      %6587 = vst [vmem:[#allocation2] sm:$0xff] %v6585
      %6588 = vst [vmem:[#allocation2 + $0x8] sm:$0xff] %v6586
      %6589 = vst [vmem:[%s233] sm:$0xff] %v6585
      %6590 = vst [vmem:[%s233 + $0x8] sm:$0xff] %v6586
      %p6591 = scmp.lt.s32.totalorder %s19, 1
      %s6592 = scalar_select %p6591, %s19, 1
      %p6593 = scmp.lt.s32.totalorder %s20, 7
      %s6594 = scalar_select %p6593, %s20, 7
      %s6595 = smul.addr %s6594, 2
      %s6596 = smul.addr %s6592, 16
      %s6597 = sadd.s32 %s6595, %s6596
      %s6598 = smul.addr %s6597, 8
      %s6599 = scalar_lea.vmem %s4, %s6598
      // Predicated region
      $region41: #{dcgru_encoder_forward.2} parent=35 // pred_check
        %p6600 = pneg %p138
      $region42: #{dcgru_encoder_forward.2} parent=35 // pred_check_branch
        %6602 = sbr.rel (%p6600) target = $region44
      $region43: #{dcgru_encoder_forward.2} parent=35 // pred_region
        _
      $region44: #{dcgru_encoder_forward.2} parent=35 // pred_fallthru
        _
    $region36: #{dcgru_encoder_forward.2} parent=5 // pred_fallthru
      _
    %p6603 = scmp.le.s32.totalorder 2, %s10
    // Predicated region
    $region45: #{dcgru_encoder_forward.2} parent=5 // pred_check
      %p6604 = pneg %p6603
    $region46: #{dcgru_encoder_forward.2} parent=5 // pred_check_branch
      %6606 = sbr.rel (%p6604) target = $region48
    $region47: #{dcgru_encoder_forward.2} parent=5 // pred_region
      %s6607 = ssub.s32 %s10, 2
      // Predicated region
      $region49: #{dcgru_encoder_forward.2} parent=47 // pred_check
        %p6608 = pneg %p144
      $region50: #{dcgru_encoder_forward.2} parent=47 // pred_check_branch
        %6610 = sbr.rel (%p6608) target = $region52
      $region51: #{dcgru_encoder_forward.2} parent=47 // pred_region
        %p6611 = scmp.lt.s32.totalorder %s21, 1
        %s6612 = scalar_select %p6611, %s21, 1
        %p6613 = scmp.lt.s32.totalorder %s22, 7
        %s6614 = scalar_select %p6613, %s22, 7
        %s6615 = smul.addr %s6614, 2
        %s6616 = smul.addr %s6612, 16
        %s6617 = sadd.s32 %s6615, %s6616
        %s6618 = smul.addr %s6617, 8
        %s6619 = scalar_lea.vmem %s4, %s6618
      $region52: #{dcgru_encoder_forward.2} parent=47 // pred_fallthru
        _
    $region48: #{dcgru_encoder_forward.2} parent=5 // pred_fallthru
      _
  $region6: #{dcgru_encoder_forward.2} parent=0 // loop_footer
    %s14 = sadd.s32 1, %s10
  $region7: #{dcgru_encoder_forward.2} parent=0 // loop_footer_branch
    %9 = sbr.rel target = $region3
  $region8: #{dcgru_encoder_forward.2} parent=0 // loop_exit
    _

</llo_original>
